<compile_context>
chip_gen: v7x
topology: tpu7x:2x2x1
jax: 0.10.0
libtpu: 0.0.40
codegen_flags: <defaults>
</compile_context>

<pallas_src>
import numpy as np

import jax
import jax.numpy as jnp
from jax import lax
from jax.experimental import pallas as pl
from jax.experimental.pallas import tpu as pltpu

# ---------------- config (mirrors the `config` module of the torch code) ----
MAX_LENGTH = 8      # config.MAX_LENGTH
SOS_TOKEN = 0       # config.SOS_TOKEN
EOS_TOKEN = 1       # config.EOS_TOKEN

EMBED = 32
HIDDEN = 32
HALF = HIDDEN // 2
VOCAB = 16          # output_lang.size()
NLOGIT = VOCAB + MAX_LENGTH   # joint generate+copy logits width


def _vmem():
    return pl.BlockSpec(memory_space=pltpu.MemorySpace.VMEM)


def _smem():
    return pl.BlockSpec(memory_space=pltpu.MemorySpace.SMEM)


# ====================== fused ActorCopy forward kernel ======================
def actor_copy_kernel(len_ref, xemb_ref, tok_ref, cmask_ref, al_ref, gum_ref,
                      emb_ref, ewih_ref, ewhh_ref, eb_ref,
                      aw_ref, ab_ref, dw_ref, db_ref,
                      gw_ref, gb_ref, cw_ref, cb_ref,
                      states_ref, step_ref, enc_ref):
    E, H, V, L, VL = EMBED, HIDDEN, VOCAB, MAX_LENGTH, NLOGIT
    f32 = jnp.float32
    sigmoid = jax.nn.sigmoid

    len_x = len_ref[0]                                     # SMEM scalar

    # ---------------- fused bidirectional encoder (masked recurrence) -------
    # Both directions as ONE width-H cell (gate-major W_ih, block-diag W_hh).
    # Input projection batched over all tokens: one [L,E]@[E,4H] matmul.
    xg = (jnp.dot(xemb_ref[...], ewih_ref[...], preferred_element_type=f32)
          + eb_ref[...])                                   # [L, 4H]
    ewhh = ewhh_ref[...]
    hc = jnp.zeros((1, H), f32)
    cc = jnp.zeros((1, H), f32)
    for ei in range(L):
        g = xg[ei:ei + 1, :] + jnp.dot(hc, ewhh, preferred_element_type=f32)
        gi = sigmoid(g[:, 0:H])
        gf = sigmoid(g[:, H:2 * H])
        gg = jnp.tanh(g[:, 2 * H:3 * H])
        go = sigmoid(g[:, 3 * H:4 * H])
        cc_new = gf * cc + gi * gg
        hc_new = go * jnp.tanh(cc_new)
        m = (ei < len_x).astype(f32)                       # valid-token mask
        enc_ref[ei:ei + 1, :] = hc_new * m                 # encoder_outputs[ei]
        hc = hc_new * m + hc * (1.0 - m)
        cc = cc_new * m + cc * (1.0 - m)
    enc = enc_ref[...]                                     # [L, H]

    zpad = jnp.zeros((1, 128 - H), f32)
    states_ref[0:1, :] = jnp.concatenate([hc, zpad], axis=1)   # states[0]

    # ---------------- decode-invariant pieces hoisted out of the loop -------
    score_c = jnp.tanh(jnp.dot(enc, cw_ref[...], preferred_element_type=f32)
                       + cb_ref[...])                      # [L, H]
    score_cT = jnp.transpose(score_c)                      # one-time transpose
    wgc = jnp.concatenate([gw_ref[...], score_cT], axis=1)     # [H, V+L]
    bgc = jnp.concatenate([gb_ref[...], jnp.zeros((1, L), f32)], axis=1)
    al_all = al_ref[...]                                   # [1, V+L] allowed mask
    aw = aw_ref[...]
    ab = ab_ref[...]
    dw = dw_ref[...]                                       # [128, 4H] fused
    db = db_ref[...]
    emb = emb_ref[...]
    tok = tok_ref[...]
    cmask = cmask_ref[...]
    gum = gum_ref[...]                                     # [L, V+L] Gumbel noise

    iota_v = lax.broadcasted_iota(jnp.int32, (1, V), 1).astype(f32)
    iota_l = lax.broadcasted_iota(jnp.int32, (1, L), 1).astype(f32)
    iota_vl = lax.broadcasted_iota(jnp.int32, (1, VL), 1).astype(f32)
    iota_o = lax.broadcasted_iota(jnp.int32, (1, 128), 1)

    h = hc                                                 # decoder hidden init
    c = cc
    x = emb[SOS_TOKEN:SOS_TOKEN + 1, :]                    # decoder_input = emb[SOS]
    prev_action = jnp.zeros((1, 1), f32)                   # unused at t == 0
    prev_pc = jnp.zeros((1, L), f32)
    zero_h = jnp.zeros((1, H), f32)

    # ---------------- fused decode loop (unrolled over MAX_LENGTH) ----------
    for t in range(L):
        if t == 0:
            # prev_word is None -> zero reads
            sel = zero_h
            att = zero_h
        else:
            # attentive read = softmax(attn(cat([x, h]))) @ encoder_outputs
            alog = (jnp.dot(jnp.concatenate([x, h], axis=1), aw,
                            preferred_element_type=f32) + ab)       # [1, L]
            am = jnp.max(alog, axis=1, keepdims=True)
            ae = jnp.exp(alog - am)
            asm = ae / jnp.sum(ae, axis=1, keepdims=True)
            att = jnp.dot(asm, enc, preferred_element_type=f32)     # [1, H]
            # selective read = normalized masked prev copy-probs @ enc
            neq = (tok != prev_action).astype(f32)
            pcm = prev_pc * cmask * neq
            ssum = jnp.sum(pcm, axis=1, keepdims=True)
            inv = jnp.where(ssum > 0.0, 1.0 / jnp.maximum(ssum, 1e-30), 1.0)
            sel = jnp.dot(pcm * inv, enc, preferred_element_type=f32)

        # decoder LSTM cell: input cat([x, sel, att]) and hidden h fused into
        # one [1,128]@[128,4H] MXU matmul.
        zin = jnp.concatenate([x, sel, att, h], axis=1)              # [1, 128]
        gates = jnp.dot(zin, dw, preferred_element_type=f32) + db    # [1, 4H]
        gi = sigmoid(gates[:, 0:H])
        gf = sigmoid(gates[:, H:2 * H])
        gg = jnp.tanh(gates[:, 2 * H:3 * H])
        go = sigmoid(gates[:, 3 * H:4 * H])
        c = gf * c + gi * gg
        h = go * jnp.tanh(c)
        states_ref[t + 1:t + 2, :] = jnp.concatenate([h, zpad], axis=1)

        # joint generate+copy logits in ONE matmul + one softmax
        logits = jnp.dot(h, wgc, preferred_element_type=f32) + bgc   # [1, V+L]
        lm = jnp.max(logits, axis=1, keepdims=True)
        le = jnp.exp(logits - lm)
        p = le / jnp.sum(le, axis=1, keepdims=True)                  # probs
        dist = p * al_all                                            # masked

        # ---- categorical sampling: Gumbel-max over the masked weights ------
        sc = jnp.where(dist > 0.0,
                       jnp.log(jnp.maximum(dist, 1e-30)), -1e30) + gum[t:t + 1, :]
        ms = jnp.max(sc, axis=1, keepdims=True)
        idx_f = jnp.min(jnp.where(sc >= ms, iota_vl, float(VL)),
                        axis=1, keepdims=True)                       # argmax idx
        is_copy = idx_f >= float(V)
        ic_f = idx_f - float(V)                                      # copy pos
        copy_word = jnp.sum(jnp.where(iota_l == ic_f, tok, 0.0),
                            axis=1, keepdims=True)
        action_f = jnp.where(is_copy, copy_word, idx_f)              # word id
        p_sel = jnp.sum(jnp.where(iota_vl == idx_f, dist, 0.0),
                        axis=1, keepdims=True)
        p_x = jnp.sum(jnp.where(iota_v == action_f, dist[:, 0:V], 0.0),
                      axis=1, keepdims=True)
        prob = jnp.where(is_copy, p_sel + p_x, p_sel)

        # pack per-step scalars into one lane-dense 128-wide row
        row = (jnp.where(iota_o == 0, action_f, 0.0)
               + jnp.where(iota_o == 1, prob, 0.0)
               + jnp.where(iota_o == 2, idx_f, 0.0)
               + jnp.where(iota_o == 3, is_copy.astype(f32), 0.0))
        step_ref[t:t + 1, :] = row

        # carries for next step
        prev_action = action_f
        prev_pc = p[:, V:VL]                     # unmasked copy-part probs
        onehot = (iota_v == action_f).astype(f32)
        x = jnp.dot(onehot, emb, preferred_element_type=f32)   # emb[action]


# ==================== host-side weight re-layout helpers ====================
def _gate_major(wf, wb):
    """[in,4*HALF] x2 -> [in,4*HIDDEN] with per-gate [fwd|bwd] column blocks."""
    parts = []
    for g in range(4):
        parts.append(wf[:, g * HALF:(g + 1) * HALF])
        parts.append(wb[:, g * HALF:(g + 1) * HALF])
    return jnp.concatenate(parts, axis=1)


def _block_diag_whh(wf, wb):
    """[HALF,4*HALF] x2 -> block-diagonal [HIDDEN,4*HIDDEN] (gate-major)."""
    zer = jnp.zeros((HALF, HALF), jnp.float32)
    top, bot = [], []
    for g in range(4):
        top += [wf[:, g * HALF:(g + 1) * HALF], zer]
        bot += [zer, wb[:, g * HALF:(g + 1) * HALF]]
    return jnp.concatenate([jnp.concatenate(top, axis=1),
                            jnp.concatenate(bot, axis=1)], axis=0)


@jax.jit
def _actor_copy_device(params, key, len_arr, x_pad, tok_row, cmask, al_all):
    p = params
    xemb = p["embedding"][x_pad]                              # [L, E]
    gum = jax.random.gumbel(key, (MAX_LENGTH, NLOGIT), dtype=jnp.float32)
    enc_wih = _gate_major(p["enc_f_wih"], p["enc_b_wih"])
    enc_b = _gate_major(p["enc_f_b"], p["enc_b_b"])
    enc_whh = _block_diag_whh(p["enc_f_whh"], p["enc_b_whh"])
    dw_all = jnp.concatenate([p["dec_wih"], p["dec_whh"]], axis=0)   # [128, 4H]
    return pl.pallas_call(
        actor_copy_kernel,
        out_shape=(jax.ShapeDtypeStruct((MAX_LENGTH + 1, 128), jnp.float32),
                   jax.ShapeDtypeStruct((MAX_LENGTH, 128), jnp.float32),
                   jax.ShapeDtypeStruct((MAX_LENGTH, HIDDEN), jnp.float32)),
        in_specs=[_smem()] + [_vmem()] * 17,
        out_specs=(_vmem(), _vmem(), _vmem()),
    )(len_arr, xemb, tok_row, cmask, al_all, gum, p["embedding"],
      enc_wih, enc_whh, enc_b,
      p["attn_w"], p["attn_b"], dw_all, p["dec_b"],
      p["gen_w"], p["gen_b"], p["copy_w"], p["copy_b"])


# ============================ parameter init ================================
def init_params(key):
    ks = jax.random.split(key, 16)

    def w(k, shape, scale=0.1):
        return (scale * jax.random.normal(k, shape)).astype(jnp.float32)

    p = {}
    p["embedding"] = w(ks[0], (VOCAB, EMBED))
    # EncoderBiRNN: bidirectional LSTM, hidden_size // 2 per direction
    p["enc_f_wih"] = w(ks[1], (EMBED, 4 * HALF))
    p["enc_f_whh"] = w(ks[2], (HALF, 4 * HALF))
    p["enc_f_b"] = w(ks[3], (1, 4 * HALF))
    p["enc_b_wih"] = w(ks[4], (EMBED, 4 * HALF))
    p["enc_b_whh"] = w(ks[5], (HALF, 4 * HALF))
    p["enc_b_b"] = w(ks[6], (1, 4 * HALF))
    # CopyDecoder
    p["attn_w"] = w(ks[7], (2 * HIDDEN, MAX_LENGTH))
    p["attn_b"] = w(ks[8], (1, MAX_LENGTH))
    p["dec_wih"] = w(ks[9], (EMBED + 2 * HIDDEN, 4 * HIDDEN))
    p["dec_whh"] = w(ks[10], (HIDDEN, 4 * HIDDEN))
    p["dec_b"] = w(ks[11], (1, 4 * HIDDEN))
    p["gen_w"] = w(ks[12], (HIDDEN, VOCAB))
    p["gen_b"] = w(ks[13], (1, VOCAB))
    p["copy_w"] = w(ks[14], (HIDDEN, HIDDEN))
    p["copy_b"] = w(ks[15], (1, HIDDEN))
    # attn_combine exists in the torch module but is never used in forward().
    return p


# ============================== forward pass ================================
def actor_copy_forward(params, x_tokens, allowed_actions, key):
    """x_tokens: python list of int token ids (output_lang.word_to_index is
    the identity, output_lang.index2word[i] == i)."""
    len_x = len(x_tokens)
    assert 2 <= len_x <= MAX_LENGTH
    V, L = VOCAB, MAX_LENGTH

    x_pad = np.zeros((L,), np.int32)
    x_pad[:len_x] = np.asarray(x_tokens, np.int32)

    tok_row = np.full((1, L), -1.0, np.float32)
    tok_row[0, :len_x] = np.asarray(x_tokens, np.float32)

    # unused_words base mask: unused[0]=0, unused[len-1:]=0
    cmask = np.ones((1, L), np.float32)
    cmask[0, 0] = 0.0
    cmask[0, len_x - 1:] = 0.0

    allowed = np.zeros((NLOGIT,), np.float32)
    allowed[list(allowed_actions)] = 1.0
    allowed[V + 1:V + len_x - 1] = 1.0
    al_all = jnp.asarray(allowed[None, :])

    len_arr = jnp.asarray([len_x], jnp.int32)

    states_dev, step_dev, _enc = _actor_copy_device(
        params, key, len_arr, jnp.asarray(x_pad),
        jnp.asarray(tok_row), jnp.asarray(cmask), al_all)

    # Single device->host sync for the whole forward.
    step_host = np.asarray(step_dev)

    states = [states_dev[0:1, :HIDDEN]]
    actions, probs = [], []
    for t in range(L):
        action = int(round(float(step_host[t, 0])))
        states.append(states_dev[t + 1:t + 2, :HIDDEN])
        actions.append(action)
        probs.append(float(step_host[t, 1]))
        # TODO(synk): data-dependent EOS break + Python-list outputs stay
        # host-side (steps after EOS are computed in-kernel but discarded).
        if action == EOS_TOKEN:
            break
    return states, actions, probs


# ================================= main =====================================
if __name__ == "__main__":
    key = jax.random.PRNGKey(0)
    pkey, s1, s2 = jax.random.split(key, 3)
    params = init_params(pkey)

    # input sentence (token ids), ending in EOS; length <= MAX_LENGTH
    x_tokens = [2, 5, 7, 9, 3, 1]
    allowed_actions = [1, 3, 5, 7]
    states, actions, probs = actor_copy_forward(params, x_tokens,
                                                allowed_actions, s1)
    jax.block_until_ready(states[-1])

    # different length -> no recompile (len_x is a kernel SMEM scalar)
    x_tokens2 = [4, 6, 8, 1]
    states2, actions2, probs2 = actor_copy_forward(params, x_tokens2,
                                                   allowed_actions, s2)
    jax.block_until_ready(states2[-1])

    print("KERNEL_OK")
</pallas_src>

<mosaic_0001>
module attributes {stable_mosaic.version = 11 : i64} {
  func.func @actor_copy_kernel(%arg0: memref<1xi32, #tpu.memory_space<smem>>, %arg1: memref<8x32xf32, #tpu.memory_space<vmem>>, %arg2: memref<1x8xf32, #tpu.memory_space<vmem>>, %arg3: memref<1x8xf32, #tpu.memory_space<vmem>>, %arg4: memref<1x24xf32, #tpu.memory_space<vmem>>, %arg5: memref<8x24xf32, #tpu.memory_space<vmem>>, %arg6: memref<16x32xf32, #tpu.memory_space<vmem>>, %arg7: memref<32x128xf32, #tpu.memory_space<vmem>>, %arg8: memref<32x128xf32, #tpu.memory_space<vmem>>, %arg9: memref<1x128xf32, #tpu.memory_space<vmem>>, %arg10: memref<64x8xf32, #tpu.memory_space<vmem>>, %arg11: memref<1x8xf32, #tpu.memory_space<vmem>>, %arg12: memref<128x128xf32, #tpu.memory_space<vmem>>, %arg13: memref<1x128xf32, #tpu.memory_space<vmem>>, %arg14: memref<32x16xf32, #tpu.memory_space<vmem>>, %arg15: memref<1x16xf32, #tpu.memory_space<vmem>>, %arg16: memref<32x32xf32, #tpu.memory_space<vmem>>, %arg17: memref<1x32xf32, #tpu.memory_space<vmem>>, %arg18: memref<9x128xf32, #tpu.memory_space<vmem>>, %arg19: memref<8x128xf32, #tpu.memory_space<vmem>>, %arg20: memref<8x32xf32, #tpu.memory_space<vmem>>) attributes {dimension_semantics = [], scalar_prefetch = 0 : i64, scratch_operands = 0 : i64, tpu.core_type = #tpu.core_type<tc>} {
    %c0 = arith.constant 0 : index
    %0 = memref.load %arg0[%c0] : memref<1xi32, #tpu.memory_space<smem>>
    %c0_0 = arith.constant 0 : index
    %c0_1 = arith.constant 0 : index
    %1 = vector.load %arg1[%c0_0, %c0_1] : memref<8x32xf32, #tpu.memory_space<vmem>>, vector<8x32xf32>
    %c0_2 = arith.constant 0 : index
    %c0_3 = arith.constant 0 : index
    %2 = vector.load %arg7[%c0_2, %c0_3] : memref<32x128xf32, #tpu.memory_space<vmem>>, vector<32x128xf32>
    %cst = arith.constant dense<0.000000e+00> : vector<8x128xf32>
    %3 = tpu.matmul %1, %2, %cst {dimension_numbers = #tpu.dot_dimension_numbers<[1], [0], [0], [1], [0, 0, 1, 1], [], []>} : vector<8x32xf32>, vector<32x128xf32>, vector<8x128xf32> -> vector<8x128xf32>
    %c0_4 = arith.constant 0 : index
    %c0_5 = arith.constant 0 : index
    %4 = vector.load %arg9[%c0_4, %c0_5] : memref<1x128xf32, #tpu.memory_space<vmem>>, vector<1x128xf32>
    %5 = vector.broadcast %4 : vector<1x128xf32> to vector<8x128xf32>
    %6 = arith.addf %3, %5 : vector<8x128xf32>
    %c0_6 = arith.constant 0 : index
    %c0_7 = arith.constant 0 : index
    %7 = vector.load %arg8[%c0_6, %c0_7] : memref<32x128xf32, #tpu.memory_space<vmem>>, vector<32x128xf32>
    %cst_8 = arith.constant 0.000000e+00 : f32
    %8 = vector.broadcast %cst_8 : f32 to vector<1x32xf32>
    %cst_9 = arith.constant 0.000000e+00 : f32
    %9 = vector.broadcast %cst_9 : f32 to vector<1x32xf32>
    %10 = vector.extract_strided_slice %6 {offsets = [0, 0], sizes = [1, 128], strides = [1, 1]} : vector<8x128xf32> to vector<1x128xf32>
    %cst_10 = arith.constant dense<0.000000e+00> : vector<1x128xf32>
    %11 = tpu.matmul %8, %7, %cst_10 {dimension_numbers = #tpu.dot_dimension_numbers<[1], [0], [0], [1], [0, 0, 1, 1], [], []>} : vector<1x32xf32>, vector<32x128xf32>, vector<1x128xf32> -> vector<1x128xf32>
    %12 = arith.addf %10, %11 : vector<1x128xf32>
    %13 = vector.extract_strided_slice %12 {offsets = [0, 0], sizes = [1, 32], strides = [1, 1]} : vector<1x128xf32> to vector<1x32xf32>
    %14 = arith.negf %13 : vector<1x32xf32>
    %15 = math.exp %14 : vector<1x32xf32>
    %cst_11 = arith.constant 1.000000e+00 : f32
    %16 = vector.broadcast %cst_11 : f32 to vector<1x32xf32>
    %17 = arith.addf %16, %15 : vector<1x32xf32>
    %18 = arith.divf %16, %17 : vector<1x32xf32>
    %19 = vector.extract_strided_slice %12 {offsets = [0, 32], sizes = [1, 32], strides = [1, 1]} : vector<1x128xf32> to vector<1x32xf32>
    %20 = arith.negf %19 : vector<1x32xf32>
    %21 = math.exp %20 : vector<1x32xf32>
    %cst_12 = arith.constant 1.000000e+00 : f32
    %22 = vector.broadcast %cst_12 : f32 to vector<1x32xf32>
    %23 = arith.addf %22, %21 : vector<1x32xf32>
    %24 = arith.divf %22, %23 : vector<1x32xf32>
    %25 = vector.extract_strided_slice %12 {offsets = [0, 64], sizes = [1, 32], strides = [1, 1]} : vector<1x128xf32> to vector<1x32xf32>
    %26 = math.tanh %25 : vector<1x32xf32>
    %27 = vector.extract_strided_slice %12 {offsets = [0, 96], sizes = [1, 32], strides = [1, 1]} : vector<1x128xf32> to vector<1x32xf32>
    %28 = arith.negf %27 : vector<1x32xf32>
    %29 = math.exp %28 : vector<1x32xf32>
    %cst_13 = arith.constant 1.000000e+00 : f32
    %30 = vector.broadcast %cst_13 : f32 to vector<1x32xf32>
    %31 = arith.addf %30, %29 : vector<1x32xf32>
    %32 = arith.divf %30, %31 : vector<1x32xf32>
    %33 = arith.mulf %24, %9 : vector<1x32xf32>
    %34 = arith.mulf %18, %26 : vector<1x32xf32>
    %35 = arith.addf %33, %34 : vector<1x32xf32>
    %36 = math.tanh %35 : vector<1x32xf32>
    %37 = arith.mulf %32, %36 : vector<1x32xf32>
    %c0_i32 = arith.constant 0 : i32
    %38 = arith.cmpi sgt, %0, %c0_i32 : i32
    %39 = arith.extui %38 : i1 to i32
    %40 = arith.sitofp %39 : i32 to f32
    %41 = vector.broadcast %40 : f32 to vector<1x32xf32>
    %42 = arith.mulf %37, %41 : vector<1x32xf32>
    %c0_14 = arith.constant 0 : index
    %c0_15 = arith.constant 0 : index
    %43 = vector.load %arg20[%c0_14, %c0_15] : memref<8x32xf32, #tpu.memory_space<vmem>>, vector<1x32xf32>
    tpu.vector_store %arg20[%c0_14, %c0_15], %42 {strides = array<i32>} : memref<8x32xf32, #tpu.memory_space<vmem>>, vector<1x32xf32>,
    %44 = vector.broadcast %40 : f32 to vector<1x32xf32>
    %45 = arith.mulf %37, %44 : vector<1x32xf32>
    %cst_16 = arith.constant 1.000000e+00 : f32
    %46 = arith.subf %cst_16, %40 : f32
    %47 = vector.broadcast %46 : f32 to vector<1x32xf32>
    %48 = arith.mulf %8, %47 : vector<1x32xf32>
    %49 = arith.addf %45, %48 : vector<1x32xf32>
    %50 = vector.broadcast %40 : f32 to vector<1x32xf32>
    %51 = arith.mulf %35, %50 : vector<1x32xf32>
    %cst_17 = arith.constant 1.000000e+00 : f32
    %52 = arith.subf %cst_17, %40 : f32
    %53 = vector.broadcast %52 : f32 to vector<1x32xf32>
    %54 = arith.mulf %9, %53 : vector<1x32xf32>
    %55 = arith.addf %51, %54 : vector<1x32xf32>
    %56 = vector.extract_strided_slice %6 {offsets = [1, 0], sizes = [1, 128], strides = [1, 1]} : vector<8x128xf32> to vector<1x128xf32>
    %cst_18 = arith.constant dense<0.000000e+00> : vector<1x128xf32>
    %57 = tpu.matmul %49, %7, %cst_18 {dimension_numbers = #tpu.dot_dimension_numbers<[1], [0], [0], [1], [0, 0, 1, 1], [], []>} : vector<1x32xf32>, vector<32x128xf32>, vector<1x128xf32> -> vector<1x128xf32>
    %58 = arith.addf %56, %57 : vector<1x128xf32>
    %59 = vector.extract_strided_slice %58 {offsets = [0, 0], sizes = [1, 32], strides = [1, 1]} : vector<1x128xf32> to vector<1x32xf32>
    %60 = arith.negf %59 : vector<1x32xf32>
    %61 = math.exp %60 : vector<1x32xf32>
    %cst_19 = arith.constant 1.000000e+00 : f32
    %62 = vector.broadcast %cst_19 : f32 to vector<1x32xf32>
    %63 = arith.addf %62, %61 : vector<1x32xf32>
    %64 = arith.divf %62, %63 : vector<1x32xf32>
    %65 = vector.extract_strided_slice %58 {offsets = [0, 32], sizes = [1, 32], strides = [1, 1]} : vector<1x128xf32> to vector<1x32xf32>
    %66 = arith.negf %65 : vector<1x32xf32>
    %67 = math.exp %66 : vector<1x32xf32>
    %cst_20 = arith.constant 1.000000e+00 : f32
    %68 = vector.broadcast %cst_20 : f32 to vector<1x32xf32>
    %69 = arith.addf %68, %67 : vector<1x32xf32>
    %70 = arith.divf %68, %69 : vector<1x32xf32>
    %71 = vector.extract_strided_slice %58 {offsets = [0, 64], sizes = [1, 32], strides = [1, 1]} : vector<1x128xf32> to vector<1x32xf32>
    %72 = math.tanh %71 : vector<1x32xf32>
    %73 = vector.extract_strided_slice %58 {offsets = [0, 96], sizes = [1, 32], strides = [1, 1]} : vector<1x128xf32> to vector<1x32xf32>
    %74 = arith.negf %73 : vector<1x32xf32>
    %75 = math.exp %74 : vector<1x32xf32>
    %cst_21 = arith.constant 1.000000e+00 : f32
    %76 = vector.broadcast %cst_21 : f32 to vector<1x32xf32>
    %77 = arith.addf %76, %75 : vector<1x32xf32>
    %78 = arith.divf %76, %77 : vector<1x32xf32>
    %79 = arith.mulf %70, %55 : vector<1x32xf32>
    %80 = arith.mulf %64, %72 : vector<1x32xf32>
    %81 = arith.addf %79, %80 : vector<1x32xf32>
    %82 = math.tanh %81 : vector<1x32xf32>
    %83 = arith.mulf %78, %82 : vector<1x32xf32>
    %c1_i32 = arith.constant 1 : i32
    %84 = arith.cmpi sgt, %0, %c1_i32 : i32
    %85 = arith.extui %84 : i1 to i32
    %86 = arith.sitofp %85 : i32 to f32
    %87 = vector.broadcast %86 : f32 to vector<1x32xf32>
    %88 = arith.mulf %83, %87 : vector<1x32xf32>
    %c1 = arith.constant 1 : index
    %c0_22 = arith.constant 0 : index
    %89 = vector.load %arg20[%c1, %c0_22] : memref<8x32xf32, #tpu.memory_space<vmem>>, vector<1x32xf32>
    tpu.vector_store %arg20[%c1, %c0_22], %88 {strides = array<i32>} : memref<8x32xf32, #tpu.memory_space<vmem>>, vector<1x32xf32>,
    %90 = vector.broadcast %86 : f32 to vector<1x32xf32>
    %91 = arith.mulf %83, %90 : vector<1x32xf32>
    %cst_23 = arith.constant 1.000000e+00 : f32
    %92 = arith.subf %cst_23, %86 : f32
    %93 = vector.broadcast %92 : f32 to vector<1x32xf32>
    %94 = arith.mulf %49, %93 : vector<1x32xf32>
    %95 = arith.addf %91, %94 : vector<1x32xf32>
    %96 = vector.broadcast %86 : f32 to vector<1x32xf32>
    %97 = arith.mulf %81, %96 : vector<1x32xf32>
    %cst_24 = arith.constant 1.000000e+00 : f32
    %98 = arith.subf %cst_24, %86 : f32
    %99 = vector.broadcast %98 : f32 to vector<1x32xf32>
    %100 = arith.mulf %55, %99 : vector<1x32xf32>
    %101 = arith.addf %97, %100 : vector<1x32xf32>
    %102 = vector.extract_strided_slice %6 {offsets = [2, 0], sizes = [1, 128], strides = [1, 1]} : vector<8x128xf32> to vector<1x128xf32>
    %cst_25 = arith.constant dense<0.000000e+00> : vector<1x128xf32>
    %103 = tpu.matmul %95, %7, %cst_25 {dimension_numbers = #tpu.dot_dimension_numbers<[1], [0], [0], [1], [0, 0, 1, 1], [], []>} : vector<1x32xf32>, vector<32x128xf32>, vector<1x128xf32> -> vector<1x128xf32>
    %104 = arith.addf %102, %103 : vector<1x128xf32>
    %105 = vector.extract_strided_slice %104 {offsets = [0, 0], sizes = [1, 32], strides = [1, 1]} : vector<1x128xf32> to vector<1x32xf32>
    %106 = arith.negf %105 : vector<1x32xf32>
    %107 = math.exp %106 : vector<1x32xf32>
    %cst_26 = arith.constant 1.000000e+00 : f32
    %108 = vector.broadcast %cst_26 : f32 to vector<1x32xf32>
    %109 = arith.addf %108, %107 : vector<1x32xf32>
    %110 = arith.divf %108, %109 : vector<1x32xf32>
    %111 = vector.extract_strided_slice %104 {offsets = [0, 32], sizes = [1, 32], strides = [1, 1]} : vector<1x128xf32> to vector<1x32xf32>
    %112 = arith.negf %111 : vector<1x32xf32>
    %113 = math.exp %112 : vector<1x32xf32>
    %cst_27 = arith.constant 1.000000e+00 : f32
    %114 = vector.broadcast %cst_27 : f32 to vector<1x32xf32>
    %115 = arith.addf %114, %113 : vector<1x32xf32>
    %116 = arith.divf %114, %115 : vector<1x32xf32>
    %117 = vector.extract_strided_slice %104 {offsets = [0, 64], sizes = [1, 32], strides = [1, 1]} : vector<1x128xf32> to vector<1x32xf32>
    %118 = math.tanh %117 : vector<1x32xf32>
    %119 = vector.extract_strided_slice %104 {offsets = [0, 96], sizes = [1, 32], strides = [1, 1]} : vector<1x128xf32> to vector<1x32xf32>
    %120 = arith.negf %119 : vector<1x32xf32>
    %121 = math.exp %120 : vector<1x32xf32>
    %cst_28 = arith.constant 1.000000e+00 : f32
    %122 = vector.broadcast %cst_28 : f32 to vector<1x32xf32>
    %123 = arith.addf %122, %121 : vector<1x32xf32>
    %124 = arith.divf %122, %123 : vector<1x32xf32>
    %125 = arith.mulf %116, %101 : vector<1x32xf32>
    %126 = arith.mulf %110, %118 : vector<1x32xf32>
    %127 = arith.addf %125, %126 : vector<1x32xf32>
    %128 = math.tanh %127 : vector<1x32xf32>
    %129 = arith.mulf %124, %128 : vector<1x32xf32>
    %c2_i32 = arith.constant 2 : i32
    %130 = arith.cmpi sgt, %0, %c2_i32 : i32
    %131 = arith.extui %130 : i1 to i32
    %132 = arith.sitofp %131 : i32 to f32
    %133 = vector.broadcast %132 : f32 to vector<1x32xf32>
    %134 = arith.mulf %129, %133 : vector<1x32xf32>
    %c2 = arith.constant 2 : index
    %c0_29 = arith.constant 0 : index
    %135 = vector.load %arg20[%c2, %c0_29] : memref<8x32xf32, #tpu.memory_space<vmem>>, vector<1x32xf32>
    tpu.vector_store %arg20[%c2, %c0_29], %134 {strides = array<i32>} : memref<8x32xf32, #tpu.memory_space<vmem>>, vector<1x32xf32>,
    %136 = vector.broadcast %132 : f32 to vector<1x32xf32>
    %137 = arith.mulf %129, %136 : vector<1x32xf32>
    %cst_30 = arith.constant 1.000000e+00 : f32
    %138 = arith.subf %cst_30, %132 : f32
    %139 = vector.broadcast %138 : f32 to vector<1x32xf32>
    %140 = arith.mulf %95, %139 : vector<1x32xf32>
    %141 = arith.addf %137, %140 : vector<1x32xf32>
    %142 = vector.broadcast %132 : f32 to vector<1x32xf32>
    %143 = arith.mulf %127, %142 : vector<1x32xf32>
    %cst_31 = arith.constant 1.000000e+00 : f32
    %144 = arith.subf %cst_31, %132 : f32
    %145 = vector.broadcast %144 : f32 to vector<1x32xf32>
    %146 = arith.mulf %101, %145 : vector<1x32xf32>
    %147 = arith.addf %143, %146 : vector<1x32xf32>
    %148 = vector.extract_strided_slice %6 {offsets = [3, 0], sizes = [1, 128], strides = [1, 1]} : vector<8x128xf32> to vector<1x128xf32>
    %cst_32 = arith.constant dense<0.000000e+00> : vector<1x128xf32>
    %149 = tpu.matmul %141, %7, %cst_32 {dimension_numbers = #tpu.dot_dimension_numbers<[1], [0], [0], [1], [0, 0, 1, 1], [], []>} : vector<1x32xf32>, vector<32x128xf32>, vector<1x128xf32> -> vector<1x128xf32>
    %150 = arith.addf %148, %149 : vector<1x128xf32>
    %151 = vector.extract_strided_slice %150 {offsets = [0, 0], sizes = [1, 32], strides = [1, 1]} : vector<1x128xf32> to vector<1x32xf32>
    %152 = arith.negf %151 : vector<1x32xf32>
    %153 = math.exp %152 : vector<1x32xf32>
    %cst_33 = arith.constant 1.000000e+00 : f32
    %154 = vector.broadcast %cst_33 : f32 to vector<1x32xf32>
    %155 = arith.addf %154, %153 : vector<1x32xf32>
    %156 = arith.divf %154, %155 : vector<1x32xf32>
    %157 = vector.extract_strided_slice %150 {offsets = [0, 32], sizes = [1, 32], strides = [1, 1]} : vector<1x128xf32> to vector<1x32xf32>
    %158 = arith.negf %157 : vector<1x32xf32>
    %159 = math.exp %158 : vector<1x32xf32>
    %cst_34 = arith.constant 1.000000e+00 : f32
    %160 = vector.broadcast %cst_34 : f32 to vector<1x32xf32>
    %161 = arith.addf %160, %159 : vector<1x32xf32>
    %162 = arith.divf %160, %161 : vector<1x32xf32>
    %163 = vector.extract_strided_slice %150 {offsets = [0, 64], sizes = [1, 32], strides = [1, 1]} : vector<1x128xf32> to vector<1x32xf32>
    %164 = math.tanh %163 : vector<1x32xf32>
    %165 = vector.extract_strided_slice %150 {offsets = [0, 96], sizes = [1, 32], strides = [1, 1]} : vector<1x128xf32> to vector<1x32xf32>
    %166 = arith.negf %165 : vector<1x32xf32>
    %167 = math.exp %166 : vector<1x32xf32>
    %cst_35 = arith.constant 1.000000e+00 : f32
    %168 = vector.broadcast %cst_35 : f32 to vector<1x32xf32>
    %169 = arith.addf %168, %167 : vector<1x32xf32>
    %170 = arith.divf %168, %169 : vector<1x32xf32>
    %171 = arith.mulf %162, %147 : vector<1x32xf32>
    %172 = arith.mulf %156, %164 : vector<1x32xf32>
    %173 = arith.addf %171, %172 : vector<1x32xf32>
    %174 = math.tanh %173 : vector<1x32xf32>
    %175 = arith.mulf %170, %174 : vector<1x32xf32>
    %c3_i32 = arith.constant 3 : i32
    %176 = arith.cmpi sgt, %0, %c3_i32 : i32
    %177 = arith.extui %176 : i1 to i32
    %178 = arith.sitofp %177 : i32 to f32
    %179 = vector.broadcast %178 : f32 to vector<1x32xf32>
    %180 = arith.mulf %175, %179 : vector<1x32xf32>
    %c3 = arith.constant 3 : index
    %c0_36 = arith.constant 0 : index
    %181 = vector.load %arg20[%c3, %c0_36] : memref<8x32xf32, #tpu.memory_space<vmem>>, vector<1x32xf32>
    tpu.vector_store %arg20[%c3, %c0_36], %180 {strides = array<i32>} : memref<8x32xf32, #tpu.memory_space<vmem>>, vector<1x32xf32>,
    %182 = vector.broadcast %178 : f32 to vector<1x32xf32>
    %183 = arith.mulf %175, %182 : vector<1x32xf32>
    %cst_37 = arith.constant 1.000000e+00 : f32
    %184 = arith.subf %cst_37, %178 : f32
    %185 = vector.broadcast %184 : f32 to vector<1x32xf32>
    %186 = arith.mulf %141, %185 : vector<1x32xf32>
    %187 = arith.addf %183, %186 : vector<1x32xf32>
    %188 = vector.broadcast %178 : f32 to vector<1x32xf32>
    %189 = arith.mulf %173, %188 : vector<1x32xf32>
    %cst_38 = arith.constant 1.000000e+00 : f32
    %190 = arith.subf %cst_38, %178 : f32
    %191 = vector.broadcast %190 : f32 to vector<1x32xf32>
    %192 = arith.mulf %147, %191 : vector<1x32xf32>
    %193 = arith.addf %189, %192 : vector<1x32xf32>
    %194 = vector.extract_strided_slice %6 {offsets = [4, 0], sizes = [1, 128], strides = [1, 1]} : vector<8x128xf32> to vector<1x128xf32>
    %cst_39 = arith.constant dense<0.000000e+00> : vector<1x128xf32>
    %195 = tpu.matmul %187, %7, %cst_39 {dimension_numbers = #tpu.dot_dimension_numbers<[1], [0], [0], [1], [0, 0, 1, 1], [], []>} : vector<1x32xf32>, vector<32x128xf32>, vector<1x128xf32> -> vector<1x128xf32>
    %196 = arith.addf %194, %195 : vector<1x128xf32>
    %197 = vector.extract_strided_slice %196 {offsets = [0, 0], sizes = [1, 32], strides = [1, 1]} : vector<1x128xf32> to vector<1x32xf32>
    %198 = arith.negf %197 : vector<1x32xf32>
    %199 = math.exp %198 : vector<1x32xf32>
    %cst_40 = arith.constant 1.000000e+00 : f32
    %200 = vector.broadcast %cst_40 : f32 to vector<1x32xf32>
    %201 = arith.addf %200, %199 : vector<1x32xf32>
    %202 = arith.divf %200, %201 : vector<1x32xf32>
    %203 = vector.extract_strided_slice %196 {offsets = [0, 32], sizes = [1, 32], strides = [1, 1]} : vector<1x128xf32> to vector<1x32xf32>
    %204 = arith.negf %203 : vector<1x32xf32>
    %205 = math.exp %204 : vector<1x32xf32>
    %cst_41 = arith.constant 1.000000e+00 : f32
    %206 = vector.broadcast %cst_41 : f32 to vector<1x32xf32>
    %207 = arith.addf %206, %205 : vector<1x32xf32>
    %208 = arith.divf %206, %207 : vector<1x32xf32>
    %209 = vector.extract_strided_slice %196 {offsets = [0, 64], sizes = [1, 32], strides = [1, 1]} : vector<1x128xf32> to vector<1x32xf32>
    %210 = math.tanh %209 : vector<1x32xf32>
    %211 = vector.extract_strided_slice %196 {offsets = [0, 96], sizes = [1, 32], strides = [1, 1]} : vector<1x128xf32> to vector<1x32xf32>
    %212 = arith.negf %211 : vector<1x32xf32>
    %213 = math.exp %212 : vector<1x32xf32>
    %cst_42 = arith.constant 1.000000e+00 : f32
    %214 = vector.broadcast %cst_42 : f32 to vector<1x32xf32>
    %215 = arith.addf %214, %213 : vector<1x32xf32>
    %216 = arith.divf %214, %215 : vector<1x32xf32>
    %217 = arith.mulf %208, %193 : vector<1x32xf32>
    %218 = arith.mulf %202, %210 : vector<1x32xf32>
    %219 = arith.addf %217, %218 : vector<1x32xf32>
    %220 = math.tanh %219 : vector<1x32xf32>
    %221 = arith.mulf %216, %220 : vector<1x32xf32>
    %c4_i32 = arith.constant 4 : i32
    %222 = arith.cmpi sgt, %0, %c4_i32 : i32
    %223 = arith.extui %222 : i1 to i32
    %224 = arith.sitofp %223 : i32 to f32
    %225 = vector.broadcast %224 : f32 to vector<1x32xf32>
    %226 = arith.mulf %221, %225 : vector<1x32xf32>
    %c4 = arith.constant 4 : index
    %c0_43 = arith.constant 0 : index
    %227 = vector.load %arg20[%c4, %c0_43] : memref<8x32xf32, #tpu.memory_space<vmem>>, vector<1x32xf32>
    tpu.vector_store %arg20[%c4, %c0_43], %226 {strides = array<i32>} : memref<8x32xf32, #tpu.memory_space<vmem>>, vector<1x32xf32>,
    %228 = vector.broadcast %224 : f32 to vector<1x32xf32>
    %229 = arith.mulf %221, %228 : vector<1x32xf32>
    %cst_44 = arith.constant 1.000000e+00 : f32
    %230 = arith.subf %cst_44, %224 : f32
    %231 = vector.broadcast %230 : f32 to vector<1x32xf32>
    %232 = arith.mulf %187, %231 : vector<1x32xf32>
    %233 = arith.addf %229, %232 : vector<1x32xf32>
    %234 = vector.broadcast %224 : f32 to vector<1x32xf32>
    %235 = arith.mulf %219, %234 : vector<1x32xf32>
    %cst_45 = arith.constant 1.000000e+00 : f32
    %236 = arith.subf %cst_45, %224 : f32
    %237 = vector.broadcast %236 : f32 to vector<1x32xf32>
    %238 = arith.mulf %193, %237 : vector<1x32xf32>
    %239 = arith.addf %235, %238 : vector<1x32xf32>
    %240 = vector.extract_strided_slice %6 {offsets = [5, 0], sizes = [1, 128], strides = [1, 1]} : vector<8x128xf32> to vector<1x128xf32>
    %cst_46 = arith.constant dense<0.000000e+00> : vector<1x128xf32>
    %241 = tpu.matmul %233, %7, %cst_46 {dimension_numbers = #tpu.dot_dimension_numbers<[1], [0], [0], [1], [0, 0, 1, 1], [], []>} : vector<1x32xf32>, vector<32x128xf32>, vector<1x128xf32> -> vector<1x128xf32>
    %242 = arith.addf %240, %241 : vector<1x128xf32>
    %243 = vector.extract_strided_slice %242 {offsets = [0, 0], sizes = [1, 32], strides = [1, 1]} : vector<1x128xf32> to vector<1x32xf32>
    %244 = arith.negf %243 : vector<1x32xf32>
    %245 = math.exp %244 : vector<1x32xf32>
    %cst_47 = arith.constant 1.000000e+00 : f32
    %246 = vector.broadcast %cst_47 : f32 to vector<1x32xf32>
    %247 = arith.addf %246, %245 : vector<1x32xf32>
    %248 = arith.divf %246, %247 : vector<1x32xf32>
    %249 = vector.extract_strided_slice %242 {offsets = [0, 32], sizes = [1, 32], strides = [1, 1]} : vector<1x128xf32> to vector<1x32xf32>
    %250 = arith.negf %249 : vector<1x32xf32>
    %251 = math.exp %250 : vector<1x32xf32>
    %cst_48 = arith.constant 1.000000e+00 : f32
    %252 = vector.broadcast %cst_48 : f32 to vector<1x32xf32>
    %253 = arith.addf %252, %251 : vector<1x32xf32>
    %254 = arith.divf %252, %253 : vector<1x32xf32>
    %255 = vector.extract_strided_slice %242 {offsets = [0, 64], sizes = [1, 32], strides = [1, 1]} : vector<1x128xf32> to vector<1x32xf32>
    %256 = math.tanh %255 : vector<1x32xf32>
    %257 = vector.extract_strided_slice %242 {offsets = [0, 96], sizes = [1, 32], strides = [1, 1]} : vector<1x128xf32> to vector<1x32xf32>
    %258 = arith.negf %257 : vector<1x32xf32>
    %259 = math.exp %258 : vector<1x32xf32>
    %cst_49 = arith.constant 1.000000e+00 : f32
    %260 = vector.broadcast %cst_49 : f32 to vector<1x32xf32>
    %261 = arith.addf %260, %259 : vector<1x32xf32>
    %262 = arith.divf %260, %261 : vector<1x32xf32>
    %263 = arith.mulf %254, %239 : vector<1x32xf32>
    %264 = arith.mulf %248, %256 : vector<1x32xf32>
    %265 = arith.addf %263, %264 : vector<1x32xf32>
    %266 = math.tanh %265 : vector<1x32xf32>
    %267 = arith.mulf %262, %266 : vector<1x32xf32>
    %c5_i32 = arith.constant 5 : i32
    %268 = arith.cmpi sgt, %0, %c5_i32 : i32
    %269 = arith.extui %268 : i1 to i32
    %270 = arith.sitofp %269 : i32 to f32
    %271 = vector.broadcast %270 : f32 to vector<1x32xf32>
    %272 = arith.mulf %267, %271 : vector<1x32xf32>
    %c5 = arith.constant 5 : index
    %c0_50 = arith.constant 0 : index
    %273 = vector.load %arg20[%c5, %c0_50] : memref<8x32xf32, #tpu.memory_space<vmem>>, vector<1x32xf32>
    tpu.vector_store %arg20[%c5, %c0_50], %272 {strides = array<i32>} : memref<8x32xf32, #tpu.memory_space<vmem>>, vector<1x32xf32>,
    %274 = vector.broadcast %270 : f32 to vector<1x32xf32>
    %275 = arith.mulf %267, %274 : vector<1x32xf32>
    %cst_51 = arith.constant 1.000000e+00 : f32
    %276 = arith.subf %cst_51, %270 : f32
    %277 = vector.broadcast %276 : f32 to vector<1x32xf32>
    %278 = arith.mulf %233, %277 : vector<1x32xf32>
    %279 = arith.addf %275, %278 : vector<1x32xf32>
    %280 = vector.broadcast %270 : f32 to vector<1x32xf32>
    %281 = arith.mulf %265, %280 : vector<1x32xf32>
    %cst_52 = arith.constant 1.000000e+00 : f32
    %282 = arith.subf %cst_52, %270 : f32
    %283 = vector.broadcast %282 : f32 to vector<1x32xf32>
    %284 = arith.mulf %239, %283 : vector<1x32xf32>
    %285 = arith.addf %281, %284 : vector<1x32xf32>
    %286 = vector.extract_strided_slice %6 {offsets = [6, 0], sizes = [1, 128], strides = [1, 1]} : vector<8x128xf32> to vector<1x128xf32>
    %cst_53 = arith.constant dense<0.000000e+00> : vector<1x128xf32>
    %287 = tpu.matmul %279, %7, %cst_53 {dimension_numbers = #tpu.dot_dimension_numbers<[1], [0], [0], [1], [0, 0, 1, 1], [], []>} : vector<1x32xf32>, vector<32x128xf32>, vector<1x128xf32> -> vector<1x128xf32>
    %288 = arith.addf %286, %287 : vector<1x128xf32>
    %289 = vector.extract_strided_slice %288 {offsets = [0, 0], sizes = [1, 32], strides = [1, 1]} : vector<1x128xf32> to vector<1x32xf32>
    %290 = arith.negf %289 : vector<1x32xf32>
    %291 = math.exp %290 : vector<1x32xf32>
    %cst_54 = arith.constant 1.000000e+00 : f32
    %292 = vector.broadcast %cst_54 : f32 to vector<1x32xf32>
    %293 = arith.addf %292, %291 : vector<1x32xf32>
    %294 = arith.divf %292, %293 : vector<1x32xf32>
    %295 = vector.extract_strided_slice %288 {offsets = [0, 32], sizes = [1, 32], strides = [1, 1]} : vector<1x128xf32> to vector<1x32xf32>
    %296 = arith.negf %295 : vector<1x32xf32>
    %297 = math.exp %296 : vector<1x32xf32>
    %cst_55 = arith.constant 1.000000e+00 : f32
    %298 = vector.broadcast %cst_55 : f32 to vector<1x32xf32>
    %299 = arith.addf %298, %297 : vector<1x32xf32>
    %300 = arith.divf %298, %299 : vector<1x32xf32>
    %301 = vector.extract_strided_slice %288 {offsets = [0, 64], sizes = [1, 32], strides = [1, 1]} : vector<1x128xf32> to vector<1x32xf32>
    %302 = math.tanh %301 : vector<1x32xf32>
    %303 = vector.extract_strided_slice %288 {offsets = [0, 96], sizes = [1, 32], strides = [1, 1]} : vector<1x128xf32> to vector<1x32xf32>
    %304 = arith.negf %303 : vector<1x32xf32>
    %305 = math.exp %304 : vector<1x32xf32>
    %cst_56 = arith.constant 1.000000e+00 : f32
    %306 = vector.broadcast %cst_56 : f32 to vector<1x32xf32>
    %307 = arith.addf %306, %305 : vector<1x32xf32>
    %308 = arith.divf %306, %307 : vector<1x32xf32>
    %309 = arith.mulf %300, %285 : vector<1x32xf32>
    %310 = arith.mulf %294, %302 : vector<1x32xf32>
    %311 = arith.addf %309, %310 : vector<1x32xf32>
    %312 = math.tanh %311 : vector<1x32xf32>
    %313 = arith.mulf %308, %312 : vector<1x32xf32>
    %c6_i32 = arith.constant 6 : i32
    %314 = arith.cmpi sgt, %0, %c6_i32 : i32
    %315 = arith.extui %314 : i1 to i32
    %316 = arith.sitofp %315 : i32 to f32
    %317 = vector.broadcast %316 : f32 to vector<1x32xf32>
    %318 = arith.mulf %313, %317 : vector<1x32xf32>
    %c6 = arith.constant 6 : index
    %c0_57 = arith.constant 0 : index
    %319 = vector.load %arg20[%c6, %c0_57] : memref<8x32xf32, #tpu.memory_space<vmem>>, vector<1x32xf32>
    tpu.vector_store %arg20[%c6, %c0_57], %318 {strides = array<i32>} : memref<8x32xf32, #tpu.memory_space<vmem>>, vector<1x32xf32>,
    %320 = vector.broadcast %316 : f32 to vector<1x32xf32>
    %321 = arith.mulf %313, %320 : vector<1x32xf32>
    %cst_58 = arith.constant 1.000000e+00 : f32
    %322 = arith.subf %cst_58, %316 : f32
    %323 = vector.broadcast %322 : f32 to vector<1x32xf32>
    %324 = arith.mulf %279, %323 : vector<1x32xf32>
    %325 = arith.addf %321, %324 : vector<1x32xf32>
    %326 = vector.broadcast %316 : f32 to vector<1x32xf32>
    %327 = arith.mulf %311, %326 : vector<1x32xf32>
    %cst_59 = arith.constant 1.000000e+00 : f32
    %328 = arith.subf %cst_59, %316 : f32
    %329 = vector.broadcast %328 : f32 to vector<1x32xf32>
    %330 = arith.mulf %285, %329 : vector<1x32xf32>
    %331 = arith.addf %327, %330 : vector<1x32xf32>
    %332 = vector.extract_strided_slice %6 {offsets = [7, 0], sizes = [1, 128], strides = [1, 1]} : vector<8x128xf32> to vector<1x128xf32>
    %cst_60 = arith.constant dense<0.000000e+00> : vector<1x128xf32>
    %333 = tpu.matmul %325, %7, %cst_60 {dimension_numbers = #tpu.dot_dimension_numbers<[1], [0], [0], [1], [0, 0, 1, 1], [], []>} : vector<1x32xf32>, vector<32x128xf32>, vector<1x128xf32> -> vector<1x128xf32>
    %334 = arith.addf %332, %333 : vector<1x128xf32>
    %335 = vector.extract_strided_slice %334 {offsets = [0, 0], sizes = [1, 32], strides = [1, 1]} : vector<1x128xf32> to vector<1x32xf32>
    %336 = arith.negf %335 : vector<1x32xf32>
    %337 = math.exp %336 : vector<1x32xf32>
    %cst_61 = arith.constant 1.000000e+00 : f32
    %338 = vector.broadcast %cst_61 : f32 to vector<1x32xf32>
    %339 = arith.addf %338, %337 : vector<1x32xf32>
    %340 = arith.divf %338, %339 : vector<1x32xf32>
    %341 = vector.extract_strided_slice %334 {offsets = [0, 32], sizes = [1, 32], strides = [1, 1]} : vector<1x128xf32> to vector<1x32xf32>
    %342 = arith.negf %341 : vector<1x32xf32>
    %343 = math.exp %342 : vector<1x32xf32>
    %cst_62 = arith.constant 1.000000e+00 : f32
    %344 = vector.broadcast %cst_62 : f32 to vector<1x32xf32>
    %345 = arith.addf %344, %343 : vector<1x32xf32>
    %346 = arith.divf %344, %345 : vector<1x32xf32>
    %347 = vector.extract_strided_slice %334 {offsets = [0, 64], sizes = [1, 32], strides = [1, 1]} : vector<1x128xf32> to vector<1x32xf32>
    %348 = math.tanh %347 : vector<1x32xf32>
    %349 = vector.extract_strided_slice %334 {offsets = [0, 96], sizes = [1, 32], strides = [1, 1]} : vector<1x128xf32> to vector<1x32xf32>
    %350 = arith.negf %349 : vector<1x32xf32>
    %351 = math.exp %350 : vector<1x32xf32>
    %cst_63 = arith.constant 1.000000e+00 : f32
    %352 = vector.broadcast %cst_63 : f32 to vector<1x32xf32>
    %353 = arith.addf %352, %351 : vector<1x32xf32>
    %354 = arith.divf %352, %353 : vector<1x32xf32>
    %355 = arith.mulf %346, %331 : vector<1x32xf32>
    %356 = arith.mulf %340, %348 : vector<1x32xf32>
    %357 = arith.addf %355, %356 : vector<1x32xf32>
    %358 = math.tanh %357 : vector<1x32xf32>
    %359 = arith.mulf %354, %358 : vector<1x32xf32>
    %c7_i32 = arith.constant 7 : i32
    %360 = arith.cmpi sgt, %0, %c7_i32 : i32
    %361 = arith.extui %360 : i1 to i32
    %362 = arith.sitofp %361 : i32 to f32
    %363 = vector.broadcast %362 : f32 to vector<1x32xf32>
    %364 = arith.mulf %359, %363 : vector<1x32xf32>
    %c7 = arith.constant 7 : index
    %c0_64 = arith.constant 0 : index
    %365 = vector.load %arg20[%c7, %c0_64] : memref<8x32xf32, #tpu.memory_space<vmem>>, vector<1x32xf32>
    tpu.vector_store %arg20[%c7, %c0_64], %364 {strides = array<i32>} : memref<8x32xf32, #tpu.memory_space<vmem>>, vector<1x32xf32>,
    %366 = vector.broadcast %362 : f32 to vector<1x32xf32>
    %367 = arith.mulf %359, %366 : vector<1x32xf32>
    %cst_65 = arith.constant 1.000000e+00 : f32
    %368 = arith.subf %cst_65, %362 : f32
    %369 = vector.broadcast %368 : f32 to vector<1x32xf32>
    %370 = arith.mulf %325, %369 : vector<1x32xf32>
    %371 = arith.addf %367, %370 : vector<1x32xf32>
    %372 = vector.broadcast %362 : f32 to vector<1x32xf32>
    %373 = arith.mulf %357, %372 : vector<1x32xf32>
    %cst_66 = arith.constant 1.000000e+00 : f32
    %374 = arith.subf %cst_66, %362 : f32
    %375 = vector.broadcast %374 : f32 to vector<1x32xf32>
    %376 = arith.mulf %331, %375 : vector<1x32xf32>
    %377 = arith.addf %373, %376 : vector<1x32xf32>
    %c0_67 = arith.constant 0 : index
    %c0_68 = arith.constant 0 : index
    %378 = vector.load %arg20[%c0_67, %c0_68] : memref<8x32xf32, #tpu.memory_space<vmem>>, vector<8x32xf32>
    %cst_69 = arith.constant 0.000000e+00 : f32
    %379 = vector.broadcast %cst_69 : f32 to vector<1x96xf32>
    %380 = tpu.concatenate %371, %379 in 1 : vector<1x32xf32>, vector<1x96xf32> -> vector<1x128xf32>
    %c0_70 = arith.constant 0 : index
    %c0_71 = arith.constant 0 : index
    %381 = vector.load %arg18[%c0_70, %c0_71] : memref<9x128xf32, #tpu.memory_space<vmem>>, vector<1x128xf32>
    tpu.vector_store %arg18[%c0_70, %c0_71], %380 {strides = array<i32>} : memref<9x128xf32, #tpu.memory_space<vmem>>, vector<1x128xf32>,
    %c0_72 = arith.constant 0 : index
    %c0_73 = arith.constant 0 : index
    %382 = vector.load %arg16[%c0_72, %c0_73] : memref<32x32xf32, #tpu.memory_space<vmem>>, vector<32x32xf32>
    %cst_74 = arith.constant dense<0.000000e+00> : vector<8x32xf32>
    %383 = tpu.matmul %378, %382, %cst_74 {dimension_numbers = #tpu.dot_dimension_numbers<[1], [0], [0], [1], [0, 0, 1, 1], [], []>} : vector<8x32xf32>, vector<32x32xf32>, vector<8x32xf32> -> vector<8x32xf32>
    %c0_75 = arith.constant 0 : index
    %c0_76 = arith.constant 0 : index
    %384 = vector.load %arg17[%c0_75, %c0_76] : memref<1x32xf32, #tpu.memory_space<vmem>>, vector<1x32xf32>
    %385 = vector.broadcast %384 : vector<1x32xf32> to vector<8x32xf32>
    %386 = arith.addf %383, %385 : vector<8x32xf32>
    %387 = math.tanh %386 : vector<8x32xf32>
    %388 = tpu.transpose %387, [1, 0] : vector<8x32xf32> -> vector<32x8xf32>
    %c0_77 = arith.constant 0 : index
    %c0_78 = arith.constant 0 : index
    %389 = vector.load %arg14[%c0_77, %c0_78] : memref<32x16xf32, #tpu.memory_space<vmem>>, vector<32x16xf32>
    %390 = tpu.concatenate %389, %388 in 1 : vector<32x16xf32>, vector<32x8xf32> -> vector<32x24xf32>
    %c0_79 = arith.constant 0 : index
    %c0_80 = arith.constant 0 : index
    %391 = vector.load %arg15[%c0_79, %c0_80] : memref<1x16xf32, #tpu.memory_space<vmem>>, vector<1x16xf32>
    %cst_81 = arith.constant 0.000000e+00 : f32
    %392 = vector.broadcast %cst_81 : f32 to vector<1x8xf32>
    %393 = tpu.concatenate %391, %392 in 1 : vector<1x16xf32>, vector<1x8xf32> -> vector<1x24xf32>
    %c0_82 = arith.constant 0 : index
    %c0_83 = arith.constant 0 : index
    %394 = vector.load %arg4[%c0_82, %c0_83] : memref<1x24xf32, #tpu.memory_space<vmem>>, vector<1x24xf32>
    %c0_84 = arith.constant 0 : index
    %c0_85 = arith.constant 0 : index
    %395 = vector.load %arg10[%c0_84, %c0_85] : memref<64x8xf32, #tpu.memory_space<vmem>>, vector<64x8xf32>
    %c0_86 = arith.constant 0 : index
    %c0_87 = arith.constant 0 : index
    %396 = vector.load %arg11[%c0_86, %c0_87] : memref<1x8xf32, #tpu.memory_space<vmem>>, vector<1x8xf32>
    %c0_88 = arith.constant 0 : index
    %c0_89 = arith.constant 0 : index
    %397 = vector.load %arg12[%c0_88, %c0_89] : memref<128x128xf32, #tpu.memory_space<vmem>>, vector<128x128xf32>
    %c0_90 = arith.constant 0 : index
    %c0_91 = arith.constant 0 : index
    %398 = vector.load %arg13[%c0_90, %c0_91] : memref<1x128xf32, #tpu.memory_space<vmem>>, vector<1x128xf32>
    %c0_92 = arith.constant 0 : index
    %c0_93 = arith.constant 0 : index
    %399 = vector.load %arg6[%c0_92, %c0_93] : memref<16x32xf32, #tpu.memory_space<vmem>>, vector<16x32xf32>
    %c0_94 = arith.constant 0 : index
    %c0_95 = arith.constant 0 : index
    %400 = vector.load %arg2[%c0_94, %c0_95] : memref<1x8xf32, #tpu.memory_space<vmem>>, vector<1x8xf32>
    %c0_96 = arith.constant 0 : index
    %c0_97 = arith.constant 0 : index
    %401 = vector.load %arg3[%c0_96, %c0_97] : memref<1x8xf32, #tpu.memory_space<vmem>>, vector<1x8xf32>
    %c0_98 = arith.constant 0 : index
    %c0_99 = arith.constant 0 : index
    %402 = vector.load %arg5[%c0_98, %c0_99] : memref<8x24xf32, #tpu.memory_space<vmem>>, vector<8x24xf32>
    %403 = tpu.iota {dimensions = array<i32: 1>} : vector<1x16xi32>
    %404 = arith.sitofp %403 : vector<1x16xi32> to vector<1x16xf32>
    %405 = tpu.iota {dimensions = array<i32: 1>} : vector<1x8xi32>
    %406 = arith.sitofp %405 : vector<1x8xi32> to vector<1x8xf32>
    %407 = tpu.iota {dimensions = array<i32: 1>} : vector<1x24xi32>
    %408 = arith.sitofp %407 : vector<1x24xi32> to vector<1x24xf32>
    %409 = tpu.iota {dimensions = array<i32: 1>} : vector<1x128xi32>
    %410 = vector.extract_strided_slice %399 {offsets = [0, 0], sizes = [1, 32], strides = [1, 1]} : vector<16x32xf32> to vector<1x32xf32>
    %cst_100 = arith.constant 0.000000e+00 : f32
    %411 = vector.broadcast %cst_100 : f32 to vector<1x32xf32>
    %412 = tpu.concatenate %410, %411, %411, %371 in 1 : vector<1x32xf32>, vector<1x32xf32>, vector<1x32xf32>, vector<1x32xf32> -> vector<1x128xf32>
    %cst_101 = arith.constant dense<0.000000e+00> : vector<1x128xf32>
    %413 = tpu.matmul %412, %397, %cst_101 {dimension_numbers = #tpu.dot_dimension_numbers<[1], [0], [0], [1], [0, 0, 1, 1], [], []>} : vector<1x128xf32>, vector<128x128xf32>, vector<1x128xf32> -> vector<1x128xf32>
    %414 = arith.addf %413, %398 : vector<1x128xf32>
    %415 = vector.extract_strided_slice %414 {offsets = [0, 0], sizes = [1, 32], strides = [1, 1]} : vector<1x128xf32> to vector<1x32xf32>
    %416 = arith.negf %415 : vector<1x32xf32>
    %417 = math.exp %416 : vector<1x32xf32>
    %cst_102 = arith.constant 1.000000e+00 : f32
    %418 = vector.broadcast %cst_102 : f32 to vector<1x32xf32>
    %419 = arith.addf %418, %417 : vector<1x32xf32>
    %420 = arith.divf %418, %419 : vector<1x32xf32>
    %421 = vector.extract_strided_slice %414 {offsets = [0, 32], sizes = [1, 32], strides = [1, 1]} : vector<1x128xf32> to vector<1x32xf32>
    %422 = arith.negf %421 : vector<1x32xf32>
    %423 = math.exp %422 : vector<1x32xf32>
    %cst_103 = arith.constant 1.000000e+00 : f32
    %424 = vector.broadcast %cst_103 : f32 to vector<1x32xf32>
    %425 = arith.addf %424, %423 : vector<1x32xf32>
    %426 = arith.divf %424, %425 : vector<1x32xf32>
    %427 = vector.extract_strided_slice %414 {offsets = [0, 64], sizes = [1, 32], strides = [1, 1]} : vector<1x128xf32> to vector<1x32xf32>
    %428 = math.tanh %427 : vector<1x32xf32>
    %429 = vector.extract_strided_slice %414 {offsets = [0, 96], sizes = [1, 32], strides = [1, 1]} : vector<1x128xf32> to vector<1x32xf32>
    %430 = arith.negf %429 : vector<1x32xf32>
    %431 = math.exp %430 : vector<1x32xf32>
    %cst_104 = arith.constant 1.000000e+00 : f32
    %432 = vector.broadcast %cst_104 : f32 to vector<1x32xf32>
    %433 = arith.addf %432, %431 : vector<1x32xf32>
    %434 = arith.divf %432, %433 : vector<1x32xf32>
    %435 = arith.mulf %426, %377 : vector<1x32xf32>
    %436 = arith.mulf %420, %428 : vector<1x32xf32>
    %437 = arith.addf %435, %436 : vector<1x32xf32>
    %438 = math.tanh %437 : vector<1x32xf32>
    %439 = arith.mulf %434, %438 : vector<1x32xf32>
    %440 = tpu.concatenate %439, %379 in 1 : vector<1x32xf32>, vector<1x96xf32> -> vector<1x128xf32>
    %c1_105 = arith.constant 1 : index
    %c0_106 = arith.constant 0 : index
    %441 = vector.load %arg18[%c1_105, %c0_106] : memref<9x128xf32, #tpu.memory_space<vmem>>, vector<1x128xf32>
    tpu.vector_store %arg18[%c1_105, %c0_106], %440 {strides = array<i32>} : memref<9x128xf32, #tpu.memory_space<vmem>>, vector<1x128xf32>,
    %cst_107 = arith.constant dense<0.000000e+00> : vector<1x24xf32>
    %442 = tpu.matmul %439, %390, %cst_107 {dimension_numbers = #tpu.dot_dimension_numbers<[1], [0], [0], [1], [0, 0, 1, 1], [], []>} : vector<1x32xf32>, vector<32x24xf32>, vector<1x24xf32> -> vector<1x24xf32>
    %443 = arith.addf %442, %393 : vector<1x24xf32>
    %cst_108 = arith.constant dense<0xFF800000> : vector<1xf32>
    %444 = vector.multi_reduction <maximumf>, %443, %cst_108 [1] : vector<1x24xf32> to vector<1xf32>
    %445 = vector.shape_cast %444 : vector<1xf32> to vector<1x1xf32>
    %446 = vector.broadcast %445 : vector<1x1xf32> to vector<1x24xf32>
    %447 = arith.subf %443, %446 : vector<1x24xf32>
    %448 = math.exp %447 : vector<1x24xf32>
    %cst_109 = arith.constant dense<0.000000e+00> : vector<1xf32>
    %449 = vector.multi_reduction <add>, %448, %cst_109 [1] : vector<1x24xf32> to vector<1xf32>
    %450 = vector.shape_cast %449 : vector<1xf32> to vector<1x1xf32>
    %451 = vector.broadcast %450 : vector<1x1xf32> to vector<1x24xf32>
    %452 = arith.divf %448, %451 : vector<1x24xf32>
    %453 = arith.mulf %452, %394 : vector<1x24xf32>
    %cst_110 = arith.constant 0.000000e+00 : f32
    %454 = vector.broadcast %cst_110 : f32 to vector<1x24xf32>
    %455 = arith.cmpf ogt, %453, %454 : vector<1x24xf32>
    %cst_111 = arith.constant 1.000000e-30 : f32
    %456 = vector.broadcast %cst_111 : f32 to vector<1x24xf32>
    %457 = arith.maximumf %453, %456 : vector<1x24xf32>
    %458 = math.log %457 : vector<1x24xf32>
    %cst_112 = arith.constant -1.000000e+30 : f32
    %459 = vector.broadcast %cst_112 : f32 to vector<1x24xf32>
    %460 = arith.select %455, %458, %459 : vector<1x24xi1>, vector<1x24xf32>
    %461 = vector.extract_strided_slice %402 {offsets = [0, 0], sizes = [1, 24], strides = [1, 1]} : vector<8x24xf32> to vector<1x24xf32>
    %462 = arith.addf %460, %461 : vector<1x24xf32>
    %cst_113 = arith.constant dense<0xFF800000> : vector<1xf32>
    %463 = vector.multi_reduction <maximumf>, %462, %cst_113 [1] : vector<1x24xf32> to vector<1xf32>
    %464 = vector.shape_cast %463 : vector<1xf32> to vector<1x1xf32>
    %465 = vector.broadcast %464 : vector<1x1xf32> to vector<1x24xf32>
    %466 = arith.cmpf oge, %462, %465 : vector<1x24xf32>
    %cst_114 = arith.constant 2.400000e+01 : f32
    %467 = vector.broadcast %cst_114 : f32 to vector<1x24xf32>
    %468 = arith.select %466, %408, %467 : vector<1x24xi1>, vector<1x24xf32>
    %cst_115 = arith.constant dense<0x7F800000> : vector<1xf32>
    %469 = vector.multi_reduction <minimumf>, %468, %cst_115 [1] : vector<1x24xf32> to vector<1xf32>
    %470 = vector.shape_cast %469 : vector<1xf32> to vector<1x1xf32>
    %cst_116 = arith.constant 1.600000e+01 : f32
    %471 = vector.broadcast %cst_116 : f32 to vector<1x1xf32>
    %472 = arith.cmpf oge, %470, %471 : vector<1x1xf32>
    %cst_117 = arith.constant 1.600000e+01 : f32
    %473 = vector.broadcast %cst_117 : f32 to vector<1x1xf32>
    %474 = arith.subf %470, %473 : vector<1x1xf32>
    %475 = vector.broadcast %474 : vector<1x1xf32> to vector<1x8xf32>
    %476 = arith.cmpf oeq, %406, %475 : vector<1x8xf32>
    %cst_118 = arith.constant 0.000000e+00 : f32
    %477 = vector.broadcast %cst_118 : f32 to vector<1x8xf32>
    %478 = arith.select %476, %400, %477 : vector<1x8xi1>, vector<1x8xf32>
    %cst_119 = arith.constant dense<0.000000e+00> : vector<1xf32>
    %479 = vector.multi_reduction <add>, %478, %cst_119 [1] : vector<1x8xf32> to vector<1xf32>
    %480 = vector.shape_cast %479 : vector<1xf32> to vector<1x1xf32>
    %481 = arith.select %472, %480, %470 : vector<1x1xi1>, vector<1x1xf32>
    %482 = vector.broadcast %470 : vector<1x1xf32> to vector<1x24xf32>
    %483 = arith.cmpf oeq, %408, %482 : vector<1x24xf32>
    %cst_120 = arith.constant 0.000000e+00 : f32
    %484 = vector.broadcast %cst_120 : f32 to vector<1x24xf32>
    %485 = arith.select %483, %453, %484 : vector<1x24xi1>, vector<1x24xf32>
    %cst_121 = arith.constant dense<0.000000e+00> : vector<1xf32>
    %486 = vector.multi_reduction <add>, %485, %cst_121 [1] : vector<1x24xf32> to vector<1xf32>
    %487 = vector.shape_cast %486 : vector<1xf32> to vector<1x1xf32>
    %488 = vector.broadcast %481 : vector<1x1xf32> to vector<1x16xf32>
    %489 = arith.cmpf oeq, %404, %488 : vector<1x16xf32>
    %490 = vector.extract_strided_slice %453 {offsets = [0, 0], sizes = [1, 16], strides = [1, 1]} : vector<1x24xf32> to vector<1x16xf32>
    %cst_122 = arith.constant 0.000000e+00 : f32
    %491 = vector.broadcast %cst_122 : f32 to vector<1x16xf32>
    %492 = arith.select %489, %490, %491 : vector<1x16xi1>, vector<1x16xf32>
    %cst_123 = arith.constant dense<0.000000e+00> : vector<1xf32>
    %493 = vector.multi_reduction <add>, %492, %cst_123 [1] : vector<1x16xf32> to vector<1xf32>
    %494 = vector.shape_cast %493 : vector<1xf32> to vector<1x1xf32>
    %495 = arith.addf %487, %494 : vector<1x1xf32>
    %496 = arith.select %472, %495, %487 : vector<1x1xi1>, vector<1x1xf32>
    %c0_i32_124 = arith.constant 0 : i32
    %497 = vector.broadcast %c0_i32_124 : i32 to vector<1x128xi32>
    %498 = arith.cmpi eq, %409, %497 : vector<1x128xi32>
    %cst_125 = arith.constant 0.000000e+00 : f32
    %499 = vector.shape_cast %481 : vector<1x1xf32> to vector<1x1xf32>
    %500 = vector.broadcast %499 : vector<1x1xf32> to vector<1x128xf32>
    %501 = vector.broadcast %cst_125 : f32 to vector<1x128xf32>
    %502 = arith.select %498, %500, %501 : vector<1x128xi1>, vector<1x128xf32>
    %c1_i32_126 = arith.constant 1 : i32
    %503 = vector.broadcast %c1_i32_126 : i32 to vector<1x128xi32>
    %504 = arith.cmpi eq, %409, %503 : vector<1x128xi32>
    %cst_127 = arith.constant 0.000000e+00 : f32
    %505 = vector.shape_cast %496 : vector<1x1xf32> to vector<1x1xf32>
    %506 = vector.broadcast %505 : vector<1x1xf32> to vector<1x128xf32>
    %507 = vector.broadcast %cst_127 : f32 to vector<1x128xf32>
    %508 = arith.select %504, %506, %507 : vector<1x128xi1>, vector<1x128xf32>
    %509 = arith.addf %502, %508 : vector<1x128xf32>
    %c2_i32_128 = arith.constant 2 : i32
    %510 = vector.broadcast %c2_i32_128 : i32 to vector<1x128xi32>
    %511 = arith.cmpi eq, %409, %510 : vector<1x128xi32>
    %cst_129 = arith.constant 0.000000e+00 : f32
    %512 = vector.shape_cast %470 : vector<1x1xf32> to vector<1x1xf32>
    %513 = vector.broadcast %512 : vector<1x1xf32> to vector<1x128xf32>
    %514 = vector.broadcast %cst_129 : f32 to vector<1x128xf32>
    %515 = arith.select %511, %513, %514 : vector<1x128xi1>, vector<1x128xf32>
    %516 = arith.addf %509, %515 : vector<1x128xf32>
    %c3_i32_130 = arith.constant 3 : i32
    %517 = vector.broadcast %c3_i32_130 : i32 to vector<1x128xi32>
    %518 = arith.cmpi eq, %409, %517 : vector<1x128xi32>
    %519 = arith.extui %472 : vector<1x1xi1> to vector<1x1xi32>
    %520 = arith.sitofp %519 : vector<1x1xi32> to vector<1x1xf32>
    %cst_131 = arith.constant 0.000000e+00 : f32
    %521 = vector.shape_cast %520 : vector<1x1xf32> to vector<1x1xf32>
    %522 = vector.broadcast %521 : vector<1x1xf32> to vector<1x128xf32>
    %523 = vector.broadcast %cst_131 : f32 to vector<1x128xf32>
    %524 = arith.select %518, %522, %523 : vector<1x128xi1>, vector<1x128xf32>
    %525 = arith.addf %516, %524 : vector<1x128xf32>
    %c0_132 = arith.constant 0 : index
    %c0_133 = arith.constant 0 : index
    %526 = vector.load %arg19[%c0_132, %c0_133] : memref<8x128xf32, #tpu.memory_space<vmem>>, vector<1x128xf32>
    tpu.vector_store %arg19[%c0_132, %c0_133], %525 {strides = array<i32>} : memref<8x128xf32, #tpu.memory_space<vmem>>, vector<1x128xf32>,
    %527 = vector.extract_strided_slice %452 {offsets = [0, 16], sizes = [1, 8], strides = [1, 1]} : vector<1x24xf32> to vector<1x8xf32>
    %528 = vector.broadcast %481 : vector<1x1xf32> to vector<1x16xf32>
    %529 = arith.cmpf oeq, %404, %528 : vector<1x16xf32>
    %530 = arith.extui %529 : vector<1x16xi1> to vector<1x16xi32>
    %531 = arith.sitofp %530 : vector<1x16xi32> to vector<1x16xf32>
    %cst_134 = arith.constant dense<0.000000e+00> : vector<1x32xf32>
    %532 = tpu.matmul %531, %399, %cst_134 {dimension_numbers = #tpu.dot_dimension_numbers<[1], [0], [0], [1], [0, 0, 1, 1], [], []>} : vector<1x16xf32>, vector<16x32xf32>, vector<1x32xf32> -> vector<1x32xf32>
    %533 = tpu.concatenate %532, %439 in 1 : vector<1x32xf32>, vector<1x32xf32> -> vector<1x64xf32>
    %cst_135 = arith.constant dense<0.000000e+00> : vector<1x8xf32>
    %534 = tpu.matmul %533, %395, %cst_135 {dimension_numbers = #tpu.dot_dimension_numbers<[1], [0], [0], [1], [0, 0, 1, 1], [], []>} : vector<1x64xf32>, vector<64x8xf32>, vector<1x8xf32> -> vector<1x8xf32>
    %535 = arith.addf %534, %396 : vector<1x8xf32>
    %cst_136 = arith.constant dense<0xFF800000> : vector<1xf32>
    %536 = vector.multi_reduction <maximumf>, %535, %cst_136 [1] : vector<1x8xf32> to vector<1xf32>
    %537 = vector.shape_cast %536 : vector<1xf32> to vector<1x1xf32>
    %538 = vector.broadcast %537 : vector<1x1xf32> to vector<1x8xf32>
    %539 = arith.subf %535, %538 : vector<1x8xf32>
    %540 = math.exp %539 : vector<1x8xf32>
    %cst_137 = arith.constant dense<0.000000e+00> : vector<1xf32>
    %541 = vector.multi_reduction <add>, %540, %cst_137 [1] : vector<1x8xf32> to vector<1xf32>
    %542 = vector.shape_cast %541 : vector<1xf32> to vector<1x1xf32>
    %543 = vector.broadcast %542 : vector<1x1xf32> to vector<1x8xf32>
    %544 = arith.divf %540, %543 : vector<1x8xf32>
    %cst_138 = arith.constant dense<0.000000e+00> : vector<1x32xf32>
    %545 = tpu.matmul %544, %378, %cst_138 {dimension_numbers = #tpu.dot_dimension_numbers<[1], [0], [0], [1], [0, 0, 1, 1], [], []>} : vector<1x8xf32>, vector<8x32xf32>, vector<1x32xf32> -> vector<1x32xf32>
    %546 = vector.broadcast %481 : vector<1x1xf32> to vector<1x8xf32>
    %547 = arith.cmpf one, %400, %546 : vector<1x8xf32>
    %548 = arith.extui %547 : vector<1x8xi1> to vector<1x8xi32>
    %549 = arith.sitofp %548 : vector<1x8xi32> to vector<1x8xf32>
    %550 = arith.mulf %527, %401 : vector<1x8xf32>
    %551 = arith.mulf %550, %549 : vector<1x8xf32>
    %cst_139 = arith.constant dense<0.000000e+00> : vector<1xf32>
    %552 = vector.multi_reduction <add>, %551, %cst_139 [1] : vector<1x8xf32> to vector<1xf32>
    %553 = vector.shape_cast %552 : vector<1xf32> to vector<1x1xf32>
    %cst_140 = arith.constant 0.000000e+00 : f32
    %554 = vector.broadcast %cst_140 : f32 to vector<1x1xf32>
    %555 = arith.cmpf ogt, %553, %554 : vector<1x1xf32>
    %cst_141 = arith.constant 1.000000e-30 : f32
    %556 = vector.broadcast %cst_141 : f32 to vector<1x1xf32>
    %557 = arith.maximumf %553, %556 : vector<1x1xf32>
    %cst_142 = arith.constant 1.000000e+00 : f32
    %558 = vector.broadcast %cst_142 : f32 to vector<1x1xf32>
    %559 = arith.divf %558, %557 : vector<1x1xf32>
    %cst_143 = arith.constant 1.000000e+00 : f32
    %560 = vector.broadcast %cst_143 : f32 to vector<1x1xf32>
    %561 = arith.select %555, %559, %560 : vector<1x1xi1>, vector<1x1xf32>
    %562 = vector.broadcast %561 : vector<1x1xf32> to vector<1x8xf32>
    %563 = arith.mulf %551, %562 : vector<1x8xf32>
    %cst_144 = arith.constant dense<0.000000e+00> : vector<1x32xf32>
    %564 = tpu.matmul %563, %378, %cst_144 {dimension_numbers = #tpu.dot_dimension_numbers<[1], [0], [0], [1], [0, 0, 1, 1], [], []>} : vector<1x8xf32>, vector<8x32xf32>, vector<1x32xf32> -> vector<1x32xf32>
    %565 = tpu.concatenate %532, %564, %545, %439 in 1 : vector<1x32xf32>, vector<1x32xf32>, vector<1x32xf32>, vector<1x32xf32> -> vector<1x128xf32>
    %cst_145 = arith.constant dense<0.000000e+00> : vector<1x128xf32>
    %566 = tpu.matmul %565, %397, %cst_145 {dimension_numbers = #tpu.dot_dimension_numbers<[1], [0], [0], [1], [0, 0, 1, 1], [], []>} : vector<1x128xf32>, vector<128x128xf32>, vector<1x128xf32> -> vector<1x128xf32>
    %567 = arith.addf %566, %398 : vector<1x128xf32>
    %568 = vector.extract_strided_slice %567 {offsets = [0, 0], sizes = [1, 32], strides = [1, 1]} : vector<1x128xf32> to vector<1x32xf32>
    %569 = arith.negf %568 : vector<1x32xf32>
    %570 = math.exp %569 : vector<1x32xf32>
    %cst_146 = arith.constant 1.000000e+00 : f32
    %571 = vector.broadcast %cst_146 : f32 to vector<1x32xf32>
    %572 = arith.addf %571, %570 : vector<1x32xf32>
    %573 = arith.divf %571, %572 : vector<1x32xf32>
    %574 = vector.extract_strided_slice %567 {offsets = [0, 32], sizes = [1, 32], strides = [1, 1]} : vector<1x128xf32> to vector<1x32xf32>
    %575 = arith.negf %574 : vector<1x32xf32>
    %576 = math.exp %575 : vector<1x32xf32>
    %cst_147 = arith.constant 1.000000e+00 : f32
    %577 = vector.broadcast %cst_147 : f32 to vector<1x32xf32>
    %578 = arith.addf %577, %576 : vector<1x32xf32>
    %579 = arith.divf %577, %578 : vector<1x32xf32>
    %580 = vector.extract_strided_slice %567 {offsets = [0, 64], sizes = [1, 32], strides = [1, 1]} : vector<1x128xf32> to vector<1x32xf32>
    %581 = math.tanh %580 : vector<1x32xf32>
    %582 = vector.extract_strided_slice %567 {offsets = [0, 96], sizes = [1, 32], strides = [1, 1]} : vector<1x128xf32> to vector<1x32xf32>
    %583 = arith.negf %582 : vector<1x32xf32>
    %584 = math.exp %583 : vector<1x32xf32>
    %cst_148 = arith.constant 1.000000e+00 : f32
    %585 = vector.broadcast %cst_148 : f32 to vector<1x32xf32>
    %586 = arith.addf %585, %584 : vector<1x32xf32>
    %587 = arith.divf %585, %586 : vector<1x32xf32>
    %588 = arith.mulf %579, %437 : vector<1x32xf32>
    %589 = arith.mulf %573, %581 : vector<1x32xf32>
    %590 = arith.addf %588, %589 : vector<1x32xf32>
    %591 = math.tanh %590 : vector<1x32xf32>
    %592 = arith.mulf %587, %591 : vector<1x32xf32>
    %593 = tpu.concatenate %592, %379 in 1 : vector<1x32xf32>, vector<1x96xf32> -> vector<1x128xf32>
    %c2_149 = arith.constant 2 : index
    %c0_150 = arith.constant 0 : index
    %594 = vector.load %arg18[%c2_149, %c0_150] : memref<9x128xf32, #tpu.memory_space<vmem>>, vector<1x128xf32>
    tpu.vector_store %arg18[%c2_149, %c0_150], %593 {strides = array<i32>} : memref<9x128xf32, #tpu.memory_space<vmem>>, vector<1x128xf32>,
    %cst_151 = arith.constant dense<0.000000e+00> : vector<1x24xf32>
    %595 = tpu.matmul %592, %390, %cst_151 {dimension_numbers = #tpu.dot_dimension_numbers<[1], [0], [0], [1], [0, 0, 1, 1], [], []>} : vector<1x32xf32>, vector<32x24xf32>, vector<1x24xf32> -> vector<1x24xf32>
    %596 = arith.addf %595, %393 : vector<1x24xf32>
    %cst_152 = arith.constant dense<0xFF800000> : vector<1xf32>
    %597 = vector.multi_reduction <maximumf>, %596, %cst_152 [1] : vector<1x24xf32> to vector<1xf32>
    %598 = vector.shape_cast %597 : vector<1xf32> to vector<1x1xf32>
    %599 = vector.broadcast %598 : vector<1x1xf32> to vector<1x24xf32>
    %600 = arith.subf %596, %599 : vector<1x24xf32>
    %601 = math.exp %600 : vector<1x24xf32>
    %cst_153 = arith.constant dense<0.000000e+00> : vector<1xf32>
    %602 = vector.multi_reduction <add>, %601, %cst_153 [1] : vector<1x24xf32> to vector<1xf32>
    %603 = vector.shape_cast %602 : vector<1xf32> to vector<1x1xf32>
    %604 = vector.broadcast %603 : vector<1x1xf32> to vector<1x24xf32>
    %605 = arith.divf %601, %604 : vector<1x24xf32>
    %606 = arith.mulf %605, %394 : vector<1x24xf32>
    %cst_154 = arith.constant 0.000000e+00 : f32
    %607 = vector.broadcast %cst_154 : f32 to vector<1x24xf32>
    %608 = arith.cmpf ogt, %606, %607 : vector<1x24xf32>
    %cst_155 = arith.constant 1.000000e-30 : f32
    %609 = vector.broadcast %cst_155 : f32 to vector<1x24xf32>
    %610 = arith.maximumf %606, %609 : vector<1x24xf32>
    %611 = math.log %610 : vector<1x24xf32>
    %cst_156 = arith.constant -1.000000e+30 : f32
    %612 = vector.broadcast %cst_156 : f32 to vector<1x24xf32>
    %613 = arith.select %608, %611, %612 : vector<1x24xi1>, vector<1x24xf32>
    %614 = vector.extract_strided_slice %402 {offsets = [1, 0], sizes = [1, 24], strides = [1, 1]} : vector<8x24xf32> to vector<1x24xf32>
    %615 = arith.addf %613, %614 : vector<1x24xf32>
    %cst_157 = arith.constant dense<0xFF800000> : vector<1xf32>
    %616 = vector.multi_reduction <maximumf>, %615, %cst_157 [1] : vector<1x24xf32> to vector<1xf32>
    %617 = vector.shape_cast %616 : vector<1xf32> to vector<1x1xf32>
    %618 = vector.broadcast %617 : vector<1x1xf32> to vector<1x24xf32>
    %619 = arith.cmpf oge, %615, %618 : vector<1x24xf32>
    %cst_158 = arith.constant 2.400000e+01 : f32
    %620 = vector.broadcast %cst_158 : f32 to vector<1x24xf32>
    %621 = arith.select %619, %408, %620 : vector<1x24xi1>, vector<1x24xf32>
    %cst_159 = arith.constant dense<0x7F800000> : vector<1xf32>
    %622 = vector.multi_reduction <minimumf>, %621, %cst_159 [1] : vector<1x24xf32> to vector<1xf32>
    %623 = vector.shape_cast %622 : vector<1xf32> to vector<1x1xf32>
    %cst_160 = arith.constant 1.600000e+01 : f32
    %624 = vector.broadcast %cst_160 : f32 to vector<1x1xf32>
    %625 = arith.cmpf oge, %623, %624 : vector<1x1xf32>
    %cst_161 = arith.constant 1.600000e+01 : f32
    %626 = vector.broadcast %cst_161 : f32 to vector<1x1xf32>
    %627 = arith.subf %623, %626 : vector<1x1xf32>
    %628 = vector.broadcast %627 : vector<1x1xf32> to vector<1x8xf32>
    %629 = arith.cmpf oeq, %406, %628 : vector<1x8xf32>
    %cst_162 = arith.constant 0.000000e+00 : f32
    %630 = vector.broadcast %cst_162 : f32 to vector<1x8xf32>
    %631 = arith.select %629, %400, %630 : vector<1x8xi1>, vector<1x8xf32>
    %cst_163 = arith.constant dense<0.000000e+00> : vector<1xf32>
    %632 = vector.multi_reduction <add>, %631, %cst_163 [1] : vector<1x8xf32> to vector<1xf32>
    %633 = vector.shape_cast %632 : vector<1xf32> to vector<1x1xf32>
    %634 = arith.select %625, %633, %623 : vector<1x1xi1>, vector<1x1xf32>
    %635 = vector.broadcast %623 : vector<1x1xf32> to vector<1x24xf32>
    %636 = arith.cmpf oeq, %408, %635 : vector<1x24xf32>
    %cst_164 = arith.constant 0.000000e+00 : f32
    %637 = vector.broadcast %cst_164 : f32 to vector<1x24xf32>
    %638 = arith.select %636, %606, %637 : vector<1x24xi1>, vector<1x24xf32>
    %cst_165 = arith.constant dense<0.000000e+00> : vector<1xf32>
    %639 = vector.multi_reduction <add>, %638, %cst_165 [1] : vector<1x24xf32> to vector<1xf32>
    %640 = vector.shape_cast %639 : vector<1xf32> to vector<1x1xf32>
    %641 = vector.broadcast %634 : vector<1x1xf32> to vector<1x16xf32>
    %642 = arith.cmpf oeq, %404, %641 : vector<1x16xf32>
    %643 = vector.extract_strided_slice %606 {offsets = [0, 0], sizes = [1, 16], strides = [1, 1]} : vector<1x24xf32> to vector<1x16xf32>
    %cst_166 = arith.constant 0.000000e+00 : f32
    %644 = vector.broadcast %cst_166 : f32 to vector<1x16xf32>
    %645 = arith.select %642, %643, %644 : vector<1x16xi1>, vector<1x16xf32>
    %cst_167 = arith.constant dense<0.000000e+00> : vector<1xf32>
    %646 = vector.multi_reduction <add>, %645, %cst_167 [1] : vector<1x16xf32> to vector<1xf32>
    %647 = vector.shape_cast %646 : vector<1xf32> to vector<1x1xf32>
    %648 = arith.addf %640, %647 : vector<1x1xf32>
    %649 = arith.select %625, %648, %640 : vector<1x1xi1>, vector<1x1xf32>
    %c0_i32_168 = arith.constant 0 : i32
    %650 = vector.broadcast %c0_i32_168 : i32 to vector<1x128xi32>
    %651 = arith.cmpi eq, %409, %650 : vector<1x128xi32>
    %cst_169 = arith.constant 0.000000e+00 : f32
    %652 = vector.shape_cast %634 : vector<1x1xf32> to vector<1x1xf32>
    %653 = vector.broadcast %652 : vector<1x1xf32> to vector<1x128xf32>
    %654 = vector.broadcast %cst_169 : f32 to vector<1x128xf32>
    %655 = arith.select %651, %653, %654 : vector<1x128xi1>, vector<1x128xf32>
    %c1_i32_170 = arith.constant 1 : i32
    %656 = vector.broadcast %c1_i32_170 : i32 to vector<1x128xi32>
    %657 = arith.cmpi eq, %409, %656 : vector<1x128xi32>
    %cst_171 = arith.constant 0.000000e+00 : f32
    %658 = vector.shape_cast %649 : vector<1x1xf32> to vector<1x1xf32>
    %659 = vector.broadcast %658 : vector<1x1xf32> to vector<1x128xf32>
    %660 = vector.broadcast %cst_171 : f32 to vector<1x128xf32>
    %661 = arith.select %657, %659, %660 : vector<1x128xi1>, vector<1x128xf32>
    %662 = arith.addf %655, %661 : vector<1x128xf32>
    %c2_i32_172 = arith.constant 2 : i32
    %663 = vector.broadcast %c2_i32_172 : i32 to vector<1x128xi32>
    %664 = arith.cmpi eq, %409, %663 : vector<1x128xi32>
    %cst_173 = arith.constant 0.000000e+00 : f32
    %665 = vector.shape_cast %623 : vector<1x1xf32> to vector<1x1xf32>
    %666 = vector.broadcast %665 : vector<1x1xf32> to vector<1x128xf32>
    %667 = vector.broadcast %cst_173 : f32 to vector<1x128xf32>
    %668 = arith.select %664, %666, %667 : vector<1x128xi1>, vector<1x128xf32>
    %669 = arith.addf %662, %668 : vector<1x128xf32>
    %c3_i32_174 = arith.constant 3 : i32
    %670 = vector.broadcast %c3_i32_174 : i32 to vector<1x128xi32>
    %671 = arith.cmpi eq, %409, %670 : vector<1x128xi32>
    %672 = arith.extui %625 : vector<1x1xi1> to vector<1x1xi32>
    %673 = arith.sitofp %672 : vector<1x1xi32> to vector<1x1xf32>
    %cst_175 = arith.constant 0.000000e+00 : f32
    %674 = vector.shape_cast %673 : vector<1x1xf32> to vector<1x1xf32>
    %675 = vector.broadcast %674 : vector<1x1xf32> to vector<1x128xf32>
    %676 = vector.broadcast %cst_175 : f32 to vector<1x128xf32>
    %677 = arith.select %671, %675, %676 : vector<1x128xi1>, vector<1x128xf32>
    %678 = arith.addf %669, %677 : vector<1x128xf32>
    %c1_176 = arith.constant 1 : index
    %c0_177 = arith.constant 0 : index
    %679 = vector.load %arg19[%c1_176, %c0_177] : memref<8x128xf32, #tpu.memory_space<vmem>>, vector<1x128xf32>
    tpu.vector_store %arg19[%c1_176, %c0_177], %678 {strides = array<i32>} : memref<8x128xf32, #tpu.memory_space<vmem>>, vector<1x128xf32>,
    %680 = vector.extract_strided_slice %605 {offsets = [0, 16], sizes = [1, 8], strides = [1, 1]} : vector<1x24xf32> to vector<1x8xf32>
    %681 = vector.broadcast %634 : vector<1x1xf32> to vector<1x16xf32>
    %682 = arith.cmpf oeq, %404, %681 : vector<1x16xf32>
    %683 = arith.extui %682 : vector<1x16xi1> to vector<1x16xi32>
    %684 = arith.sitofp %683 : vector<1x16xi32> to vector<1x16xf32>
    %cst_178 = arith.constant dense<0.000000e+00> : vector<1x32xf32>
    %685 = tpu.matmul %684, %399, %cst_178 {dimension_numbers = #tpu.dot_dimension_numbers<[1], [0], [0], [1], [0, 0, 1, 1], [], []>} : vector<1x16xf32>, vector<16x32xf32>, vector<1x32xf32> -> vector<1x32xf32>
    %686 = tpu.concatenate %685, %592 in 1 : vector<1x32xf32>, vector<1x32xf32> -> vector<1x64xf32>
    %cst_179 = arith.constant dense<0.000000e+00> : vector<1x8xf32>
    %687 = tpu.matmul %686, %395, %cst_179 {dimension_numbers = #tpu.dot_dimension_numbers<[1], [0], [0], [1], [0, 0, 1, 1], [], []>} : vector<1x64xf32>, vector<64x8xf32>, vector<1x8xf32> -> vector<1x8xf32>
    %688 = arith.addf %687, %396 : vector<1x8xf32>
    %cst_180 = arith.constant dense<0xFF800000> : vector<1xf32>
    %689 = vector.multi_reduction <maximumf>, %688, %cst_180 [1] : vector<1x8xf32> to vector<1xf32>
    %690 = vector.shape_cast %689 : vector<1xf32> to vector<1x1xf32>
    %691 = vector.broadcast %690 : vector<1x1xf32> to vector<1x8xf32>
    %692 = arith.subf %688, %691 : vector<1x8xf32>
    %693 = math.exp %692 : vector<1x8xf32>
    %cst_181 = arith.constant dense<0.000000e+00> : vector<1xf32>
    %694 = vector.multi_reduction <add>, %693, %cst_181 [1] : vector<1x8xf32> to vector<1xf32>
    %695 = vector.shape_cast %694 : vector<1xf32> to vector<1x1xf32>
    %696 = vector.broadcast %695 : vector<1x1xf32> to vector<1x8xf32>
    %697 = arith.divf %693, %696 : vector<1x8xf32>
    %cst_182 = arith.constant dense<0.000000e+00> : vector<1x32xf32>
    %698 = tpu.matmul %697, %378, %cst_182 {dimension_numbers = #tpu.dot_dimension_numbers<[1], [0], [0], [1], [0, 0, 1, 1], [], []>} : vector<1x8xf32>, vector<8x32xf32>, vector<1x32xf32> -> vector<1x32xf32>
    %699 = vector.broadcast %634 : vector<1x1xf32> to vector<1x8xf32>
    %700 = arith.cmpf one, %400, %699 : vector<1x8xf32>
    %701 = arith.extui %700 : vector<1x8xi1> to vector<1x8xi32>
    %702 = arith.sitofp %701 : vector<1x8xi32> to vector<1x8xf32>
    %703 = arith.mulf %680, %401 : vector<1x8xf32>
    %704 = arith.mulf %703, %702 : vector<1x8xf32>
    %cst_183 = arith.constant dense<0.000000e+00> : vector<1xf32>
    %705 = vector.multi_reduction <add>, %704, %cst_183 [1] : vector<1x8xf32> to vector<1xf32>
    %706 = vector.shape_cast %705 : vector<1xf32> to vector<1x1xf32>
    %cst_184 = arith.constant 0.000000e+00 : f32
    %707 = vector.broadcast %cst_184 : f32 to vector<1x1xf32>
    %708 = arith.cmpf ogt, %706, %707 : vector<1x1xf32>
    %cst_185 = arith.constant 1.000000e-30 : f32
    %709 = vector.broadcast %cst_185 : f32 to vector<1x1xf32>
    %710 = arith.maximumf %706, %709 : vector<1x1xf32>
    %cst_186 = arith.constant 1.000000e+00 : f32
    %711 = vector.broadcast %cst_186 : f32 to vector<1x1xf32>
    %712 = arith.divf %711, %710 : vector<1x1xf32>
    %cst_187 = arith.constant 1.000000e+00 : f32
    %713 = vector.broadcast %cst_187 : f32 to vector<1x1xf32>
    %714 = arith.select %708, %712, %713 : vector<1x1xi1>, vector<1x1xf32>
    %715 = vector.broadcast %714 : vector<1x1xf32> to vector<1x8xf32>
    %716 = arith.mulf %704, %715 : vector<1x8xf32>
    %cst_188 = arith.constant dense<0.000000e+00> : vector<1x32xf32>
    %717 = tpu.matmul %716, %378, %cst_188 {dimension_numbers = #tpu.dot_dimension_numbers<[1], [0], [0], [1], [0, 0, 1, 1], [], []>} : vector<1x8xf32>, vector<8x32xf32>, vector<1x32xf32> -> vector<1x32xf32>
    %718 = tpu.concatenate %685, %717, %698, %592 in 1 : vector<1x32xf32>, vector<1x32xf32>, vector<1x32xf32>, vector<1x32xf32> -> vector<1x128xf32>
    %cst_189 = arith.constant dense<0.000000e+00> : vector<1x128xf32>
    %719 = tpu.matmul %718, %397, %cst_189 {dimension_numbers = #tpu.dot_dimension_numbers<[1], [0], [0], [1], [0, 0, 1, 1], [], []>} : vector<1x128xf32>, vector<128x128xf32>, vector<1x128xf32> -> vector<1x128xf32>
    %720 = arith.addf %719, %398 : vector<1x128xf32>
    %721 = vector.extract_strided_slice %720 {offsets = [0, 0], sizes = [1, 32], strides = [1, 1]} : vector<1x128xf32> to vector<1x32xf32>
    %722 = arith.negf %721 : vector<1x32xf32>
    %723 = math.exp %722 : vector<1x32xf32>
    %cst_190 = arith.constant 1.000000e+00 : f32
    %724 = vector.broadcast %cst_190 : f32 to vector<1x32xf32>
    %725 = arith.addf %724, %723 : vector<1x32xf32>
    %726 = arith.divf %724, %725 : vector<1x32xf32>
    %727 = vector.extract_strided_slice %720 {offsets = [0, 32], sizes = [1, 32], strides = [1, 1]} : vector<1x128xf32> to vector<1x32xf32>
    %728 = arith.negf %727 : vector<1x32xf32>
    %729 = math.exp %728 : vector<1x32xf32>
    %cst_191 = arith.constant 1.000000e+00 : f32
    %730 = vector.broadcast %cst_191 : f32 to vector<1x32xf32>
    %731 = arith.addf %730, %729 : vector<1x32xf32>
    %732 = arith.divf %730, %731 : vector<1x32xf32>
    %733 = vector.extract_strided_slice %720 {offsets = [0, 64], sizes = [1, 32], strides = [1, 1]} : vector<1x128xf32> to vector<1x32xf32>
    %734 = math.tanh %733 : vector<1x32xf32>
    %735 = vector.extract_strided_slice %720 {offsets = [0, 96], sizes = [1, 32], strides = [1, 1]} : vector<1x128xf32> to vector<1x32xf32>
    %736 = arith.negf %735 : vector<1x32xf32>
    %737 = math.exp %736 : vector<1x32xf32>
    %cst_192 = arith.constant 1.000000e+00 : f32
    %738 = vector.broadcast %cst_192 : f32 to vector<1x32xf32>
    %739 = arith.addf %738, %737 : vector<1x32xf32>
    %740 = arith.divf %738, %739 : vector<1x32xf32>
    %741 = arith.mulf %732, %590 : vector<1x32xf32>
    %742 = arith.mulf %726, %734 : vector<1x32xf32>
    %743 = arith.addf %741, %742 : vector<1x32xf32>
    %744 = math.tanh %743 : vector<1x32xf32>
    %745 = arith.mulf %740, %744 : vector<1x32xf32>
    %746 = tpu.concatenate %745, %379 in 1 : vector<1x32xf32>, vector<1x96xf32> -> vector<1x128xf32>
    %c3_193 = arith.constant 3 : index
    %c0_194 = arith.constant 0 : index
    %747 = vector.load %arg18[%c3_193, %c0_194] : memref<9x128xf32, #tpu.memory_space<vmem>>, vector<1x128xf32>
    tpu.vector_store %arg18[%c3_193, %c0_194], %746 {strides = array<i32>} : memref<9x128xf32, #tpu.memory_space<vmem>>, vector<1x128xf32>,
    %cst_195 = arith.constant dense<0.000000e+00> : vector<1x24xf32>
    %748 = tpu.matmul %745, %390, %cst_195 {dimension_numbers = #tpu.dot_dimension_numbers<[1], [0], [0], [1], [0, 0, 1, 1], [], []>} : vector<1x32xf32>, vector<32x24xf32>, vector<1x24xf32> -> vector<1x24xf32>
    %749 = arith.addf %748, %393 : vector<1x24xf32>
    %cst_196 = arith.constant dense<0xFF800000> : vector<1xf32>
    %750 = vector.multi_reduction <maximumf>, %749, %cst_196 [1] : vector<1x24xf32> to vector<1xf32>
    %751 = vector.shape_cast %750 : vector<1xf32> to vector<1x1xf32>
    %752 = vector.broadcast %751 : vector<1x1xf32> to vector<1x24xf32>
    %753 = arith.subf %749, %752 : vector<1x24xf32>
    %754 = math.exp %753 : vector<1x24xf32>
    %cst_197 = arith.constant dense<0.000000e+00> : vector<1xf32>
    %755 = vector.multi_reduction <add>, %754, %cst_197 [1] : vector<1x24xf32> to vector<1xf32>
    %756 = vector.shape_cast %755 : vector<1xf32> to vector<1x1xf32>
    %757 = vector.broadcast %756 : vector<1x1xf32> to vector<1x24xf32>
    %758 = arith.divf %754, %757 : vector<1x24xf32>
    %759 = arith.mulf %758, %394 : vector<1x24xf32>
    %cst_198 = arith.constant 0.000000e+00 : f32
    %760 = vector.broadcast %cst_198 : f32 to vector<1x24xf32>
    %761 = arith.cmpf ogt, %759, %760 : vector<1x24xf32>
    %cst_199 = arith.constant 1.000000e-30 : f32
    %762 = vector.broadcast %cst_199 : f32 to vector<1x24xf32>
    %763 = arith.maximumf %759, %762 : vector<1x24xf32>
    %764 = math.log %763 : vector<1x24xf32>
    %cst_200 = arith.constant -1.000000e+30 : f32
    %765 = vector.broadcast %cst_200 : f32 to vector<1x24xf32>
    %766 = arith.select %761, %764, %765 : vector<1x24xi1>, vector<1x24xf32>
    %767 = vector.extract_strided_slice %402 {offsets = [2, 0], sizes = [1, 24], strides = [1, 1]} : vector<8x24xf32> to vector<1x24xf32>
    %768 = arith.addf %766, %767 : vector<1x24xf32>
    %cst_201 = arith.constant dense<0xFF800000> : vector<1xf32>
    %769 = vector.multi_reduction <maximumf>, %768, %cst_201 [1] : vector<1x24xf32> to vector<1xf32>
    %770 = vector.shape_cast %769 : vector<1xf32> to vector<1x1xf32>
    %771 = vector.broadcast %770 : vector<1x1xf32> to vector<1x24xf32>
    %772 = arith.cmpf oge, %768, %771 : vector<1x24xf32>
    %cst_202 = arith.constant 2.400000e+01 : f32
    %773 = vector.broadcast %cst_202 : f32 to vector<1x24xf32>
    %774 = arith.select %772, %408, %773 : vector<1x24xi1>, vector<1x24xf32>
    %cst_203 = arith.constant dense<0x7F800000> : vector<1xf32>
    %775 = vector.multi_reduction <minimumf>, %774, %cst_203 [1] : vector<1x24xf32> to vector<1xf32>
    %776 = vector.shape_cast %775 : vector<1xf32> to vector<1x1xf32>
    %cst_204 = arith.constant 1.600000e+01 : f32
    %777 = vector.broadcast %cst_204 : f32 to vector<1x1xf32>
    %778 = arith.cmpf oge, %776, %777 : vector<1x1xf32>
    %cst_205 = arith.constant 1.600000e+01 : f32
    %779 = vector.broadcast %cst_205 : f32 to vector<1x1xf32>
    %780 = arith.subf %776, %779 : vector<1x1xf32>
    %781 = vector.broadcast %780 : vector<1x1xf32> to vector<1x8xf32>
    %782 = arith.cmpf oeq, %406, %781 : vector<1x8xf32>
    %cst_206 = arith.constant 0.000000e+00 : f32
    %783 = vector.broadcast %cst_206 : f32 to vector<1x8xf32>
    %784 = arith.select %782, %400, %783 : vector<1x8xi1>, vector<1x8xf32>
    %cst_207 = arith.constant dense<0.000000e+00> : vector<1xf32>
    %785 = vector.multi_reduction <add>, %784, %cst_207 [1] : vector<1x8xf32> to vector<1xf32>
    %786 = vector.shape_cast %785 : vector<1xf32> to vector<1x1xf32>
    %787 = arith.select %778, %786, %776 : vector<1x1xi1>, vector<1x1xf32>
    %788 = vector.broadcast %776 : vector<1x1xf32> to vector<1x24xf32>
    %789 = arith.cmpf oeq, %408, %788 : vector<1x24xf32>
    %cst_208 = arith.constant 0.000000e+00 : f32
    %790 = vector.broadcast %cst_208 : f32 to vector<1x24xf32>
    %791 = arith.select %789, %759, %790 : vector<1x24xi1>, vector<1x24xf32>
    %cst_209 = arith.constant dense<0.000000e+00> : vector<1xf32>
    %792 = vector.multi_reduction <add>, %791, %cst_209 [1] : vector<1x24xf32> to vector<1xf32>
    %793 = vector.shape_cast %792 : vector<1xf32> to vector<1x1xf32>
    %794 = vector.broadcast %787 : vector<1x1xf32> to vector<1x16xf32>
    %795 = arith.cmpf oeq, %404, %794 : vector<1x16xf32>
    %796 = vector.extract_strided_slice %759 {offsets = [0, 0], sizes = [1, 16], strides = [1, 1]} : vector<1x24xf32> to vector<1x16xf32>
    %cst_210 = arith.constant 0.000000e+00 : f32
    %797 = vector.broadcast %cst_210 : f32 to vector<1x16xf32>
    %798 = arith.select %795, %796, %797 : vector<1x16xi1>, vector<1x16xf32>
    %cst_211 = arith.constant dense<0.000000e+00> : vector<1xf32>
    %799 = vector.multi_reduction <add>, %798, %cst_211 [1] : vector<1x16xf32> to vector<1xf32>
    %800 = vector.shape_cast %799 : vector<1xf32> to vector<1x1xf32>
    %801 = arith.addf %793, %800 : vector<1x1xf32>
    %802 = arith.select %778, %801, %793 : vector<1x1xi1>, vector<1x1xf32>
    %c0_i32_212 = arith.constant 0 : i32
    %803 = vector.broadcast %c0_i32_212 : i32 to vector<1x128xi32>
    %804 = arith.cmpi eq, %409, %803 : vector<1x128xi32>
    %cst_213 = arith.constant 0.000000e+00 : f32
    %805 = vector.shape_cast %787 : vector<1x1xf32> to vector<1x1xf32>
    %806 = vector.broadcast %805 : vector<1x1xf32> to vector<1x128xf32>
    %807 = vector.broadcast %cst_213 : f32 to vector<1x128xf32>
    %808 = arith.select %804, %806, %807 : vector<1x128xi1>, vector<1x128xf32>
    %c1_i32_214 = arith.constant 1 : i32
    %809 = vector.broadcast %c1_i32_214 : i32 to vector<1x128xi32>
    %810 = arith.cmpi eq, %409, %809 : vector<1x128xi32>
    %cst_215 = arith.constant 0.000000e+00 : f32
    %811 = vector.shape_cast %802 : vector<1x1xf32> to vector<1x1xf32>
    %812 = vector.broadcast %811 : vector<1x1xf32> to vector<1x128xf32>
    %813 = vector.broadcast %cst_215 : f32 to vector<1x128xf32>
    %814 = arith.select %810, %812, %813 : vector<1x128xi1>, vector<1x128xf32>
    %815 = arith.addf %808, %814 : vector<1x128xf32>
    %c2_i32_216 = arith.constant 2 : i32
    %816 = vector.broadcast %c2_i32_216 : i32 to vector<1x128xi32>
    %817 = arith.cmpi eq, %409, %816 : vector<1x128xi32>
    %cst_217 = arith.constant 0.000000e+00 : f32
    %818 = vector.shape_cast %776 : vector<1x1xf32> to vector<1x1xf32>
    %819 = vector.broadcast %818 : vector<1x1xf32> to vector<1x128xf32>
    %820 = vector.broadcast %cst_217 : f32 to vector<1x128xf32>
    %821 = arith.select %817, %819, %820 : vector<1x128xi1>, vector<1x128xf32>
    %822 = arith.addf %815, %821 : vector<1x128xf32>
    %c3_i32_218 = arith.constant 3 : i32
    %823 = vector.broadcast %c3_i32_218 : i32 to vector<1x128xi32>
    %824 = arith.cmpi eq, %409, %823 : vector<1x128xi32>
    %825 = arith.extui %778 : vector<1x1xi1> to vector<1x1xi32>
    %826 = arith.sitofp %825 : vector<1x1xi32> to vector<1x1xf32>
    %cst_219 = arith.constant 0.000000e+00 : f32
    %827 = vector.shape_cast %826 : vector<1x1xf32> to vector<1x1xf32>
    %828 = vector.broadcast %827 : vector<1x1xf32> to vector<1x128xf32>
    %829 = vector.broadcast %cst_219 : f32 to vector<1x128xf32>
    %830 = arith.select %824, %828, %829 : vector<1x128xi1>, vector<1x128xf32>
    %831 = arith.addf %822, %830 : vector<1x128xf32>
    %c2_220 = arith.constant 2 : index
    %c0_221 = arith.constant 0 : index
    %832 = vector.load %arg19[%c2_220, %c0_221] : memref<8x128xf32, #tpu.memory_space<vmem>>, vector<1x128xf32>
    tpu.vector_store %arg19[%c2_220, %c0_221], %831 {strides = array<i32>} : memref<8x128xf32, #tpu.memory_space<vmem>>, vector<1x128xf32>,
    %833 = vector.extract_strided_slice %758 {offsets = [0, 16], sizes = [1, 8], strides = [1, 1]} : vector<1x24xf32> to vector<1x8xf32>
    %834 = vector.broadcast %787 : vector<1x1xf32> to vector<1x16xf32>
    %835 = arith.cmpf oeq, %404, %834 : vector<1x16xf32>
    %836 = arith.extui %835 : vector<1x16xi1> to vector<1x16xi32>
    %837 = arith.sitofp %836 : vector<1x16xi32> to vector<1x16xf32>
    %cst_222 = arith.constant dense<0.000000e+00> : vector<1x32xf32>
    %838 = tpu.matmul %837, %399, %cst_222 {dimension_numbers = #tpu.dot_dimension_numbers<[1], [0], [0], [1], [0, 0, 1, 1], [], []>} : vector<1x16xf32>, vector<16x32xf32>, vector<1x32xf32> -> vector<1x32xf32>
    %839 = tpu.concatenate %838, %745 in 1 : vector<1x32xf32>, vector<1x32xf32> -> vector<1x64xf32>
    %cst_223 = arith.constant dense<0.000000e+00> : vector<1x8xf32>
    %840 = tpu.matmul %839, %395, %cst_223 {dimension_numbers = #tpu.dot_dimension_numbers<[1], [0], [0], [1], [0, 0, 1, 1], [], []>} : vector<1x64xf32>, vector<64x8xf32>, vector<1x8xf32> -> vector<1x8xf32>
    %841 = arith.addf %840, %396 : vector<1x8xf32>
    %cst_224 = arith.constant dense<0xFF800000> : vector<1xf32>
    %842 = vector.multi_reduction <maximumf>, %841, %cst_224 [1] : vector<1x8xf32> to vector<1xf32>
    %843 = vector.shape_cast %842 : vector<1xf32> to vector<1x1xf32>
    %844 = vector.broadcast %843 : vector<1x1xf32> to vector<1x8xf32>
    %845 = arith.subf %841, %844 : vector<1x8xf32>
    %846 = math.exp %845 : vector<1x8xf32>
    %cst_225 = arith.constant dense<0.000000e+00> : vector<1xf32>
    %847 = vector.multi_reduction <add>, %846, %cst_225 [1] : vector<1x8xf32> to vector<1xf32>
    %848 = vector.shape_cast %847 : vector<1xf32> to vector<1x1xf32>
    %849 = vector.broadcast %848 : vector<1x1xf32> to vector<1x8xf32>
    %850 = arith.divf %846, %849 : vector<1x8xf32>
    %cst_226 = arith.constant dense<0.000000e+00> : vector<1x32xf32>
    %851 = tpu.matmul %850, %378, %cst_226 {dimension_numbers = #tpu.dot_dimension_numbers<[1], [0], [0], [1], [0, 0, 1, 1], [], []>} : vector<1x8xf32>, vector<8x32xf32>, vector<1x32xf32> -> vector<1x32xf32>
    %852 = vector.broadcast %787 : vector<1x1xf32> to vector<1x8xf32>
    %853 = arith.cmpf one, %400, %852 : vector<1x8xf32>
    %854 = arith.extui %853 : vector<1x8xi1> to vector<1x8xi32>
    %855 = arith.sitofp %854 : vector<1x8xi32> to vector<1x8xf32>
    %856 = arith.mulf %833, %401 : vector<1x8xf32>
    %857 = arith.mulf %856, %855 : vector<1x8xf32>
    %cst_227 = arith.constant dense<0.000000e+00> : vector<1xf32>
    %858 = vector.multi_reduction <add>, %857, %cst_227 [1] : vector<1x8xf32> to vector<1xf32>
    %859 = vector.shape_cast %858 : vector<1xf32> to vector<1x1xf32>
    %cst_228 = arith.constant 0.000000e+00 : f32
    %860 = vector.broadcast %cst_228 : f32 to vector<1x1xf32>
    %861 = arith.cmpf ogt, %859, %860 : vector<1x1xf32>
    %cst_229 = arith.constant 1.000000e-30 : f32
    %862 = vector.broadcast %cst_229 : f32 to vector<1x1xf32>
    %863 = arith.maximumf %859, %862 : vector<1x1xf32>
    %cst_230 = arith.constant 1.000000e+00 : f32
    %864 = vector.broadcast %cst_230 : f32 to vector<1x1xf32>
    %865 = arith.divf %864, %863 : vector<1x1xf32>
    %cst_231 = arith.constant 1.000000e+00 : f32
    %866 = vector.broadcast %cst_231 : f32 to vector<1x1xf32>
    %867 = arith.select %861, %865, %866 : vector<1x1xi1>, vector<1x1xf32>
    %868 = vector.broadcast %867 : vector<1x1xf32> to vector<1x8xf32>
    %869 = arith.mulf %857, %868 : vector<1x8xf32>
    %cst_232 = arith.constant dense<0.000000e+00> : vector<1x32xf32>
    %870 = tpu.matmul %869, %378, %cst_232 {dimension_numbers = #tpu.dot_dimension_numbers<[1], [0], [0], [1], [0, 0, 1, 1], [], []>} : vector<1x8xf32>, vector<8x32xf32>, vector<1x32xf32> -> vector<1x32xf32>
    %871 = tpu.concatenate %838, %870, %851, %745 in 1 : vector<1x32xf32>, vector<1x32xf32>, vector<1x32xf32>, vector<1x32xf32> -> vector<1x128xf32>
    %cst_233 = arith.constant dense<0.000000e+00> : vector<1x128xf32>
    %872 = tpu.matmul %871, %397, %cst_233 {dimension_numbers = #tpu.dot_dimension_numbers<[1], [0], [0], [1], [0, 0, 1, 1], [], []>} : vector<1x128xf32>, vector<128x128xf32>, vector<1x128xf32> -> vector<1x128xf32>
    %873 = arith.addf %872, %398 : vector<1x128xf32>
    %874 = vector.extract_strided_slice %873 {offsets = [0, 0], sizes = [1, 32], strides = [1, 1]} : vector<1x128xf32> to vector<1x32xf32>
    %875 = arith.negf %874 : vector<1x32xf32>
    %876 = math.exp %875 : vector<1x32xf32>
    %cst_234 = arith.constant 1.000000e+00 : f32
    %877 = vector.broadcast %cst_234 : f32 to vector<1x32xf32>
    %878 = arith.addf %877, %876 : vector<1x32xf32>
    %879 = arith.divf %877, %878 : vector<1x32xf32>
    %880 = vector.extract_strided_slice %873 {offsets = [0, 32], sizes = [1, 32], strides = [1, 1]} : vector<1x128xf32> to vector<1x32xf32>
    %881 = arith.negf %880 : vector<1x32xf32>
    %882 = math.exp %881 : vector<1x32xf32>
    %cst_235 = arith.constant 1.000000e+00 : f32
    %883 = vector.broadcast %cst_235 : f32 to vector<1x32xf32>
    %884 = arith.addf %883, %882 : vector<1x32xf32>
    %885 = arith.divf %883, %884 : vector<1x32xf32>
    %886 = vector.extract_strided_slice %873 {offsets = [0, 64], sizes = [1, 32], strides = [1, 1]} : vector<1x128xf32> to vector<1x32xf32>
    %887 = math.tanh %886 : vector<1x32xf32>
    %888 = vector.extract_strided_slice %873 {offsets = [0, 96], sizes = [1, 32], strides = [1, 1]} : vector<1x128xf32> to vector<1x32xf32>
    %889 = arith.negf %888 : vector<1x32xf32>
    %890 = math.exp %889 : vector<1x32xf32>
    %cst_236 = arith.constant 1.000000e+00 : f32
    %891 = vector.broadcast %cst_236 : f32 to vector<1x32xf32>
    %892 = arith.addf %891, %890 : vector<1x32xf32>
    %893 = arith.divf %891, %892 : vector<1x32xf32>
    %894 = arith.mulf %885, %743 : vector<1x32xf32>
    %895 = arith.mulf %879, %887 : vector<1x32xf32>
    %896 = arith.addf %894, %895 : vector<1x32xf32>
    %897 = math.tanh %896 : vector<1x32xf32>
    %898 = arith.mulf %893, %897 : vector<1x32xf32>
    %899 = tpu.concatenate %898, %379 in 1 : vector<1x32xf32>, vector<1x96xf32> -> vector<1x128xf32>
    %c4_237 = arith.constant 4 : index
    %c0_238 = arith.constant 0 : index
    %900 = vector.load %arg18[%c4_237, %c0_238] : memref<9x128xf32, #tpu.memory_space<vmem>>, vector<1x128xf32>
    tpu.vector_store %arg18[%c4_237, %c0_238], %899 {strides = array<i32>} : memref<9x128xf32, #tpu.memory_space<vmem>>, vector<1x128xf32>,
    %cst_239 = arith.constant dense<0.000000e+00> : vector<1x24xf32>
    %901 = tpu.matmul %898, %390, %cst_239 {dimension_numbers = #tpu.dot_dimension_numbers<[1], [0], [0], [1], [0, 0, 1, 1], [], []>} : vector<1x32xf32>, vector<32x24xf32>, vector<1x24xf32> -> vector<1x24xf32>
    %902 = arith.addf %901, %393 : vector<1x24xf32>
    %cst_240 = arith.constant dense<0xFF800000> : vector<1xf32>
    %903 = vector.multi_reduction <maximumf>, %902, %cst_240 [1] : vector<1x24xf32> to vector<1xf32>
    %904 = vector.shape_cast %903 : vector<1xf32> to vector<1x1xf32>
    %905 = vector.broadcast %904 : vector<1x1xf32> to vector<1x24xf32>
    %906 = arith.subf %902, %905 : vector<1x24xf32>
    %907 = math.exp %906 : vector<1x24xf32>
    %cst_241 = arith.constant dense<0.000000e+00> : vector<1xf32>
    %908 = vector.multi_reduction <add>, %907, %cst_241 [1] : vector<1x24xf32> to vector<1xf32>
    %909 = vector.shape_cast %908 : vector<1xf32> to vector<1x1xf32>
    %910 = vector.broadcast %909 : vector<1x1xf32> to vector<1x24xf32>
    %911 = arith.divf %907, %910 : vector<1x24xf32>
    %912 = arith.mulf %911, %394 : vector<1x24xf32>
    %cst_242 = arith.constant 0.000000e+00 : f32
    %913 = vector.broadcast %cst_242 : f32 to vector<1x24xf32>
    %914 = arith.cmpf ogt, %912, %913 : vector<1x24xf32>
    %cst_243 = arith.constant 1.000000e-30 : f32
    %915 = vector.broadcast %cst_243 : f32 to vector<1x24xf32>
    %916 = arith.maximumf %912, %915 : vector<1x24xf32>
    %917 = math.log %916 : vector<1x24xf32>
    %cst_244 = arith.constant -1.000000e+30 : f32
    %918 = vector.broadcast %cst_244 : f32 to vector<1x24xf32>
    %919 = arith.select %914, %917, %918 : vector<1x24xi1>, vector<1x24xf32>
    %920 = vector.extract_strided_slice %402 {offsets = [3, 0], sizes = [1, 24], strides = [1, 1]} : vector<8x24xf32> to vector<1x24xf32>
    %921 = arith.addf %919, %920 : vector<1x24xf32>
    %cst_245 = arith.constant dense<0xFF800000> : vector<1xf32>
    %922 = vector.multi_reduction <maximumf>, %921, %cst_245 [1] : vector<1x24xf32> to vector<1xf32>
    %923 = vector.shape_cast %922 : vector<1xf32> to vector<1x1xf32>
    %924 = vector.broadcast %923 : vector<1x1xf32> to vector<1x24xf32>
    %925 = arith.cmpf oge, %921, %924 : vector<1x24xf32>
    %cst_246 = arith.constant 2.400000e+01 : f32
    %926 = vector.broadcast %cst_246 : f32 to vector<1x24xf32>
    %927 = arith.select %925, %408, %926 : vector<1x24xi1>, vector<1x24xf32>
    %cst_247 = arith.constant dense<0x7F800000> : vector<1xf32>
    %928 = vector.multi_reduction <minimumf>, %927, %cst_247 [1] : vector<1x24xf32> to vector<1xf32>
    %929 = vector.shape_cast %928 : vector<1xf32> to vector<1x1xf32>
    %cst_248 = arith.constant 1.600000e+01 : f32
    %930 = vector.broadcast %cst_248 : f32 to vector<1x1xf32>
    %931 = arith.cmpf oge, %929, %930 : vector<1x1xf32>
    %cst_249 = arith.constant 1.600000e+01 : f32
    %932 = vector.broadcast %cst_249 : f32 to vector<1x1xf32>
    %933 = arith.subf %929, %932 : vector<1x1xf32>
    %934 = vector.broadcast %933 : vector<1x1xf32> to vector<1x8xf32>
    %935 = arith.cmpf oeq, %406, %934 : vector<1x8xf32>
    %cst_250 = arith.constant 0.000000e+00 : f32
    %936 = vector.broadcast %cst_250 : f32 to vector<1x8xf32>
    %937 = arith.select %935, %400, %936 : vector<1x8xi1>, vector<1x8xf32>
    %cst_251 = arith.constant dense<0.000000e+00> : vector<1xf32>
    %938 = vector.multi_reduction <add>, %937, %cst_251 [1] : vector<1x8xf32> to vector<1xf32>
    %939 = vector.shape_cast %938 : vector<1xf32> to vector<1x1xf32>
    %940 = arith.select %931, %939, %929 : vector<1x1xi1>, vector<1x1xf32>
    %941 = vector.broadcast %929 : vector<1x1xf32> to vector<1x24xf32>
    %942 = arith.cmpf oeq, %408, %941 : vector<1x24xf32>
    %cst_252 = arith.constant 0.000000e+00 : f32
    %943 = vector.broadcast %cst_252 : f32 to vector<1x24xf32>
    %944 = arith.select %942, %912, %943 : vector<1x24xi1>, vector<1x24xf32>
    %cst_253 = arith.constant dense<0.000000e+00> : vector<1xf32>
    %945 = vector.multi_reduction <add>, %944, %cst_253 [1] : vector<1x24xf32> to vector<1xf32>
    %946 = vector.shape_cast %945 : vector<1xf32> to vector<1x1xf32>
    %947 = vector.broadcast %940 : vector<1x1xf32> to vector<1x16xf32>
    %948 = arith.cmpf oeq, %404, %947 : vector<1x16xf32>
    %949 = vector.extract_strided_slice %912 {offsets = [0, 0], sizes = [1, 16], strides = [1, 1]} : vector<1x24xf32> to vector<1x16xf32>
    %cst_254 = arith.constant 0.000000e+00 : f32
    %950 = vector.broadcast %cst_254 : f32 to vector<1x16xf32>
    %951 = arith.select %948, %949, %950 : vector<1x16xi1>, vector<1x16xf32>
    %cst_255 = arith.constant dense<0.000000e+00> : vector<1xf32>
    %952 = vector.multi_reduction <add>, %951, %cst_255 [1] : vector<1x16xf32> to vector<1xf32>
    %953 = vector.shape_cast %952 : vector<1xf32> to vector<1x1xf32>
    %954 = arith.addf %946, %953 : vector<1x1xf32>
    %955 = arith.select %931, %954, %946 : vector<1x1xi1>, vector<1x1xf32>
    %c0_i32_256 = arith.constant 0 : i32
    %956 = vector.broadcast %c0_i32_256 : i32 to vector<1x128xi32>
    %957 = arith.cmpi eq, %409, %956 : vector<1x128xi32>
    %cst_257 = arith.constant 0.000000e+00 : f32
    %958 = vector.shape_cast %940 : vector<1x1xf32> to vector<1x1xf32>
    %959 = vector.broadcast %958 : vector<1x1xf32> to vector<1x128xf32>
    %960 = vector.broadcast %cst_257 : f32 to vector<1x128xf32>
    %961 = arith.select %957, %959, %960 : vector<1x128xi1>, vector<1x128xf32>
    %c1_i32_258 = arith.constant 1 : i32
    %962 = vector.broadcast %c1_i32_258 : i32 to vector<1x128xi32>
    %963 = arith.cmpi eq, %409, %962 : vector<1x128xi32>
    %cst_259 = arith.constant 0.000000e+00 : f32
    %964 = vector.shape_cast %955 : vector<1x1xf32> to vector<1x1xf32>
    %965 = vector.broadcast %964 : vector<1x1xf32> to vector<1x128xf32>
    %966 = vector.broadcast %cst_259 : f32 to vector<1x128xf32>
    %967 = arith.select %963, %965, %966 : vector<1x128xi1>, vector<1x128xf32>
    %968 = arith.addf %961, %967 : vector<1x128xf32>
    %c2_i32_260 = arith.constant 2 : i32
    %969 = vector.broadcast %c2_i32_260 : i32 to vector<1x128xi32>
    %970 = arith.cmpi eq, %409, %969 : vector<1x128xi32>
    %cst_261 = arith.constant 0.000000e+00 : f32
    %971 = vector.shape_cast %929 : vector<1x1xf32> to vector<1x1xf32>
    %972 = vector.broadcast %971 : vector<1x1xf32> to vector<1x128xf32>
    %973 = vector.broadcast %cst_261 : f32 to vector<1x128xf32>
    %974 = arith.select %970, %972, %973 : vector<1x128xi1>, vector<1x128xf32>
    %975 = arith.addf %968, %974 : vector<1x128xf32>
    %c3_i32_262 = arith.constant 3 : i32
    %976 = vector.broadcast %c3_i32_262 : i32 to vector<1x128xi32>
    %977 = arith.cmpi eq, %409, %976 : vector<1x128xi32>
    %978 = arith.extui %931 : vector<1x1xi1> to vector<1x1xi32>
    %979 = arith.sitofp %978 : vector<1x1xi32> to vector<1x1xf32>
    %cst_263 = arith.constant 0.000000e+00 : f32
    %980 = vector.shape_cast %979 : vector<1x1xf32> to vector<1x1xf32>
    %981 = vector.broadcast %980 : vector<1x1xf32> to vector<1x128xf32>
    %982 = vector.broadcast %cst_263 : f32 to vector<1x128xf32>
    %983 = arith.select %977, %981, %982 : vector<1x128xi1>, vector<1x128xf32>
    %984 = arith.addf %975, %983 : vector<1x128xf32>
    %c3_264 = arith.constant 3 : index
    %c0_265 = arith.constant 0 : index
    %985 = vector.load %arg19[%c3_264, %c0_265] : memref<8x128xf32, #tpu.memory_space<vmem>>, vector<1x128xf32>
    tpu.vector_store %arg19[%c3_264, %c0_265], %984 {strides = array<i32>} : memref<8x128xf32, #tpu.memory_space<vmem>>, vector<1x128xf32>,
    %986 = vector.extract_strided_slice %911 {offsets = [0, 16], sizes = [1, 8], strides = [1, 1]} : vector<1x24xf32> to vector<1x8xf32>
    %987 = vector.broadcast %940 : vector<1x1xf32> to vector<1x16xf32>
    %988 = arith.cmpf oeq, %404, %987 : vector<1x16xf32>
    %989 = arith.extui %988 : vector<1x16xi1> to vector<1x16xi32>
    %990 = arith.sitofp %989 : vector<1x16xi32> to vector<1x16xf32>
    %cst_266 = arith.constant dense<0.000000e+00> : vector<1x32xf32>
    %991 = tpu.matmul %990, %399, %cst_266 {dimension_numbers = #tpu.dot_dimension_numbers<[1], [0], [0], [1], [0, 0, 1, 1], [], []>} : vector<1x16xf32>, vector<16x32xf32>, vector<1x32xf32> -> vector<1x32xf32>
    %992 = tpu.concatenate %991, %898 in 1 : vector<1x32xf32>, vector<1x32xf32> -> vector<1x64xf32>
    %cst_267 = arith.constant dense<0.000000e+00> : vector<1x8xf32>
    %993 = tpu.matmul %992, %395, %cst_267 {dimension_numbers = #tpu.dot_dimension_numbers<[1], [0], [0], [1], [0, 0, 1, 1], [], []>} : vector<1x64xf32>, vector<64x8xf32>, vector<1x8xf32> -> vector<1x8xf32>
    %994 = arith.addf %993, %396 : vector<1x8xf32>
    %cst_268 = arith.constant dense<0xFF800000> : vector<1xf32>
    %995 = vector.multi_reduction <maximumf>, %994, %cst_268 [1] : vector<1x8xf32> to vector<1xf32>
    %996 = vector.shape_cast %995 : vector<1xf32> to vector<1x1xf32>
    %997 = vector.broadcast %996 : vector<1x1xf32> to vector<1x8xf32>
    %998 = arith.subf %994, %997 : vector<1x8xf32>
    %999 = math.exp %998 : vector<1x8xf32>
    %cst_269 = arith.constant dense<0.000000e+00> : vector<1xf32>
    %1000 = vector.multi_reduction <add>, %999, %cst_269 [1] : vector<1x8xf32> to vector<1xf32>
    %1001 = vector.shape_cast %1000 : vector<1xf32> to vector<1x1xf32>
    %1002 = vector.broadcast %1001 : vector<1x1xf32> to vector<1x8xf32>
    %1003 = arith.divf %999, %1002 : vector<1x8xf32>
    %cst_270 = arith.constant dense<0.000000e+00> : vector<1x32xf32>
    %1004 = tpu.matmul %1003, %378, %cst_270 {dimension_numbers = #tpu.dot_dimension_numbers<[1], [0], [0], [1], [0, 0, 1, 1], [], []>} : vector<1x8xf32>, vector<8x32xf32>, vector<1x32xf32> -> vector<1x32xf32>
    %1005 = vector.broadcast %940 : vector<1x1xf32> to vector<1x8xf32>
    %1006 = arith.cmpf one, %400, %1005 : vector<1x8xf32>
    %1007 = arith.extui %1006 : vector<1x8xi1> to vector<1x8xi32>
    %1008 = arith.sitofp %1007 : vector<1x8xi32> to vector<1x8xf32>
    %1009 = arith.mulf %986, %401 : vector<1x8xf32>
    %1010 = arith.mulf %1009, %1008 : vector<1x8xf32>
    %cst_271 = arith.constant dense<0.000000e+00> : vector<1xf32>
    %1011 = vector.multi_reduction <add>, %1010, %cst_271 [1] : vector<1x8xf32> to vector<1xf32>
    %1012 = vector.shape_cast %1011 : vector<1xf32> to vector<1x1xf32>
    %cst_272 = arith.constant 0.000000e+00 : f32
    %1013 = vector.broadcast %cst_272 : f32 to vector<1x1xf32>
    %1014 = arith.cmpf ogt, %1012, %1013 : vector<1x1xf32>
    %cst_273 = arith.constant 1.000000e-30 : f32
    %1015 = vector.broadcast %cst_273 : f32 to vector<1x1xf32>
    %1016 = arith.maximumf %1012, %1015 : vector<1x1xf32>
    %cst_274 = arith.constant 1.000000e+00 : f32
    %1017 = vector.broadcast %cst_274 : f32 to vector<1x1xf32>
    %1018 = arith.divf %1017, %1016 : vector<1x1xf32>
    %cst_275 = arith.constant 1.000000e+00 : f32
    %1019 = vector.broadcast %cst_275 : f32 to vector<1x1xf32>
    %1020 = arith.select %1014, %1018, %1019 : vector<1x1xi1>, vector<1x1xf32>
    %1021 = vector.broadcast %1020 : vector<1x1xf32> to vector<1x8xf32>
    %1022 = arith.mulf %1010, %1021 : vector<1x8xf32>
    %cst_276 = arith.constant dense<0.000000e+00> : vector<1x32xf32>
    %1023 = tpu.matmul %1022, %378, %cst_276 {dimension_numbers = #tpu.dot_dimension_numbers<[1], [0], [0], [1], [0, 0, 1, 1], [], []>} : vector<1x8xf32>, vector<8x32xf32>, vector<1x32xf32> -> vector<1x32xf32>
    %1024 = tpu.concatenate %991, %1023, %1004, %898 in 1 : vector<1x32xf32>, vector<1x32xf32>, vector<1x32xf32>, vector<1x32xf32> -> vector<1x128xf32>
    %cst_277 = arith.constant dense<0.000000e+00> : vector<1x128xf32>
    %1025 = tpu.matmul %1024, %397, %cst_277 {dimension_numbers = #tpu.dot_dimension_numbers<[1], [0], [0], [1], [0, 0, 1, 1], [], []>} : vector<1x128xf32>, vector<128x128xf32>, vector<1x128xf32> -> vector<1x128xf32>
    %1026 = arith.addf %1025, %398 : vector<1x128xf32>
    %1027 = vector.extract_strided_slice %1026 {offsets = [0, 0], sizes = [1, 32], strides = [1, 1]} : vector<1x128xf32> to vector<1x32xf32>
    %1028 = arith.negf %1027 : vector<1x32xf32>
    %1029 = math.exp %1028 : vector<1x32xf32>
    %cst_278 = arith.constant 1.000000e+00 : f32
    %1030 = vector.broadcast %cst_278 : f32 to vector<1x32xf32>
    %1031 = arith.addf %1030, %1029 : vector<1x32xf32>
    %1032 = arith.divf %1030, %1031 : vector<1x32xf32>
    %1033 = vector.extract_strided_slice %1026 {offsets = [0, 32], sizes = [1, 32], strides = [1, 1]} : vector<1x128xf32> to vector<1x32xf32>
    %1034 = arith.negf %1033 : vector<1x32xf32>
    %1035 = math.exp %1034 : vector<1x32xf32>
    %cst_279 = arith.constant 1.000000e+00 : f32
    %1036 = vector.broadcast %cst_279 : f32 to vector<1x32xf32>
    %1037 = arith.addf %1036, %1035 : vector<1x32xf32>
    %1038 = arith.divf %1036, %1037 : vector<1x32xf32>
    %1039 = vector.extract_strided_slice %1026 {offsets = [0, 64], sizes = [1, 32], strides = [1, 1]} : vector<1x128xf32> to vector<1x32xf32>
    %1040 = math.tanh %1039 : vector<1x32xf32>
    %1041 = vector.extract_strided_slice %1026 {offsets = [0, 96], sizes = [1, 32], strides = [1, 1]} : vector<1x128xf32> to vector<1x32xf32>
    %1042 = arith.negf %1041 : vector<1x32xf32>
    %1043 = math.exp %1042 : vector<1x32xf32>
    %cst_280 = arith.constant 1.000000e+00 : f32
    %1044 = vector.broadcast %cst_280 : f32 to vector<1x32xf32>
    %1045 = arith.addf %1044, %1043 : vector<1x32xf32>
    %1046 = arith.divf %1044, %1045 : vector<1x32xf32>
    %1047 = arith.mulf %1038, %896 : vector<1x32xf32>
    %1048 = arith.mulf %1032, %1040 : vector<1x32xf32>
    %1049 = arith.addf %1047, %1048 : vector<1x32xf32>
    %1050 = math.tanh %1049 : vector<1x32xf32>
    %1051 = arith.mulf %1046, %1050 : vector<1x32xf32>
    %1052 = tpu.concatenate %1051, %379 in 1 : vector<1x32xf32>, vector<1x96xf32> -> vector<1x128xf32>
    %c5_281 = arith.constant 5 : index
    %c0_282 = arith.constant 0 : index
    %1053 = vector.load %arg18[%c5_281, %c0_282] : memref<9x128xf32, #tpu.memory_space<vmem>>, vector<1x128xf32>
    tpu.vector_store %arg18[%c5_281, %c0_282], %1052 {strides = array<i32>} : memref<9x128xf32, #tpu.memory_space<vmem>>, vector<1x128xf32>,
    %cst_283 = arith.constant dense<0.000000e+00> : vector<1x24xf32>
    %1054 = tpu.matmul %1051, %390, %cst_283 {dimension_numbers = #tpu.dot_dimension_numbers<[1], [0], [0], [1], [0, 0, 1, 1], [], []>} : vector<1x32xf32>, vector<32x24xf32>, vector<1x24xf32> -> vector<1x24xf32>
    %1055 = arith.addf %1054, %393 : vector<1x24xf32>
    %cst_284 = arith.constant dense<0xFF800000> : vector<1xf32>
    %1056 = vector.multi_reduction <maximumf>, %1055, %cst_284 [1] : vector<1x24xf32> to vector<1xf32>
    %1057 = vector.shape_cast %1056 : vector<1xf32> to vector<1x1xf32>
    %1058 = vector.broadcast %1057 : vector<1x1xf32> to vector<1x24xf32>
    %1059 = arith.subf %1055, %1058 : vector<1x24xf32>
    %1060 = math.exp %1059 : vector<1x24xf32>
    %cst_285 = arith.constant dense<0.000000e+00> : vector<1xf32>
    %1061 = vector.multi_reduction <add>, %1060, %cst_285 [1] : vector<1x24xf32> to vector<1xf32>
    %1062 = vector.shape_cast %1061 : vector<1xf32> to vector<1x1xf32>
    %1063 = vector.broadcast %1062 : vector<1x1xf32> to vector<1x24xf32>
    %1064 = arith.divf %1060, %1063 : vector<1x24xf32>
    %1065 = arith.mulf %1064, %394 : vector<1x24xf32>
    %cst_286 = arith.constant 0.000000e+00 : f32
    %1066 = vector.broadcast %cst_286 : f32 to vector<1x24xf32>
    %1067 = arith.cmpf ogt, %1065, %1066 : vector<1x24xf32>
    %cst_287 = arith.constant 1.000000e-30 : f32
    %1068 = vector.broadcast %cst_287 : f32 to vector<1x24xf32>
    %1069 = arith.maximumf %1065, %1068 : vector<1x24xf32>
    %1070 = math.log %1069 : vector<1x24xf32>
    %cst_288 = arith.constant -1.000000e+30 : f32
    %1071 = vector.broadcast %cst_288 : f32 to vector<1x24xf32>
    %1072 = arith.select %1067, %1070, %1071 : vector<1x24xi1>, vector<1x24xf32>
    %1073 = vector.extract_strided_slice %402 {offsets = [4, 0], sizes = [1, 24], strides = [1, 1]} : vector<8x24xf32> to vector<1x24xf32>
    %1074 = arith.addf %1072, %1073 : vector<1x24xf32>
    %cst_289 = arith.constant dense<0xFF800000> : vector<1xf32>
    %1075 = vector.multi_reduction <maximumf>, %1074, %cst_289 [1] : vector<1x24xf32> to vector<1xf32>
    %1076 = vector.shape_cast %1075 : vector<1xf32> to vector<1x1xf32>
    %1077 = vector.broadcast %1076 : vector<1x1xf32> to vector<1x24xf32>
    %1078 = arith.cmpf oge, %1074, %1077 : vector<1x24xf32>
    %cst_290 = arith.constant 2.400000e+01 : f32
    %1079 = vector.broadcast %cst_290 : f32 to vector<1x24xf32>
    %1080 = arith.select %1078, %408, %1079 : vector<1x24xi1>, vector<1x24xf32>
    %cst_291 = arith.constant dense<0x7F800000> : vector<1xf32>
    %1081 = vector.multi_reduction <minimumf>, %1080, %cst_291 [1] : vector<1x24xf32> to vector<1xf32>
    %1082 = vector.shape_cast %1081 : vector<1xf32> to vector<1x1xf32>
    %cst_292 = arith.constant 1.600000e+01 : f32
    %1083 = vector.broadcast %cst_292 : f32 to vector<1x1xf32>
    %1084 = arith.cmpf oge, %1082, %1083 : vector<1x1xf32>
    %cst_293 = arith.constant 1.600000e+01 : f32
    %1085 = vector.broadcast %cst_293 : f32 to vector<1x1xf32>
    %1086 = arith.subf %1082, %1085 : vector<1x1xf32>
    %1087 = vector.broadcast %1086 : vector<1x1xf32> to vector<1x8xf32>
    %1088 = arith.cmpf oeq, %406, %1087 : vector<1x8xf32>
    %cst_294 = arith.constant 0.000000e+00 : f32
    %1089 = vector.broadcast %cst_294 : f32 to vector<1x8xf32>
    %1090 = arith.select %1088, %400, %1089 : vector<1x8xi1>, vector<1x8xf32>
    %cst_295 = arith.constant dense<0.000000e+00> : vector<1xf32>
    %1091 = vector.multi_reduction <add>, %1090, %cst_295 [1] : vector<1x8xf32> to vector<1xf32>
    %1092 = vector.shape_cast %1091 : vector<1xf32> to vector<1x1xf32>
    %1093 = arith.select %1084, %1092, %1082 : vector<1x1xi1>, vector<1x1xf32>
    %1094 = vector.broadcast %1082 : vector<1x1xf32> to vector<1x24xf32>
    %1095 = arith.cmpf oeq, %408, %1094 : vector<1x24xf32>
    %cst_296 = arith.constant 0.000000e+00 : f32
    %1096 = vector.broadcast %cst_296 : f32 to vector<1x24xf32>
    %1097 = arith.select %1095, %1065, %1096 : vector<1x24xi1>, vector<1x24xf32>
    %cst_297 = arith.constant dense<0.000000e+00> : vector<1xf32>
    %1098 = vector.multi_reduction <add>, %1097, %cst_297 [1] : vector<1x24xf32> to vector<1xf32>
    %1099 = vector.shape_cast %1098 : vector<1xf32> to vector<1x1xf32>
    %1100 = vector.broadcast %1093 : vector<1x1xf32> to vector<1x16xf32>
    %1101 = arith.cmpf oeq, %404, %1100 : vector<1x16xf32>
    %1102 = vector.extract_strided_slice %1065 {offsets = [0, 0], sizes = [1, 16], strides = [1, 1]} : vector<1x24xf32> to vector<1x16xf32>
    %cst_298 = arith.constant 0.000000e+00 : f32
    %1103 = vector.broadcast %cst_298 : f32 to vector<1x16xf32>
    %1104 = arith.select %1101, %1102, %1103 : vector<1x16xi1>, vector<1x16xf32>
    %cst_299 = arith.constant dense<0.000000e+00> : vector<1xf32>
    %1105 = vector.multi_reduction <add>, %1104, %cst_299 [1] : vector<1x16xf32> to vector<1xf32>
    %1106 = vector.shape_cast %1105 : vector<1xf32> to vector<1x1xf32>
    %1107 = arith.addf %1099, %1106 : vector<1x1xf32>
    %1108 = arith.select %1084, %1107, %1099 : vector<1x1xi1>, vector<1x1xf32>
    %c0_i32_300 = arith.constant 0 : i32
    %1109 = vector.broadcast %c0_i32_300 : i32 to vector<1x128xi32>
    %1110 = arith.cmpi eq, %409, %1109 : vector<1x128xi32>
    %cst_301 = arith.constant 0.000000e+00 : f32
    %1111 = vector.shape_cast %1093 : vector<1x1xf32> to vector<1x1xf32>
    %1112 = vector.broadcast %1111 : vector<1x1xf32> to vector<1x128xf32>
    %1113 = vector.broadcast %cst_301 : f32 to vector<1x128xf32>
    %1114 = arith.select %1110, %1112, %1113 : vector<1x128xi1>, vector<1x128xf32>
    %c1_i32_302 = arith.constant 1 : i32
    %1115 = vector.broadcast %c1_i32_302 : i32 to vector<1x128xi32>
    %1116 = arith.cmpi eq, %409, %1115 : vector<1x128xi32>
    %cst_303 = arith.constant 0.000000e+00 : f32
    %1117 = vector.shape_cast %1108 : vector<1x1xf32> to vector<1x1xf32>
    %1118 = vector.broadcast %1117 : vector<1x1xf32> to vector<1x128xf32>
    %1119 = vector.broadcast %cst_303 : f32 to vector<1x128xf32>
    %1120 = arith.select %1116, %1118, %1119 : vector<1x128xi1>, vector<1x128xf32>
    %1121 = arith.addf %1114, %1120 : vector<1x128xf32>
    %c2_i32_304 = arith.constant 2 : i32
    %1122 = vector.broadcast %c2_i32_304 : i32 to vector<1x128xi32>
    %1123 = arith.cmpi eq, %409, %1122 : vector<1x128xi32>
    %cst_305 = arith.constant 0.000000e+00 : f32
    %1124 = vector.shape_cast %1082 : vector<1x1xf32> to vector<1x1xf32>
    %1125 = vector.broadcast %1124 : vector<1x1xf32> to vector<1x128xf32>
    %1126 = vector.broadcast %cst_305 : f32 to vector<1x128xf32>
    %1127 = arith.select %1123, %1125, %1126 : vector<1x128xi1>, vector<1x128xf32>
    %1128 = arith.addf %1121, %1127 : vector<1x128xf32>
    %c3_i32_306 = arith.constant 3 : i32
    %1129 = vector.broadcast %c3_i32_306 : i32 to vector<1x128xi32>
    %1130 = arith.cmpi eq, %409, %1129 : vector<1x128xi32>
    %1131 = arith.extui %1084 : vector<1x1xi1> to vector<1x1xi32>
    %1132 = arith.sitofp %1131 : vector<1x1xi32> to vector<1x1xf32>
    %cst_307 = arith.constant 0.000000e+00 : f32
    %1133 = vector.shape_cast %1132 : vector<1x1xf32> to vector<1x1xf32>
    %1134 = vector.broadcast %1133 : vector<1x1xf32> to vector<1x128xf32>
    %1135 = vector.broadcast %cst_307 : f32 to vector<1x128xf32>
    %1136 = arith.select %1130, %1134, %1135 : vector<1x128xi1>, vector<1x128xf32>
    %1137 = arith.addf %1128, %1136 : vector<1x128xf32>
    %c4_308 = arith.constant 4 : index
    %c0_309 = arith.constant 0 : index
    %1138 = vector.load %arg19[%c4_308, %c0_309] : memref<8x128xf32, #tpu.memory_space<vmem>>, vector<1x128xf32>
    tpu.vector_store %arg19[%c4_308, %c0_309], %1137 {strides = array<i32>} : memref<8x128xf32, #tpu.memory_space<vmem>>, vector<1x128xf32>,
    %1139 = vector.extract_strided_slice %1064 {offsets = [0, 16], sizes = [1, 8], strides = [1, 1]} : vector<1x24xf32> to vector<1x8xf32>
    %1140 = vector.broadcast %1093 : vector<1x1xf32> to vector<1x16xf32>
    %1141 = arith.cmpf oeq, %404, %1140 : vector<1x16xf32>
    %1142 = arith.extui %1141 : vector<1x16xi1> to vector<1x16xi32>
    %1143 = arith.sitofp %1142 : vector<1x16xi32> to vector<1x16xf32>
    %cst_310 = arith.constant dense<0.000000e+00> : vector<1x32xf32>
    %1144 = tpu.matmul %1143, %399, %cst_310 {dimension_numbers = #tpu.dot_dimension_numbers<[1], [0], [0], [1], [0, 0, 1, 1], [], []>} : vector<1x16xf32>, vector<16x32xf32>, vector<1x32xf32> -> vector<1x32xf32>
    %1145 = tpu.concatenate %1144, %1051 in 1 : vector<1x32xf32>, vector<1x32xf32> -> vector<1x64xf32>
    %cst_311 = arith.constant dense<0.000000e+00> : vector<1x8xf32>
    %1146 = tpu.matmul %1145, %395, %cst_311 {dimension_numbers = #tpu.dot_dimension_numbers<[1], [0], [0], [1], [0, 0, 1, 1], [], []>} : vector<1x64xf32>, vector<64x8xf32>, vector<1x8xf32> -> vector<1x8xf32>
    %1147 = arith.addf %1146, %396 : vector<1x8xf32>
    %cst_312 = arith.constant dense<0xFF800000> : vector<1xf32>
    %1148 = vector.multi_reduction <maximumf>, %1147, %cst_312 [1] : vector<1x8xf32> to vector<1xf32>
    %1149 = vector.shape_cast %1148 : vector<1xf32> to vector<1x1xf32>
    %1150 = vector.broadcast %1149 : vector<1x1xf32> to vector<1x8xf32>
    %1151 = arith.subf %1147, %1150 : vector<1x8xf32>
    %1152 = math.exp %1151 : vector<1x8xf32>
    %cst_313 = arith.constant dense<0.000000e+00> : vector<1xf32>
    %1153 = vector.multi_reduction <add>, %1152, %cst_313 [1] : vector<1x8xf32> to vector<1xf32>
    %1154 = vector.shape_cast %1153 : vector<1xf32> to vector<1x1xf32>
    %1155 = vector.broadcast %1154 : vector<1x1xf32> to vector<1x8xf32>
    %1156 = arith.divf %1152, %1155 : vector<1x8xf32>
    %cst_314 = arith.constant dense<0.000000e+00> : vector<1x32xf32>
    %1157 = tpu.matmul %1156, %378, %cst_314 {dimension_numbers = #tpu.dot_dimension_numbers<[1], [0], [0], [1], [0, 0, 1, 1], [], []>} : vector<1x8xf32>, vector<8x32xf32>, vector<1x32xf32> -> vector<1x32xf32>
    %1158 = vector.broadcast %1093 : vector<1x1xf32> to vector<1x8xf32>
    %1159 = arith.cmpf one, %400, %1158 : vector<1x8xf32>
    %1160 = arith.extui %1159 : vector<1x8xi1> to vector<1x8xi32>
    %1161 = arith.sitofp %1160 : vector<1x8xi32> to vector<1x8xf32>
    %1162 = arith.mulf %1139, %401 : vector<1x8xf32>
    %1163 = arith.mulf %1162, %1161 : vector<1x8xf32>
    %cst_315 = arith.constant dense<0.000000e+00> : vector<1xf32>
    %1164 = vector.multi_reduction <add>, %1163, %cst_315 [1] : vector<1x8xf32> to vector<1xf32>
    %1165 = vector.shape_cast %1164 : vector<1xf32> to vector<1x1xf32>
    %cst_316 = arith.constant 0.000000e+00 : f32
    %1166 = vector.broadcast %cst_316 : f32 to vector<1x1xf32>
    %1167 = arith.cmpf ogt, %1165, %1166 : vector<1x1xf32>
    %cst_317 = arith.constant 1.000000e-30 : f32
    %1168 = vector.broadcast %cst_317 : f32 to vector<1x1xf32>
    %1169 = arith.maximumf %1165, %1168 : vector<1x1xf32>
    %cst_318 = arith.constant 1.000000e+00 : f32
    %1170 = vector.broadcast %cst_318 : f32 to vector<1x1xf32>
    %1171 = arith.divf %1170, %1169 : vector<1x1xf32>
    %cst_319 = arith.constant 1.000000e+00 : f32
    %1172 = vector.broadcast %cst_319 : f32 to vector<1x1xf32>
    %1173 = arith.select %1167, %1171, %1172 : vector<1x1xi1>, vector<1x1xf32>
    %1174 = vector.broadcast %1173 : vector<1x1xf32> to vector<1x8xf32>
    %1175 = arith.mulf %1163, %1174 : vector<1x8xf32>
    %cst_320 = arith.constant dense<0.000000e+00> : vector<1x32xf32>
    %1176 = tpu.matmul %1175, %378, %cst_320 {dimension_numbers = #tpu.dot_dimension_numbers<[1], [0], [0], [1], [0, 0, 1, 1], [], []>} : vector<1x8xf32>, vector<8x32xf32>, vector<1x32xf32> -> vector<1x32xf32>
    %1177 = tpu.concatenate %1144, %1176, %1157, %1051 in 1 : vector<1x32xf32>, vector<1x32xf32>, vector<1x32xf32>, vector<1x32xf32> -> vector<1x128xf32>
    %cst_321 = arith.constant dense<0.000000e+00> : vector<1x128xf32>
    %1178 = tpu.matmul %1177, %397, %cst_321 {dimension_numbers = #tpu.dot_dimension_numbers<[1], [0], [0], [1], [0, 0, 1, 1], [], []>} : vector<1x128xf32>, vector<128x128xf32>, vector<1x128xf32> -> vector<1x128xf32>
    %1179 = arith.addf %1178, %398 : vector<1x128xf32>
    %1180 = vector.extract_strided_slice %1179 {offsets = [0, 0], sizes = [1, 32], strides = [1, 1]} : vector<1x128xf32> to vector<1x32xf32>
    %1181 = arith.negf %1180 : vector<1x32xf32>
    %1182 = math.exp %1181 : vector<1x32xf32>
    %cst_322 = arith.constant 1.000000e+00 : f32
    %1183 = vector.broadcast %cst_322 : f32 to vector<1x32xf32>
    %1184 = arith.addf %1183, %1182 : vector<1x32xf32>
    %1185 = arith.divf %1183, %1184 : vector<1x32xf32>
    %1186 = vector.extract_strided_slice %1179 {offsets = [0, 32], sizes = [1, 32], strides = [1, 1]} : vector<1x128xf32> to vector<1x32xf32>
    %1187 = arith.negf %1186 : vector<1x32xf32>
    %1188 = math.exp %1187 : vector<1x32xf32>
    %cst_323 = arith.constant 1.000000e+00 : f32
    %1189 = vector.broadcast %cst_323 : f32 to vector<1x32xf32>
    %1190 = arith.addf %1189, %1188 : vector<1x32xf32>
    %1191 = arith.divf %1189, %1190 : vector<1x32xf32>
    %1192 = vector.extract_strided_slice %1179 {offsets = [0, 64], sizes = [1, 32], strides = [1, 1]} : vector<1x128xf32> to vector<1x32xf32>
    %1193 = math.tanh %1192 : vector<1x32xf32>
    %1194 = vector.extract_strided_slice %1179 {offsets = [0, 96], sizes = [1, 32], strides = [1, 1]} : vector<1x128xf32> to vector<1x32xf32>
    %1195 = arith.negf %1194 : vector<1x32xf32>
    %1196 = math.exp %1195 : vector<1x32xf32>
    %cst_324 = arith.constant 1.000000e+00 : f32
    %1197 = vector.broadcast %cst_324 : f32 to vector<1x32xf32>
    %1198 = arith.addf %1197, %1196 : vector<1x32xf32>
    %1199 = arith.divf %1197, %1198 : vector<1x32xf32>
    %1200 = arith.mulf %1191, %1049 : vector<1x32xf32>
    %1201 = arith.mulf %1185, %1193 : vector<1x32xf32>
    %1202 = arith.addf %1200, %1201 : vector<1x32xf32>
    %1203 = math.tanh %1202 : vector<1x32xf32>
    %1204 = arith.mulf %1199, %1203 : vector<1x32xf32>
    %1205 = tpu.concatenate %1204, %379 in 1 : vector<1x32xf32>, vector<1x96xf32> -> vector<1x128xf32>
    %c6_325 = arith.constant 6 : index
    %c0_326 = arith.constant 0 : index
    %1206 = vector.load %arg18[%c6_325, %c0_326] : memref<9x128xf32, #tpu.memory_space<vmem>>, vector<1x128xf32>
    tpu.vector_store %arg18[%c6_325, %c0_326], %1205 {strides = array<i32>} : memref<9x128xf32, #tpu.memory_space<vmem>>, vector<1x128xf32>,
    %cst_327 = arith.constant dense<0.000000e+00> : vector<1x24xf32>
    %1207 = tpu.matmul %1204, %390, %cst_327 {dimension_numbers = #tpu.dot_dimension_numbers<[1], [0], [0], [1], [0, 0, 1, 1], [], []>} : vector<1x32xf32>, vector<32x24xf32>, vector<1x24xf32> -> vector<1x24xf32>
    %1208 = arith.addf %1207, %393 : vector<1x24xf32>
    %cst_328 = arith.constant dense<0xFF800000> : vector<1xf32>
    %1209 = vector.multi_reduction <maximumf>, %1208, %cst_328 [1] : vector<1x24xf32> to vector<1xf32>
    %1210 = vector.shape_cast %1209 : vector<1xf32> to vector<1x1xf32>
    %1211 = vector.broadcast %1210 : vector<1x1xf32> to vector<1x24xf32>
    %1212 = arith.subf %1208, %1211 : vector<1x24xf32>
    %1213 = math.exp %1212 : vector<1x24xf32>
    %cst_329 = arith.constant dense<0.000000e+00> : vector<1xf32>
    %1214 = vector.multi_reduction <add>, %1213, %cst_329 [1] : vector<1x24xf32> to vector<1xf32>
    %1215 = vector.shape_cast %1214 : vector<1xf32> to vector<1x1xf32>
    %1216 = vector.broadcast %1215 : vector<1x1xf32> to vector<1x24xf32>
    %1217 = arith.divf %1213, %1216 : vector<1x24xf32>
    %1218 = arith.mulf %1217, %394 : vector<1x24xf32>
    %cst_330 = arith.constant 0.000000e+00 : f32
    %1219 = vector.broadcast %cst_330 : f32 to vector<1x24xf32>
    %1220 = arith.cmpf ogt, %1218, %1219 : vector<1x24xf32>
    %cst_331 = arith.constant 1.000000e-30 : f32
    %1221 = vector.broadcast %cst_331 : f32 to vector<1x24xf32>
    %1222 = arith.maximumf %1218, %1221 : vector<1x24xf32>
    %1223 = math.log %1222 : vector<1x24xf32>
    %cst_332 = arith.constant -1.000000e+30 : f32
    %1224 = vector.broadcast %cst_332 : f32 to vector<1x24xf32>
    %1225 = arith.select %1220, %1223, %1224 : vector<1x24xi1>, vector<1x24xf32>
    %1226 = vector.extract_strided_slice %402 {offsets = [5, 0], sizes = [1, 24], strides = [1, 1]} : vector<8x24xf32> to vector<1x24xf32>
    %1227 = arith.addf %1225, %1226 : vector<1x24xf32>
    %cst_333 = arith.constant dense<0xFF800000> : vector<1xf32>
    %1228 = vector.multi_reduction <maximumf>, %1227, %cst_333 [1] : vector<1x24xf32> to vector<1xf32>
    %1229 = vector.shape_cast %1228 : vector<1xf32> to vector<1x1xf32>
    %1230 = vector.broadcast %1229 : vector<1x1xf32> to vector<1x24xf32>
    %1231 = arith.cmpf oge, %1227, %1230 : vector<1x24xf32>
    %cst_334 = arith.constant 2.400000e+01 : f32
    %1232 = vector.broadcast %cst_334 : f32 to vector<1x24xf32>
    %1233 = arith.select %1231, %408, %1232 : vector<1x24xi1>, vector<1x24xf32>
    %cst_335 = arith.constant dense<0x7F800000> : vector<1xf32>
    %1234 = vector.multi_reduction <minimumf>, %1233, %cst_335 [1] : vector<1x24xf32> to vector<1xf32>
    %1235 = vector.shape_cast %1234 : vector<1xf32> to vector<1x1xf32>
    %cst_336 = arith.constant 1.600000e+01 : f32
    %1236 = vector.broadcast %cst_336 : f32 to vector<1x1xf32>
    %1237 = arith.cmpf oge, %1235, %1236 : vector<1x1xf32>
    %cst_337 = arith.constant 1.600000e+01 : f32
    %1238 = vector.broadcast %cst_337 : f32 to vector<1x1xf32>
    %1239 = arith.subf %1235, %1238 : vector<1x1xf32>
    %1240 = vector.broadcast %1239 : vector<1x1xf32> to vector<1x8xf32>
    %1241 = arith.cmpf oeq, %406, %1240 : vector<1x8xf32>
    %cst_338 = arith.constant 0.000000e+00 : f32
    %1242 = vector.broadcast %cst_338 : f32 to vector<1x8xf32>
    %1243 = arith.select %1241, %400, %1242 : vector<1x8xi1>, vector<1x8xf32>
    %cst_339 = arith.constant dense<0.000000e+00> : vector<1xf32>
    %1244 = vector.multi_reduction <add>, %1243, %cst_339 [1] : vector<1x8xf32> to vector<1xf32>
    %1245 = vector.shape_cast %1244 : vector<1xf32> to vector<1x1xf32>
    %1246 = arith.select %1237, %1245, %1235 : vector<1x1xi1>, vector<1x1xf32>
    %1247 = vector.broadcast %1235 : vector<1x1xf32> to vector<1x24xf32>
    %1248 = arith.cmpf oeq, %408, %1247 : vector<1x24xf32>
    %cst_340 = arith.constant 0.000000e+00 : f32
    %1249 = vector.broadcast %cst_340 : f32 to vector<1x24xf32>
    %1250 = arith.select %1248, %1218, %1249 : vector<1x24xi1>, vector<1x24xf32>
    %cst_341 = arith.constant dense<0.000000e+00> : vector<1xf32>
    %1251 = vector.multi_reduction <add>, %1250, %cst_341 [1] : vector<1x24xf32> to vector<1xf32>
    %1252 = vector.shape_cast %1251 : vector<1xf32> to vector<1x1xf32>
    %1253 = vector.broadcast %1246 : vector<1x1xf32> to vector<1x16xf32>
    %1254 = arith.cmpf oeq, %404, %1253 : vector<1x16xf32>
    %1255 = vector.extract_strided_slice %1218 {offsets = [0, 0], sizes = [1, 16], strides = [1, 1]} : vector<1x24xf32> to vector<1x16xf32>
    %cst_342 = arith.constant 0.000000e+00 : f32
    %1256 = vector.broadcast %cst_342 : f32 to vector<1x16xf32>
    %1257 = arith.select %1254, %1255, %1256 : vector<1x16xi1>, vector<1x16xf32>
    %cst_343 = arith.constant dense<0.000000e+00> : vector<1xf32>
    %1258 = vector.multi_reduction <add>, %1257, %cst_343 [1] : vector<1x16xf32> to vector<1xf32>
    %1259 = vector.shape_cast %1258 : vector<1xf32> to vector<1x1xf32>
    %1260 = arith.addf %1252, %1259 : vector<1x1xf32>
    %1261 = arith.select %1237, %1260, %1252 : vector<1x1xi1>, vector<1x1xf32>
    %c0_i32_344 = arith.constant 0 : i32
    %1262 = vector.broadcast %c0_i32_344 : i32 to vector<1x128xi32>
    %1263 = arith.cmpi eq, %409, %1262 : vector<1x128xi32>
    %cst_345 = arith.constant 0.000000e+00 : f32
    %1264 = vector.shape_cast %1246 : vector<1x1xf32> to vector<1x1xf32>
    %1265 = vector.broadcast %1264 : vector<1x1xf32> to vector<1x128xf32>
    %1266 = vector.broadcast %cst_345 : f32 to vector<1x128xf32>
    %1267 = arith.select %1263, %1265, %1266 : vector<1x128xi1>, vector<1x128xf32>
    %c1_i32_346 = arith.constant 1 : i32
    %1268 = vector.broadcast %c1_i32_346 : i32 to vector<1x128xi32>
    %1269 = arith.cmpi eq, %409, %1268 : vector<1x128xi32>
    %cst_347 = arith.constant 0.000000e+00 : f32
    %1270 = vector.shape_cast %1261 : vector<1x1xf32> to vector<1x1xf32>
    %1271 = vector.broadcast %1270 : vector<1x1xf32> to vector<1x128xf32>
    %1272 = vector.broadcast %cst_347 : f32 to vector<1x128xf32>
    %1273 = arith.select %1269, %1271, %1272 : vector<1x128xi1>, vector<1x128xf32>
    %1274 = arith.addf %1267, %1273 : vector<1x128xf32>
    %c2_i32_348 = arith.constant 2 : i32
    %1275 = vector.broadcast %c2_i32_348 : i32 to vector<1x128xi32>
    %1276 = arith.cmpi eq, %409, %1275 : vector<1x128xi32>
    %cst_349 = arith.constant 0.000000e+00 : f32
    %1277 = vector.shape_cast %1235 : vector<1x1xf32> to vector<1x1xf32>
    %1278 = vector.broadcast %1277 : vector<1x1xf32> to vector<1x128xf32>
    %1279 = vector.broadcast %cst_349 : f32 to vector<1x128xf32>
    %1280 = arith.select %1276, %1278, %1279 : vector<1x128xi1>, vector<1x128xf32>
    %1281 = arith.addf %1274, %1280 : vector<1x128xf32>
    %c3_i32_350 = arith.constant 3 : i32
    %1282 = vector.broadcast %c3_i32_350 : i32 to vector<1x128xi32>
    %1283 = arith.cmpi eq, %409, %1282 : vector<1x128xi32>
    %1284 = arith.extui %1237 : vector<1x1xi1> to vector<1x1xi32>
    %1285 = arith.sitofp %1284 : vector<1x1xi32> to vector<1x1xf32>
    %cst_351 = arith.constant 0.000000e+00 : f32
    %1286 = vector.shape_cast %1285 : vector<1x1xf32> to vector<1x1xf32>
    %1287 = vector.broadcast %1286 : vector<1x1xf32> to vector<1x128xf32>
    %1288 = vector.broadcast %cst_351 : f32 to vector<1x128xf32>
    %1289 = arith.select %1283, %1287, %1288 : vector<1x128xi1>, vector<1x128xf32>
    %1290 = arith.addf %1281, %1289 : vector<1x128xf32>
    %c5_352 = arith.constant 5 : index
    %c0_353 = arith.constant 0 : index
    %1291 = vector.load %arg19[%c5_352, %c0_353] : memref<8x128xf32, #tpu.memory_space<vmem>>, vector<1x128xf32>
    tpu.vector_store %arg19[%c5_352, %c0_353], %1290 {strides = array<i32>} : memref<8x128xf32, #tpu.memory_space<vmem>>, vector<1x128xf32>,
    %1292 = vector.extract_strided_slice %1217 {offsets = [0, 16], sizes = [1, 8], strides = [1, 1]} : vector<1x24xf32> to vector<1x8xf32>
    %1293 = vector.broadcast %1246 : vector<1x1xf32> to vector<1x16xf32>
    %1294 = arith.cmpf oeq, %404, %1293 : vector<1x16xf32>
    %1295 = arith.extui %1294 : vector<1x16xi1> to vector<1x16xi32>
    %1296 = arith.sitofp %1295 : vector<1x16xi32> to vector<1x16xf32>
    %cst_354 = arith.constant dense<0.000000e+00> : vector<1x32xf32>
    %1297 = tpu.matmul %1296, %399, %cst_354 {dimension_numbers = #tpu.dot_dimension_numbers<[1], [0], [0], [1], [0, 0, 1, 1], [], []>} : vector<1x16xf32>, vector<16x32xf32>, vector<1x32xf32> -> vector<1x32xf32>
    %1298 = tpu.concatenate %1297, %1204 in 1 : vector<1x32xf32>, vector<1x32xf32> -> vector<1x64xf32>
    %cst_355 = arith.constant dense<0.000000e+00> : vector<1x8xf32>
    %1299 = tpu.matmul %1298, %395, %cst_355 {dimension_numbers = #tpu.dot_dimension_numbers<[1], [0], [0], [1], [0, 0, 1, 1], [], []>} : vector<1x64xf32>, vector<64x8xf32>, vector<1x8xf32> -> vector<1x8xf32>
    %1300 = arith.addf %1299, %396 : vector<1x8xf32>
    %cst_356 = arith.constant dense<0xFF800000> : vector<1xf32>
    %1301 = vector.multi_reduction <maximumf>, %1300, %cst_356 [1] : vector<1x8xf32> to vector<1xf32>
    %1302 = vector.shape_cast %1301 : vector<1xf32> to vector<1x1xf32>
    %1303 = vector.broadcast %1302 : vector<1x1xf32> to vector<1x8xf32>
    %1304 = arith.subf %1300, %1303 : vector<1x8xf32>
    %1305 = math.exp %1304 : vector<1x8xf32>
    %cst_357 = arith.constant dense<0.000000e+00> : vector<1xf32>
    %1306 = vector.multi_reduction <add>, %1305, %cst_357 [1] : vector<1x8xf32> to vector<1xf32>
    %1307 = vector.shape_cast %1306 : vector<1xf32> to vector<1x1xf32>
    %1308 = vector.broadcast %1307 : vector<1x1xf32> to vector<1x8xf32>
    %1309 = arith.divf %1305, %1308 : vector<1x8xf32>
    %cst_358 = arith.constant dense<0.000000e+00> : vector<1x32xf32>
    %1310 = tpu.matmul %1309, %378, %cst_358 {dimension_numbers = #tpu.dot_dimension_numbers<[1], [0], [0], [1], [0, 0, 1, 1], [], []>} : vector<1x8xf32>, vector<8x32xf32>, vector<1x32xf32> -> vector<1x32xf32>
    %1311 = vector.broadcast %1246 : vector<1x1xf32> to vector<1x8xf32>
    %1312 = arith.cmpf one, %400, %1311 : vector<1x8xf32>
    %1313 = arith.extui %1312 : vector<1x8xi1> to vector<1x8xi32>
    %1314 = arith.sitofp %1313 : vector<1x8xi32> to vector<1x8xf32>
    %1315 = arith.mulf %1292, %401 : vector<1x8xf32>
    %1316 = arith.mulf %1315, %1314 : vector<1x8xf32>
    %cst_359 = arith.constant dense<0.000000e+00> : vector<1xf32>
    %1317 = vector.multi_reduction <add>, %1316, %cst_359 [1] : vector<1x8xf32> to vector<1xf32>
    %1318 = vector.shape_cast %1317 : vector<1xf32> to vector<1x1xf32>
    %cst_360 = arith.constant 0.000000e+00 : f32
    %1319 = vector.broadcast %cst_360 : f32 to vector<1x1xf32>
    %1320 = arith.cmpf ogt, %1318, %1319 : vector<1x1xf32>
    %cst_361 = arith.constant 1.000000e-30 : f32
    %1321 = vector.broadcast %cst_361 : f32 to vector<1x1xf32>
    %1322 = arith.maximumf %1318, %1321 : vector<1x1xf32>
    %cst_362 = arith.constant 1.000000e+00 : f32
    %1323 = vector.broadcast %cst_362 : f32 to vector<1x1xf32>
    %1324 = arith.divf %1323, %1322 : vector<1x1xf32>
    %cst_363 = arith.constant 1.000000e+00 : f32
    %1325 = vector.broadcast %cst_363 : f32 to vector<1x1xf32>
    %1326 = arith.select %1320, %1324, %1325 : vector<1x1xi1>, vector<1x1xf32>
    %1327 = vector.broadcast %1326 : vector<1x1xf32> to vector<1x8xf32>
    %1328 = arith.mulf %1316, %1327 : vector<1x8xf32>
    %cst_364 = arith.constant dense<0.000000e+00> : vector<1x32xf32>
    %1329 = tpu.matmul %1328, %378, %cst_364 {dimension_numbers = #tpu.dot_dimension_numbers<[1], [0], [0], [1], [0, 0, 1, 1], [], []>} : vector<1x8xf32>, vector<8x32xf32>, vector<1x32xf32> -> vector<1x32xf32>
    %1330 = tpu.concatenate %1297, %1329, %1310, %1204 in 1 : vector<1x32xf32>, vector<1x32xf32>, vector<1x32xf32>, vector<1x32xf32> -> vector<1x128xf32>
    %cst_365 = arith.constant dense<0.000000e+00> : vector<1x128xf32>
    %1331 = tpu.matmul %1330, %397, %cst_365 {dimension_numbers = #tpu.dot_dimension_numbers<[1], [0], [0], [1], [0, 0, 1, 1], [], []>} : vector<1x128xf32>, vector<128x128xf32>, vector<1x128xf32> -> vector<1x128xf32>
    %1332 = arith.addf %1331, %398 : vector<1x128xf32>
    %1333 = vector.extract_strided_slice %1332 {offsets = [0, 0], sizes = [1, 32], strides = [1, 1]} : vector<1x128xf32> to vector<1x32xf32>
    %1334 = arith.negf %1333 : vector<1x32xf32>
    %1335 = math.exp %1334 : vector<1x32xf32>
    %cst_366 = arith.constant 1.000000e+00 : f32
    %1336 = vector.broadcast %cst_366 : f32 to vector<1x32xf32>
    %1337 = arith.addf %1336, %1335 : vector<1x32xf32>
    %1338 = arith.divf %1336, %1337 : vector<1x32xf32>
    %1339 = vector.extract_strided_slice %1332 {offsets = [0, 32], sizes = [1, 32], strides = [1, 1]} : vector<1x128xf32> to vector<1x32xf32>
    %1340 = arith.negf %1339 : vector<1x32xf32>
    %1341 = math.exp %1340 : vector<1x32xf32>
    %cst_367 = arith.constant 1.000000e+00 : f32
    %1342 = vector.broadcast %cst_367 : f32 to vector<1x32xf32>
    %1343 = arith.addf %1342, %1341 : vector<1x32xf32>
    %1344 = arith.divf %1342, %1343 : vector<1x32xf32>
    %1345 = vector.extract_strided_slice %1332 {offsets = [0, 64], sizes = [1, 32], strides = [1, 1]} : vector<1x128xf32> to vector<1x32xf32>
    %1346 = math.tanh %1345 : vector<1x32xf32>
    %1347 = vector.extract_strided_slice %1332 {offsets = [0, 96], sizes = [1, 32], strides = [1, 1]} : vector<1x128xf32> to vector<1x32xf32>
    %1348 = arith.negf %1347 : vector<1x32xf32>
    %1349 = math.exp %1348 : vector<1x32xf32>
    %cst_368 = arith.constant 1.000000e+00 : f32
    %1350 = vector.broadcast %cst_368 : f32 to vector<1x32xf32>
    %1351 = arith.addf %1350, %1349 : vector<1x32xf32>
    %1352 = arith.divf %1350, %1351 : vector<1x32xf32>
    %1353 = arith.mulf %1344, %1202 : vector<1x32xf32>
    %1354 = arith.mulf %1338, %1346 : vector<1x32xf32>
    %1355 = arith.addf %1353, %1354 : vector<1x32xf32>
    %1356 = math.tanh %1355 : vector<1x32xf32>
    %1357 = arith.mulf %1352, %1356 : vector<1x32xf32>
    %1358 = tpu.concatenate %1357, %379 in 1 : vector<1x32xf32>, vector<1x96xf32> -> vector<1x128xf32>
    %c7_369 = arith.constant 7 : index
    %c0_370 = arith.constant 0 : index
    %1359 = vector.load %arg18[%c7_369, %c0_370] : memref<9x128xf32, #tpu.memory_space<vmem>>, vector<1x128xf32>
    tpu.vector_store %arg18[%c7_369, %c0_370], %1358 {strides = array<i32>} : memref<9x128xf32, #tpu.memory_space<vmem>>, vector<1x128xf32>,
    %cst_371 = arith.constant dense<0.000000e+00> : vector<1x24xf32>
    %1360 = tpu.matmul %1357, %390, %cst_371 {dimension_numbers = #tpu.dot_dimension_numbers<[1], [0], [0], [1], [0, 0, 1, 1], [], []>} : vector<1x32xf32>, vector<32x24xf32>, vector<1x24xf32> -> vector<1x24xf32>
    %1361 = arith.addf %1360, %393 : vector<1x24xf32>
    %cst_372 = arith.constant dense<0xFF800000> : vector<1xf32>
    %1362 = vector.multi_reduction <maximumf>, %1361, %cst_372 [1] : vector<1x24xf32> to vector<1xf32>
    %1363 = vector.shape_cast %1362 : vector<1xf32> to vector<1x1xf32>
    %1364 = vector.broadcast %1363 : vector<1x1xf32> to vector<1x24xf32>
    %1365 = arith.subf %1361, %1364 : vector<1x24xf32>
    %1366 = math.exp %1365 : vector<1x24xf32>
    %cst_373 = arith.constant dense<0.000000e+00> : vector<1xf32>
    %1367 = vector.multi_reduction <add>, %1366, %cst_373 [1] : vector<1x24xf32> to vector<1xf32>
    %1368 = vector.shape_cast %1367 : vector<1xf32> to vector<1x1xf32>
    %1369 = vector.broadcast %1368 : vector<1x1xf32> to vector<1x24xf32>
    %1370 = arith.divf %1366, %1369 : vector<1x24xf32>
    %1371 = arith.mulf %1370, %394 : vector<1x24xf32>
    %cst_374 = arith.constant 0.000000e+00 : f32
    %1372 = vector.broadcast %cst_374 : f32 to vector<1x24xf32>
    %1373 = arith.cmpf ogt, %1371, %1372 : vector<1x24xf32>
    %cst_375 = arith.constant 1.000000e-30 : f32
    %1374 = vector.broadcast %cst_375 : f32 to vector<1x24xf32>
    %1375 = arith.maximumf %1371, %1374 : vector<1x24xf32>
    %1376 = math.log %1375 : vector<1x24xf32>
    %cst_376 = arith.constant -1.000000e+30 : f32
    %1377 = vector.broadcast %cst_376 : f32 to vector<1x24xf32>
    %1378 = arith.select %1373, %1376, %1377 : vector<1x24xi1>, vector<1x24xf32>
    %1379 = vector.extract_strided_slice %402 {offsets = [6, 0], sizes = [1, 24], strides = [1, 1]} : vector<8x24xf32> to vector<1x24xf32>
    %1380 = arith.addf %1378, %1379 : vector<1x24xf32>
    %cst_377 = arith.constant dense<0xFF800000> : vector<1xf32>
    %1381 = vector.multi_reduction <maximumf>, %1380, %cst_377 [1] : vector<1x24xf32> to vector<1xf32>
    %1382 = vector.shape_cast %1381 : vector<1xf32> to vector<1x1xf32>
    %1383 = vector.broadcast %1382 : vector<1x1xf32> to vector<1x24xf32>
    %1384 = arith.cmpf oge, %1380, %1383 : vector<1x24xf32>
    %cst_378 = arith.constant 2.400000e+01 : f32
    %1385 = vector.broadcast %cst_378 : f32 to vector<1x24xf32>
    %1386 = arith.select %1384, %408, %1385 : vector<1x24xi1>, vector<1x24xf32>
    %cst_379 = arith.constant dense<0x7F800000> : vector<1xf32>
    %1387 = vector.multi_reduction <minimumf>, %1386, %cst_379 [1] : vector<1x24xf32> to vector<1xf32>
    %1388 = vector.shape_cast %1387 : vector<1xf32> to vector<1x1xf32>
    %cst_380 = arith.constant 1.600000e+01 : f32
    %1389 = vector.broadcast %cst_380 : f32 to vector<1x1xf32>
    %1390 = arith.cmpf oge, %1388, %1389 : vector<1x1xf32>
    %cst_381 = arith.constant 1.600000e+01 : f32
    %1391 = vector.broadcast %cst_381 : f32 to vector<1x1xf32>
    %1392 = arith.subf %1388, %1391 : vector<1x1xf32>
    %1393 = vector.broadcast %1392 : vector<1x1xf32> to vector<1x8xf32>
    %1394 = arith.cmpf oeq, %406, %1393 : vector<1x8xf32>
    %cst_382 = arith.constant 0.000000e+00 : f32
    %1395 = vector.broadcast %cst_382 : f32 to vector<1x8xf32>
    %1396 = arith.select %1394, %400, %1395 : vector<1x8xi1>, vector<1x8xf32>
    %cst_383 = arith.constant dense<0.000000e+00> : vector<1xf32>
    %1397 = vector.multi_reduction <add>, %1396, %cst_383 [1] : vector<1x8xf32> to vector<1xf32>
    %1398 = vector.shape_cast %1397 : vector<1xf32> to vector<1x1xf32>
    %1399 = arith.select %1390, %1398, %1388 : vector<1x1xi1>, vector<1x1xf32>
    %1400 = vector.broadcast %1388 : vector<1x1xf32> to vector<1x24xf32>
    %1401 = arith.cmpf oeq, %408, %1400 : vector<1x24xf32>
    %cst_384 = arith.constant 0.000000e+00 : f32
    %1402 = vector.broadcast %cst_384 : f32 to vector<1x24xf32>
    %1403 = arith.select %1401, %1371, %1402 : vector<1x24xi1>, vector<1x24xf32>
    %cst_385 = arith.constant dense<0.000000e+00> : vector<1xf32>
    %1404 = vector.multi_reduction <add>, %1403, %cst_385 [1] : vector<1x24xf32> to vector<1xf32>
    %1405 = vector.shape_cast %1404 : vector<1xf32> to vector<1x1xf32>
    %1406 = vector.broadcast %1399 : vector<1x1xf32> to vector<1x16xf32>
    %1407 = arith.cmpf oeq, %404, %1406 : vector<1x16xf32>
    %1408 = vector.extract_strided_slice %1371 {offsets = [0, 0], sizes = [1, 16], strides = [1, 1]} : vector<1x24xf32> to vector<1x16xf32>
    %cst_386 = arith.constant 0.000000e+00 : f32
    %1409 = vector.broadcast %cst_386 : f32 to vector<1x16xf32>
    %1410 = arith.select %1407, %1408, %1409 : vector<1x16xi1>, vector<1x16xf32>
    %cst_387 = arith.constant dense<0.000000e+00> : vector<1xf32>
    %1411 = vector.multi_reduction <add>, %1410, %cst_387 [1] : vector<1x16xf32> to vector<1xf32>
    %1412 = vector.shape_cast %1411 : vector<1xf32> to vector<1x1xf32>
    %1413 = arith.addf %1405, %1412 : vector<1x1xf32>
    %1414 = arith.select %1390, %1413, %1405 : vector<1x1xi1>, vector<1x1xf32>
    %c0_i32_388 = arith.constant 0 : i32
    %1415 = vector.broadcast %c0_i32_388 : i32 to vector<1x128xi32>
    %1416 = arith.cmpi eq, %409, %1415 : vector<1x128xi32>
    %cst_389 = arith.constant 0.000000e+00 : f32
    %1417 = vector.shape_cast %1399 : vector<1x1xf32> to vector<1x1xf32>
    %1418 = vector.broadcast %1417 : vector<1x1xf32> to vector<1x128xf32>
    %1419 = vector.broadcast %cst_389 : f32 to vector<1x128xf32>
    %1420 = arith.select %1416, %1418, %1419 : vector<1x128xi1>, vector<1x128xf32>
    %c1_i32_390 = arith.constant 1 : i32
    %1421 = vector.broadcast %c1_i32_390 : i32 to vector<1x128xi32>
    %1422 = arith.cmpi eq, %409, %1421 : vector<1x128xi32>
    %cst_391 = arith.constant 0.000000e+00 : f32
    %1423 = vector.shape_cast %1414 : vector<1x1xf32> to vector<1x1xf32>
    %1424 = vector.broadcast %1423 : vector<1x1xf32> to vector<1x128xf32>
    %1425 = vector.broadcast %cst_391 : f32 to vector<1x128xf32>
    %1426 = arith.select %1422, %1424, %1425 : vector<1x128xi1>, vector<1x128xf32>
    %1427 = arith.addf %1420, %1426 : vector<1x128xf32>
    %c2_i32_392 = arith.constant 2 : i32
    %1428 = vector.broadcast %c2_i32_392 : i32 to vector<1x128xi32>
    %1429 = arith.cmpi eq, %409, %1428 : vector<1x128xi32>
    %cst_393 = arith.constant 0.000000e+00 : f32
    %1430 = vector.shape_cast %1388 : vector<1x1xf32> to vector<1x1xf32>
    %1431 = vector.broadcast %1430 : vector<1x1xf32> to vector<1x128xf32>
    %1432 = vector.broadcast %cst_393 : f32 to vector<1x128xf32>
    %1433 = arith.select %1429, %1431, %1432 : vector<1x128xi1>, vector<1x128xf32>
    %1434 = arith.addf %1427, %1433 : vector<1x128xf32>
    %c3_i32_394 = arith.constant 3 : i32
    %1435 = vector.broadcast %c3_i32_394 : i32 to vector<1x128xi32>
    %1436 = arith.cmpi eq, %409, %1435 : vector<1x128xi32>
    %1437 = arith.extui %1390 : vector<1x1xi1> to vector<1x1xi32>
    %1438 = arith.sitofp %1437 : vector<1x1xi32> to vector<1x1xf32>
    %cst_395 = arith.constant 0.000000e+00 : f32
    %1439 = vector.shape_cast %1438 : vector<1x1xf32> to vector<1x1xf32>
    %1440 = vector.broadcast %1439 : vector<1x1xf32> to vector<1x128xf32>
    %1441 = vector.broadcast %cst_395 : f32 to vector<1x128xf32>
    %1442 = arith.select %1436, %1440, %1441 : vector<1x128xi1>, vector<1x128xf32>
    %1443 = arith.addf %1434, %1442 : vector<1x128xf32>
    %c6_396 = arith.constant 6 : index
    %c0_397 = arith.constant 0 : index
    %1444 = vector.load %arg19[%c6_396, %c0_397] : memref<8x128xf32, #tpu.memory_space<vmem>>, vector<1x128xf32>
    tpu.vector_store %arg19[%c6_396, %c0_397], %1443 {strides = array<i32>} : memref<8x128xf32, #tpu.memory_space<vmem>>, vector<1x128xf32>,
    %1445 = vector.extract_strided_slice %1370 {offsets = [0, 16], sizes = [1, 8], strides = [1, 1]} : vector<1x24xf32> to vector<1x8xf32>
    %1446 = vector.broadcast %1399 : vector<1x1xf32> to vector<1x16xf32>
    %1447 = arith.cmpf oeq, %404, %1446 : vector<1x16xf32>
    %1448 = arith.extui %1447 : vector<1x16xi1> to vector<1x16xi32>
    %1449 = arith.sitofp %1448 : vector<1x16xi32> to vector<1x16xf32>
    %cst_398 = arith.constant dense<0.000000e+00> : vector<1x32xf32>
    %1450 = tpu.matmul %1449, %399, %cst_398 {dimension_numbers = #tpu.dot_dimension_numbers<[1], [0], [0], [1], [0, 0, 1, 1], [], []>} : vector<1x16xf32>, vector<16x32xf32>, vector<1x32xf32> -> vector<1x32xf32>
    %1451 = tpu.concatenate %1450, %1357 in 1 : vector<1x32xf32>, vector<1x32xf32> -> vector<1x64xf32>
    %cst_399 = arith.constant dense<0.000000e+00> : vector<1x8xf32>
    %1452 = tpu.matmul %1451, %395, %cst_399 {dimension_numbers = #tpu.dot_dimension_numbers<[1], [0], [0], [1], [0, 0, 1, 1], [], []>} : vector<1x64xf32>, vector<64x8xf32>, vector<1x8xf32> -> vector<1x8xf32>
    %1453 = arith.addf %1452, %396 : vector<1x8xf32>
    %cst_400 = arith.constant dense<0xFF800000> : vector<1xf32>
    %1454 = vector.multi_reduction <maximumf>, %1453, %cst_400 [1] : vector<1x8xf32> to vector<1xf32>
    %1455 = vector.shape_cast %1454 : vector<1xf32> to vector<1x1xf32>
    %1456 = vector.broadcast %1455 : vector<1x1xf32> to vector<1x8xf32>
    %1457 = arith.subf %1453, %1456 : vector<1x8xf32>
    %1458 = math.exp %1457 : vector<1x8xf32>
    %cst_401 = arith.constant dense<0.000000e+00> : vector<1xf32>
    %1459 = vector.multi_reduction <add>, %1458, %cst_401 [1] : vector<1x8xf32> to vector<1xf32>
    %1460 = vector.shape_cast %1459 : vector<1xf32> to vector<1x1xf32>
    %1461 = vector.broadcast %1460 : vector<1x1xf32> to vector<1x8xf32>
    %1462 = arith.divf %1458, %1461 : vector<1x8xf32>
    %cst_402 = arith.constant dense<0.000000e+00> : vector<1x32xf32>
    %1463 = tpu.matmul %1462, %378, %cst_402 {dimension_numbers = #tpu.dot_dimension_numbers<[1], [0], [0], [1], [0, 0, 1, 1], [], []>} : vector<1x8xf32>, vector<8x32xf32>, vector<1x32xf32> -> vector<1x32xf32>
    %1464 = vector.broadcast %1399 : vector<1x1xf32> to vector<1x8xf32>
    %1465 = arith.cmpf one, %400, %1464 : vector<1x8xf32>
    %1466 = arith.extui %1465 : vector<1x8xi1> to vector<1x8xi32>
    %1467 = arith.sitofp %1466 : vector<1x8xi32> to vector<1x8xf32>
    %1468 = arith.mulf %1445, %401 : vector<1x8xf32>
    %1469 = arith.mulf %1468, %1467 : vector<1x8xf32>
    %cst_403 = arith.constant dense<0.000000e+00> : vector<1xf32>
    %1470 = vector.multi_reduction <add>, %1469, %cst_403 [1] : vector<1x8xf32> to vector<1xf32>
    %1471 = vector.shape_cast %1470 : vector<1xf32> to vector<1x1xf32>
    %cst_404 = arith.constant 0.000000e+00 : f32
    %1472 = vector.broadcast %cst_404 : f32 to vector<1x1xf32>
    %1473 = arith.cmpf ogt, %1471, %1472 : vector<1x1xf32>
    %cst_405 = arith.constant 1.000000e-30 : f32
    %1474 = vector.broadcast %cst_405 : f32 to vector<1x1xf32>
    %1475 = arith.maximumf %1471, %1474 : vector<1x1xf32>
    %cst_406 = arith.constant 1.000000e+00 : f32
    %1476 = vector.broadcast %cst_406 : f32 to vector<1x1xf32>
    %1477 = arith.divf %1476, %1475 : vector<1x1xf32>
    %cst_407 = arith.constant 1.000000e+00 : f32
    %1478 = vector.broadcast %cst_407 : f32 to vector<1x1xf32>
    %1479 = arith.select %1473, %1477, %1478 : vector<1x1xi1>, vector<1x1xf32>
    %1480 = vector.broadcast %1479 : vector<1x1xf32> to vector<1x8xf32>
    %1481 = arith.mulf %1469, %1480 : vector<1x8xf32>
    %cst_408 = arith.constant dense<0.000000e+00> : vector<1x32xf32>
    %1482 = tpu.matmul %1481, %378, %cst_408 {dimension_numbers = #tpu.dot_dimension_numbers<[1], [0], [0], [1], [0, 0, 1, 1], [], []>} : vector<1x8xf32>, vector<8x32xf32>, vector<1x32xf32> -> vector<1x32xf32>
    %1483 = tpu.concatenate %1450, %1482, %1463, %1357 in 1 : vector<1x32xf32>, vector<1x32xf32>, vector<1x32xf32>, vector<1x32xf32> -> vector<1x128xf32>
    %cst_409 = arith.constant dense<0.000000e+00> : vector<1x128xf32>
    %1484 = tpu.matmul %1483, %397, %cst_409 {dimension_numbers = #tpu.dot_dimension_numbers<[1], [0], [0], [1], [0, 0, 1, 1], [], []>} : vector<1x128xf32>, vector<128x128xf32>, vector<1x128xf32> -> vector<1x128xf32>
    %1485 = arith.addf %1484, %398 : vector<1x128xf32>
    %1486 = vector.extract_strided_slice %1485 {offsets = [0, 0], sizes = [1, 32], strides = [1, 1]} : vector<1x128xf32> to vector<1x32xf32>
    %1487 = arith.negf %1486 : vector<1x32xf32>
    %1488 = math.exp %1487 : vector<1x32xf32>
    %cst_410 = arith.constant 1.000000e+00 : f32
    %1489 = vector.broadcast %cst_410 : f32 to vector<1x32xf32>
    %1490 = arith.addf %1489, %1488 : vector<1x32xf32>
    %1491 = arith.divf %1489, %1490 : vector<1x32xf32>
    %1492 = vector.extract_strided_slice %1485 {offsets = [0, 32], sizes = [1, 32], strides = [1, 1]} : vector<1x128xf32> to vector<1x32xf32>
    %1493 = arith.negf %1492 : vector<1x32xf32>
    %1494 = math.exp %1493 : vector<1x32xf32>
    %cst_411 = arith.constant 1.000000e+00 : f32
    %1495 = vector.broadcast %cst_411 : f32 to vector<1x32xf32>
    %1496 = arith.addf %1495, %1494 : vector<1x32xf32>
    %1497 = arith.divf %1495, %1496 : vector<1x32xf32>
    %1498 = vector.extract_strided_slice %1485 {offsets = [0, 64], sizes = [1, 32], strides = [1, 1]} : vector<1x128xf32> to vector<1x32xf32>
    %1499 = math.tanh %1498 : vector<1x32xf32>
    %1500 = vector.extract_strided_slice %1485 {offsets = [0, 96], sizes = [1, 32], strides = [1, 1]} : vector<1x128xf32> to vector<1x32xf32>
    %1501 = arith.negf %1500 : vector<1x32xf32>
    %1502 = math.exp %1501 : vector<1x32xf32>
    %cst_412 = arith.constant 1.000000e+00 : f32
    %1503 = vector.broadcast %cst_412 : f32 to vector<1x32xf32>
    %1504 = arith.addf %1503, %1502 : vector<1x32xf32>
    %1505 = arith.divf %1503, %1504 : vector<1x32xf32>
    %1506 = arith.mulf %1497, %1355 : vector<1x32xf32>
    %1507 = arith.mulf %1491, %1499 : vector<1x32xf32>
    %1508 = arith.addf %1506, %1507 : vector<1x32xf32>
    %1509 = math.tanh %1508 : vector<1x32xf32>
    %1510 = arith.mulf %1505, %1509 : vector<1x32xf32>
    %1511 = tpu.concatenate %1510, %379 in 1 : vector<1x32xf32>, vector<1x96xf32> -> vector<1x128xf32>
    %c8 = arith.constant 8 : index
    %c0_413 = arith.constant 0 : index
    %1512 = vector.load %arg18[%c8, %c0_413] : memref<9x128xf32, #tpu.memory_space<vmem>>, vector<1x128xf32>
    tpu.vector_store %arg18[%c8, %c0_413], %1511 {strides = array<i32>} : memref<9x128xf32, #tpu.memory_space<vmem>>, vector<1x128xf32>,
    %cst_414 = arith.constant dense<0.000000e+00> : vector<1x24xf32>
    %1513 = tpu.matmul %1510, %390, %cst_414 {dimension_numbers = #tpu.dot_dimension_numbers<[1], [0], [0], [1], [0, 0, 1, 1], [], []>} : vector<1x32xf32>, vector<32x24xf32>, vector<1x24xf32> -> vector<1x24xf32>
    %1514 = arith.addf %1513, %393 : vector<1x24xf32>
    %cst_415 = arith.constant dense<0xFF800000> : vector<1xf32>
    %1515 = vector.multi_reduction <maximumf>, %1514, %cst_415 [1] : vector<1x24xf32> to vector<1xf32>
    %1516 = vector.shape_cast %1515 : vector<1xf32> to vector<1x1xf32>
    %1517 = vector.broadcast %1516 : vector<1x1xf32> to vector<1x24xf32>
    %1518 = arith.subf %1514, %1517 : vector<1x24xf32>
    %1519 = math.exp %1518 : vector<1x24xf32>
    %cst_416 = arith.constant dense<0.000000e+00> : vector<1xf32>
    %1520 = vector.multi_reduction <add>, %1519, %cst_416 [1] : vector<1x24xf32> to vector<1xf32>
    %1521 = vector.shape_cast %1520 : vector<1xf32> to vector<1x1xf32>
    %1522 = vector.broadcast %1521 : vector<1x1xf32> to vector<1x24xf32>
    %1523 = arith.divf %1519, %1522 : vector<1x24xf32>
    %1524 = arith.mulf %1523, %394 : vector<1x24xf32>
    %cst_417 = arith.constant 0.000000e+00 : f32
    %1525 = vector.broadcast %cst_417 : f32 to vector<1x24xf32>
    %1526 = arith.cmpf ogt, %1524, %1525 : vector<1x24xf32>
    %cst_418 = arith.constant 1.000000e-30 : f32
    %1527 = vector.broadcast %cst_418 : f32 to vector<1x24xf32>
    %1528 = arith.maximumf %1524, %1527 : vector<1x24xf32>
    %1529 = math.log %1528 : vector<1x24xf32>
    %cst_419 = arith.constant -1.000000e+30 : f32
    %1530 = vector.broadcast %cst_419 : f32 to vector<1x24xf32>
    %1531 = arith.select %1526, %1529, %1530 : vector<1x24xi1>, vector<1x24xf32>
    %1532 = vector.extract_strided_slice %402 {offsets = [7, 0], sizes = [1, 24], strides = [1, 1]} : vector<8x24xf32> to vector<1x24xf32>
    %1533 = arith.addf %1531, %1532 : vector<1x24xf32>
    %cst_420 = arith.constant dense<0xFF800000> : vector<1xf32>
    %1534 = vector.multi_reduction <maximumf>, %1533, %cst_420 [1] : vector<1x24xf32> to vector<1xf32>
    %1535 = vector.shape_cast %1534 : vector<1xf32> to vector<1x1xf32>
    %1536 = vector.broadcast %1535 : vector<1x1xf32> to vector<1x24xf32>
    %1537 = arith.cmpf oge, %1533, %1536 : vector<1x24xf32>
    %cst_421 = arith.constant 2.400000e+01 : f32
    %1538 = vector.broadcast %cst_421 : f32 to vector<1x24xf32>
    %1539 = arith.select %1537, %408, %1538 : vector<1x24xi1>, vector<1x24xf32>
    %cst_422 = arith.constant dense<0x7F800000> : vector<1xf32>
    %1540 = vector.multi_reduction <minimumf>, %1539, %cst_422 [1] : vector<1x24xf32> to vector<1xf32>
    %1541 = vector.shape_cast %1540 : vector<1xf32> to vector<1x1xf32>
    %cst_423 = arith.constant 1.600000e+01 : f32
    %1542 = vector.broadcast %cst_423 : f32 to vector<1x1xf32>
    %1543 = arith.cmpf oge, %1541, %1542 : vector<1x1xf32>
    %cst_424 = arith.constant 1.600000e+01 : f32
    %1544 = vector.broadcast %cst_424 : f32 to vector<1x1xf32>
    %1545 = arith.subf %1541, %1544 : vector<1x1xf32>
    %1546 = vector.broadcast %1545 : vector<1x1xf32> to vector<1x8xf32>
    %1547 = arith.cmpf oeq, %406, %1546 : vector<1x8xf32>
    %cst_425 = arith.constant 0.000000e+00 : f32
    %1548 = vector.broadcast %cst_425 : f32 to vector<1x8xf32>
    %1549 = arith.select %1547, %400, %1548 : vector<1x8xi1>, vector<1x8xf32>
    %cst_426 = arith.constant dense<0.000000e+00> : vector<1xf32>
    %1550 = vector.multi_reduction <add>, %1549, %cst_426 [1] : vector<1x8xf32> to vector<1xf32>
    %1551 = vector.shape_cast %1550 : vector<1xf32> to vector<1x1xf32>
    %1552 = arith.select %1543, %1551, %1541 : vector<1x1xi1>, vector<1x1xf32>
    %1553 = vector.broadcast %1541 : vector<1x1xf32> to vector<1x24xf32>
    %1554 = arith.cmpf oeq, %408, %1553 : vector<1x24xf32>
    %cst_427 = arith.constant 0.000000e+00 : f32
    %1555 = vector.broadcast %cst_427 : f32 to vector<1x24xf32>
    %1556 = arith.select %1554, %1524, %1555 : vector<1x24xi1>, vector<1x24xf32>
    %cst_428 = arith.constant dense<0.000000e+00> : vector<1xf32>
    %1557 = vector.multi_reduction <add>, %1556, %cst_428 [1] : vector<1x24xf32> to vector<1xf32>
    %1558 = vector.shape_cast %1557 : vector<1xf32> to vector<1x1xf32>
    %1559 = vector.broadcast %1552 : vector<1x1xf32> to vector<1x16xf32>
    %1560 = arith.cmpf oeq, %404, %1559 : vector<1x16xf32>
    %1561 = vector.extract_strided_slice %1524 {offsets = [0, 0], sizes = [1, 16], strides = [1, 1]} : vector<1x24xf32> to vector<1x16xf32>
    %cst_429 = arith.constant 0.000000e+00 : f32
    %1562 = vector.broadcast %cst_429 : f32 to vector<1x16xf32>
    %1563 = arith.select %1560, %1561, %1562 : vector<1x16xi1>, vector<1x16xf32>
    %cst_430 = arith.constant dense<0.000000e+00> : vector<1xf32>
    %1564 = vector.multi_reduction <add>, %1563, %cst_430 [1] : vector<1x16xf32> to vector<1xf32>
    %1565 = vector.shape_cast %1564 : vector<1xf32> to vector<1x1xf32>
    %1566 = arith.addf %1558, %1565 : vector<1x1xf32>
    %1567 = arith.select %1543, %1566, %1558 : vector<1x1xi1>, vector<1x1xf32>
    %c0_i32_431 = arith.constant 0 : i32
    %1568 = vector.broadcast %c0_i32_431 : i32 to vector<1x128xi32>
    %1569 = arith.cmpi eq, %409, %1568 : vector<1x128xi32>
    %cst_432 = arith.constant 0.000000e+00 : f32
    %1570 = vector.shape_cast %1552 : vector<1x1xf32> to vector<1x1xf32>
    %1571 = vector.broadcast %1570 : vector<1x1xf32> to vector<1x128xf32>
    %1572 = vector.broadcast %cst_432 : f32 to vector<1x128xf32>
    %1573 = arith.select %1569, %1571, %1572 : vector<1x128xi1>, vector<1x128xf32>
    %c1_i32_433 = arith.constant 1 : i32
    %1574 = vector.broadcast %c1_i32_433 : i32 to vector<1x128xi32>
    %1575 = arith.cmpi eq, %409, %1574 : vector<1x128xi32>
    %cst_434 = arith.constant 0.000000e+00 : f32
    %1576 = vector.shape_cast %1567 : vector<1x1xf32> to vector<1x1xf32>
    %1577 = vector.broadcast %1576 : vector<1x1xf32> to vector<1x128xf32>
    %1578 = vector.broadcast %cst_434 : f32 to vector<1x128xf32>
    %1579 = arith.select %1575, %1577, %1578 : vector<1x128xi1>, vector<1x128xf32>
    %1580 = arith.addf %1573, %1579 : vector<1x128xf32>
    %c2_i32_435 = arith.constant 2 : i32
    %1581 = vector.broadcast %c2_i32_435 : i32 to vector<1x128xi32>
    %1582 = arith.cmpi eq, %409, %1581 : vector<1x128xi32>
    %cst_436 = arith.constant 0.000000e+00 : f32
    %1583 = vector.shape_cast %1541 : vector<1x1xf32> to vector<1x1xf32>
    %1584 = vector.broadcast %1583 : vector<1x1xf32> to vector<1x128xf32>
    %1585 = vector.broadcast %cst_436 : f32 to vector<1x128xf32>
    %1586 = arith.select %1582, %1584, %1585 : vector<1x128xi1>, vector<1x128xf32>
    %1587 = arith.addf %1580, %1586 : vector<1x128xf32>
    %c3_i32_437 = arith.constant 3 : i32
    %1588 = vector.broadcast %c3_i32_437 : i32 to vector<1x128xi32>
    %1589 = arith.cmpi eq, %409, %1588 : vector<1x128xi32>
    %1590 = arith.extui %1543 : vector<1x1xi1> to vector<1x1xi32>
    %1591 = arith.sitofp %1590 : vector<1x1xi32> to vector<1x1xf32>
    %cst_438 = arith.constant 0.000000e+00 : f32
    %1592 = vector.shape_cast %1591 : vector<1x1xf32> to vector<1x1xf32>
    %1593 = vector.broadcast %1592 : vector<1x1xf32> to vector<1x128xf32>
    %1594 = vector.broadcast %cst_438 : f32 to vector<1x128xf32>
    %1595 = arith.select %1589, %1593, %1594 : vector<1x128xi1>, vector<1x128xf32>
    %1596 = arith.addf %1587, %1595 : vector<1x128xf32>
    %c7_439 = arith.constant 7 : index
    %c0_440 = arith.constant 0 : index
    %1597 = vector.load %arg19[%c7_439, %c0_440] : memref<8x128xf32, #tpu.memory_space<vmem>>, vector<1x128xf32>
    tpu.vector_store %arg19[%c7_439, %c0_440], %1596 {strides = array<i32>} : memref<8x128xf32, #tpu.memory_space<vmem>>, vector<1x128xf32>,
    return
  }
}

</mosaic_0001>

<llo_original>
// kernel: _actor_copy_device.1
$region0: #{_actor_copy_device.1}
  #allocation0 [shape = 'u32[]', space=smem, size = 0x4, offset = 0x4, fixed_abs, tag = 'smem constant byte address 0x4 - core index']
  #allocation1 [shape = 'u32[144,128]{1,0:T(1,128)}', space=vmem, size = 0x12000, scoped, tag = 'internal scratch']
  #allocation2 [shape = 's32[1]{0:T(128)S(6)}', space=smem, size = 0x200, scoped, tag = 'scoped memory for _actor_copy_device.1']
  %s0 = inlined_call_operand.<no memory space> [shape: s32[1], index: 0, kind: input, shape index: {}]
  %s1 = inlined_call_operand.vmem [shape: f32[8,32], index: 1, kind: input, shape index: {}]
  %s2 = inlined_call_operand.vmem [shape: f32[1,8], index: 2, kind: input, shape index: {}]
  %s3 = inlined_call_operand.vmem [shape: f32[1,8], index: 3, kind: input, shape index: {}]
  %s4 = inlined_call_operand.vmem [shape: f32[1,24], index: 4, kind: input, shape index: {}]
  %s5 = inlined_call_operand.vmem [shape: f32[8,24], index: 5, kind: input, shape index: {}]
  %s6 = inlined_call_operand.vmem [shape: f32[16,32], index: 6, kind: input, shape index: {}]
  %s7 = inlined_call_operand.vmem [shape: f32[32,128], index: 7, kind: input, shape index: {}]
  %s8 = inlined_call_operand.vmem [shape: f32[32,128], index: 8, kind: input, shape index: {}]
  %s9 = inlined_call_operand.vmem [shape: f32[1,128], index: 9, kind: input, shape index: {}]
  %s10 = inlined_call_operand.vmem [shape: f32[64,8], index: 10, kind: input, shape index: {}]
  %s11 = inlined_call_operand.vmem [shape: f32[1,8], index: 11, kind: input, shape index: {}]
  %s12 = inlined_call_operand.vmem [shape: f32[128,128], index: 12, kind: input, shape index: {}]
  %s13 = inlined_call_operand.vmem [shape: f32[1,128], index: 13, kind: input, shape index: {}]
  %s14 = inlined_call_operand.vmem [shape: f32[32,16], index: 14, kind: input, shape index: {}]
  %s15 = inlined_call_operand.vmem [shape: f32[1,16], index: 15, kind: input, shape index: {}]
  %s16 = inlined_call_operand.vmem [shape: f32[32,32], index: 16, kind: input, shape index: {}]
  %s17 = inlined_call_operand.vmem [shape: f32[1,32], index: 17, kind: input, shape index: {}]
  %s18 = inlined_call_operand.hbm [shape: f32[9,128], index: 18, kind: output, shape index: {0}]
  %s19 = inlined_call_operand.hbm [shape: f32[8,128], index: 19, kind: output, shape index: {1}]
  %s20 = inlined_call_operand.hbm [shape: f32[8,32], index: 20, kind: output, shape index: {2}]
  %21 = xla_tuple %s18, %s19, %s20
  %s22 = sld [smem:[#allocation0]]
  $region98: #{_actor_copy_device.1} parent=0
    _
  %s24 = ssub.s32 1, %s22
  %s25 = scalar_select 0, %s24, %s22
  %26 = sst [smem:[#allocation2]] %s0
  $region1: #{_actor_copy_device.1} parent=0
    #allocation3 [shape = 'u8[8192]{0}', space=vmem, size = 0x2000, scoped, tag = 'output window, operand 0, single buffered']
    #allocation4 [shape = 's32[1]{0}', space=sflag, size = 0x4, scoped, tag = 'scoped memory for _actor_copy_device.1']
    #allocation5 [shape = 'u8[4096]{0}', space=vmem, size = 0x1000, scoped, tag = 'output window, operand 1, single buffered']
    #allocation6 [shape = 's32[1]{0}', space=sflag, size = 0x4, scoped, tag = 'scoped memory for _actor_copy_device.1']
    #allocation7 [shape = 'u8[4096]{0}', space=vmem, size = 0x1000, scoped, tag = 'output window, operand 2, single buffered']
    %27 = vsyncpa [#allocation4], 0
    %28 = vsyncpa [#allocation6], 0
    // Predicated region
    $region2: #{_actor_copy_device.1} parent=1 // pred_check
      _
    $region3: #{_actor_copy_device.1} parent=1 // pred_check_branch
      %30 = sbr.rel (0) target = $region5
    $region4: #{_actor_copy_device.1} parent=1 // pred_region
      _
    $region5: #{_actor_copy_device.1} parent=1 // pred_fallthru
      _
    // Predicated region
    $region6: #{_actor_copy_device.1} parent=1 // pred_check
      _
    $region7: #{_actor_copy_device.1} parent=1 // pred_check_branch
      %32 = sbr.rel (0) target = $region9
    $region8: #{_actor_copy_device.1} parent=1 // pred_region
      _
    $region9: #{_actor_copy_device.1} parent=1 // pred_fallthru
      _
    // Predicated region
    $region10: #{_actor_copy_device.1} parent=1 // pred_check
      _
    $region11: #{_actor_copy_device.1} parent=1 // pred_check_branch
      %34 = sbr.rel (0) target = $region13
    $region12: #{_actor_copy_device.1} parent=1 // pred_region
      _
    $region13: #{_actor_copy_device.1} parent=1 // pred_fallthru
      _
    // Predicated region
    $region14: #{_actor_copy_device.1} parent=1 // pred_check
      _
    $region15: #{_actor_copy_device.1} parent=1 // pred_check_branch
      %36 = sbr.rel (0) target = $region17
    $region16: #{_actor_copy_device.1} parent=1 // pred_region
      _
    $region17: #{_actor_copy_device.1} parent=1 // pred_fallthru
      _
    // Predicated region
    $region18: #{_actor_copy_device.1} parent=1 // pred_check
      _
    $region19: #{_actor_copy_device.1} parent=1 // pred_check_branch
      %38 = sbr.rel (0) target = $region21
    $region20: #{_actor_copy_device.1} parent=1 // pred_region
      _
    $region21: #{_actor_copy_device.1} parent=1 // pred_fallthru
      _
    // Predicated region
    $region22: #{_actor_copy_device.1} parent=1 // pred_check
      _
    $region23: #{_actor_copy_device.1} parent=1 // pred_check_branch
      %40 = sbr.rel (0) target = $region25
    $region24: #{_actor_copy_device.1} parent=1 // pred_region
      _
    $region25: #{_actor_copy_device.1} parent=1 // pred_fallthru
      _
    // Predicated region
    $region26: #{_actor_copy_device.1} parent=1 // pred_check
      _
    $region27: #{_actor_copy_device.1} parent=1 // pred_check_branch
      %42 = sbr.rel (0) target = $region29
    $region28: #{_actor_copy_device.1} parent=1 // pred_region
      _
    $region29: #{_actor_copy_device.1} parent=1 // pred_fallthru
      _
    // Predicated region
    $region30: #{_actor_copy_device.1} parent=1 // pred_check
      _
    $region31: #{_actor_copy_device.1} parent=1 // pred_check_branch
      %44 = sbr.rel (0) target = $region33
    $region32: #{_actor_copy_device.1} parent=1 // pred_region
      _
    $region33: #{_actor_copy_device.1} parent=1 // pred_fallthru
      _
    // Predicated region
    $region34: #{_actor_copy_device.1} parent=1 // pred_check
      _
    $region35: #{_actor_copy_device.1} parent=1 // pred_check_branch
      %46 = sbr.rel (0) target = $region37
    $region36: #{_actor_copy_device.1} parent=1 // pred_region
      _
    $region37: #{_actor_copy_device.1} parent=1 // pred_fallthru
      _
    // Predicated region
    $region38: #{_actor_copy_device.1} parent=1 // pred_check
      _
    $region39: #{_actor_copy_device.1} parent=1 // pred_check_branch
      %48 = sbr.rel (0) target = $region41
    $region40: #{_actor_copy_device.1} parent=1 // pred_region
      _
    $region41: #{_actor_copy_device.1} parent=1 // pred_fallthru
      _
    // Predicated region
    $region42: #{_actor_copy_device.1} parent=1 // pred_check
      _
    $region43: #{_actor_copy_device.1} parent=1 // pred_check_branch
      %50 = sbr.rel (0) target = $region45
    $region44: #{_actor_copy_device.1} parent=1 // pred_region
      _
    $region45: #{_actor_copy_device.1} parent=1 // pred_fallthru
      _
    // Predicated region
    $region46: #{_actor_copy_device.1} parent=1 // pred_check
      _
    $region47: #{_actor_copy_device.1} parent=1 // pred_check_branch
      %52 = sbr.rel (0) target = $region49
    $region48: #{_actor_copy_device.1} parent=1 // pred_region
      _
    $region49: #{_actor_copy_device.1} parent=1 // pred_fallthru
      _
    // Predicated region
    $region50: #{_actor_copy_device.1} parent=1 // pred_check
      _
    $region51: #{_actor_copy_device.1} parent=1 // pred_check_branch
      %54 = sbr.rel (0) target = $region53
    $region52: #{_actor_copy_device.1} parent=1 // pred_region
      _
    $region53: #{_actor_copy_device.1} parent=1 // pred_fallthru
      _
    // Predicated region
    $region54: #{_actor_copy_device.1} parent=1 // pred_check
      _
    $region55: #{_actor_copy_device.1} parent=1 // pred_check_branch
      %56 = sbr.rel (0) target = $region57
    $region56: #{_actor_copy_device.1} parent=1 // pred_region
      _
    $region57: #{_actor_copy_device.1} parent=1 // pred_fallthru
      _
    // Predicated region
    $region58: #{_actor_copy_device.1} parent=1 // pred_check
      _
    $region59: #{_actor_copy_device.1} parent=1 // pred_check_branch
      %58 = sbr.rel (0) target = $region61
    $region60: #{_actor_copy_device.1} parent=1 // pred_region
      _
    $region61: #{_actor_copy_device.1} parent=1 // pred_fallthru
      _
    // Predicated region
    $region62: #{_actor_copy_device.1} parent=1 // pred_check
      _
    $region63: #{_actor_copy_device.1} parent=1 // pred_check_branch
      %60 = sbr.rel (0) target = $region65
    $region64: #{_actor_copy_device.1} parent=1 // pred_region
      _
    $region65: #{_actor_copy_device.1} parent=1 // pred_fallthru
      _
    // Predicated region
    $region66: #{_actor_copy_device.1} parent=1 // pred_check
      _
    $region67: #{_actor_copy_device.1} parent=1 // pred_check_branch
      %62 = sbr.rel (0) target = $region69
    $region68: #{_actor_copy_device.1} parent=1 // pred_region
      _
    $region69: #{_actor_copy_device.1} parent=1 // pred_fallthru
      _
    // Predicated region
    $region70: #{_actor_copy_device.1} parent=1 // pred_check
      _
    $region71: #{_actor_copy_device.1} parent=1 // pred_check_branch
      %64 = sbr.rel (0) target = $region73
    $region72: #{_actor_copy_device.1} parent=1 // pred_region
      _
    $region73: #{_actor_copy_device.1} parent=1 // pred_fallthru
      _
    %s65 = sld [smem:[#allocation2]]
    %v66 = vld [vmem:[%s1] sm:$0xff]
    %v67 = vld [vmem:[%s7] sm:$0xff]
    %v68 = vld [vmem:[%s7 + $0x8] sm:$0xff]
    %v69 = vld [vmem:[%s7 + $0x10] sm:$0xff]
    %v70 = vld [vmem:[%s7 + $0x18] sm:$0xff]
    %v71 = vld [vmem:[%s9] sm:$0x1]
    %v73 = vlaneseq
    %v74 = vshrl.u32 %v73, 7
    %v75 = vsub.s32 0, %v74
    %v76 = vrot.slane %v71, %v75
    %vm78 = vcmask 261120
    %v80 = vsel %vm78, %v66, 0
    %82 = vmatprep.subr.mxu0 0.0
    %83 = vmatpush1.msra.mxu0 %v67
    %84 = vmatprep.subr.mxu0 0.0
    %85 = vmatpush1.msra.mxu0 %v68
    %86 = vmatprep.subr.mxu0 0.0
    %87 = vmatpush1.msra.mxu0 %v69
    %88 = vmatprep.subr.mxu0 0.0
    %89 = vmatpush1.msra.mxu0 %v70
    %90 = vmatprep.subr.mxu0 0.0
    %91 = vmatpush1.msra.mxu0 0.0
    %92 = vmatprep.subr.mxu0 0.0
    %93 = vmatpush1.msra.mxu0 0.0
    %94 = vmatprep.subr.mxu0 0.0
    %95 = vmatpush1.msra.mxu0 0.0
    %96 = vmatprep.subr.mxu0 0.0
    %97 = vmatpush1.msra.mxu0 0.0
    %98 = vmatprep.subr.mxu0 0.0
    %99 = vmatpush1.msra.mxu0 0.0
    %100 = vmatprep.subr.mxu0 0.0
    %101 = vmatpush1.msra.mxu0 0.0
    %102 = vmatprep.subr.mxu0 0.0
    %103 = vmatpush1.msra.mxu0 0.0
    %104 = vmatprep.subr.mxu0 0.0
    %105 = vmatpush1.msra.mxu0 0.0
    %106 = vmatprep.subr.mxu0 0.0
    %107 = vmatpush1.msra.mxu0 0.0
    %108 = vmatprep.subr.mxu0 0.0
    %109 = vmatpush1.msra.mxu0 0.0
    %110 = vmatprep.subr.mxu0 0.0
    %111 = vmatpush1.msra.mxu0 0.0
    %112 = vmatprep.subr.mxu0 0.0
    %113 = vmatpush1.msra.mxu0 0.0
    %114 = vmatprep.subr.mxu0 0.0
    %115 = vmatpush1.msra.mxu0 0.0
    %116 = vmatprep.subr.mxu0 0.0
    %117 = vmatpush1.msra.mxu0 0.0
    %118 = vmatprep.subr.mxu0 0.0
    %119 = vmatpush1.msra.mxu0 0.0
    %120 = vmatprep.subr.mxu0 0.0
    %121 = vmatpush1.msra.mxu0 0.0
    %122 = vmatprep.subr.mxu0 0.0
    %123 = vmatpush1.msra.mxu0 0.0
    %124 = vmatprep.subr.mxu0 0.0
    %125 = vmatpush1.msra.mxu0 0.0
    %126 = vmatprep.subr.mxu0 0.0
    %127 = vmatpush1.msra.mxu0 0.0
    %128 = vmatprep.subr.mxu0 0.0
    %129 = vmatpush1.msra.mxu0 0.0
    %130 = vmatprep.subr.mxu0 0.0
    %131 = vmatpush1.msra.mxu0 0.0
    %132 = vmatprep.subr.mxu0 0.0
    %133 = vmatpush1.msra.mxu0 0.0
    %134 = vmatprep.subr.mxu0 0.0
    %135 = vmatpush1.msra.mxu0 0.0
    %136 = vmatprep.subr.mxu0 0.0
    %137 = vmatpush1.msra.mxu0 0.0
    %138 = vmatprep.subr.mxu0 0.0
    %139 = vmatpush1.msra.mxu0 0.0
    %140 = vmatprep.subr.mxu0 0.0
    %141 = vmatpush1.msra.mxu0 0.0
    %142 = vmatprep.subr.mxu0 0.0
    %143 = vmatpush1.msra.mxu0 0.0
    %144 = vmatprep.subr.mxu0 0.0
    %145 = vmatpush1.msra.mxu0 0.0
    %146 = vmatprep.mubr.f32.mxu0 0.0
    %147 = vmatmul.mubr.f32.gmra.mrb[0].mxu0 %v80
    %v148 = vpop.f32.mrb[0].mxu0
    %v149 = vadd.f32 %v76, %v148
    %v150 = vpop.f32.mrb[0].mxu0
    %151 = vdwg.mxu0
    %v152 = vld [vmem:[%s8] sm:$0xff]
    %v153 = vld [vmem:[%s8 + $0x8] sm:$0xff]
    %v154 = vld [vmem:[%s8 + $0x10] sm:$0xff]
    %v155 = vld [vmem:[%s8 + $0x18] sm:$0xff]
    %v157 = vsel %vm78, 0.0, 0
    %159 = vmatprep.subr.mxu0 0.0
    %160 = vmatpush1.msra.mxu0 %v152
    %161 = vmatprep.subr.mxu0 0.0
    %162 = vmatpush1.msra.mxu0 %v153
    %163 = vmatprep.subr.mxu0 0.0
    %164 = vmatpush1.msra.mxu0 %v154
    %165 = vmatprep.subr.mxu0 0.0
    %166 = vmatpush1.msra.mxu0 %v155
    %167 = vmatprep.subr.mxu0 0.0
    %168 = vmatpush1.msra.mxu0 0.0
    %169 = vmatprep.subr.mxu0 0.0
    %170 = vmatpush1.msra.mxu0 0.0
    %171 = vmatprep.subr.mxu0 0.0
    %172 = vmatpush1.msra.mxu0 0.0
    %173 = vmatprep.subr.mxu0 0.0
    %174 = vmatpush1.msra.mxu0 0.0
    %175 = vmatprep.subr.mxu0 0.0
    %176 = vmatpush1.msra.mxu0 0.0
    %177 = vmatprep.subr.mxu0 0.0
    %178 = vmatpush1.msra.mxu0 0.0
    %179 = vmatprep.subr.mxu0 0.0
    %180 = vmatpush1.msra.mxu0 0.0
    %181 = vmatprep.subr.mxu0 0.0
    %182 = vmatpush1.msra.mxu0 0.0
    %183 = vmatprep.subr.mxu0 0.0
    %184 = vmatpush1.msra.mxu0 0.0
    %185 = vmatprep.subr.mxu0 0.0
    %186 = vmatpush1.msra.mxu0 0.0
    %187 = vmatprep.subr.mxu0 0.0
    %188 = vmatpush1.msra.mxu0 0.0
    %189 = vmatprep.subr.mxu0 0.0
    %190 = vmatpush1.msra.mxu0 0.0
    %191 = vmatprep.subr.mxu0 0.0
    %192 = vmatpush1.msra.mxu0 0.0
    %193 = vmatprep.subr.mxu0 0.0
    %194 = vmatpush1.msra.mxu0 0.0
    %195 = vmatprep.subr.mxu0 0.0
    %196 = vmatpush1.msra.mxu0 0.0
    %197 = vmatprep.subr.mxu0 0.0
    %198 = vmatpush1.msra.mxu0 0.0
    %199 = vmatprep.subr.mxu0 0.0
    %200 = vmatpush1.msra.mxu0 0.0
    %201 = vmatprep.subr.mxu0 0.0
    %202 = vmatpush1.msra.mxu0 0.0
    %203 = vmatprep.subr.mxu0 0.0
    %204 = vmatpush1.msra.mxu0 0.0
    %205 = vmatprep.subr.mxu0 0.0
    %206 = vmatpush1.msra.mxu0 0.0
    %207 = vmatprep.subr.mxu0 0.0
    %208 = vmatpush1.msra.mxu0 0.0
    %209 = vmatprep.subr.mxu0 0.0
    %210 = vmatpush1.msra.mxu0 0.0
    %211 = vmatprep.subr.mxu0 0.0
    %212 = vmatpush1.msra.mxu0 0.0
    %213 = vmatprep.subr.mxu0 0.0
    %214 = vmatpush1.msra.mxu0 0.0
    %215 = vmatprep.subr.mxu0 0.0
    %216 = vmatpush1.msra.mxu0 0.0
    %217 = vmatprep.subr.mxu0 0.0
    %218 = vmatpush1.msra.mxu0 0.0
    %219 = vmatprep.subr.mxu0 0.0
    %220 = vmatpush1.msra.mxu0 0.0
    %221 = vmatprep.subr.mxu0 0.0
    %222 = vmatpush1.msra.mxu0 0.0
    %223 = vmatprep.mubr.f32.mxu0 0.0
    %224 = vmatmul.mubr.f32.gmra.mrb[0].mxu0 %v157
    %v225 = vpop.f32.mrb[0].mxu0
    %v226 = vadd.f32 0.0, %v225
    %v227 = vpop.f32.mrb[0].mxu0
    %228 = vdwg.mxu0
    %v229 = vadd.f32 %v149, %v226
    %v230 = vxor.u32 %v229, 2147483648
    %v231 = vmul.f32 %v230, 1.442695
    %v232 = vpow.pop %v231
    %v233 = vadd.f32 %v232, 1.0
    %v234 = vrcp.pop %v233
    %v235 = vmul.f32 1.0, %v234
    %v236 = vtanh.pop %v229
    %v237 = vmul.f32 %v235, 0.0
    %239 = vrot.lane.b32.xlu0 %v236, 64
    %v240 = vpop.permute.xlu0 %239
    %v242 = vmul.f32 %v235, %v240
    %244 = vrot.lane.b32.xlu0 %v242, 32
    %v245 = vpop.permute.xlu0 %244
    %v247 = vadd.f32 %v237, %v245
    %v248 = vtanh.pop %v247
    %250 = vrot.lane.b32.xlu0 %v248, 64
    %v251 = vpop.permute.xlu0 %250
    %v253 = vmul.f32 %v235, %v251
    %p254 = scmp.gt.s32.totalorder %s65, 0
    %s255 = scalar_select %p254, 1, 0
    %s256 = scvt.s32.f32 %s255
    %v257 = vstv %s256
    %v258 = vmul.f32 %v253, %v257
    %260 = vrot.lane.b32.xlu0 %v258, 32
    %v261 = vpop.permute.xlu0 %260
    %vm263 = vcmask 253952
    %264 = vst.msk [vmem:[#allocation7] sm:$0x1] %vm263, %v261
    %s265 = ssub.f32 1.0, %s256
    %v266 = vstv %s265
    %v267 = vmul.f32 %v266, 0.0
    %v268 = vadd.f32 %v258, %v267
    %v269 = vmul.f32 %v247, %v257
    %v270 = vadd.f32 %v269, %v267
    %272 = vrot.lane.b32.xlu0 %v268, 32
    %v273 = vpop.permute.xlu0 %272
    %v274 = vsel %vm78, %v273, 0
    %276 = vmatprep.subr.mxu0 0.0
    %277 = vmatpush1.msra.mxu0 %v152
    %278 = vmatprep.subr.mxu0 0.0
    %279 = vmatpush1.msra.mxu0 %v153
    %280 = vmatprep.subr.mxu0 0.0
    %281 = vmatpush1.msra.mxu0 %v154
    %282 = vmatprep.subr.mxu0 0.0
    %283 = vmatpush1.msra.mxu0 %v155
    %284 = vmatprep.subr.mxu0 0.0
    %285 = vmatpush1.msra.mxu0 0.0
    %286 = vmatprep.subr.mxu0 0.0
    %287 = vmatpush1.msra.mxu0 0.0
    %288 = vmatprep.subr.mxu0 0.0
    %289 = vmatpush1.msra.mxu0 0.0
    %290 = vmatprep.subr.mxu0 0.0
    %291 = vmatpush1.msra.mxu0 0.0
    %292 = vmatprep.subr.mxu0 0.0
    %293 = vmatpush1.msra.mxu0 0.0
    %294 = vmatprep.subr.mxu0 0.0
    %295 = vmatpush1.msra.mxu0 0.0
    %296 = vmatprep.subr.mxu0 0.0
    %297 = vmatpush1.msra.mxu0 0.0
    %298 = vmatprep.subr.mxu0 0.0
    %299 = vmatpush1.msra.mxu0 0.0
    %300 = vmatprep.subr.mxu0 0.0
    %301 = vmatpush1.msra.mxu0 0.0
    %302 = vmatprep.subr.mxu0 0.0
    %303 = vmatpush1.msra.mxu0 0.0
    %304 = vmatprep.subr.mxu0 0.0
    %305 = vmatpush1.msra.mxu0 0.0
    %306 = vmatprep.subr.mxu0 0.0
    %307 = vmatpush1.msra.mxu0 0.0
    %308 = vmatprep.subr.mxu0 0.0
    %309 = vmatpush1.msra.mxu0 0.0
    %310 = vmatprep.subr.mxu0 0.0
    %311 = vmatpush1.msra.mxu0 0.0
    %312 = vmatprep.subr.mxu0 0.0
    %313 = vmatpush1.msra.mxu0 0.0
    %314 = vmatprep.subr.mxu0 0.0
    %315 = vmatpush1.msra.mxu0 0.0
    %316 = vmatprep.subr.mxu0 0.0
    %317 = vmatpush1.msra.mxu0 0.0
    %318 = vmatprep.subr.mxu0 0.0
    %319 = vmatpush1.msra.mxu0 0.0
    %320 = vmatprep.subr.mxu0 0.0
    %321 = vmatpush1.msra.mxu0 0.0
    %322 = vmatprep.subr.mxu0 0.0
    %323 = vmatpush1.msra.mxu0 0.0
    %324 = vmatprep.subr.mxu0 0.0
    %325 = vmatpush1.msra.mxu0 0.0
    %326 = vmatprep.subr.mxu0 0.0
    %327 = vmatpush1.msra.mxu0 0.0
    %328 = vmatprep.subr.mxu0 0.0
    %329 = vmatpush1.msra.mxu0 0.0
    %330 = vmatprep.subr.mxu0 0.0
    %331 = vmatpush1.msra.mxu0 0.0
    %332 = vmatprep.subr.mxu0 0.0
    %333 = vmatpush1.msra.mxu0 0.0
    %334 = vmatprep.subr.mxu0 0.0
    %335 = vmatpush1.msra.mxu0 0.0
    %336 = vmatprep.subr.mxu0 0.0
    %337 = vmatpush1.msra.mxu0 0.0
    %338 = vmatprep.subr.mxu0 0.0
    %339 = vmatpush1.msra.mxu0 0.0
    %340 = vmatprep.mubr.f32.mxu0 0.0
    %341 = vmatmul.mubr.f32.gmra.mrb[0].mxu0 %v274
    %v342 = vpop.f32.mrb[0].mxu0
    %v343 = vadd.f32 0.0, %v342
    %v344 = vpop.f32.mrb[0].mxu0
    %345 = vdwg.mxu0
    %v347 = vrot.slane %v343, 7
    %v349 = vadd.f32 %v149, %v347
    %v350 = vxor.u32 %v349, 2147483648
    %v351 = vmul.f32 %v350, 1.442695
    %v352 = vpow.pop %v351
    %v353 = vadd.f32 %v352, 1.0
    %v354 = vrcp.pop %v353
    %v355 = vmul.f32 1.0, %v354
    %v356 = vtanh.pop %v349
    %v358 = vrot.slane %v270, 7
    %v360 = vmul.f32 %v355, %v358
    %362 = vrot.lane.b32.xlu0 %v356, 64
    %v363 = vpop.permute.xlu0 %362
    %v365 = vmul.f32 %v355, %v363
    %367 = vrot.lane.b32.xlu0 %v365, 32
    %v368 = vpop.permute.xlu0 %367
    %v370 = vadd.f32 %v360, %v368
    %v371 = vtanh.pop %v370
    %373 = vrot.lane.b32.xlu0 %v371, 64
    %v374 = vpop.permute.xlu0 %373
    %v376 = vmul.f32 %v355, %v374
    %p377 = scmp.gt.s32.totalorder %s65, 1
    %s378 = scalar_select %p377, 1, 0
    %s379 = scvt.s32.f32 %s378
    %v380 = vstv %s379
    %v381 = vmul.f32 %v376, %v380
    %383 = vrot.lane.b32.xlu0 %v381, 32
    %v384 = vpop.permute.xlu0 %383
    %vm386 = vcmask 254977
    %387 = vst.msk [vmem:[#allocation7] sm:$0x2] %vm386, %v384
    %s388 = ssub.f32 1.0, %s379
    %v389 = vstv %s388
    %v390 = vmul.f32 %v268, %v389
    %v392 = vrot.slane %v390, 7
    %v394 = vadd.f32 %v381, %v392
    %v395 = vmul.f32 %v370, %v380
    %v396 = vmul.f32 %v270, %v389
    %v398 = vrot.slane %v396, 7
    %v400 = vadd.f32 %v395, %v398
    %v402 = vrot.slane %v394, 1
    %403 = vrot.lane.b32.xlu0 %v402, 32
    %v404 = vpop.permute.xlu0 %403
    %v405 = vsel %vm78, %v404, 0
    %407 = vmatprep.subr.mxu0 0.0
    %408 = vmatpush1.msra.mxu0 %v152
    %409 = vmatprep.subr.mxu0 0.0
    %410 = vmatpush1.msra.mxu0 %v153
    %411 = vmatprep.subr.mxu0 0.0
    %412 = vmatpush1.msra.mxu0 %v154
    %413 = vmatprep.subr.mxu0 0.0
    %414 = vmatpush1.msra.mxu0 %v155
    %415 = vmatprep.subr.mxu0 0.0
    %416 = vmatpush1.msra.mxu0 0.0
    %417 = vmatprep.subr.mxu0 0.0
    %418 = vmatpush1.msra.mxu0 0.0
    %419 = vmatprep.subr.mxu0 0.0
    %420 = vmatpush1.msra.mxu0 0.0
    %421 = vmatprep.subr.mxu0 0.0
    %422 = vmatpush1.msra.mxu0 0.0
    %423 = vmatprep.subr.mxu0 0.0
    %424 = vmatpush1.msra.mxu0 0.0
    %425 = vmatprep.subr.mxu0 0.0
    %426 = vmatpush1.msra.mxu0 0.0
    %427 = vmatprep.subr.mxu0 0.0
    %428 = vmatpush1.msra.mxu0 0.0
    %429 = vmatprep.subr.mxu0 0.0
    %430 = vmatpush1.msra.mxu0 0.0
    %431 = vmatprep.subr.mxu0 0.0
    %432 = vmatpush1.msra.mxu0 0.0
    %433 = vmatprep.subr.mxu0 0.0
    %434 = vmatpush1.msra.mxu0 0.0
    %435 = vmatprep.subr.mxu0 0.0
    %436 = vmatpush1.msra.mxu0 0.0
    %437 = vmatprep.subr.mxu0 0.0
    %438 = vmatpush1.msra.mxu0 0.0
    %439 = vmatprep.subr.mxu0 0.0
    %440 = vmatpush1.msra.mxu0 0.0
    %441 = vmatprep.subr.mxu0 0.0
    %442 = vmatpush1.msra.mxu0 0.0
    %443 = vmatprep.subr.mxu0 0.0
    %444 = vmatpush1.msra.mxu0 0.0
    %445 = vmatprep.subr.mxu0 0.0
    %446 = vmatpush1.msra.mxu0 0.0
    %447 = vmatprep.subr.mxu0 0.0
    %448 = vmatpush1.msra.mxu0 0.0
    %449 = vmatprep.subr.mxu0 0.0
    %450 = vmatpush1.msra.mxu0 0.0
    %451 = vmatprep.subr.mxu0 0.0
    %452 = vmatpush1.msra.mxu0 0.0
    %453 = vmatprep.subr.mxu0 0.0
    %454 = vmatpush1.msra.mxu0 0.0
    %455 = vmatprep.subr.mxu0 0.0
    %456 = vmatpush1.msra.mxu0 0.0
    %457 = vmatprep.subr.mxu0 0.0
    %458 = vmatpush1.msra.mxu0 0.0
    %459 = vmatprep.subr.mxu0 0.0
    %460 = vmatpush1.msra.mxu0 0.0
    %461 = vmatprep.subr.mxu0 0.0
    %462 = vmatpush1.msra.mxu0 0.0
    %463 = vmatprep.subr.mxu0 0.0
    %464 = vmatpush1.msra.mxu0 0.0
    %465 = vmatprep.subr.mxu0 0.0
    %466 = vmatpush1.msra.mxu0 0.0
    %467 = vmatprep.subr.mxu0 0.0
    %468 = vmatpush1.msra.mxu0 0.0
    %469 = vmatprep.subr.mxu0 0.0
    %470 = vmatpush1.msra.mxu0 0.0
    %471 = vmatprep.mubr.f32.mxu0 0.0
    %472 = vmatmul.mubr.f32.gmra.mrb[0].mxu0 %v405
    %v473 = vpop.f32.mrb[0].mxu0
    %v474 = vadd.f32 0.0, %v473
    %v475 = vpop.f32.mrb[0].mxu0
    %476 = vdwg.mxu0
    %v478 = vrot.slane %v474, 6
    %v480 = vadd.f32 %v149, %v478
    %v481 = vxor.u32 %v480, 2147483648
    %v482 = vmul.f32 %v481, 1.442695
    %v483 = vpow.pop %v482
    %v484 = vadd.f32 %v483, 1.0
    %v485 = vrcp.pop %v484
    %v486 = vmul.f32 1.0, %v485
    %v487 = vtanh.pop %v480
    %v489 = vrot.slane %v400, 7
    %v491 = vmul.f32 %v486, %v489
    %493 = vrot.lane.b32.xlu0 %v487, 64
    %v494 = vpop.permute.xlu0 %493
    %v496 = vmul.f32 %v486, %v494
    %498 = vrot.lane.b32.xlu0 %v496, 32
    %v499 = vpop.permute.xlu0 %498
    %v501 = vadd.f32 %v491, %v499
    %v502 = vtanh.pop %v501
    %504 = vrot.lane.b32.xlu0 %v502, 64
    %v505 = vpop.permute.xlu0 %504
    %v507 = vmul.f32 %v486, %v505
    %p508 = scmp.gt.s32.totalorder %s65, 2
    %s509 = scalar_select %p508, 1, 0
    %s510 = scvt.s32.f32 %s509
    %v511 = vstv %s510
    %v512 = vmul.f32 %v507, %v511
    %514 = vrot.lane.b32.xlu0 %v512, 32
    %v515 = vpop.permute.xlu0 %514
    %vm517 = vcmask 256002
    %518 = vst.msk [vmem:[#allocation7] sm:$0x4] %vm517, %v515
    %s519 = ssub.f32 1.0, %s510
    %v520 = vstv %s519
    %v521 = vmul.f32 %v394, %v520
    %v523 = vrot.slane %v521, 7
    %v525 = vadd.f32 %v512, %v523
    %v526 = vmul.f32 %v501, %v511
    %v527 = vmul.f32 %v400, %v520
    %v529 = vrot.slane %v527, 7
    %v531 = vadd.f32 %v526, %v529
    %v533 = vrot.slane %v525, 2
    %534 = vrot.lane.b32.xlu0 %v533, 32
    %v535 = vpop.permute.xlu0 %534
    %v536 = vsel %vm78, %v535, 0
    %538 = vmatprep.subr.mxu0 0.0
    %539 = vmatpush1.msra.mxu0 %v152
    %540 = vmatprep.subr.mxu0 0.0
    %541 = vmatpush1.msra.mxu0 %v153
    %542 = vmatprep.subr.mxu0 0.0
    %543 = vmatpush1.msra.mxu0 %v154
    %544 = vmatprep.subr.mxu0 0.0
    %545 = vmatpush1.msra.mxu0 %v155
    %546 = vmatprep.subr.mxu0 0.0
    %547 = vmatpush1.msra.mxu0 0.0
    %548 = vmatprep.subr.mxu0 0.0
    %549 = vmatpush1.msra.mxu0 0.0
    %550 = vmatprep.subr.mxu0 0.0
    %551 = vmatpush1.msra.mxu0 0.0
    %552 = vmatprep.subr.mxu0 0.0
    %553 = vmatpush1.msra.mxu0 0.0
    %554 = vmatprep.subr.mxu0 0.0
    %555 = vmatpush1.msra.mxu0 0.0
    %556 = vmatprep.subr.mxu0 0.0
    %557 = vmatpush1.msra.mxu0 0.0
    %558 = vmatprep.subr.mxu0 0.0
    %559 = vmatpush1.msra.mxu0 0.0
    %560 = vmatprep.subr.mxu0 0.0
    %561 = vmatpush1.msra.mxu0 0.0
    %562 = vmatprep.subr.mxu0 0.0
    %563 = vmatpush1.msra.mxu0 0.0
    %564 = vmatprep.subr.mxu0 0.0
    %565 = vmatpush1.msra.mxu0 0.0
    %566 = vmatprep.subr.mxu0 0.0
    %567 = vmatpush1.msra.mxu0 0.0
    %568 = vmatprep.subr.mxu0 0.0
    %569 = vmatpush1.msra.mxu0 0.0
    %570 = vmatprep.subr.mxu0 0.0
    %571 = vmatpush1.msra.mxu0 0.0
    %572 = vmatprep.subr.mxu0 0.0
    %573 = vmatpush1.msra.mxu0 0.0
    %574 = vmatprep.subr.mxu0 0.0
    %575 = vmatpush1.msra.mxu0 0.0
    %576 = vmatprep.subr.mxu0 0.0
    %577 = vmatpush1.msra.mxu0 0.0
    %578 = vmatprep.subr.mxu0 0.0
    %579 = vmatpush1.msra.mxu0 0.0
    %580 = vmatprep.subr.mxu0 0.0
    %581 = vmatpush1.msra.mxu0 0.0
    %582 = vmatprep.subr.mxu0 0.0
    %583 = vmatpush1.msra.mxu0 0.0
    %584 = vmatprep.subr.mxu0 0.0
    %585 = vmatpush1.msra.mxu0 0.0
    %586 = vmatprep.subr.mxu0 0.0
    %587 = vmatpush1.msra.mxu0 0.0
    %588 = vmatprep.subr.mxu0 0.0
    %589 = vmatpush1.msra.mxu0 0.0
    %590 = vmatprep.subr.mxu0 0.0
    %591 = vmatpush1.msra.mxu0 0.0
    %592 = vmatprep.subr.mxu0 0.0
    %593 = vmatpush1.msra.mxu0 0.0
    %594 = vmatprep.subr.mxu0 0.0
    %595 = vmatpush1.msra.mxu0 0.0
    %596 = vmatprep.subr.mxu0 0.0
    %597 = vmatpush1.msra.mxu0 0.0
    %598 = vmatprep.subr.mxu0 0.0
    %599 = vmatpush1.msra.mxu0 0.0
    %600 = vmatprep.subr.mxu0 0.0
    %601 = vmatpush1.msra.mxu0 0.0
    %602 = vmatprep.mubr.f32.mxu0 0.0
    %603 = vmatmul.mubr.f32.gmra.mrb[0].mxu0 %v536
    %v604 = vpop.f32.mrb[0].mxu0
    %v605 = vadd.f32 0.0, %v604
    %v606 = vpop.f32.mrb[0].mxu0
    %607 = vdwg.mxu0
    %v609 = vrot.slane %v605, 5
    %v611 = vadd.f32 %v149, %v609
    %v612 = vxor.u32 %v611, 2147483648
    %v613 = vmul.f32 %v612, 1.442695
    %v614 = vpow.pop %v613
    %v615 = vadd.f32 %v614, 1.0
    %v616 = vrcp.pop %v615
    %v617 = vmul.f32 1.0, %v616
    %v618 = vtanh.pop %v611
    %v620 = vrot.slane %v531, 7
    %v622 = vmul.f32 %v617, %v620
    %624 = vrot.lane.b32.xlu0 %v618, 64
    %v625 = vpop.permute.xlu0 %624
    %v627 = vmul.f32 %v617, %v625
    %629 = vrot.lane.b32.xlu0 %v627, 32
    %v630 = vpop.permute.xlu0 %629
    %v632 = vadd.f32 %v622, %v630
    %v633 = vtanh.pop %v632
    %635 = vrot.lane.b32.xlu0 %v633, 64
    %v636 = vpop.permute.xlu0 %635
    %v638 = vmul.f32 %v617, %v636
    %p639 = scmp.gt.s32.totalorder %s65, 3
    %s640 = scalar_select %p639, 1, 0
    %s641 = scvt.s32.f32 %s640
    %v642 = vstv %s641
    %v643 = vmul.f32 %v638, %v642
    %645 = vrot.lane.b32.xlu0 %v643, 32
    %v646 = vpop.permute.xlu0 %645
    %vm648 = vcmask 257027
    %649 = vst.msk [vmem:[#allocation7] sm:$0x8] %vm648, %v646
    %s650 = ssub.f32 1.0, %s641
    %v651 = vstv %s650
    %v652 = vmul.f32 %v525, %v651
    %v654 = vrot.slane %v652, 7
    %v656 = vadd.f32 %v643, %v654
    %v657 = vmul.f32 %v632, %v642
    %v658 = vmul.f32 %v531, %v651
    %v660 = vrot.slane %v658, 7
    %v662 = vadd.f32 %v657, %v660
    %v664 = vrot.slane %v656, 3
    %665 = vrot.lane.b32.xlu0 %v664, 32
    %v666 = vpop.permute.xlu0 %665
    %v667 = vsel %vm78, %v666, 0
    %669 = vmatprep.subr.mxu0 0.0
    %670 = vmatpush1.msra.mxu0 %v152
    %671 = vmatprep.subr.mxu0 0.0
    %672 = vmatpush1.msra.mxu0 %v153
    %673 = vmatprep.subr.mxu0 0.0
    %674 = vmatpush1.msra.mxu0 %v154
    %675 = vmatprep.subr.mxu0 0.0
    %676 = vmatpush1.msra.mxu0 %v155
    %677 = vmatprep.subr.mxu0 0.0
    %678 = vmatpush1.msra.mxu0 0.0
    %679 = vmatprep.subr.mxu0 0.0
    %680 = vmatpush1.msra.mxu0 0.0
    %681 = vmatprep.subr.mxu0 0.0
    %682 = vmatpush1.msra.mxu0 0.0
    %683 = vmatprep.subr.mxu0 0.0
    %684 = vmatpush1.msra.mxu0 0.0
    %685 = vmatprep.subr.mxu0 0.0
    %686 = vmatpush1.msra.mxu0 0.0
    %687 = vmatprep.subr.mxu0 0.0
    %688 = vmatpush1.msra.mxu0 0.0
    %689 = vmatprep.subr.mxu0 0.0
    %690 = vmatpush1.msra.mxu0 0.0
    %691 = vmatprep.subr.mxu0 0.0
    %692 = vmatpush1.msra.mxu0 0.0
    %693 = vmatprep.subr.mxu0 0.0
    %694 = vmatpush1.msra.mxu0 0.0
    %695 = vmatprep.subr.mxu0 0.0
    %696 = vmatpush1.msra.mxu0 0.0
    %697 = vmatprep.subr.mxu0 0.0
    %698 = vmatpush1.msra.mxu0 0.0
    %699 = vmatprep.subr.mxu0 0.0
    %700 = vmatpush1.msra.mxu0 0.0
    %701 = vmatprep.subr.mxu0 0.0
    %702 = vmatpush1.msra.mxu0 0.0
    %703 = vmatprep.subr.mxu0 0.0
    %704 = vmatpush1.msra.mxu0 0.0
    %705 = vmatprep.subr.mxu0 0.0
    %706 = vmatpush1.msra.mxu0 0.0
    %707 = vmatprep.subr.mxu0 0.0
    %708 = vmatpush1.msra.mxu0 0.0
    %709 = vmatprep.subr.mxu0 0.0
    %710 = vmatpush1.msra.mxu0 0.0
    %711 = vmatprep.subr.mxu0 0.0
    %712 = vmatpush1.msra.mxu0 0.0
    %713 = vmatprep.subr.mxu0 0.0
    %714 = vmatpush1.msra.mxu0 0.0
    %715 = vmatprep.subr.mxu0 0.0
    %716 = vmatpush1.msra.mxu0 0.0
    %717 = vmatprep.subr.mxu0 0.0
    %718 = vmatpush1.msra.mxu0 0.0
    %719 = vmatprep.subr.mxu0 0.0
    %720 = vmatpush1.msra.mxu0 0.0
    %721 = vmatprep.subr.mxu0 0.0
    %722 = vmatpush1.msra.mxu0 0.0
    %723 = vmatprep.subr.mxu0 0.0
    %724 = vmatpush1.msra.mxu0 0.0
    %725 = vmatprep.subr.mxu0 0.0
    %726 = vmatpush1.msra.mxu0 0.0
    %727 = vmatprep.subr.mxu0 0.0
    %728 = vmatpush1.msra.mxu0 0.0
    %729 = vmatprep.subr.mxu0 0.0
    %730 = vmatpush1.msra.mxu0 0.0
    %731 = vmatprep.subr.mxu0 0.0
    %732 = vmatpush1.msra.mxu0 0.0
    %733 = vmatprep.mubr.f32.mxu0 0.0
    %734 = vmatmul.mubr.f32.gmra.mrb[0].mxu0 %v667
    %v735 = vpop.f32.mrb[0].mxu0
    %v736 = vadd.f32 0.0, %v735
    %v737 = vpop.f32.mrb[0].mxu0
    %738 = vdwg.mxu0
    %v740 = vrot.slane %v736, 4
    %v742 = vadd.f32 %v149, %v740
    %v743 = vxor.u32 %v742, 2147483648
    %v744 = vmul.f32 %v743, 1.442695
    %v745 = vpow.pop %v744
    %v746 = vadd.f32 %v745, 1.0
    %v747 = vrcp.pop %v746
    %v748 = vmul.f32 1.0, %v747
    %v749 = vtanh.pop %v742
    %v751 = vrot.slane %v662, 7
    %v753 = vmul.f32 %v748, %v751
    %755 = vrot.lane.b32.xlu0 %v749, 64
    %v756 = vpop.permute.xlu0 %755
    %v758 = vmul.f32 %v748, %v756
    %760 = vrot.lane.b32.xlu0 %v758, 32
    %v761 = vpop.permute.xlu0 %760
    %v763 = vadd.f32 %v753, %v761
    %v764 = vtanh.pop %v763
    %766 = vrot.lane.b32.xlu0 %v764, 64
    %v767 = vpop.permute.xlu0 %766
    %v769 = vmul.f32 %v748, %v767
    %p770 = scmp.gt.s32.totalorder %s65, 4
    %s771 = scalar_select %p770, 1, 0
    %s772 = scvt.s32.f32 %s771
    %v773 = vstv %s772
    %v774 = vmul.f32 %v769, %v773
    %776 = vrot.lane.b32.xlu0 %v774, 32
    %v777 = vpop.permute.xlu0 %776
    %vm779 = vcmask 258052
    %780 = vst.msk [vmem:[#allocation7] sm:$0x10] %vm779, %v777
    %s781 = ssub.f32 1.0, %s772
    %v782 = vstv %s781
    %v783 = vmul.f32 %v656, %v782
    %v785 = vrot.slane %v783, 7
    %v787 = vadd.f32 %v774, %v785
    %v788 = vmul.f32 %v763, %v773
    %v789 = vmul.f32 %v662, %v782
    %v791 = vrot.slane %v789, 7
    %v793 = vadd.f32 %v788, %v791
    %v795 = vrot.slane %v787, 4
    %796 = vrot.lane.b32.xlu0 %v795, 32
    %v797 = vpop.permute.xlu0 %796
    %v798 = vsel %vm78, %v797, 0
    %800 = vmatprep.subr.mxu0 0.0
    %801 = vmatpush1.msra.mxu0 %v152
    %802 = vmatprep.subr.mxu0 0.0
    %803 = vmatpush1.msra.mxu0 %v153
    %804 = vmatprep.subr.mxu0 0.0
    %805 = vmatpush1.msra.mxu0 %v154
    %806 = vmatprep.subr.mxu0 0.0
    %807 = vmatpush1.msra.mxu0 %v155
    %808 = vmatprep.subr.mxu0 0.0
    %809 = vmatpush1.msra.mxu0 0.0
    %810 = vmatprep.subr.mxu0 0.0
    %811 = vmatpush1.msra.mxu0 0.0
    %812 = vmatprep.subr.mxu0 0.0
    %813 = vmatpush1.msra.mxu0 0.0
    %814 = vmatprep.subr.mxu0 0.0
    %815 = vmatpush1.msra.mxu0 0.0
    %816 = vmatprep.subr.mxu0 0.0
    %817 = vmatpush1.msra.mxu0 0.0
    %818 = vmatprep.subr.mxu0 0.0
    %819 = vmatpush1.msra.mxu0 0.0
    %820 = vmatprep.subr.mxu0 0.0
    %821 = vmatpush1.msra.mxu0 0.0
    %822 = vmatprep.subr.mxu0 0.0
    %823 = vmatpush1.msra.mxu0 0.0
    %824 = vmatprep.subr.mxu0 0.0
    %825 = vmatpush1.msra.mxu0 0.0
    %826 = vmatprep.subr.mxu0 0.0
    %827 = vmatpush1.msra.mxu0 0.0
    %828 = vmatprep.subr.mxu0 0.0
    %829 = vmatpush1.msra.mxu0 0.0
    %830 = vmatprep.subr.mxu0 0.0
    %831 = vmatpush1.msra.mxu0 0.0
    %832 = vmatprep.subr.mxu0 0.0
    %833 = vmatpush1.msra.mxu0 0.0
    %834 = vmatprep.subr.mxu0 0.0
    %835 = vmatpush1.msra.mxu0 0.0
    %836 = vmatprep.subr.mxu0 0.0
    %837 = vmatpush1.msra.mxu0 0.0
    %838 = vmatprep.subr.mxu0 0.0
    %839 = vmatpush1.msra.mxu0 0.0
    %840 = vmatprep.subr.mxu0 0.0
    %841 = vmatpush1.msra.mxu0 0.0
    %842 = vmatprep.subr.mxu0 0.0
    %843 = vmatpush1.msra.mxu0 0.0
    %844 = vmatprep.subr.mxu0 0.0
    %845 = vmatpush1.msra.mxu0 0.0
    %846 = vmatprep.subr.mxu0 0.0
    %847 = vmatpush1.msra.mxu0 0.0
    %848 = vmatprep.subr.mxu0 0.0
    %849 = vmatpush1.msra.mxu0 0.0
    %850 = vmatprep.subr.mxu0 0.0
    %851 = vmatpush1.msra.mxu0 0.0
    %852 = vmatprep.subr.mxu0 0.0
    %853 = vmatpush1.msra.mxu0 0.0
    %854 = vmatprep.subr.mxu0 0.0
    %855 = vmatpush1.msra.mxu0 0.0
    %856 = vmatprep.subr.mxu0 0.0
    %857 = vmatpush1.msra.mxu0 0.0
    %858 = vmatprep.subr.mxu0 0.0
    %859 = vmatpush1.msra.mxu0 0.0
    %860 = vmatprep.subr.mxu0 0.0
    %861 = vmatpush1.msra.mxu0 0.0
    %862 = vmatprep.subr.mxu0 0.0
    %863 = vmatpush1.msra.mxu0 0.0
    %864 = vmatprep.mubr.f32.mxu0 0.0
    %865 = vmatmul.mubr.f32.gmra.mrb[0].mxu0 %v798
    %v866 = vpop.f32.mrb[0].mxu0
    %v867 = vadd.f32 0.0, %v866
    %v868 = vpop.f32.mrb[0].mxu0
    %869 = vdwg.mxu0
    %v871 = vrot.slane %v867, 3
    %v873 = vadd.f32 %v149, %v871
    %v874 = vxor.u32 %v873, 2147483648
    %v875 = vmul.f32 %v874, 1.442695
    %v876 = vpow.pop %v875
    %v877 = vadd.f32 %v876, 1.0
    %v878 = vrcp.pop %v877
    %v879 = vmul.f32 1.0, %v878
    %v880 = vtanh.pop %v873
    %v882 = vrot.slane %v793, 7
    %v884 = vmul.f32 %v879, %v882
    %886 = vrot.lane.b32.xlu0 %v880, 64
    %v887 = vpop.permute.xlu0 %886
    %v889 = vmul.f32 %v879, %v887
    %891 = vrot.lane.b32.xlu0 %v889, 32
    %v892 = vpop.permute.xlu0 %891
    %v894 = vadd.f32 %v884, %v892
    %v895 = vtanh.pop %v894
    %897 = vrot.lane.b32.xlu0 %v895, 64
    %v898 = vpop.permute.xlu0 %897
    %v900 = vmul.f32 %v879, %v898
    %p901 = scmp.gt.s32.totalorder %s65, 5
    %s902 = scalar_select %p901, 1, 0
    %s903 = scvt.s32.f32 %s902
    %v904 = vstv %s903
    %v905 = vmul.f32 %v900, %v904
    %907 = vrot.lane.b32.xlu0 %v905, 32
    %v908 = vpop.permute.xlu0 %907
    %vm910 = vcmask 259077
    %911 = vst.msk [vmem:[#allocation7] sm:$0x20] %vm910, %v908
    %s912 = ssub.f32 1.0, %s903
    %v913 = vstv %s912
    %v914 = vmul.f32 %v787, %v913
    %v916 = vrot.slane %v914, 7
    %v918 = vadd.f32 %v905, %v916
    %v919 = vmul.f32 %v894, %v904
    %v920 = vmul.f32 %v793, %v913
    %v922 = vrot.slane %v920, 7
    %v924 = vadd.f32 %v919, %v922
    %v926 = vrot.slane %v918, 5
    %927 = vrot.lane.b32.xlu0 %v926, 32
    %v928 = vpop.permute.xlu0 %927
    %v929 = vsel %vm78, %v928, 0
    %931 = vmatprep.subr.mxu0 0.0
    %932 = vmatpush1.msra.mxu0 %v152
    %933 = vmatprep.subr.mxu0 0.0
    %934 = vmatpush1.msra.mxu0 %v153
    %935 = vmatprep.subr.mxu0 0.0
    %936 = vmatpush1.msra.mxu0 %v154
    %937 = vmatprep.subr.mxu0 0.0
    %938 = vmatpush1.msra.mxu0 %v155
    %939 = vmatprep.subr.mxu0 0.0
    %940 = vmatpush1.msra.mxu0 0.0
    %941 = vmatprep.subr.mxu0 0.0
    %942 = vmatpush1.msra.mxu0 0.0
    %943 = vmatprep.subr.mxu0 0.0
    %944 = vmatpush1.msra.mxu0 0.0
    %945 = vmatprep.subr.mxu0 0.0
    %946 = vmatpush1.msra.mxu0 0.0
    %947 = vmatprep.subr.mxu0 0.0
    %948 = vmatpush1.msra.mxu0 0.0
    %949 = vmatprep.subr.mxu0 0.0
    %950 = vmatpush1.msra.mxu0 0.0
    %951 = vmatprep.subr.mxu0 0.0
    %952 = vmatpush1.msra.mxu0 0.0
    %953 = vmatprep.subr.mxu0 0.0
    %954 = vmatpush1.msra.mxu0 0.0
    %955 = vmatprep.subr.mxu0 0.0
    %956 = vmatpush1.msra.mxu0 0.0
    %957 = vmatprep.subr.mxu0 0.0
    %958 = vmatpush1.msra.mxu0 0.0
    %959 = vmatprep.subr.mxu0 0.0
    %960 = vmatpush1.msra.mxu0 0.0
    %961 = vmatprep.subr.mxu0 0.0
    %962 = vmatpush1.msra.mxu0 0.0
    %963 = vmatprep.subr.mxu0 0.0
    %964 = vmatpush1.msra.mxu0 0.0
    %965 = vmatprep.subr.mxu0 0.0
    %966 = vmatpush1.msra.mxu0 0.0
    %967 = vmatprep.subr.mxu0 0.0
    %968 = vmatpush1.msra.mxu0 0.0
    %969 = vmatprep.subr.mxu0 0.0
    %970 = vmatpush1.msra.mxu0 0.0
    %971 = vmatprep.subr.mxu0 0.0
    %972 = vmatpush1.msra.mxu0 0.0
    %973 = vmatprep.subr.mxu0 0.0
    %974 = vmatpush1.msra.mxu0 0.0
    %975 = vmatprep.subr.mxu0 0.0
    %976 = vmatpush1.msra.mxu0 0.0
    %977 = vmatprep.subr.mxu0 0.0
    %978 = vmatpush1.msra.mxu0 0.0
    %979 = vmatprep.subr.mxu0 0.0
    %980 = vmatpush1.msra.mxu0 0.0
    %981 = vmatprep.subr.mxu0 0.0
    %982 = vmatpush1.msra.mxu0 0.0
    %983 = vmatprep.subr.mxu0 0.0
    %984 = vmatpush1.msra.mxu0 0.0
    %985 = vmatprep.subr.mxu0 0.0
    %986 = vmatpush1.msra.mxu0 0.0
    %987 = vmatprep.subr.mxu0 0.0
    %988 = vmatpush1.msra.mxu0 0.0
    %989 = vmatprep.subr.mxu0 0.0
    %990 = vmatpush1.msra.mxu0 0.0
    %991 = vmatprep.subr.mxu0 0.0
    %992 = vmatpush1.msra.mxu0 0.0
    %993 = vmatprep.subr.mxu0 0.0
    %994 = vmatpush1.msra.mxu0 0.0
    %995 = vmatprep.mubr.f32.mxu0 0.0
    %996 = vmatmul.mubr.f32.gmra.mrb[0].mxu0 %v929
    %v997 = vpop.f32.mrb[0].mxu0
    %v998 = vadd.f32 0.0, %v997
    %v999 = vpop.f32.mrb[0].mxu0
    %1000 = vdwg.mxu0
    %v1002 = vrot.slane %v998, 2
    %v1004 = vadd.f32 %v149, %v1002
    %v1005 = vxor.u32 %v1004, 2147483648
    %v1006 = vmul.f32 %v1005, 1.442695
    %v1007 = vpow.pop %v1006
    %v1008 = vadd.f32 %v1007, 1.0
    %v1009 = vrcp.pop %v1008
    %v1010 = vmul.f32 1.0, %v1009
    %v1011 = vtanh.pop %v1004
    %v1013 = vrot.slane %v924, 7
    %v1015 = vmul.f32 %v1010, %v1013
    %1017 = vrot.lane.b32.xlu0 %v1011, 64
    %v1018 = vpop.permute.xlu0 %1017
    %v1020 = vmul.f32 %v1010, %v1018
    %1022 = vrot.lane.b32.xlu0 %v1020, 32
    %v1023 = vpop.permute.xlu0 %1022
    %v1025 = vadd.f32 %v1015, %v1023
    %v1026 = vtanh.pop %v1025
    %1028 = vrot.lane.b32.xlu0 %v1026, 64
    %v1029 = vpop.permute.xlu0 %1028
    %v1031 = vmul.f32 %v1010, %v1029
    %p1032 = scmp.gt.s32.totalorder %s65, 6
    %s1033 = scalar_select %p1032, 1, 0
    %s1034 = scvt.s32.f32 %s1033
    %v1035 = vstv %s1034
    %v1036 = vmul.f32 %v1031, %v1035
    %1038 = vrot.lane.b32.xlu0 %v1036, 32
    %v1039 = vpop.permute.xlu0 %1038
    %vm1041 = vcmask 260102
    %1042 = vst.msk [vmem:[#allocation7] sm:$0x40] %vm1041, %v1039
    %s1043 = ssub.f32 1.0, %s1034
    %v1044 = vstv %s1043
    %v1045 = vmul.f32 %v918, %v1044
    %v1047 = vrot.slane %v1045, 7
    %v1049 = vadd.f32 %v1036, %v1047
    %v1050 = vmul.f32 %v1025, %v1035
    %v1051 = vmul.f32 %v924, %v1044
    %v1053 = vrot.slane %v1051, 7
    %v1055 = vadd.f32 %v1050, %v1053
    %v1057 = vrot.slane %v1049, 6
    %1058 = vrot.lane.b32.xlu0 %v1057, 32
    %v1059 = vpop.permute.xlu0 %1058
    %v1060 = vsel %vm78, %v1059, 0
    %1062 = vmatprep.subr.mxu0 0.0
    %1063 = vmatpush1.msra.mxu0 %v152
    %1064 = vmatprep.subr.mxu0 0.0
    %1065 = vmatpush1.msra.mxu0 %v153
    %1066 = vmatprep.subr.mxu0 0.0
    %1067 = vmatpush1.msra.mxu0 %v154
    %1068 = vmatprep.subr.mxu0 0.0
    %1069 = vmatpush1.msra.mxu0 %v155
    %1070 = vmatprep.subr.mxu0 0.0
    %1071 = vmatpush1.msra.mxu0 0.0
    %1072 = vmatprep.subr.mxu0 0.0
    %1073 = vmatpush1.msra.mxu0 0.0
    %1074 = vmatprep.subr.mxu0 0.0
    %1075 = vmatpush1.msra.mxu0 0.0
    %1076 = vmatprep.subr.mxu0 0.0
    %1077 = vmatpush1.msra.mxu0 0.0
    %1078 = vmatprep.subr.mxu0 0.0
    %1079 = vmatpush1.msra.mxu0 0.0
    %1080 = vmatprep.subr.mxu0 0.0
    %1081 = vmatpush1.msra.mxu0 0.0
    %1082 = vmatprep.subr.mxu0 0.0
    %1083 = vmatpush1.msra.mxu0 0.0
    %1084 = vmatprep.subr.mxu0 0.0
    %1085 = vmatpush1.msra.mxu0 0.0
    %1086 = vmatprep.subr.mxu0 0.0
    %1087 = vmatpush1.msra.mxu0 0.0
    %1088 = vmatprep.subr.mxu0 0.0
    %1089 = vmatpush1.msra.mxu0 0.0
    %1090 = vmatprep.subr.mxu0 0.0
    %1091 = vmatpush1.msra.mxu0 0.0
    %1092 = vmatprep.subr.mxu0 0.0
    %1093 = vmatpush1.msra.mxu0 0.0
    %1094 = vmatprep.subr.mxu0 0.0
    %1095 = vmatpush1.msra.mxu0 0.0
    %1096 = vmatprep.subr.mxu0 0.0
    %1097 = vmatpush1.msra.mxu0 0.0
    %1098 = vmatprep.subr.mxu0 0.0
    %1099 = vmatpush1.msra.mxu0 0.0
    %1100 = vmatprep.subr.mxu0 0.0
    %1101 = vmatpush1.msra.mxu0 0.0
    %1102 = vmatprep.subr.mxu0 0.0
    %1103 = vmatpush1.msra.mxu0 0.0
    %1104 = vmatprep.subr.mxu0 0.0
    %1105 = vmatpush1.msra.mxu0 0.0
    %1106 = vmatprep.subr.mxu0 0.0
    %1107 = vmatpush1.msra.mxu0 0.0
    %1108 = vmatprep.subr.mxu0 0.0
    %1109 = vmatpush1.msra.mxu0 0.0
    %1110 = vmatprep.subr.mxu0 0.0
    %1111 = vmatpush1.msra.mxu0 0.0
    %1112 = vmatprep.subr.mxu0 0.0
    %1113 = vmatpush1.msra.mxu0 0.0
    %1114 = vmatprep.subr.mxu0 0.0
    %1115 = vmatpush1.msra.mxu0 0.0
    %1116 = vmatprep.subr.mxu0 0.0
    %1117 = vmatpush1.msra.mxu0 0.0
    %1118 = vmatprep.subr.mxu0 0.0
    %1119 = vmatpush1.msra.mxu0 0.0
    %1120 = vmatprep.subr.mxu0 0.0
    %1121 = vmatpush1.msra.mxu0 0.0
    %1122 = vmatprep.subr.mxu0 0.0
    %1123 = vmatpush1.msra.mxu0 0.0
    %1124 = vmatprep.subr.mxu0 0.0
    %1125 = vmatpush1.msra.mxu0 0.0
    %1126 = vmatprep.mubr.f32.mxu0 0.0
    %1127 = vmatmul.mubr.f32.gmra.mrb[0].mxu0 %v1060
    %v1128 = vpop.f32.mrb[0].mxu0
    %v1129 = vadd.f32 0.0, %v1128
    %v1130 = vpop.f32.mrb[0].mxu0
    %1131 = vdwg.mxu0
    %v1133 = vrot.slane %v1129, 1
    %v1135 = vadd.f32 %v149, %v1133
    %v1136 = vxor.u32 %v1135, 2147483648
    %v1137 = vmul.f32 %v1136, 1.442695
    %v1138 = vpow.pop %v1137
    %v1139 = vadd.f32 %v1138, 1.0
    %v1140 = vrcp.pop %v1139
    %v1141 = vmul.f32 1.0, %v1140
    %v1142 = vtanh.pop %v1135
    %v1144 = vrot.slane %v1055, 7
    %v1146 = vmul.f32 %v1141, %v1144
    %1148 = vrot.lane.b32.xlu0 %v1142, 64
    %v1149 = vpop.permute.xlu0 %1148
    %v1151 = vmul.f32 %v1141, %v1149
    %1153 = vrot.lane.b32.xlu0 %v1151, 32
    %v1154 = vpop.permute.xlu0 %1153
    %v1156 = vadd.f32 %v1146, %v1154
    %v1157 = vtanh.pop %v1156
    %1159 = vrot.lane.b32.xlu0 %v1157, 64
    %v1160 = vpop.permute.xlu0 %1159
    %v1162 = vmul.f32 %v1141, %v1160
    %p1163 = scmp.gt.s32.totalorder %s65, 7
    %s1164 = scalar_select %p1163, 1, 0
    %s1165 = scvt.s32.f32 %s1164
    %v1166 = vstv %s1165
    %v1167 = vmul.f32 %v1162, %v1166
    %1169 = vrot.lane.b32.xlu0 %v1167, 32
    %v1170 = vpop.permute.xlu0 %1169
    %vm1172 = vcmask 261127
    %1173 = vst.msk [vmem:[#allocation7] sm:$0x80] %vm1172, %v1170
    %s1174 = ssub.f32 1.0, %s1165
    %v1175 = vstv %s1174
    %v1176 = vmul.f32 %v1049, %v1175
    %v1178 = vrot.slane %v1176, 7
    %v1180 = vadd.f32 %v1167, %v1178
    %v1181 = vmul.f32 %v1156, %v1166
    %v1182 = vmul.f32 %v1055, %v1175
    %v1184 = vrot.slane %v1182, 7
    %v1186 = vadd.f32 %v1181, %v1184
    %v1187 = vld [vmem:[#allocation7] sm:$0xff]
    %1189 = vrot.lane.b32.xlu0 %v1180, 32
    %v1190 = vpop.permute.xlu0 %1189
    %v1192 = vsel %vm78, %v1190, 0.0
    %1193 = vst [vmem:[#allocation3 - $0x7] sm:$0x80] %v1192
    %v1194 = vld [vmem:[%s16] sm:$0xff]
    %v1195 = vld [vmem:[%s16 + $0x8] sm:$0xff]
    %v1196 = vld [vmem:[%s16 + $0x10] sm:$0xff]
    %v1197 = vld [vmem:[%s16 + $0x18] sm:$0xff]
    %v1198 = vld [vmem:[%s17] sm:$0x1]
    %v1200 = vlaneseq
    %v1201 = vshrl.u32 %v1200, 7
    %v1202 = vsub.s32 0, %v1201
    %v1203 = vrot.slane %v1198, %v1202
    %v1206 = vsel %vm78, %v1187, 0
    %1208 = vmatprep.subr.mxu0 0.0
    %1209 = vmatpush1.msra.mxu0 %v1194
    %1210 = vmatprep.subr.mxu0 0.0
    %1211 = vmatpush1.msra.mxu0 %v1195
    %1212 = vmatprep.subr.mxu0 0.0
    %1213 = vmatpush1.msra.mxu0 %v1196
    %1214 = vmatprep.subr.mxu0 0.0
    %1215 = vmatpush1.msra.mxu0 %v1197
    %1216 = vmatprep.subr.mxu0 0.0
    %1217 = vmatpush1.msra.mxu0 0.0
    %1218 = vmatprep.subr.mxu0 0.0
    %1219 = vmatpush1.msra.mxu0 0.0
    %1220 = vmatprep.subr.mxu0 0.0
    %1221 = vmatpush1.msra.mxu0 0.0
    %1222 = vmatprep.subr.mxu0 0.0
    %1223 = vmatpush1.msra.mxu0 0.0
    %1224 = vmatprep.subr.mxu0 0.0
    %1225 = vmatpush1.msra.mxu0 0.0
    %1226 = vmatprep.subr.mxu0 0.0
    %1227 = vmatpush1.msra.mxu0 0.0
    %1228 = vmatprep.subr.mxu0 0.0
    %1229 = vmatpush1.msra.mxu0 0.0
    %1230 = vmatprep.subr.mxu0 0.0
    %1231 = vmatpush1.msra.mxu0 0.0
    %1232 = vmatprep.subr.mxu0 0.0
    %1233 = vmatpush1.msra.mxu0 0.0
    %1234 = vmatprep.subr.mxu0 0.0
    %1235 = vmatpush1.msra.mxu0 0.0
    %1236 = vmatprep.subr.mxu0 0.0
    %1237 = vmatpush1.msra.mxu0 0.0
    %1238 = vmatprep.subr.mxu0 0.0
    %1239 = vmatpush1.msra.mxu0 0.0
    %1240 = vmatprep.subr.mxu0 0.0
    %1241 = vmatpush1.msra.mxu0 0.0
    %1242 = vmatprep.subr.mxu0 0.0
    %1243 = vmatpush1.msra.mxu0 0.0
    %1244 = vmatprep.subr.mxu0 0.0
    %1245 = vmatpush1.msra.mxu0 0.0
    %1246 = vmatprep.subr.mxu0 0.0
    %1247 = vmatpush1.msra.mxu0 0.0
    %1248 = vmatprep.subr.mxu0 0.0
    %1249 = vmatpush1.msra.mxu0 0.0
    %1250 = vmatprep.subr.mxu0 0.0
    %1251 = vmatpush1.msra.mxu0 0.0
    %1252 = vmatprep.subr.mxu0 0.0
    %1253 = vmatpush1.msra.mxu0 0.0
    %1254 = vmatprep.subr.mxu0 0.0
    %1255 = vmatpush1.msra.mxu0 0.0
    %1256 = vmatprep.subr.mxu0 0.0
    %1257 = vmatpush1.msra.mxu0 0.0
    %1258 = vmatprep.subr.mxu0 0.0
    %1259 = vmatpush1.msra.mxu0 0.0
    %1260 = vmatprep.subr.mxu0 0.0
    %1261 = vmatpush1.msra.mxu0 0.0
    %1262 = vmatprep.subr.mxu0 0.0
    %1263 = vmatpush1.msra.mxu0 0.0
    %1264 = vmatprep.subr.mxu0 0.0
    %1265 = vmatpush1.msra.mxu0 0.0
    %1266 = vmatprep.subr.mxu0 0.0
    %1267 = vmatpush1.msra.mxu0 0.0
    %1268 = vmatprep.subr.mxu0 0.0
    %1269 = vmatpush1.msra.mxu0 0.0
    %1270 = vmatprep.subr.mxu0 0.0
    %1271 = vmatpush1.msra.mxu0 0.0
    %1272 = vmatprep.mubr.f32.mxu0 0.0
    %1273 = vmatmul.mubr.f32.gmra.mrb[0].mxu0 %v1206
    %v1274 = vpop.f32.mrb[0].mxu0
    %v1275 = vadd.f32 %v1203, %v1274
    %v1276 = vpop.f32.mrb[0].mxu0
    %1277 = vdwg.mxu0
    %v1278 = vtanh.pop %v1275
    %1279 = vxpose.xlu0.b32.start [1/16] %v1278, 128
    %1280 = vxpose.xlu0.b32.cont [2/16] 0.0, 128
    %1281 = vxpose.xlu0.b32.cont [3/16] 0.0, 128
    %1282 = vxpose.xlu0.b32.cont [4/16] 0.0, 128
    %1283 = vxpose.xlu0.b32.cont [5/16] 0.0, 128
    %1284 = vxpose.xlu0.b32.cont [6/16] 0.0, 128
    %1285 = vxpose.xlu0.b32.cont [7/16] 0.0, 128
    %1286 = vxpose.xlu0.b32.cont [8/16] 0.0, 128
    %1287 = vxpose.xlu0.b32.cont [9/16] 0.0, 128
    %1288 = vxpose.xlu0.b32.cont [10/16] 0.0, 128
    %1289 = vxpose.xlu0.b32.cont [11/16] 0.0, 128
    %1290 = vxpose.xlu0.b32.cont [12/16] 0.0, 128
    %1291 = vxpose.xlu0.b32.cont [13/16] 0.0, 128
    %1292 = vxpose.xlu0.b32.cont [14/16] 0.0, 128
    %1293 = vxpose.xlu0.b32.cont [15/16] 0.0, 128
    %1294 = vxpose.xlu0.b32.end [16/16] 0.0, 128
    %v1295 = vpop.trf.xlu0
    %v1296 = vpop.trf.xlu0
    %v1297 = vpop.trf.xlu0
    %v1298 = vpop.trf.xlu0
    %v1299 = vpop.trf.xlu0
    %v1300 = vpop.trf.xlu0
    %v1301 = vpop.trf.xlu0
    %v1302 = vpop.trf.xlu0
    %v1303 = vpop.trf.xlu0
    %v1304 = vpop.trf.xlu0
    %v1305 = vpop.trf.xlu0
    %v1306 = vpop.trf.xlu0
    %v1307 = vpop.trf.xlu0
    %v1308 = vpop.trf.xlu0
    %v1309 = vpop.trf.xlu0
    %v1310 = vpop.trf.xlu0
    %v1311 = vld [vmem:[%s14] sm:$0xff]
    %v1312 = vld [vmem:[%s14 + $0x8] sm:$0xff]
    %v1313 = vld [vmem:[%s14 + $0x10] sm:$0xff]
    %v1314 = vld [vmem:[%s14 + $0x18] sm:$0xff]
    %1319 = vrot.lane.b32.xlu0 %v1295, 16
    %v1320 = vpop.permute.xlu0 %1319
    %1321 = vrot.lane.b32.xlu0 %v1296, 16
    %v1322 = vpop.permute.xlu0 %1321
    %1323 = vrot.lane.b32.xlu0 %v1297, 16
    %v1324 = vpop.permute.xlu0 %1323
    %1325 = vrot.lane.b32.xlu0 %v1298, 16
    %v1326 = vpop.permute.xlu0 %1325
    %vm1331 = vcmask 130048
    %v1332 = vsel %vm1331, %v1311, %v1320
    %v1333 = vsel %vm1331, %v1312, %v1322
    %v1334 = vsel %vm1331, %v1313, %v1324
    %v1335 = vsel %vm1331, %v1314, %v1326
    %v1336 = vld [vmem:[%s15] sm:$0x1]
    %v1337 = vsel %vm1331, %v1336, 0.0
    %v1338 = vld [vmem:[%s4] sm:$0x1]
    %v1339 = vld [vmem:[%s10] sm:$0xff]
    %v1340 = vld [vmem:[%s10 + $0x8] sm:$0xff]
    %v1341 = vld [vmem:[%s10 + $0x10] sm:$0xff]
    %v1342 = vld [vmem:[%s10 + $0x18] sm:$0xff]
    %v1343 = vld [vmem:[%s10 + $0x20] sm:$0xff]
    %v1344 = vld [vmem:[%s10 + $0x28] sm:$0xff]
    %v1345 = vld [vmem:[%s10 + $0x30] sm:$0xff]
    %v1346 = vld [vmem:[%s10 + $0x38] sm:$0xff]
    %v1347 = vld [vmem:[%s11] sm:$0x1]
    %v1348 = vld [vmem:[%s12] sm:$0xff]
    %v1349 = vld [vmem:[%s12 + $0x8] sm:$0xff]
    %v1350 = vld [vmem:[%s12 + $0x10] sm:$0xff]
    %v1351 = vld [vmem:[%s12 + $0x18] sm:$0xff]
    %v1352 = vld [vmem:[%s12 + $0x20] sm:$0xff]
    %v1353 = vld [vmem:[%s12 + $0x28] sm:$0xff]
    %v1354 = vld [vmem:[%s12 + $0x30] sm:$0xff]
    %v1355 = vld [vmem:[%s12 + $0x38] sm:$0xff]
    %v1356 = vld [vmem:[%s12 + $0x40] sm:$0xff]
    %v1357 = vld [vmem:[%s12 + $0x48] sm:$0xff]
    %v1358 = vld [vmem:[%s12 + $0x50] sm:$0xff]
    %v1359 = vld [vmem:[%s12 + $0x58] sm:$0xff]
    %v1360 = vld [vmem:[%s12 + $0x60] sm:$0xff]
    %v1361 = vld [vmem:[%s12 + $0x68] sm:$0xff]
    %v1362 = vld [vmem:[%s12 + $0x70] sm:$0xff]
    %v1363 = vld [vmem:[%s12 + $0x78] sm:$0xff]
    %v1364 = vld [vmem:[%s13] sm:$0x1]
    %v1365 = vld [vmem:[%s6] sm:$0xff]
    %v1366 = vld [vmem:[%s6 + $0x8] sm:$0xff]
    %v1367 = vld [vmem:[%s2] sm:$0x1]
    %v1368 = vld [vmem:[%s3] sm:$0x1]
    %v1369 = vld [vmem:[%s5] sm:$0xff]
    %v1370 = vlaneseq
    %v1371 = vand.u32 %v1370, 127
    %v1372 = vcvt.s32.f32 %v1371
    %v1373 = vrot.slane %v1180, 7
    %v1375 = vsel %vm78, %v1365, 0.0
    %vm1376 = vcmask 523264
    %v1377 = vsel %vm1376, %v1375, 0.0
    %vm1378 = vcmask 785408
    %v1379 = vsel %vm1378, %v1377, %v1373
    %1380 = vmatprep.subr.mxu0 0.0
    %1381 = vmatpush1.msra.mxu0 %v1348
    %1382 = vmatprep.subr.mxu0 0.0
    %1383 = vmatpush1.msra.mxu0 %v1349
    %1384 = vmatprep.subr.mxu0 0.0
    %1385 = vmatpush1.msra.mxu0 %v1350
    %1386 = vmatprep.subr.mxu0 0.0
    %1387 = vmatpush1.msra.mxu0 %v1351
    %1388 = vmatprep.subr.mxu0 0.0
    %1389 = vmatpush1.msra.mxu0 %v1352
    %1390 = vmatprep.subr.mxu0 0.0
    %1391 = vmatpush1.msra.mxu0 %v1353
    %1392 = vmatprep.subr.mxu0 0.0
    %1393 = vmatpush1.msra.mxu0 %v1354
    %1394 = vmatprep.subr.mxu0 0.0
    %1395 = vmatpush1.msra.mxu0 %v1355
    %1396 = vmatprep.subr.mxu0 0.0
    %1397 = vmatpush1.msra.mxu0 %v1356
    %1398 = vmatprep.subr.mxu0 0.0
    %1399 = vmatpush1.msra.mxu0 %v1357
    %1400 = vmatprep.subr.mxu0 0.0
    %1401 = vmatpush1.msra.mxu0 %v1358
    %1402 = vmatprep.subr.mxu0 0.0
    %1403 = vmatpush1.msra.mxu0 %v1359
    %1404 = vmatprep.subr.mxu0 0.0
    %1405 = vmatpush1.msra.mxu0 %v1360
    %1406 = vmatprep.subr.mxu0 0.0
    %1407 = vmatpush1.msra.mxu0 %v1361
    %1408 = vmatprep.subr.mxu0 0.0
    %1409 = vmatpush1.msra.mxu0 %v1362
    %1410 = vmatprep.subr.mxu0 0.0
    %1411 = vmatpush1.msra.mxu0 %v1363
    %1412 = vmatprep.subr.mxu0 0.0
    %1413 = vmatpush1.msra.mxu0 0.0
    %1414 = vmatprep.subr.mxu0 0.0
    %1415 = vmatpush1.msra.mxu0 0.0
    %1416 = vmatprep.subr.mxu0 0.0
    %1417 = vmatpush1.msra.mxu0 0.0
    %1418 = vmatprep.subr.mxu0 0.0
    %1419 = vmatpush1.msra.mxu0 0.0
    %1420 = vmatprep.subr.mxu0 0.0
    %1421 = vmatpush1.msra.mxu0 0.0
    %1422 = vmatprep.subr.mxu0 0.0
    %1423 = vmatpush1.msra.mxu0 0.0
    %1424 = vmatprep.subr.mxu0 0.0
    %1425 = vmatpush1.msra.mxu0 0.0
    %1426 = vmatprep.subr.mxu0 0.0
    %1427 = vmatpush1.msra.mxu0 0.0
    %1428 = vmatprep.subr.mxu0 0.0
    %1429 = vmatpush1.msra.mxu0 0.0
    %1430 = vmatprep.subr.mxu0 0.0
    %1431 = vmatpush1.msra.mxu0 0.0
    %1432 = vmatprep.subr.mxu0 0.0
    %1433 = vmatpush1.msra.mxu0 0.0
    %1434 = vmatprep.subr.mxu0 0.0
    %1435 = vmatpush1.msra.mxu0 0.0
    %1436 = vmatprep.subr.mxu0 0.0
    %1437 = vmatpush1.msra.mxu0 0.0
    %1438 = vmatprep.subr.mxu0 0.0
    %1439 = vmatpush1.msra.mxu0 0.0
    %1440 = vmatprep.subr.mxu0 0.0
    %1441 = vmatpush1.msra.mxu0 0.0
    %1442 = vmatprep.subr.mxu0 0.0
    %1443 = vmatpush1.msra.mxu0 0.0
    %1444 = vmatprep.mubr.f32.mxu0 0.0
    %1445 = vmatmul.mubr.f32.gmra.mrb[0].mxu0 %v1379
    %v1446 = vpop.f32.mrb[0].mxu0
    %v1447 = vadd.f32 %v1364, %v1446
    %v1448 = vpop.f32.mrb[0].mxu0
    %1449 = vdwg.mxu0
    %v1450 = vxor.u32 %v1447, 2147483648
    %v1451 = vmul.f32 %v1450, 1.442695
    %v1452 = vpow.pop %v1451
    %v1453 = vadd.f32 %v1452, 1.0
    %v1454 = vrcp.pop %v1453
    %v1455 = vmul.f32 1.0, %v1454
    %v1456 = vtanh.pop %v1447
    %v1458 = vrot.slane %v1186, 7
    %v1460 = vmul.f32 %v1455, %v1458
    %1462 = vrot.lane.b32.xlu0 %v1456, 64
    %v1463 = vpop.permute.xlu0 %1462
    %v1465 = vmul.f32 %v1455, %v1463
    %1467 = vrot.lane.b32.xlu0 %v1465, 32
    %v1468 = vpop.permute.xlu0 %1467
    %v1470 = vadd.f32 %v1460, %v1468
    %v1471 = vtanh.pop %v1470
    %1473 = vrot.lane.b32.xlu0 %v1471, 64
    %v1474 = vpop.permute.xlu0 %1473
    %v1476 = vmul.f32 %v1455, %v1474
    %1478 = vrot.lane.b32.xlu0 %v1476, 32
    %v1479 = vpop.permute.xlu0 %1478
    %v1481 = vsel %vm78, %v1479, 0.0
    %1482 = vst [vmem:[#allocation3 + $0x1] sm:$0x1] %v1481
    %v1483 = vsel %vm78, %v1479, 0
    %1485 = vmatprep.subr.mxu0 0.0
    %1486 = vmatpush1.msra.mxu0 %v1332
    %1487 = vmatprep.subr.mxu0 0.0
    %1488 = vmatpush1.msra.mxu0 %v1333
    %1489 = vmatprep.subr.mxu0 0.0
    %1490 = vmatpush1.msra.mxu0 %v1334
    %1491 = vmatprep.subr.mxu0 0.0
    %1492 = vmatpush1.msra.mxu0 %v1335
    %1493 = vmatprep.subr.mxu0 0.0
    %1494 = vmatpush1.msra.mxu0 0.0
    %1495 = vmatprep.subr.mxu0 0.0
    %1496 = vmatpush1.msra.mxu0 0.0
    %1497 = vmatprep.subr.mxu0 0.0
    %1498 = vmatpush1.msra.mxu0 0.0
    %1499 = vmatprep.subr.mxu0 0.0
    %1500 = vmatpush1.msra.mxu0 0.0
    %1501 = vmatprep.subr.mxu0 0.0
    %1502 = vmatpush1.msra.mxu0 0.0
    %1503 = vmatprep.subr.mxu0 0.0
    %1504 = vmatpush1.msra.mxu0 0.0
    %1505 = vmatprep.subr.mxu0 0.0
    %1506 = vmatpush1.msra.mxu0 0.0
    %1507 = vmatprep.subr.mxu0 0.0
    %1508 = vmatpush1.msra.mxu0 0.0
    %1509 = vmatprep.subr.mxu0 0.0
    %1510 = vmatpush1.msra.mxu0 0.0
    %1511 = vmatprep.subr.mxu0 0.0
    %1512 = vmatpush1.msra.mxu0 0.0
    %1513 = vmatprep.subr.mxu0 0.0
    %1514 = vmatpush1.msra.mxu0 0.0
    %1515 = vmatprep.subr.mxu0 0.0
    %1516 = vmatpush1.msra.mxu0 0.0
    %1517 = vmatprep.subr.mxu0 0.0
    %1518 = vmatpush1.msra.mxu0 0.0
    %1519 = vmatprep.subr.mxu0 0.0
    %1520 = vmatpush1.msra.mxu0 0.0
    %1521 = vmatprep.subr.mxu0 0.0
    %1522 = vmatpush1.msra.mxu0 0.0
    %1523 = vmatprep.subr.mxu0 0.0
    %1524 = vmatpush1.msra.mxu0 0.0
    %1525 = vmatprep.subr.mxu0 0.0
    %1526 = vmatpush1.msra.mxu0 0.0
    %1527 = vmatprep.subr.mxu0 0.0
    %1528 = vmatpush1.msra.mxu0 0.0
    %1529 = vmatprep.subr.mxu0 0.0
    %1530 = vmatpush1.msra.mxu0 0.0
    %1531 = vmatprep.subr.mxu0 0.0
    %1532 = vmatpush1.msra.mxu0 0.0
    %1533 = vmatprep.subr.mxu0 0.0
    %1534 = vmatpush1.msra.mxu0 0.0
    %1535 = vmatprep.subr.mxu0 0.0
    %1536 = vmatpush1.msra.mxu0 0.0
    %1537 = vmatprep.subr.mxu0 0.0
    %1538 = vmatpush1.msra.mxu0 0.0
    %1539 = vmatprep.subr.mxu0 0.0
    %1540 = vmatpush1.msra.mxu0 0.0
    %1541 = vmatprep.subr.mxu0 0.0
    %1542 = vmatpush1.msra.mxu0 0.0
    %1543 = vmatprep.subr.mxu0 0.0
    %1544 = vmatpush1.msra.mxu0 0.0
    %1545 = vmatprep.subr.mxu0 0.0
    %1546 = vmatpush1.msra.mxu0 0.0
    %1547 = vmatprep.subr.mxu0 0.0
    %1548 = vmatpush1.msra.mxu0 0.0
    %1549 = vmatprep.mubr.f32.mxu0 0.0
    %1550 = vmatmul.mubr.f32.gmra.mrb[0].mxu0 %v1483
    %v1551 = vpop.f32.mrb[0].mxu0
    %v1552 = vadd.f32 %v1337, %v1551
    %v1553 = vpop.f32.mrb[0].mxu0
    %1554 = vdwg.mxu0
    %vm1555 = vcmask 188416
    %v1556 = vsel %vm1555, %v1552, -inf
    %1557 = vmax.xlane.f32.xlu0 %v1556
    %v1558 = vpop.xlane.xlu0 %1557
    %v1559 = vsub.f32 %v1552, %v1558
    %v1560 = vmul.f32 %v1559, 1.442695
    %v1561 = vpow.pop %v1560
    %v1562 = vsel %vm1555, %v1561, 0.0
    %1563 = vadd.xlane.f32.xlu0 %v1562
    %v1564 = vpop.xlane.xlu0 %1563
    %v1565 = vrcp.pop %v1564
    %v1566 = vmul.f32 %v1561, %v1565
    %v1567 = vmul.f32 %v1566, %v1338
    %vm1568 = vcmp.gt.f32.partialorder %v1567, 0.0
    %v1569 = vmax.f32 %v1567, 1e-30
    %v1570 = vlog2.pop %v1569
    %v1571 = vmul.f32 %v1570, 0.6931472
    %v1572 = vsel %vm1568, %v1571, -1e+30
    %v1573 = vadd.f32 %v1572, %v1369
    %v1574 = vsel %vm1555, %v1573, -inf
    %1575 = vmax.xlane.f32.xlu0 %v1574
    %v1576 = vpop.xlane.xlu0 %1575
    %vm1577 = vcmp.ge.f32.partialorder %v1573, %v1576
    %v1578 = vsel %vm1577, %v1372, 24.0
    %v1579 = vsel %vm1555, %v1578, inf
    %1580 = vmin.xlane.f32.xlu0 %v1579
    %v1581 = vpop.xlane.xlu0 %1580
    %vm1582 = vcmp.ge.f32.partialorder %v1581, 16.0
    %v1583 = vsub.f32 %v1581, 16.0
    %vm1584 = vcmp.eq.f32.partialorder %v1372, %v1583
    %v1585 = vsel %vm1584, %v1367, 0.0
    %vm1586 = vcmask 57344
    %v1587 = vsel %vm1586, %v1585, 0.0
    %1588 = vadd.xlane.f32.xlu0 %v1587
    %v1589 = vpop.xlane.xlu0 %1588
    %v1590 = vsel %vm1582, %v1589, %v1581
    %vm1591 = vcmp.eq.f32.partialorder %v1372, %v1581
    %v1592 = vsel %vm1591, %v1567, 0.0
    %v1593 = vsel %vm1555, %v1592, 0.0
    %1594 = vadd.xlane.f32.xlu0 %v1593
    %v1595 = vpop.xlane.xlu0 %1594
    %vm1596 = vcmp.eq.f32.partialorder %v1372, %v1590
    %v1597 = vsel %vm1596, %v1567, 0.0
    %vm1598 = vcmask 122880
    %v1599 = vsel %vm1598, %v1597, 0.0
    %1600 = vadd.xlane.f32.xlu0 %v1599
    %v1601 = vpop.xlane.xlu0 %1600
    %v1602 = vadd.f32 %v1595, %v1601
    %v1603 = vsel %vm1582, %v1602, %v1595
    %vm1604 = vcmp.eq.s32.totalorder %v1371, 0
    %v1605 = vsel %vm1604, %v1590, 0.0
    %vm1606 = vcmp.eq.s32.totalorder %v1371, 1
    %v1607 = vsel %vm1606, %v1603, 0.0
    %v1608 = vadd.f32 %v1605, %v1607
    %vm1609 = vcmp.eq.s32.totalorder %v1371, 2
    %v1610 = vsel %vm1609, %v1581, 0.0
    %v1611 = vadd.f32 %v1608, %v1610
    %vm1612 = vcmp.eq.s32.totalorder %v1371, 3
    %v1613 = vsel %vm1582, 1, 0
    %v1614 = vcvt.s32.f32 %v1613
    %v1615 = vsel %vm1612, %v1614, 0.0
    %v1616 = vadd.f32 %v1611, %v1615
    %1617 = vst [vmem:[#allocation5] sm:$0x1] %v1616
    %v1618 = vsel %vm1596, 1, 0
    %v1619 = vcvt.s32.f32 %v1618
    %v1621 = vsel %vm1331, %v1619, 0
    %1623 = vmatprep.subr.mxu0 0.0
    %1624 = vmatpush1.msra.mxu0 %v1365
    %1625 = vmatprep.subr.mxu0 0.0
    %1626 = vmatpush1.msra.mxu0 %v1366
    %1627 = vmatprep.subr.mxu0 0.0
    %1628 = vmatpush1.msra.mxu0 0.0
    %1629 = vmatprep.subr.mxu0 0.0
    %1630 = vmatpush1.msra.mxu0 0.0
    %1631 = vmatprep.subr.mxu0 0.0
    %1632 = vmatpush1.msra.mxu0 0.0
    %1633 = vmatprep.subr.mxu0 0.0
    %1634 = vmatpush1.msra.mxu0 0.0
    %1635 = vmatprep.subr.mxu0 0.0
    %1636 = vmatpush1.msra.mxu0 0.0
    %1637 = vmatprep.subr.mxu0 0.0
    %1638 = vmatpush1.msra.mxu0 0.0
    %1639 = vmatprep.subr.mxu0 0.0
    %1640 = vmatpush1.msra.mxu0 0.0
    %1641 = vmatprep.subr.mxu0 0.0
    %1642 = vmatpush1.msra.mxu0 0.0
    %1643 = vmatprep.subr.mxu0 0.0
    %1644 = vmatpush1.msra.mxu0 0.0
    %1645 = vmatprep.subr.mxu0 0.0
    %1646 = vmatpush1.msra.mxu0 0.0
    %1647 = vmatprep.subr.mxu0 0.0
    %1648 = vmatpush1.msra.mxu0 0.0
    %1649 = vmatprep.subr.mxu0 0.0
    %1650 = vmatpush1.msra.mxu0 0.0
    %1651 = vmatprep.subr.mxu0 0.0
    %1652 = vmatpush1.msra.mxu0 0.0
    %1653 = vmatprep.subr.mxu0 0.0
    %1654 = vmatpush1.msra.mxu0 0.0
    %1655 = vmatprep.subr.mxu0 0.0
    %1656 = vmatpush1.msra.mxu0 0.0
    %1657 = vmatprep.subr.mxu0 0.0
    %1658 = vmatpush1.msra.mxu0 0.0
    %1659 = vmatprep.subr.mxu0 0.0
    %1660 = vmatpush1.msra.mxu0 0.0
    %1661 = vmatprep.subr.mxu0 0.0
    %1662 = vmatpush1.msra.mxu0 0.0
    %1663 = vmatprep.subr.mxu0 0.0
    %1664 = vmatpush1.msra.mxu0 0.0
    %1665 = vmatprep.subr.mxu0 0.0
    %1666 = vmatpush1.msra.mxu0 0.0
    %1667 = vmatprep.subr.mxu0 0.0
    %1668 = vmatpush1.msra.mxu0 0.0
    %1669 = vmatprep.subr.mxu0 0.0
    %1670 = vmatpush1.msra.mxu0 0.0
    %1671 = vmatprep.subr.mxu0 0.0
    %1672 = vmatpush1.msra.mxu0 0.0
    %1673 = vmatprep.subr.mxu0 0.0
    %1674 = vmatpush1.msra.mxu0 0.0
    %1675 = vmatprep.subr.mxu0 0.0
    %1676 = vmatpush1.msra.mxu0 0.0
    %1677 = vmatprep.subr.mxu0 0.0
    %1678 = vmatpush1.msra.mxu0 0.0
    %1679 = vmatprep.subr.mxu0 0.0
    %1680 = vmatpush1.msra.mxu0 0.0
    %1681 = vmatprep.subr.mxu0 0.0
    %1682 = vmatpush1.msra.mxu0 0.0
    %1683 = vmatprep.subr.mxu0 0.0
    %1684 = vmatpush1.msra.mxu0 0.0
    %1685 = vmatprep.subr.mxu0 0.0
    %1686 = vmatpush1.msra.mxu0 0.0
    %1687 = vmatprep.mubr.f32.mxu0 0.0
    %1688 = vmatmul.mubr.f32.gmra.mrb[0].mxu0 %v1621
    %v1689 = vpop.f32.mrb[0].mxu0
    %v1690 = vadd.f32 0.0, %v1689
    %v1691 = vpop.f32.mrb[0].mxu0
    %1692 = vdwg.mxu0
    %1693 = vrot.lane.b32.xlu0 %v1476, 64
    %v1694 = vpop.permute.xlu0 %1693
    %v1696 = vsel %vm78, %v1690, %v1694
    %v1698 = vsel %vm1376, %v1696, 0
    %1700 = vmatprep.subr.mxu0 0.0
    %1701 = vmatpush1.msra.mxu0 %v1339
    %1702 = vmatprep.subr.mxu0 0.0
    %1703 = vmatpush1.msra.mxu0 %v1340
    %1704 = vmatprep.subr.mxu0 0.0
    %1705 = vmatpush1.msra.mxu0 %v1341
    %1706 = vmatprep.subr.mxu0 0.0
    %1707 = vmatpush1.msra.mxu0 %v1342
    %1708 = vmatprep.subr.mxu0 0.0
    %1709 = vmatpush1.msra.mxu0 %v1343
    %1710 = vmatprep.subr.mxu0 0.0
    %1711 = vmatpush1.msra.mxu0 %v1344
    %1712 = vmatprep.subr.mxu0 0.0
    %1713 = vmatpush1.msra.mxu0 %v1345
    %1714 = vmatprep.subr.mxu0 0.0
    %1715 = vmatpush1.msra.mxu0 %v1346
    %1716 = vmatprep.subr.mxu0 0.0
    %1717 = vmatpush1.msra.mxu0 0.0
    %1718 = vmatprep.subr.mxu0 0.0
    %1719 = vmatpush1.msra.mxu0 0.0
    %1720 = vmatprep.subr.mxu0 0.0
    %1721 = vmatpush1.msra.mxu0 0.0
    %1722 = vmatprep.subr.mxu0 0.0
    %1723 = vmatpush1.msra.mxu0 0.0
    %1724 = vmatprep.subr.mxu0 0.0
    %1725 = vmatpush1.msra.mxu0 0.0
    %1726 = vmatprep.subr.mxu0 0.0
    %1727 = vmatpush1.msra.mxu0 0.0
    %1728 = vmatprep.subr.mxu0 0.0
    %1729 = vmatpush1.msra.mxu0 0.0
    %1730 = vmatprep.subr.mxu0 0.0
    %1731 = vmatpush1.msra.mxu0 0.0
    %1732 = vmatprep.subr.mxu0 0.0
    %1733 = vmatpush1.msra.mxu0 0.0
    %1734 = vmatprep.subr.mxu0 0.0
    %1735 = vmatpush1.msra.mxu0 0.0
    %1736 = vmatprep.subr.mxu0 0.0
    %1737 = vmatpush1.msra.mxu0 0.0
    %1738 = vmatprep.subr.mxu0 0.0
    %1739 = vmatpush1.msra.mxu0 0.0
    %1740 = vmatprep.subr.mxu0 0.0
    %1741 = vmatpush1.msra.mxu0 0.0
    %1742 = vmatprep.subr.mxu0 0.0
    %1743 = vmatpush1.msra.mxu0 0.0
    %1744 = vmatprep.subr.mxu0 0.0
    %1745 = vmatpush1.msra.mxu0 0.0
    %1746 = vmatprep.subr.mxu0 0.0
    %1747 = vmatpush1.msra.mxu0 0.0
    %1748 = vmatprep.subr.mxu0 0.0
    %1749 = vmatpush1.msra.mxu0 0.0
    %1750 = vmatprep.subr.mxu0 0.0
    %1751 = vmatpush1.msra.mxu0 0.0
    %1752 = vmatprep.subr.mxu0 0.0
    %1753 = vmatpush1.msra.mxu0 0.0
    %1754 = vmatprep.subr.mxu0 0.0
    %1755 = vmatpush1.msra.mxu0 0.0
    %1756 = vmatprep.subr.mxu0 0.0
    %1757 = vmatpush1.msra.mxu0 0.0
    %1758 = vmatprep.subr.mxu0 0.0
    %1759 = vmatpush1.msra.mxu0 0.0
    %1760 = vmatprep.subr.mxu0 0.0
    %1761 = vmatpush1.msra.mxu0 0.0
    %1762 = vmatprep.subr.mxu0 0.0
    %1763 = vmatpush1.msra.mxu0 0.0
    %1764 = vmatprep.mubr.f32.mxu0 0.0
    %1765 = vmatmul.mubr.f32.gmra.mrb[0].mxu0 %v1698
    %v1766 = vpop.f32.mrb[0].mxu0
    %v1767 = vadd.f32 %v1347, %v1766
    %v1768 = vpop.f32.mrb[0].mxu0
    %1769 = vdwg.mxu0
    %v1770 = vsel %vm1586, %v1767, -inf
    %1771 = vmax.xlane.f32.xlu0 %v1770
    %v1772 = vpop.xlane.xlu0 %1771
    %v1773 = vsub.f32 %v1767, %v1772
    %v1774 = vmul.f32 %v1773, 1.442695
    %v1775 = vpow.pop %v1774
    %v1776 = vsel %vm1586, %v1775, 0.0
    %1777 = vadd.xlane.f32.xlu0 %v1776
    %v1778 = vpop.xlane.xlu0 %1777
    %v1779 = vrcp.pop %v1778
    %v1780 = vmul.f32 %v1775, %v1779
    %vm1781 = vcmask 64512
    %v1783 = vsel %vm1781, %v1780, 0
    %1785 = vmatprep.subr.mxu0 0.0
    %1786 = vmatpush1.msra.mxu0 %v1187
    %1787 = vmatprep.subr.mxu0 0.0
    %1788 = vmatpush1.msra.mxu0 0.0
    %1789 = vmatprep.subr.mxu0 0.0
    %1790 = vmatpush1.msra.mxu0 0.0
    %1791 = vmatprep.subr.mxu0 0.0
    %1792 = vmatpush1.msra.mxu0 0.0
    %1793 = vmatprep.subr.mxu0 0.0
    %1794 = vmatpush1.msra.mxu0 0.0
    %1795 = vmatprep.subr.mxu0 0.0
    %1796 = vmatpush1.msra.mxu0 0.0
    %1797 = vmatprep.subr.mxu0 0.0
    %1798 = vmatpush1.msra.mxu0 0.0
    %1799 = vmatprep.subr.mxu0 0.0
    %1800 = vmatpush1.msra.mxu0 0.0
    %1801 = vmatprep.subr.mxu0 0.0
    %1802 = vmatpush1.msra.mxu0 0.0
    %1803 = vmatprep.subr.mxu0 0.0
    %1804 = vmatpush1.msra.mxu0 0.0
    %1805 = vmatprep.subr.mxu0 0.0
    %1806 = vmatpush1.msra.mxu0 0.0
    %1807 = vmatprep.subr.mxu0 0.0
    %1808 = vmatpush1.msra.mxu0 0.0
    %1809 = vmatprep.subr.mxu0 0.0
    %1810 = vmatpush1.msra.mxu0 0.0
    %1811 = vmatprep.subr.mxu0 0.0
    %1812 = vmatpush1.msra.mxu0 0.0
    %1813 = vmatprep.subr.mxu0 0.0
    %1814 = vmatpush1.msra.mxu0 0.0
    %1815 = vmatprep.subr.mxu0 0.0
    %1816 = vmatpush1.msra.mxu0 0.0
    %1817 = vmatprep.subr.mxu0 0.0
    %1818 = vmatpush1.msra.mxu0 0.0
    %1819 = vmatprep.subr.mxu0 0.0
    %1820 = vmatpush1.msra.mxu0 0.0
    %1821 = vmatprep.subr.mxu0 0.0
    %1822 = vmatpush1.msra.mxu0 0.0
    %1823 = vmatprep.subr.mxu0 0.0
    %1824 = vmatpush1.msra.mxu0 0.0
    %1825 = vmatprep.subr.mxu0 0.0
    %1826 = vmatpush1.msra.mxu0 0.0
    %1827 = vmatprep.subr.mxu0 0.0
    %1828 = vmatpush1.msra.mxu0 0.0
    %1829 = vmatprep.subr.mxu0 0.0
    %1830 = vmatpush1.msra.mxu0 0.0
    %1831 = vmatprep.subr.mxu0 0.0
    %1832 = vmatpush1.msra.mxu0 0.0
    %1833 = vmatprep.subr.mxu0 0.0
    %1834 = vmatpush1.msra.mxu0 0.0
    %1835 = vmatprep.subr.mxu0 0.0
    %1836 = vmatpush1.msra.mxu0 0.0
    %1837 = vmatprep.subr.mxu0 0.0
    %1838 = vmatpush1.msra.mxu0 0.0
    %1839 = vmatprep.subr.mxu0 0.0
    %1840 = vmatpush1.msra.mxu0 0.0
    %1841 = vmatprep.subr.mxu0 0.0
    %1842 = vmatpush1.msra.mxu0 0.0
    %1843 = vmatprep.subr.mxu0 0.0
    %1844 = vmatpush1.msra.mxu0 0.0
    %1845 = vmatprep.subr.mxu0 0.0
    %1846 = vmatpush1.msra.mxu0 0.0
    %1847 = vmatprep.subr.mxu0 0.0
    %1848 = vmatpush1.msra.mxu0 0.0
    %1849 = vmatprep.mubr.f32.mxu0 0.0
    %1850 = vmatmul.mubr.f32.gmra.mrb[0].mxu0 %v1783
    %v1851 = vpop.f32.mrb[0].mxu0
    %v1852 = vadd.f32 0.0, %v1851
    %v1853 = vpop.f32.mrb[0].mxu0
    %1854 = vdwg.mxu0
    %vm1855 = vcmp.ne.f32.partialorder %v1367, %v1590
    %v1856 = vsel %vm1855, 1, 0
    %v1857 = vcvt.s32.f32 %v1856
    %v1859 = vlaneseq
    %v1860 = vshrl.u32 %v1859, 7
    %v1861 = vsub.s32 0, %v1860
    %v1862 = vrot.slane %v1368, %v1861
    %1863 = vrot.lane.b32.xlu0 %v1862, 16
    %v1864 = vpop.permute.xlu0 %1863
    %v1866 = vmul.f32 %v1566, %v1864
    %v1868 = vlaneseq
    %v1869 = vshrl.u32 %v1868, 7
    %v1870 = vsub.s32 0, %v1869
    %v1871 = vrot.slane %v1857, %v1870
    %1872 = vrot.lane.b32.xlu0 %v1871, 16
    %v1873 = vpop.permute.xlu0 %1872
    %v1875 = vmul.f32 %v1866, %v1873
    %1877 = vrot.lane.b32.xlu0 %v1875, 112
    %v1878 = vpop.permute.xlu0 %1877
    %v1880 = vsel %vm1586, %v1878, 0.0
    %1881 = vadd.xlane.f32.xlu0 %v1880
    %v1882 = vpop.xlane.xlu0 %1881
    %vm1883 = vcmp.gt.f32.partialorder %v1882, 0.0
    %v1884 = vmax.f32 %v1882, 1e-30
    %v1885 = vrcp.pop %v1884
    %v1886 = vmul.f32 1.0, %v1885
    %v1887 = vsel %vm1883, %v1886, 1.0
    %v1888 = vmul.f32 %v1875, %v1887
    %1890 = vrot.lane.b32.xlu0 %v1888, 112
    %v1891 = vpop.permute.xlu0 %1890
    %v1892 = vsel %vm1781, %v1891, 0
    %1894 = vmatprep.subr.mxu0 0.0
    %1895 = vmatpush1.msra.mxu0 %v1187
    %1896 = vmatprep.subr.mxu0 0.0
    %1897 = vmatpush1.msra.mxu0 0.0
    %1898 = vmatprep.subr.mxu0 0.0
    %1899 = vmatpush1.msra.mxu0 0.0
    %1900 = vmatprep.subr.mxu0 0.0
    %1901 = vmatpush1.msra.mxu0 0.0
    %1902 = vmatprep.subr.mxu0 0.0
    %1903 = vmatpush1.msra.mxu0 0.0
    %1904 = vmatprep.subr.mxu0 0.0
    %1905 = vmatpush1.msra.mxu0 0.0
    %1906 = vmatprep.subr.mxu0 0.0
    %1907 = vmatpush1.msra.mxu0 0.0
    %1908 = vmatprep.subr.mxu0 0.0
    %1909 = vmatpush1.msra.mxu0 0.0
    %1910 = vmatprep.subr.mxu0 0.0
    %1911 = vmatpush1.msra.mxu0 0.0
    %1912 = vmatprep.subr.mxu0 0.0
    %1913 = vmatpush1.msra.mxu0 0.0
    %1914 = vmatprep.subr.mxu0 0.0
    %1915 = vmatpush1.msra.mxu0 0.0
    %1916 = vmatprep.subr.mxu0 0.0
    %1917 = vmatpush1.msra.mxu0 0.0
    %1918 = vmatprep.subr.mxu0 0.0
    %1919 = vmatpush1.msra.mxu0 0.0
    %1920 = vmatprep.subr.mxu0 0.0
    %1921 = vmatpush1.msra.mxu0 0.0
    %1922 = vmatprep.subr.mxu0 0.0
    %1923 = vmatpush1.msra.mxu0 0.0
    %1924 = vmatprep.subr.mxu0 0.0
    %1925 = vmatpush1.msra.mxu0 0.0
    %1926 = vmatprep.subr.mxu0 0.0
    %1927 = vmatpush1.msra.mxu0 0.0
    %1928 = vmatprep.subr.mxu0 0.0
    %1929 = vmatpush1.msra.mxu0 0.0
    %1930 = vmatprep.subr.mxu0 0.0
    %1931 = vmatpush1.msra.mxu0 0.0
    %1932 = vmatprep.subr.mxu0 0.0
    %1933 = vmatpush1.msra.mxu0 0.0
    %1934 = vmatprep.subr.mxu0 0.0
    %1935 = vmatpush1.msra.mxu0 0.0
    %1936 = vmatprep.subr.mxu0 0.0
    %1937 = vmatpush1.msra.mxu0 0.0
    %1938 = vmatprep.subr.mxu0 0.0
    %1939 = vmatpush1.msra.mxu0 0.0
    %1940 = vmatprep.subr.mxu0 0.0
    %1941 = vmatpush1.msra.mxu0 0.0
    %1942 = vmatprep.subr.mxu0 0.0
    %1943 = vmatpush1.msra.mxu0 0.0
    %1944 = vmatprep.subr.mxu0 0.0
    %1945 = vmatpush1.msra.mxu0 0.0
    %1946 = vmatprep.subr.mxu0 0.0
    %1947 = vmatpush1.msra.mxu0 0.0
    %1948 = vmatprep.subr.mxu0 0.0
    %1949 = vmatpush1.msra.mxu0 0.0
    %1950 = vmatprep.subr.mxu0 0.0
    %1951 = vmatpush1.msra.mxu0 0.0
    %1952 = vmatprep.subr.mxu0 0.0
    %1953 = vmatpush1.msra.mxu0 0.0
    %1954 = vmatprep.subr.mxu0 0.0
    %1955 = vmatpush1.msra.mxu0 0.0
    %1956 = vmatprep.subr.mxu0 0.0
    %1957 = vmatpush1.msra.mxu0 0.0
    %1958 = vmatprep.mubr.f32.mxu0 0.0
    %1959 = vmatmul.mubr.f32.gmra.mrb[0].mxu0 %v1892
    %v1960 = vpop.f32.mrb[0].mxu0
    %v1961 = vadd.f32 0.0, %v1960
    %v1962 = vpop.f32.mrb[0].mxu0
    %1963 = vdwg.mxu0
    %1965 = vrot.lane.b32.xlu0 %v1961, 32
    %v1966 = vpop.permute.xlu0 %1965
    %1969 = vrot.lane.b32.xlu0 %v1852, 64
    %v1970 = vpop.permute.xlu0 %1969
    %v1972 = vsel %vm78, %v1690, %v1966
    %v1973 = vsel %vm1376, %v1972, %v1970
    %v1974 = vsel %vm1378, %v1973, %v1476
    %1975 = vmatprep.subr.mxu0 0.0
    %1976 = vmatpush1.msra.mxu0 %v1348
    %1977 = vmatprep.subr.mxu0 0.0
    %1978 = vmatpush1.msra.mxu0 %v1349
    %1979 = vmatprep.subr.mxu0 0.0
    %1980 = vmatpush1.msra.mxu0 %v1350
    %1981 = vmatprep.subr.mxu0 0.0
    %1982 = vmatpush1.msra.mxu0 %v1351
    %1983 = vmatprep.subr.mxu0 0.0
    %1984 = vmatpush1.msra.mxu0 %v1352
    %1985 = vmatprep.subr.mxu0 0.0
    %1986 = vmatpush1.msra.mxu0 %v1353
    %1987 = vmatprep.subr.mxu0 0.0
    %1988 = vmatpush1.msra.mxu0 %v1354
    %1989 = vmatprep.subr.mxu0 0.0
    %1990 = vmatpush1.msra.mxu0 %v1355
    %1991 = vmatprep.subr.mxu0 0.0
    %1992 = vmatpush1.msra.mxu0 %v1356
    %1993 = vmatprep.subr.mxu0 0.0
    %1994 = vmatpush1.msra.mxu0 %v1357
    %1995 = vmatprep.subr.mxu0 0.0
    %1996 = vmatpush1.msra.mxu0 %v1358
    %1997 = vmatprep.subr.mxu0 0.0
    %1998 = vmatpush1.msra.mxu0 %v1359
    %1999 = vmatprep.subr.mxu0 0.0
    %2000 = vmatpush1.msra.mxu0 %v1360
    %2001 = vmatprep.subr.mxu0 0.0
    %2002 = vmatpush1.msra.mxu0 %v1361
    %2003 = vmatprep.subr.mxu0 0.0
    %2004 = vmatpush1.msra.mxu0 %v1362
    %2005 = vmatprep.subr.mxu0 0.0
    %2006 = vmatpush1.msra.mxu0 %v1363
    %2007 = vmatprep.subr.mxu0 0.0
    %2008 = vmatpush1.msra.mxu0 0.0
    %2009 = vmatprep.subr.mxu0 0.0
    %2010 = vmatpush1.msra.mxu0 0.0
    %2011 = vmatprep.subr.mxu0 0.0
    %2012 = vmatpush1.msra.mxu0 0.0
    %2013 = vmatprep.subr.mxu0 0.0
    %2014 = vmatpush1.msra.mxu0 0.0
    %2015 = vmatprep.subr.mxu0 0.0
    %2016 = vmatpush1.msra.mxu0 0.0
    %2017 = vmatprep.subr.mxu0 0.0
    %2018 = vmatpush1.msra.mxu0 0.0
    %2019 = vmatprep.subr.mxu0 0.0
    %2020 = vmatpush1.msra.mxu0 0.0
    %2021 = vmatprep.subr.mxu0 0.0
    %2022 = vmatpush1.msra.mxu0 0.0
    %2023 = vmatprep.subr.mxu0 0.0
    %2024 = vmatpush1.msra.mxu0 0.0
    %2025 = vmatprep.subr.mxu0 0.0
    %2026 = vmatpush1.msra.mxu0 0.0
    %2027 = vmatprep.subr.mxu0 0.0
    %2028 = vmatpush1.msra.mxu0 0.0
    %2029 = vmatprep.subr.mxu0 0.0
    %2030 = vmatpush1.msra.mxu0 0.0
    %2031 = vmatprep.subr.mxu0 0.0
    %2032 = vmatpush1.msra.mxu0 0.0
    %2033 = vmatprep.subr.mxu0 0.0
    %2034 = vmatpush1.msra.mxu0 0.0
    %2035 = vmatprep.subr.mxu0 0.0
    %2036 = vmatpush1.msra.mxu0 0.0
    %2037 = vmatprep.subr.mxu0 0.0
    %2038 = vmatpush1.msra.mxu0 0.0
    %2039 = vmatprep.mubr.f32.mxu0 0.0
    %2040 = vmatmul.mubr.f32.gmra.mrb[0].mxu0 %v1974
    %v2041 = vpop.f32.mrb[0].mxu0
    %v2042 = vadd.f32 %v1364, %v2041
    %v2043 = vpop.f32.mrb[0].mxu0
    %2044 = vdwg.mxu0
    %v2045 = vxor.u32 %v2042, 2147483648
    %v2046 = vmul.f32 %v2045, 1.442695
    %v2047 = vpow.pop %v2046
    %v2048 = vadd.f32 %v2047, 1.0
    %v2049 = vrcp.pop %v2048
    %v2050 = vmul.f32 1.0, %v2049
    %v2051 = vtanh.pop %v2042
    %v2052 = vmul.f32 %v2050, %v1470
    %2054 = vrot.lane.b32.xlu0 %v2051, 64
    %v2055 = vpop.permute.xlu0 %2054
    %v2057 = vmul.f32 %v2050, %v2055
    %2059 = vrot.lane.b32.xlu0 %v2057, 32
    %v2060 = vpop.permute.xlu0 %2059
    %v2062 = vadd.f32 %v2052, %v2060
    %v2063 = vtanh.pop %v2062
    %2065 = vrot.lane.b32.xlu0 %v2063, 64
    %v2066 = vpop.permute.xlu0 %2065
    %v2068 = vmul.f32 %v2050, %v2066
    %2070 = vrot.lane.b32.xlu0 %v2068, 32
    %v2071 = vpop.permute.xlu0 %2070
    %v2073 = vsel %vm78, %v2071, 0.0
    %2074 = vst [vmem:[#allocation3 + $0x2] sm:$0x1] %v2073
    %v2075 = vsel %vm78, %v2071, 0
    %2077 = vmatprep.subr.mxu0 0.0
    %2078 = vmatpush1.msra.mxu0 %v1332
    %2079 = vmatprep.subr.mxu0 0.0
    %2080 = vmatpush1.msra.mxu0 %v1333
    %2081 = vmatprep.subr.mxu0 0.0
    %2082 = vmatpush1.msra.mxu0 %v1334
    %2083 = vmatprep.subr.mxu0 0.0
    %2084 = vmatpush1.msra.mxu0 %v1335
    %2085 = vmatprep.subr.mxu0 0.0
    %2086 = vmatpush1.msra.mxu0 0.0
    %2087 = vmatprep.subr.mxu0 0.0
    %2088 = vmatpush1.msra.mxu0 0.0
    %2089 = vmatprep.subr.mxu0 0.0
    %2090 = vmatpush1.msra.mxu0 0.0
    %2091 = vmatprep.subr.mxu0 0.0
    %2092 = vmatpush1.msra.mxu0 0.0
    %2093 = vmatprep.subr.mxu0 0.0
    %2094 = vmatpush1.msra.mxu0 0.0
    %2095 = vmatprep.subr.mxu0 0.0
    %2096 = vmatpush1.msra.mxu0 0.0
    %2097 = vmatprep.subr.mxu0 0.0
    %2098 = vmatpush1.msra.mxu0 0.0
    %2099 = vmatprep.subr.mxu0 0.0
    %2100 = vmatpush1.msra.mxu0 0.0
    %2101 = vmatprep.subr.mxu0 0.0
    %2102 = vmatpush1.msra.mxu0 0.0
    %2103 = vmatprep.subr.mxu0 0.0
    %2104 = vmatpush1.msra.mxu0 0.0
    %2105 = vmatprep.subr.mxu0 0.0
    %2106 = vmatpush1.msra.mxu0 0.0
    %2107 = vmatprep.subr.mxu0 0.0
    %2108 = vmatpush1.msra.mxu0 0.0
    %2109 = vmatprep.subr.mxu0 0.0
    %2110 = vmatpush1.msra.mxu0 0.0
    %2111 = vmatprep.subr.mxu0 0.0
    %2112 = vmatpush1.msra.mxu0 0.0
    %2113 = vmatprep.subr.mxu0 0.0
    %2114 = vmatpush1.msra.mxu0 0.0
    %2115 = vmatprep.subr.mxu0 0.0
    %2116 = vmatpush1.msra.mxu0 0.0
    %2117 = vmatprep.subr.mxu0 0.0
    %2118 = vmatpush1.msra.mxu0 0.0
    %2119 = vmatprep.subr.mxu0 0.0
    %2120 = vmatpush1.msra.mxu0 0.0
    %2121 = vmatprep.subr.mxu0 0.0
    %2122 = vmatpush1.msra.mxu0 0.0
    %2123 = vmatprep.subr.mxu0 0.0
    %2124 = vmatpush1.msra.mxu0 0.0
    %2125 = vmatprep.subr.mxu0 0.0
    %2126 = vmatpush1.msra.mxu0 0.0
    %2127 = vmatprep.subr.mxu0 0.0
    %2128 = vmatpush1.msra.mxu0 0.0
    %2129 = vmatprep.subr.mxu0 0.0
    %2130 = vmatpush1.msra.mxu0 0.0
    %2131 = vmatprep.subr.mxu0 0.0
    %2132 = vmatpush1.msra.mxu0 0.0
    %2133 = vmatprep.subr.mxu0 0.0
    %2134 = vmatpush1.msra.mxu0 0.0
    %2135 = vmatprep.subr.mxu0 0.0
    %2136 = vmatpush1.msra.mxu0 0.0
    %2137 = vmatprep.subr.mxu0 0.0
    %2138 = vmatpush1.msra.mxu0 0.0
    %2139 = vmatprep.subr.mxu0 0.0
    %2140 = vmatpush1.msra.mxu0 0.0
    %2141 = vmatprep.mubr.f32.mxu0 0.0
    %2142 = vmatmul.mubr.f32.gmra.mrb[0].mxu0 %v2075
    %v2143 = vpop.f32.mrb[0].mxu0
    %v2144 = vadd.f32 %v1337, %v2143
    %v2145 = vpop.f32.mrb[0].mxu0
    %2146 = vdwg.mxu0
    %v2147 = vsel %vm1555, %v2144, -inf
    %2148 = vmax.xlane.f32.xlu0 %v2147
    %v2149 = vpop.xlane.xlu0 %2148
    %v2150 = vsub.f32 %v2144, %v2149
    %v2151 = vmul.f32 %v2150, 1.442695
    %v2152 = vpow.pop %v2151
    %v2153 = vsel %vm1555, %v2152, 0.0
    %2154 = vadd.xlane.f32.xlu0 %v2153
    %v2155 = vpop.xlane.xlu0 %2154
    %v2156 = vrcp.pop %v2155
    %v2157 = vmul.f32 %v2152, %v2156
    %v2158 = vmul.f32 %v2157, %v1338
    %vm2159 = vcmp.gt.f32.partialorder %v2158, 0.0
    %v2160 = vmax.f32 %v2158, 1e-30
    %v2161 = vlog2.pop %v2160
    %v2162 = vmul.f32 %v2161, 0.6931472
    %v2163 = vsel %vm2159, %v2162, -1e+30
    %v2165 = vrot.slane %v1369, 1
    %v2167 = vadd.f32 %v2163, %v2165
    %v2168 = vsel %vm1555, %v2167, -inf
    %2169 = vmax.xlane.f32.xlu0 %v2168
    %v2170 = vpop.xlane.xlu0 %2169
    %vm2171 = vcmp.ge.f32.partialorder %v2167, %v2170
    %v2172 = vsel %vm2171, %v1372, 24.0
    %v2173 = vsel %vm1555, %v2172, inf
    %2174 = vmin.xlane.f32.xlu0 %v2173
    %v2175 = vpop.xlane.xlu0 %2174
    %vm2176 = vcmp.ge.f32.partialorder %v2175, 16.0
    %v2177 = vsub.f32 %v2175, 16.0
    %vm2178 = vcmp.eq.f32.partialorder %v1372, %v2177
    %v2179 = vsel %vm2178, %v1367, 0.0
    %v2180 = vsel %vm1586, %v2179, 0.0
    %2181 = vadd.xlane.f32.xlu0 %v2180
    %v2182 = vpop.xlane.xlu0 %2181
    %v2183 = vsel %vm2176, %v2182, %v2175
    %vm2184 = vcmp.eq.f32.partialorder %v1372, %v2175
    %v2185 = vsel %vm2184, %v2158, 0.0
    %v2186 = vsel %vm1555, %v2185, 0.0
    %2187 = vadd.xlane.f32.xlu0 %v2186
    %v2188 = vpop.xlane.xlu0 %2187
    %vm2189 = vcmp.eq.f32.partialorder %v1372, %v2183
    %v2190 = vsel %vm2189, %v2158, 0.0
    %v2191 = vsel %vm1598, %v2190, 0.0
    %2192 = vadd.xlane.f32.xlu0 %v2191
    %v2193 = vpop.xlane.xlu0 %2192
    %v2194 = vadd.f32 %v2188, %v2193
    %v2195 = vsel %vm2176, %v2194, %v2188
    %v2196 = vsel %vm1604, %v2183, 0.0
    %v2197 = vsel %vm1606, %v2195, 0.0
    %v2198 = vadd.f32 %v2196, %v2197
    %v2199 = vsel %vm1609, %v2175, 0.0
    %v2200 = vadd.f32 %v2198, %v2199
    %v2201 = vsel %vm2176, 1, 0
    %v2202 = vcvt.s32.f32 %v2201
    %v2203 = vsel %vm1612, %v2202, 0.0
    %v2204 = vadd.f32 %v2200, %v2203
    %2205 = vst [vmem:[#allocation5 + $0x1] sm:$0x1] %v2204
    %v2206 = vsel %vm2189, 1, 0
    %v2207 = vcvt.s32.f32 %v2206
    %v2209 = vsel %vm1331, %v2207, 0
    %2211 = vmatprep.subr.mxu0 0.0
    %2212 = vmatpush1.msra.mxu0 %v1365
    %2213 = vmatprep.subr.mxu0 0.0
    %2214 = vmatpush1.msra.mxu0 %v1366
    %2215 = vmatprep.subr.mxu0 0.0
    %2216 = vmatpush1.msra.mxu0 0.0
    %2217 = vmatprep.subr.mxu0 0.0
    %2218 = vmatpush1.msra.mxu0 0.0
    %2219 = vmatprep.subr.mxu0 0.0
    %2220 = vmatpush1.msra.mxu0 0.0
    %2221 = vmatprep.subr.mxu0 0.0
    %2222 = vmatpush1.msra.mxu0 0.0
    %2223 = vmatprep.subr.mxu0 0.0
    %2224 = vmatpush1.msra.mxu0 0.0
    %2225 = vmatprep.subr.mxu0 0.0
    %2226 = vmatpush1.msra.mxu0 0.0
    %2227 = vmatprep.subr.mxu0 0.0
    %2228 = vmatpush1.msra.mxu0 0.0
    %2229 = vmatprep.subr.mxu0 0.0
    %2230 = vmatpush1.msra.mxu0 0.0
    %2231 = vmatprep.subr.mxu0 0.0
    %2232 = vmatpush1.msra.mxu0 0.0
    %2233 = vmatprep.subr.mxu0 0.0
    %2234 = vmatpush1.msra.mxu0 0.0
    %2235 = vmatprep.subr.mxu0 0.0
    %2236 = vmatpush1.msra.mxu0 0.0
    %2237 = vmatprep.subr.mxu0 0.0
    %2238 = vmatpush1.msra.mxu0 0.0
    %2239 = vmatprep.subr.mxu0 0.0
    %2240 = vmatpush1.msra.mxu0 0.0
    %2241 = vmatprep.subr.mxu0 0.0
    %2242 = vmatpush1.msra.mxu0 0.0
    %2243 = vmatprep.subr.mxu0 0.0
    %2244 = vmatpush1.msra.mxu0 0.0
    %2245 = vmatprep.subr.mxu0 0.0
    %2246 = vmatpush1.msra.mxu0 0.0
    %2247 = vmatprep.subr.mxu0 0.0
    %2248 = vmatpush1.msra.mxu0 0.0
    %2249 = vmatprep.subr.mxu0 0.0
    %2250 = vmatpush1.msra.mxu0 0.0
    %2251 = vmatprep.subr.mxu0 0.0
    %2252 = vmatpush1.msra.mxu0 0.0
    %2253 = vmatprep.subr.mxu0 0.0
    %2254 = vmatpush1.msra.mxu0 0.0
    %2255 = vmatprep.subr.mxu0 0.0
    %2256 = vmatpush1.msra.mxu0 0.0
    %2257 = vmatprep.subr.mxu0 0.0
    %2258 = vmatpush1.msra.mxu0 0.0
    %2259 = vmatprep.subr.mxu0 0.0
    %2260 = vmatpush1.msra.mxu0 0.0
    %2261 = vmatprep.subr.mxu0 0.0
    %2262 = vmatpush1.msra.mxu0 0.0
    %2263 = vmatprep.subr.mxu0 0.0
    %2264 = vmatpush1.msra.mxu0 0.0
    %2265 = vmatprep.subr.mxu0 0.0
    %2266 = vmatpush1.msra.mxu0 0.0
    %2267 = vmatprep.subr.mxu0 0.0
    %2268 = vmatpush1.msra.mxu0 0.0
    %2269 = vmatprep.subr.mxu0 0.0
    %2270 = vmatpush1.msra.mxu0 0.0
    %2271 = vmatprep.subr.mxu0 0.0
    %2272 = vmatpush1.msra.mxu0 0.0
    %2273 = vmatprep.subr.mxu0 0.0
    %2274 = vmatpush1.msra.mxu0 0.0
    %2275 = vmatprep.mubr.f32.mxu0 0.0
    %2276 = vmatmul.mubr.f32.gmra.mrb[0].mxu0 %v2209
    %v2277 = vpop.f32.mrb[0].mxu0
    %v2278 = vadd.f32 0.0, %v2277
    %v2279 = vpop.f32.mrb[0].mxu0
    %2280 = vdwg.mxu0
    %2281 = vrot.lane.b32.xlu0 %v2068, 64
    %v2282 = vpop.permute.xlu0 %2281
    %v2284 = vsel %vm78, %v2278, %v2282
    %v2286 = vsel %vm1376, %v2284, 0
    %2288 = vmatprep.subr.mxu0 0.0
    %2289 = vmatpush1.msra.mxu0 %v1339
    %2290 = vmatprep.subr.mxu0 0.0
    %2291 = vmatpush1.msra.mxu0 %v1340
    %2292 = vmatprep.subr.mxu0 0.0
    %2293 = vmatpush1.msra.mxu0 %v1341
    %2294 = vmatprep.subr.mxu0 0.0
    %2295 = vmatpush1.msra.mxu0 %v1342
    %2296 = vmatprep.subr.mxu0 0.0
    %2297 = vmatpush1.msra.mxu0 %v1343
    %2298 = vmatprep.subr.mxu0 0.0
    %2299 = vmatpush1.msra.mxu0 %v1344
    %2300 = vmatprep.subr.mxu0 0.0
    %2301 = vmatpush1.msra.mxu0 %v1345
    %2302 = vmatprep.subr.mxu0 0.0
    %2303 = vmatpush1.msra.mxu0 %v1346
    %2304 = vmatprep.subr.mxu0 0.0
    %2305 = vmatpush1.msra.mxu0 0.0
    %2306 = vmatprep.subr.mxu0 0.0
    %2307 = vmatpush1.msra.mxu0 0.0
    %2308 = vmatprep.subr.mxu0 0.0
    %2309 = vmatpush1.msra.mxu0 0.0
    %2310 = vmatprep.subr.mxu0 0.0
    %2311 = vmatpush1.msra.mxu0 0.0
    %2312 = vmatprep.subr.mxu0 0.0
    %2313 = vmatpush1.msra.mxu0 0.0
    %2314 = vmatprep.subr.mxu0 0.0
    %2315 = vmatpush1.msra.mxu0 0.0
    %2316 = vmatprep.subr.mxu0 0.0
    %2317 = vmatpush1.msra.mxu0 0.0
    %2318 = vmatprep.subr.mxu0 0.0
    %2319 = vmatpush1.msra.mxu0 0.0
    %2320 = vmatprep.subr.mxu0 0.0
    %2321 = vmatpush1.msra.mxu0 0.0
    %2322 = vmatprep.subr.mxu0 0.0
    %2323 = vmatpush1.msra.mxu0 0.0
    %2324 = vmatprep.subr.mxu0 0.0
    %2325 = vmatpush1.msra.mxu0 0.0
    %2326 = vmatprep.subr.mxu0 0.0
    %2327 = vmatpush1.msra.mxu0 0.0
    %2328 = vmatprep.subr.mxu0 0.0
    %2329 = vmatpush1.msra.mxu0 0.0
    %2330 = vmatprep.subr.mxu0 0.0
    %2331 = vmatpush1.msra.mxu0 0.0
    %2332 = vmatprep.subr.mxu0 0.0
    %2333 = vmatpush1.msra.mxu0 0.0
    %2334 = vmatprep.subr.mxu0 0.0
    %2335 = vmatpush1.msra.mxu0 0.0
    %2336 = vmatprep.subr.mxu0 0.0
    %2337 = vmatpush1.msra.mxu0 0.0
    %2338 = vmatprep.subr.mxu0 0.0
    %2339 = vmatpush1.msra.mxu0 0.0
    %2340 = vmatprep.subr.mxu0 0.0
    %2341 = vmatpush1.msra.mxu0 0.0
    %2342 = vmatprep.subr.mxu0 0.0
    %2343 = vmatpush1.msra.mxu0 0.0
    %2344 = vmatprep.subr.mxu0 0.0
    %2345 = vmatpush1.msra.mxu0 0.0
    %2346 = vmatprep.subr.mxu0 0.0
    %2347 = vmatpush1.msra.mxu0 0.0
    %2348 = vmatprep.subr.mxu0 0.0
    %2349 = vmatpush1.msra.mxu0 0.0
    %2350 = vmatprep.subr.mxu0 0.0
    %2351 = vmatpush1.msra.mxu0 0.0
    %2352 = vmatprep.mubr.f32.mxu0 0.0
    %2353 = vmatmul.mubr.f32.gmra.mrb[0].mxu0 %v2286
    %v2354 = vpop.f32.mrb[0].mxu0
    %v2355 = vadd.f32 %v1347, %v2354
    %v2356 = vpop.f32.mrb[0].mxu0
    %2357 = vdwg.mxu0
    %v2358 = vsel %vm1586, %v2355, -inf
    %2359 = vmax.xlane.f32.xlu0 %v2358
    %v2360 = vpop.xlane.xlu0 %2359
    %v2361 = vsub.f32 %v2355, %v2360
    %v2362 = vmul.f32 %v2361, 1.442695
    %v2363 = vpow.pop %v2362
    %v2364 = vsel %vm1586, %v2363, 0.0
    %2365 = vadd.xlane.f32.xlu0 %v2364
    %v2366 = vpop.xlane.xlu0 %2365
    %v2367 = vrcp.pop %v2366
    %v2368 = vmul.f32 %v2363, %v2367
    %v2370 = vsel %vm1781, %v2368, 0
    %2372 = vmatprep.subr.mxu0 0.0
    %2373 = vmatpush1.msra.mxu0 %v1187
    %2374 = vmatprep.subr.mxu0 0.0
    %2375 = vmatpush1.msra.mxu0 0.0
    %2376 = vmatprep.subr.mxu0 0.0
    %2377 = vmatpush1.msra.mxu0 0.0
    %2378 = vmatprep.subr.mxu0 0.0
    %2379 = vmatpush1.msra.mxu0 0.0
    %2380 = vmatprep.subr.mxu0 0.0
    %2381 = vmatpush1.msra.mxu0 0.0
    %2382 = vmatprep.subr.mxu0 0.0
    %2383 = vmatpush1.msra.mxu0 0.0
    %2384 = vmatprep.subr.mxu0 0.0
    %2385 = vmatpush1.msra.mxu0 0.0
    %2386 = vmatprep.subr.mxu0 0.0
    %2387 = vmatpush1.msra.mxu0 0.0
    %2388 = vmatprep.subr.mxu0 0.0
    %2389 = vmatpush1.msra.mxu0 0.0
    %2390 = vmatprep.subr.mxu0 0.0
    %2391 = vmatpush1.msra.mxu0 0.0
    %2392 = vmatprep.subr.mxu0 0.0
    %2393 = vmatpush1.msra.mxu0 0.0
    %2394 = vmatprep.subr.mxu0 0.0
    %2395 = vmatpush1.msra.mxu0 0.0
    %2396 = vmatprep.subr.mxu0 0.0
    %2397 = vmatpush1.msra.mxu0 0.0
    %2398 = vmatprep.subr.mxu0 0.0
    %2399 = vmatpush1.msra.mxu0 0.0
    %2400 = vmatprep.subr.mxu0 0.0
    %2401 = vmatpush1.msra.mxu0 0.0
    %2402 = vmatprep.subr.mxu0 0.0
    %2403 = vmatpush1.msra.mxu0 0.0
    %2404 = vmatprep.subr.mxu0 0.0
    %2405 = vmatpush1.msra.mxu0 0.0
    %2406 = vmatprep.subr.mxu0 0.0
    %2407 = vmatpush1.msra.mxu0 0.0
    %2408 = vmatprep.subr.mxu0 0.0
    %2409 = vmatpush1.msra.mxu0 0.0
    %2410 = vmatprep.subr.mxu0 0.0
    %2411 = vmatpush1.msra.mxu0 0.0
    %2412 = vmatprep.subr.mxu0 0.0
    %2413 = vmatpush1.msra.mxu0 0.0
    %2414 = vmatprep.subr.mxu0 0.0
    %2415 = vmatpush1.msra.mxu0 0.0
    %2416 = vmatprep.subr.mxu0 0.0
    %2417 = vmatpush1.msra.mxu0 0.0
    %2418 = vmatprep.subr.mxu0 0.0
    %2419 = vmatpush1.msra.mxu0 0.0
    %2420 = vmatprep.subr.mxu0 0.0
    %2421 = vmatpush1.msra.mxu0 0.0
    %2422 = vmatprep.subr.mxu0 0.0
    %2423 = vmatpush1.msra.mxu0 0.0
    %2424 = vmatprep.subr.mxu0 0.0
    %2425 = vmatpush1.msra.mxu0 0.0
    %2426 = vmatprep.subr.mxu0 0.0
    %2427 = vmatpush1.msra.mxu0 0.0
    %2428 = vmatprep.subr.mxu0 0.0
    %2429 = vmatpush1.msra.mxu0 0.0
    %2430 = vmatprep.subr.mxu0 0.0
    %2431 = vmatpush1.msra.mxu0 0.0
    %2432 = vmatprep.subr.mxu0 0.0
    %2433 = vmatpush1.msra.mxu0 0.0
    %2434 = vmatprep.subr.mxu0 0.0
    %2435 = vmatpush1.msra.mxu0 0.0
    %2436 = vmatprep.mubr.f32.mxu0 0.0
    %2437 = vmatmul.mubr.f32.gmra.mrb[0].mxu0 %v2370
    %v2438 = vpop.f32.mrb[0].mxu0
    %v2439 = vadd.f32 0.0, %v2438
    %v2440 = vpop.f32.mrb[0].mxu0
    %2441 = vdwg.mxu0
    %vm2442 = vcmp.ne.f32.partialorder %v1367, %v2183
    %v2443 = vsel %vm2442, 1, 0
    %v2444 = vcvt.s32.f32 %v2443
    %v2445 = vmul.f32 %v2157, %v1864
    %v2447 = vlaneseq
    %v2448 = vshrl.u32 %v2447, 7
    %v2449 = vsub.s32 0, %v2448
    %v2450 = vrot.slane %v2444, %v2449
    %2451 = vrot.lane.b32.xlu0 %v2450, 16
    %v2452 = vpop.permute.xlu0 %2451
    %v2454 = vmul.f32 %v2445, %v2452
    %2456 = vrot.lane.b32.xlu0 %v2454, 112
    %v2457 = vpop.permute.xlu0 %2456
    %v2459 = vsel %vm1586, %v2457, 0.0
    %2460 = vadd.xlane.f32.xlu0 %v2459
    %v2461 = vpop.xlane.xlu0 %2460
    %vm2462 = vcmp.gt.f32.partialorder %v2461, 0.0
    %v2463 = vmax.f32 %v2461, 1e-30
    %v2464 = vrcp.pop %v2463
    %v2465 = vmul.f32 1.0, %v2464
    %v2466 = vsel %vm2462, %v2465, 1.0
    %v2467 = vmul.f32 %v2454, %v2466
    %2469 = vrot.lane.b32.xlu0 %v2467, 112
    %v2470 = vpop.permute.xlu0 %2469
    %v2471 = vsel %vm1781, %v2470, 0
    %2473 = vmatprep.subr.mxu0 0.0
    %2474 = vmatpush1.msra.mxu0 %v1187
    %2475 = vmatprep.subr.mxu0 0.0
    %2476 = vmatpush1.msra.mxu0 0.0
    %2477 = vmatprep.subr.mxu0 0.0
    %2478 = vmatpush1.msra.mxu0 0.0
    %2479 = vmatprep.subr.mxu0 0.0
    %2480 = vmatpush1.msra.mxu0 0.0
    %2481 = vmatprep.subr.mxu0 0.0
    %2482 = vmatpush1.msra.mxu0 0.0
    %2483 = vmatprep.subr.mxu0 0.0
    %2484 = vmatpush1.msra.mxu0 0.0
    %2485 = vmatprep.subr.mxu0 0.0
    %2486 = vmatpush1.msra.mxu0 0.0
    %2487 = vmatprep.subr.mxu0 0.0
    %2488 = vmatpush1.msra.mxu0 0.0
    %2489 = vmatprep.subr.mxu0 0.0
    %2490 = vmatpush1.msra.mxu0 0.0
    %2491 = vmatprep.subr.mxu0 0.0
    %2492 = vmatpush1.msra.mxu0 0.0
    %2493 = vmatprep.subr.mxu0 0.0
    %2494 = vmatpush1.msra.mxu0 0.0
    %2495 = vmatprep.subr.mxu0 0.0
    %2496 = vmatpush1.msra.mxu0 0.0
    %2497 = vmatprep.subr.mxu0 0.0
    %2498 = vmatpush1.msra.mxu0 0.0
    %2499 = vmatprep.subr.mxu0 0.0
    %2500 = vmatpush1.msra.mxu0 0.0
    %2501 = vmatprep.subr.mxu0 0.0
    %2502 = vmatpush1.msra.mxu0 0.0
    %2503 = vmatprep.subr.mxu0 0.0
    %2504 = vmatpush1.msra.mxu0 0.0
    %2505 = vmatprep.subr.mxu0 0.0
    %2506 = vmatpush1.msra.mxu0 0.0
    %2507 = vmatprep.subr.mxu0 0.0
    %2508 = vmatpush1.msra.mxu0 0.0
    %2509 = vmatprep.subr.mxu0 0.0
    %2510 = vmatpush1.msra.mxu0 0.0
    %2511 = vmatprep.subr.mxu0 0.0
    %2512 = vmatpush1.msra.mxu0 0.0
    %2513 = vmatprep.subr.mxu0 0.0
    %2514 = vmatpush1.msra.mxu0 0.0
    %2515 = vmatprep.subr.mxu0 0.0
    %2516 = vmatpush1.msra.mxu0 0.0
    %2517 = vmatprep.subr.mxu0 0.0
    %2518 = vmatpush1.msra.mxu0 0.0
    %2519 = vmatprep.subr.mxu0 0.0
    %2520 = vmatpush1.msra.mxu0 0.0
    %2521 = vmatprep.subr.mxu0 0.0
    %2522 = vmatpush1.msra.mxu0 0.0
    %2523 = vmatprep.subr.mxu0 0.0
    %2524 = vmatpush1.msra.mxu0 0.0
    %2525 = vmatprep.subr.mxu0 0.0
    %2526 = vmatpush1.msra.mxu0 0.0
    %2527 = vmatprep.subr.mxu0 0.0
    %2528 = vmatpush1.msra.mxu0 0.0
    %2529 = vmatprep.subr.mxu0 0.0
    %2530 = vmatpush1.msra.mxu0 0.0
    %2531 = vmatprep.subr.mxu0 0.0
    %2532 = vmatpush1.msra.mxu0 0.0
    %2533 = vmatprep.subr.mxu0 0.0
    %2534 = vmatpush1.msra.mxu0 0.0
    %2535 = vmatprep.subr.mxu0 0.0
    %2536 = vmatpush1.msra.mxu0 0.0
    %2537 = vmatprep.mubr.f32.mxu0 0.0
    %2538 = vmatmul.mubr.f32.gmra.mrb[0].mxu0 %v2471
    %v2539 = vpop.f32.mrb[0].mxu0
    %v2540 = vadd.f32 0.0, %v2539
    %v2541 = vpop.f32.mrb[0].mxu0
    %2542 = vdwg.mxu0
    %2544 = vrot.lane.b32.xlu0 %v2540, 32
    %v2545 = vpop.permute.xlu0 %2544
    %2548 = vrot.lane.b32.xlu0 %v2439, 64
    %v2549 = vpop.permute.xlu0 %2548
    %v2551 = vsel %vm78, %v2278, %v2545
    %v2552 = vsel %vm1376, %v2551, %v2549
    %v2553 = vsel %vm1378, %v2552, %v2068
    %2554 = vmatprep.subr.mxu0 0.0
    %2555 = vmatpush1.msra.mxu0 %v1348
    %2556 = vmatprep.subr.mxu0 0.0
    %2557 = vmatpush1.msra.mxu0 %v1349
    %2558 = vmatprep.subr.mxu0 0.0
    %2559 = vmatpush1.msra.mxu0 %v1350
    %2560 = vmatprep.subr.mxu0 0.0
    %2561 = vmatpush1.msra.mxu0 %v1351
    %2562 = vmatprep.subr.mxu0 0.0
    %2563 = vmatpush1.msra.mxu0 %v1352
    %2564 = vmatprep.subr.mxu0 0.0
    %2565 = vmatpush1.msra.mxu0 %v1353
    %2566 = vmatprep.subr.mxu0 0.0
    %2567 = vmatpush1.msra.mxu0 %v1354
    %2568 = vmatprep.subr.mxu0 0.0
    %2569 = vmatpush1.msra.mxu0 %v1355
    %2570 = vmatprep.subr.mxu0 0.0
    %2571 = vmatpush1.msra.mxu0 %v1356
    %2572 = vmatprep.subr.mxu0 0.0
    %2573 = vmatpush1.msra.mxu0 %v1357
    %2574 = vmatprep.subr.mxu0 0.0
    %2575 = vmatpush1.msra.mxu0 %v1358
    %2576 = vmatprep.subr.mxu0 0.0
    %2577 = vmatpush1.msra.mxu0 %v1359
    %2578 = vmatprep.subr.mxu0 0.0
    %2579 = vmatpush1.msra.mxu0 %v1360
    %2580 = vmatprep.subr.mxu0 0.0
    %2581 = vmatpush1.msra.mxu0 %v1361
    %2582 = vmatprep.subr.mxu0 0.0
    %2583 = vmatpush1.msra.mxu0 %v1362
    %2584 = vmatprep.subr.mxu0 0.0
    %2585 = vmatpush1.msra.mxu0 %v1363
    %2586 = vmatprep.subr.mxu0 0.0
    %2587 = vmatpush1.msra.mxu0 0.0
    %2588 = vmatprep.subr.mxu0 0.0
    %2589 = vmatpush1.msra.mxu0 0.0
    %2590 = vmatprep.subr.mxu0 0.0
    %2591 = vmatpush1.msra.mxu0 0.0
    %2592 = vmatprep.subr.mxu0 0.0
    %2593 = vmatpush1.msra.mxu0 0.0
    %2594 = vmatprep.subr.mxu0 0.0
    %2595 = vmatpush1.msra.mxu0 0.0
    %2596 = vmatprep.subr.mxu0 0.0
    %2597 = vmatpush1.msra.mxu0 0.0
    %2598 = vmatprep.subr.mxu0 0.0
    %2599 = vmatpush1.msra.mxu0 0.0
    %2600 = vmatprep.subr.mxu0 0.0
    %2601 = vmatpush1.msra.mxu0 0.0
    %2602 = vmatprep.subr.mxu0 0.0
    %2603 = vmatpush1.msra.mxu0 0.0
    %2604 = vmatprep.subr.mxu0 0.0
    %2605 = vmatpush1.msra.mxu0 0.0
    %2606 = vmatprep.subr.mxu0 0.0
    %2607 = vmatpush1.msra.mxu0 0.0
    %2608 = vmatprep.subr.mxu0 0.0
    %2609 = vmatpush1.msra.mxu0 0.0
    %2610 = vmatprep.subr.mxu0 0.0
    %2611 = vmatpush1.msra.mxu0 0.0
    %2612 = vmatprep.subr.mxu0 0.0
    %2613 = vmatpush1.msra.mxu0 0.0
    %2614 = vmatprep.subr.mxu0 0.0
    %2615 = vmatpush1.msra.mxu0 0.0
    %2616 = vmatprep.subr.mxu0 0.0
    %2617 = vmatpush1.msra.mxu0 0.0
    %2618 = vmatprep.mubr.f32.mxu0 0.0
    %2619 = vmatmul.mubr.f32.gmra.mrb[0].mxu0 %v2553
    %v2620 = vpop.f32.mrb[0].mxu0
    %v2621 = vadd.f32 %v1364, %v2620
    %v2622 = vpop.f32.mrb[0].mxu0
    %2623 = vdwg.mxu0
    %v2624 = vxor.u32 %v2621, 2147483648
    %v2625 = vmul.f32 %v2624, 1.442695
    %v2626 = vpow.pop %v2625
    %v2627 = vadd.f32 %v2626, 1.0
    %v2628 = vrcp.pop %v2627
    %v2629 = vmul.f32 1.0, %v2628
    %v2630 = vtanh.pop %v2621
    %v2631 = vmul.f32 %v2629, %v2062
    %2633 = vrot.lane.b32.xlu0 %v2630, 64
    %v2634 = vpop.permute.xlu0 %2633
    %v2636 = vmul.f32 %v2629, %v2634
    %2638 = vrot.lane.b32.xlu0 %v2636, 32
    %v2639 = vpop.permute.xlu0 %2638
    %v2641 = vadd.f32 %v2631, %v2639
    %v2642 = vtanh.pop %v2641
    %2644 = vrot.lane.b32.xlu0 %v2642, 64
    %v2645 = vpop.permute.xlu0 %2644
    %v2647 = vmul.f32 %v2629, %v2645
    %2649 = vrot.lane.b32.xlu0 %v2647, 32
    %v2650 = vpop.permute.xlu0 %2649
    %v2652 = vsel %vm78, %v2650, 0.0
    %2653 = vst [vmem:[#allocation3 + $0x3] sm:$0x1] %v2652
    %v2654 = vsel %vm78, %v2650, 0
    %2656 = vmatprep.subr.mxu0 0.0
    %2657 = vmatpush1.msra.mxu0 %v1332
    %2658 = vmatprep.subr.mxu0 0.0
    %2659 = vmatpush1.msra.mxu0 %v1333
    %2660 = vmatprep.subr.mxu0 0.0
    %2661 = vmatpush1.msra.mxu0 %v1334
    %2662 = vmatprep.subr.mxu0 0.0
    %2663 = vmatpush1.msra.mxu0 %v1335
    %2664 = vmatprep.subr.mxu0 0.0
    %2665 = vmatpush1.msra.mxu0 0.0
    %2666 = vmatprep.subr.mxu0 0.0
    %2667 = vmatpush1.msra.mxu0 0.0
    %2668 = vmatprep.subr.mxu0 0.0
    %2669 = vmatpush1.msra.mxu0 0.0
    %2670 = vmatprep.subr.mxu0 0.0
    %2671 = vmatpush1.msra.mxu0 0.0
    %2672 = vmatprep.subr.mxu0 0.0
    %2673 = vmatpush1.msra.mxu0 0.0
    %2674 = vmatprep.subr.mxu0 0.0
    %2675 = vmatpush1.msra.mxu0 0.0
    %2676 = vmatprep.subr.mxu0 0.0
    %2677 = vmatpush1.msra.mxu0 0.0
    %2678 = vmatprep.subr.mxu0 0.0
    %2679 = vmatpush1.msra.mxu0 0.0
    %2680 = vmatprep.subr.mxu0 0.0
    %2681 = vmatpush1.msra.mxu0 0.0
    %2682 = vmatprep.subr.mxu0 0.0
    %2683 = vmatpush1.msra.mxu0 0.0
    %2684 = vmatprep.subr.mxu0 0.0
    %2685 = vmatpush1.msra.mxu0 0.0
    %2686 = vmatprep.subr.mxu0 0.0
    %2687 = vmatpush1.msra.mxu0 0.0
    %2688 = vmatprep.subr.mxu0 0.0
    %2689 = vmatpush1.msra.mxu0 0.0
    %2690 = vmatprep.subr.mxu0 0.0
    %2691 = vmatpush1.msra.mxu0 0.0
    %2692 = vmatprep.subr.mxu0 0.0
    %2693 = vmatpush1.msra.mxu0 0.0
    %2694 = vmatprep.subr.mxu0 0.0
    %2695 = vmatpush1.msra.mxu0 0.0
    %2696 = vmatprep.subr.mxu0 0.0
    %2697 = vmatpush1.msra.mxu0 0.0
    %2698 = vmatprep.subr.mxu0 0.0
    %2699 = vmatpush1.msra.mxu0 0.0
    %2700 = vmatprep.subr.mxu0 0.0
    %2701 = vmatpush1.msra.mxu0 0.0
    %2702 = vmatprep.subr.mxu0 0.0
    %2703 = vmatpush1.msra.mxu0 0.0
    %2704 = vmatprep.subr.mxu0 0.0
    %2705 = vmatpush1.msra.mxu0 0.0
    %2706 = vmatprep.subr.mxu0 0.0
    %2707 = vmatpush1.msra.mxu0 0.0
    %2708 = vmatprep.subr.mxu0 0.0
    %2709 = vmatpush1.msra.mxu0 0.0
    %2710 = vmatprep.subr.mxu0 0.0
    %2711 = vmatpush1.msra.mxu0 0.0
    %2712 = vmatprep.subr.mxu0 0.0
    %2713 = vmatpush1.msra.mxu0 0.0
    %2714 = vmatprep.subr.mxu0 0.0
    %2715 = vmatpush1.msra.mxu0 0.0
    %2716 = vmatprep.subr.mxu0 0.0
    %2717 = vmatpush1.msra.mxu0 0.0
    %2718 = vmatprep.subr.mxu0 0.0
    %2719 = vmatpush1.msra.mxu0 0.0
    %2720 = vmatprep.mubr.f32.mxu0 0.0
    %2721 = vmatmul.mubr.f32.gmra.mrb[0].mxu0 %v2654
    %v2722 = vpop.f32.mrb[0].mxu0
    %v2723 = vadd.f32 %v1337, %v2722
    %v2724 = vpop.f32.mrb[0].mxu0
    %2725 = vdwg.mxu0
    %v2726 = vsel %vm1555, %v2723, -inf
    %2727 = vmax.xlane.f32.xlu0 %v2726
    %v2728 = vpop.xlane.xlu0 %2727
    %v2729 = vsub.f32 %v2723, %v2728
    %v2730 = vmul.f32 %v2729, 1.442695
    %v2731 = vpow.pop %v2730
    %v2732 = vsel %vm1555, %v2731, 0.0
    %2733 = vadd.xlane.f32.xlu0 %v2732
    %v2734 = vpop.xlane.xlu0 %2733
    %v2735 = vrcp.pop %v2734
    %v2736 = vmul.f32 %v2731, %v2735
    %v2737 = vmul.f32 %v2736, %v1338
    %vm2738 = vcmp.gt.f32.partialorder %v2737, 0.0
    %v2739 = vmax.f32 %v2737, 1e-30
    %v2740 = vlog2.pop %v2739
    %v2741 = vmul.f32 %v2740, 0.6931472
    %v2742 = vsel %vm2738, %v2741, -1e+30
    %v2743 = vrot.slane %v1369, 2
    %v2745 = vadd.f32 %v2742, %v2743
    %v2746 = vsel %vm1555, %v2745, -inf
    %2747 = vmax.xlane.f32.xlu0 %v2746
    %v2748 = vpop.xlane.xlu0 %2747
    %vm2749 = vcmp.ge.f32.partialorder %v2745, %v2748
    %v2750 = vsel %vm2749, %v1372, 24.0
    %v2751 = vsel %vm1555, %v2750, inf
    %2752 = vmin.xlane.f32.xlu0 %v2751
    %v2753 = vpop.xlane.xlu0 %2752
    %vm2754 = vcmp.ge.f32.partialorder %v2753, 16.0
    %v2755 = vsub.f32 %v2753, 16.0
    %vm2756 = vcmp.eq.f32.partialorder %v1372, %v2755
    %v2757 = vsel %vm2756, %v1367, 0.0
    %v2758 = vsel %vm1586, %v2757, 0.0
    %2759 = vadd.xlane.f32.xlu0 %v2758
    %v2760 = vpop.xlane.xlu0 %2759
    %v2761 = vsel %vm2754, %v2760, %v2753
    %vm2762 = vcmp.eq.f32.partialorder %v1372, %v2753
    %v2763 = vsel %vm2762, %v2737, 0.0
    %v2764 = vsel %vm1555, %v2763, 0.0
    %2765 = vadd.xlane.f32.xlu0 %v2764
    %v2766 = vpop.xlane.xlu0 %2765
    %vm2767 = vcmp.eq.f32.partialorder %v1372, %v2761
    %v2768 = vsel %vm2767, %v2737, 0.0
    %v2769 = vsel %vm1598, %v2768, 0.0
    %2770 = vadd.xlane.f32.xlu0 %v2769
    %v2771 = vpop.xlane.xlu0 %2770
    %v2772 = vadd.f32 %v2766, %v2771
    %v2773 = vsel %vm2754, %v2772, %v2766
    %v2774 = vsel %vm1604, %v2761, 0.0
    %v2775 = vsel %vm1606, %v2773, 0.0
    %v2776 = vadd.f32 %v2774, %v2775
    %v2777 = vsel %vm1609, %v2753, 0.0
    %v2778 = vadd.f32 %v2776, %v2777
    %v2779 = vsel %vm2754, 1, 0
    %v2780 = vcvt.s32.f32 %v2779
    %v2781 = vsel %vm1612, %v2780, 0.0
    %v2782 = vadd.f32 %v2778, %v2781
    %2783 = vst [vmem:[#allocation5 + $0x2] sm:$0x1] %v2782
    %v2784 = vsel %vm2767, 1, 0
    %v2785 = vcvt.s32.f32 %v2784
    %v2787 = vsel %vm1331, %v2785, 0
    %2789 = vmatprep.subr.mxu0 0.0
    %2790 = vmatpush1.msra.mxu0 %v1365
    %2791 = vmatprep.subr.mxu0 0.0
    %2792 = vmatpush1.msra.mxu0 %v1366
    %2793 = vmatprep.subr.mxu0 0.0
    %2794 = vmatpush1.msra.mxu0 0.0
    %2795 = vmatprep.subr.mxu0 0.0
    %2796 = vmatpush1.msra.mxu0 0.0
    %2797 = vmatprep.subr.mxu0 0.0
    %2798 = vmatpush1.msra.mxu0 0.0
    %2799 = vmatprep.subr.mxu0 0.0
    %2800 = vmatpush1.msra.mxu0 0.0
    %2801 = vmatprep.subr.mxu0 0.0
    %2802 = vmatpush1.msra.mxu0 0.0
    %2803 = vmatprep.subr.mxu0 0.0
    %2804 = vmatpush1.msra.mxu0 0.0
    %2805 = vmatprep.subr.mxu0 0.0
    %2806 = vmatpush1.msra.mxu0 0.0
    %2807 = vmatprep.subr.mxu0 0.0
    %2808 = vmatpush1.msra.mxu0 0.0
    %2809 = vmatprep.subr.mxu0 0.0
    %2810 = vmatpush1.msra.mxu0 0.0
    %2811 = vmatprep.subr.mxu0 0.0
    %2812 = vmatpush1.msra.mxu0 0.0
    %2813 = vmatprep.subr.mxu0 0.0
    %2814 = vmatpush1.msra.mxu0 0.0
    %2815 = vmatprep.subr.mxu0 0.0
    %2816 = vmatpush1.msra.mxu0 0.0
    %2817 = vmatprep.subr.mxu0 0.0
    %2818 = vmatpush1.msra.mxu0 0.0
    %2819 = vmatprep.subr.mxu0 0.0
    %2820 = vmatpush1.msra.mxu0 0.0
    %2821 = vmatprep.subr.mxu0 0.0
    %2822 = vmatpush1.msra.mxu0 0.0
    %2823 = vmatprep.subr.mxu0 0.0
    %2824 = vmatpush1.msra.mxu0 0.0
    %2825 = vmatprep.subr.mxu0 0.0
    %2826 = vmatpush1.msra.mxu0 0.0
    %2827 = vmatprep.subr.mxu0 0.0
    %2828 = vmatpush1.msra.mxu0 0.0
    %2829 = vmatprep.subr.mxu0 0.0
    %2830 = vmatpush1.msra.mxu0 0.0
    %2831 = vmatprep.subr.mxu0 0.0
    %2832 = vmatpush1.msra.mxu0 0.0
    %2833 = vmatprep.subr.mxu0 0.0
    %2834 = vmatpush1.msra.mxu0 0.0
    %2835 = vmatprep.subr.mxu0 0.0
    %2836 = vmatpush1.msra.mxu0 0.0
    %2837 = vmatprep.subr.mxu0 0.0
    %2838 = vmatpush1.msra.mxu0 0.0
    %2839 = vmatprep.subr.mxu0 0.0
    %2840 = vmatpush1.msra.mxu0 0.0
    %2841 = vmatprep.subr.mxu0 0.0
    %2842 = vmatpush1.msra.mxu0 0.0
    %2843 = vmatprep.subr.mxu0 0.0
    %2844 = vmatpush1.msra.mxu0 0.0
    %2845 = vmatprep.subr.mxu0 0.0
    %2846 = vmatpush1.msra.mxu0 0.0
    %2847 = vmatprep.subr.mxu0 0.0
    %2848 = vmatpush1.msra.mxu0 0.0
    %2849 = vmatprep.subr.mxu0 0.0
    %2850 = vmatpush1.msra.mxu0 0.0
    %2851 = vmatprep.subr.mxu0 0.0
    %2852 = vmatpush1.msra.mxu0 0.0
    %2853 = vmatprep.mubr.f32.mxu0 0.0
    %2854 = vmatmul.mubr.f32.gmra.mrb[0].mxu0 %v2787
    %v2855 = vpop.f32.mrb[0].mxu0
    %v2856 = vadd.f32 0.0, %v2855
    %v2857 = vpop.f32.mrb[0].mxu0
    %2858 = vdwg.mxu0
    %2859 = vrot.lane.b32.xlu0 %v2647, 64
    %v2860 = vpop.permute.xlu0 %2859
    %v2862 = vsel %vm78, %v2856, %v2860
    %v2864 = vsel %vm1376, %v2862, 0
    %2866 = vmatprep.subr.mxu0 0.0
    %2867 = vmatpush1.msra.mxu0 %v1339
    %2868 = vmatprep.subr.mxu0 0.0
    %2869 = vmatpush1.msra.mxu0 %v1340
    %2870 = vmatprep.subr.mxu0 0.0
    %2871 = vmatpush1.msra.mxu0 %v1341
    %2872 = vmatprep.subr.mxu0 0.0
    %2873 = vmatpush1.msra.mxu0 %v1342
    %2874 = vmatprep.subr.mxu0 0.0
    %2875 = vmatpush1.msra.mxu0 %v1343
    %2876 = vmatprep.subr.mxu0 0.0
    %2877 = vmatpush1.msra.mxu0 %v1344
    %2878 = vmatprep.subr.mxu0 0.0
    %2879 = vmatpush1.msra.mxu0 %v1345
    %2880 = vmatprep.subr.mxu0 0.0
    %2881 = vmatpush1.msra.mxu0 %v1346
    %2882 = vmatprep.subr.mxu0 0.0
    %2883 = vmatpush1.msra.mxu0 0.0
    %2884 = vmatprep.subr.mxu0 0.0
    %2885 = vmatpush1.msra.mxu0 0.0
    %2886 = vmatprep.subr.mxu0 0.0
    %2887 = vmatpush1.msra.mxu0 0.0
    %2888 = vmatprep.subr.mxu0 0.0
    %2889 = vmatpush1.msra.mxu0 0.0
    %2890 = vmatprep.subr.mxu0 0.0
    %2891 = vmatpush1.msra.mxu0 0.0
    %2892 = vmatprep.subr.mxu0 0.0
    %2893 = vmatpush1.msra.mxu0 0.0
    %2894 = vmatprep.subr.mxu0 0.0
    %2895 = vmatpush1.msra.mxu0 0.0
    %2896 = vmatprep.subr.mxu0 0.0
    %2897 = vmatpush1.msra.mxu0 0.0
    %2898 = vmatprep.subr.mxu0 0.0
    %2899 = vmatpush1.msra.mxu0 0.0
    %2900 = vmatprep.subr.mxu0 0.0
    %2901 = vmatpush1.msra.mxu0 0.0
    %2902 = vmatprep.subr.mxu0 0.0
    %2903 = vmatpush1.msra.mxu0 0.0
    %2904 = vmatprep.subr.mxu0 0.0
    %2905 = vmatpush1.msra.mxu0 0.0
    %2906 = vmatprep.subr.mxu0 0.0
    %2907 = vmatpush1.msra.mxu0 0.0
    %2908 = vmatprep.subr.mxu0 0.0
    %2909 = vmatpush1.msra.mxu0 0.0
    %2910 = vmatprep.subr.mxu0 0.0
    %2911 = vmatpush1.msra.mxu0 0.0
    %2912 = vmatprep.subr.mxu0 0.0
    %2913 = vmatpush1.msra.mxu0 0.0
    %2914 = vmatprep.subr.mxu0 0.0
    %2915 = vmatpush1.msra.mxu0 0.0
    %2916 = vmatprep.subr.mxu0 0.0
    %2917 = vmatpush1.msra.mxu0 0.0
    %2918 = vmatprep.subr.mxu0 0.0
    %2919 = vmatpush1.msra.mxu0 0.0
    %2920 = vmatprep.subr.mxu0 0.0
    %2921 = vmatpush1.msra.mxu0 0.0
    %2922 = vmatprep.subr.mxu0 0.0
    %2923 = vmatpush1.msra.mxu0 0.0
    %2924 = vmatprep.subr.mxu0 0.0
    %2925 = vmatpush1.msra.mxu0 0.0
    %2926 = vmatprep.subr.mxu0 0.0
    %2927 = vmatpush1.msra.mxu0 0.0
    %2928 = vmatprep.subr.mxu0 0.0
    %2929 = vmatpush1.msra.mxu0 0.0
    %2930 = vmatprep.mubr.f32.mxu0 0.0
    %2931 = vmatmul.mubr.f32.gmra.mrb[0].mxu0 %v2864
    %v2932 = vpop.f32.mrb[0].mxu0
    %v2933 = vadd.f32 %v1347, %v2932
    %v2934 = vpop.f32.mrb[0].mxu0
    %2935 = vdwg.mxu0
    %v2936 = vsel %vm1586, %v2933, -inf
    %2937 = vmax.xlane.f32.xlu0 %v2936
    %v2938 = vpop.xlane.xlu0 %2937
    %v2939 = vsub.f32 %v2933, %v2938
    %v2940 = vmul.f32 %v2939, 1.442695
    %v2941 = vpow.pop %v2940
    %v2942 = vsel %vm1586, %v2941, 0.0
    %2943 = vadd.xlane.f32.xlu0 %v2942
    %v2944 = vpop.xlane.xlu0 %2943
    %v2945 = vrcp.pop %v2944
    %v2946 = vmul.f32 %v2941, %v2945
    %v2948 = vsel %vm1781, %v2946, 0
    %2950 = vmatprep.subr.mxu0 0.0
    %2951 = vmatpush1.msra.mxu0 %v1187
    %2952 = vmatprep.subr.mxu0 0.0
    %2953 = vmatpush1.msra.mxu0 0.0
    %2954 = vmatprep.subr.mxu0 0.0
    %2955 = vmatpush1.msra.mxu0 0.0
    %2956 = vmatprep.subr.mxu0 0.0
    %2957 = vmatpush1.msra.mxu0 0.0
    %2958 = vmatprep.subr.mxu0 0.0
    %2959 = vmatpush1.msra.mxu0 0.0
    %2960 = vmatprep.subr.mxu0 0.0
    %2961 = vmatpush1.msra.mxu0 0.0
    %2962 = vmatprep.subr.mxu0 0.0
    %2963 = vmatpush1.msra.mxu0 0.0
    %2964 = vmatprep.subr.mxu0 0.0
    %2965 = vmatpush1.msra.mxu0 0.0
    %2966 = vmatprep.subr.mxu0 0.0
    %2967 = vmatpush1.msra.mxu0 0.0
    %2968 = vmatprep.subr.mxu0 0.0
    %2969 = vmatpush1.msra.mxu0 0.0
    %2970 = vmatprep.subr.mxu0 0.0
    %2971 = vmatpush1.msra.mxu0 0.0
    %2972 = vmatprep.subr.mxu0 0.0
    %2973 = vmatpush1.msra.mxu0 0.0
    %2974 = vmatprep.subr.mxu0 0.0
    %2975 = vmatpush1.msra.mxu0 0.0
    %2976 = vmatprep.subr.mxu0 0.0
    %2977 = vmatpush1.msra.mxu0 0.0
    %2978 = vmatprep.subr.mxu0 0.0
    %2979 = vmatpush1.msra.mxu0 0.0
    %2980 = vmatprep.subr.mxu0 0.0
    %2981 = vmatpush1.msra.mxu0 0.0
    %2982 = vmatprep.subr.mxu0 0.0
    %2983 = vmatpush1.msra.mxu0 0.0
    %2984 = vmatprep.subr.mxu0 0.0
    %2985 = vmatpush1.msra.mxu0 0.0
    %2986 = vmatprep.subr.mxu0 0.0
    %2987 = vmatpush1.msra.mxu0 0.0
    %2988 = vmatprep.subr.mxu0 0.0
    %2989 = vmatpush1.msra.mxu0 0.0
    %2990 = vmatprep.subr.mxu0 0.0
    %2991 = vmatpush1.msra.mxu0 0.0
    %2992 = vmatprep.subr.mxu0 0.0
    %2993 = vmatpush1.msra.mxu0 0.0
    %2994 = vmatprep.subr.mxu0 0.0
    %2995 = vmatpush1.msra.mxu0 0.0
    %2996 = vmatprep.subr.mxu0 0.0
    %2997 = vmatpush1.msra.mxu0 0.0
    %2998 = vmatprep.subr.mxu0 0.0
    %2999 = vmatpush1.msra.mxu0 0.0
    %3000 = vmatprep.subr.mxu0 0.0
    %3001 = vmatpush1.msra.mxu0 0.0
    %3002 = vmatprep.subr.mxu0 0.0
    %3003 = vmatpush1.msra.mxu0 0.0
    %3004 = vmatprep.subr.mxu0 0.0
    %3005 = vmatpush1.msra.mxu0 0.0
    %3006 = vmatprep.subr.mxu0 0.0
    %3007 = vmatpush1.msra.mxu0 0.0
    %3008 = vmatprep.subr.mxu0 0.0
    %3009 = vmatpush1.msra.mxu0 0.0
    %3010 = vmatprep.subr.mxu0 0.0
    %3011 = vmatpush1.msra.mxu0 0.0
    %3012 = vmatprep.subr.mxu0 0.0
    %3013 = vmatpush1.msra.mxu0 0.0
    %3014 = vmatprep.mubr.f32.mxu0 0.0
    %3015 = vmatmul.mubr.f32.gmra.mrb[0].mxu0 %v2948
    %v3016 = vpop.f32.mrb[0].mxu0
    %v3017 = vadd.f32 0.0, %v3016
    %v3018 = vpop.f32.mrb[0].mxu0
    %3019 = vdwg.mxu0
    %vm3020 = vcmp.ne.f32.partialorder %v1367, %v2761
    %v3021 = vsel %vm3020, 1, 0
    %v3022 = vcvt.s32.f32 %v3021
    %v3023 = vmul.f32 %v2736, %v1864
    %v3025 = vlaneseq
    %v3026 = vshrl.u32 %v3025, 7
    %v3027 = vsub.s32 0, %v3026
    %v3028 = vrot.slane %v3022, %v3027
    %3029 = vrot.lane.b32.xlu0 %v3028, 16
    %v3030 = vpop.permute.xlu0 %3029
    %v3032 = vmul.f32 %v3023, %v3030
    %3034 = vrot.lane.b32.xlu0 %v3032, 112
    %v3035 = vpop.permute.xlu0 %3034
    %v3037 = vsel %vm1586, %v3035, 0.0
    %3038 = vadd.xlane.f32.xlu0 %v3037
    %v3039 = vpop.xlane.xlu0 %3038
    %vm3040 = vcmp.gt.f32.partialorder %v3039, 0.0
    %v3041 = vmax.f32 %v3039, 1e-30
    %v3042 = vrcp.pop %v3041
    %v3043 = vmul.f32 1.0, %v3042
    %v3044 = vsel %vm3040, %v3043, 1.0
    %v3045 = vmul.f32 %v3032, %v3044
    %3047 = vrot.lane.b32.xlu0 %v3045, 112
    %v3048 = vpop.permute.xlu0 %3047
    %v3049 = vsel %vm1781, %v3048, 0
    %3051 = vmatprep.subr.mxu0 0.0
    %3052 = vmatpush1.msra.mxu0 %v1187
    %3053 = vmatprep.subr.mxu0 0.0
    %3054 = vmatpush1.msra.mxu0 0.0
    %3055 = vmatprep.subr.mxu0 0.0
    %3056 = vmatpush1.msra.mxu0 0.0
    %3057 = vmatprep.subr.mxu0 0.0
    %3058 = vmatpush1.msra.mxu0 0.0
    %3059 = vmatprep.subr.mxu0 0.0
    %3060 = vmatpush1.msra.mxu0 0.0
    %3061 = vmatprep.subr.mxu0 0.0
    %3062 = vmatpush1.msra.mxu0 0.0
    %3063 = vmatprep.subr.mxu0 0.0
    %3064 = vmatpush1.msra.mxu0 0.0
    %3065 = vmatprep.subr.mxu0 0.0
    %3066 = vmatpush1.msra.mxu0 0.0
    %3067 = vmatprep.subr.mxu0 0.0
    %3068 = vmatpush1.msra.mxu0 0.0
    %3069 = vmatprep.subr.mxu0 0.0
    %3070 = vmatpush1.msra.mxu0 0.0
    %3071 = vmatprep.subr.mxu0 0.0
    %3072 = vmatpush1.msra.mxu0 0.0
    %3073 = vmatprep.subr.mxu0 0.0
    %3074 = vmatpush1.msra.mxu0 0.0
    %3075 = vmatprep.subr.mxu0 0.0
    %3076 = vmatpush1.msra.mxu0 0.0
    %3077 = vmatprep.subr.mxu0 0.0
    %3078 = vmatpush1.msra.mxu0 0.0
    %3079 = vmatprep.subr.mxu0 0.0
    %3080 = vmatpush1.msra.mxu0 0.0
    %3081 = vmatprep.subr.mxu0 0.0
    %3082 = vmatpush1.msra.mxu0 0.0
    %3083 = vmatprep.subr.mxu0 0.0
    %3084 = vmatpush1.msra.mxu0 0.0
    %3085 = vmatprep.subr.mxu0 0.0
    %3086 = vmatpush1.msra.mxu0 0.0
    %3087 = vmatprep.subr.mxu0 0.0
    %3088 = vmatpush1.msra.mxu0 0.0
    %3089 = vmatprep.subr.mxu0 0.0
    %3090 = vmatpush1.msra.mxu0 0.0
    %3091 = vmatprep.subr.mxu0 0.0
    %3092 = vmatpush1.msra.mxu0 0.0
    %3093 = vmatprep.subr.mxu0 0.0
    %3094 = vmatpush1.msra.mxu0 0.0
    %3095 = vmatprep.subr.mxu0 0.0
    %3096 = vmatpush1.msra.mxu0 0.0
    %3097 = vmatprep.subr.mxu0 0.0
    %3098 = vmatpush1.msra.mxu0 0.0
    %3099 = vmatprep.subr.mxu0 0.0
    %3100 = vmatpush1.msra.mxu0 0.0
    %3101 = vmatprep.subr.mxu0 0.0
    %3102 = vmatpush1.msra.mxu0 0.0
    %3103 = vmatprep.subr.mxu0 0.0
    %3104 = vmatpush1.msra.mxu0 0.0
    %3105 = vmatprep.subr.mxu0 0.0
    %3106 = vmatpush1.msra.mxu0 0.0
    %3107 = vmatprep.subr.mxu0 0.0
    %3108 = vmatpush1.msra.mxu0 0.0
    %3109 = vmatprep.subr.mxu0 0.0
    %3110 = vmatpush1.msra.mxu0 0.0
    %3111 = vmatprep.subr.mxu0 0.0
    %3112 = vmatpush1.msra.mxu0 0.0
    %3113 = vmatprep.subr.mxu0 0.0
    %3114 = vmatpush1.msra.mxu0 0.0
    %3115 = vmatprep.mubr.f32.mxu0 0.0
    %3116 = vmatmul.mubr.f32.gmra.mrb[0].mxu0 %v3049
    %v3117 = vpop.f32.mrb[0].mxu0
    %v3118 = vadd.f32 0.0, %v3117
    %v3119 = vpop.f32.mrb[0].mxu0
    %3120 = vdwg.mxu0
    %3122 = vrot.lane.b32.xlu0 %v3118, 32
    %v3123 = vpop.permute.xlu0 %3122
    %3126 = vrot.lane.b32.xlu0 %v3017, 64
    %v3127 = vpop.permute.xlu0 %3126
    %v3129 = vsel %vm78, %v2856, %v3123
    %v3130 = vsel %vm1376, %v3129, %v3127
    %v3131 = vsel %vm1378, %v3130, %v2647
    %3132 = vmatprep.subr.mxu0 0.0
    %3133 = vmatpush1.msra.mxu0 %v1348
    %3134 = vmatprep.subr.mxu0 0.0
    %3135 = vmatpush1.msra.mxu0 %v1349
    %3136 = vmatprep.subr.mxu0 0.0
    %3137 = vmatpush1.msra.mxu0 %v1350
    %3138 = vmatprep.subr.mxu0 0.0
    %3139 = vmatpush1.msra.mxu0 %v1351
    %3140 = vmatprep.subr.mxu0 0.0
    %3141 = vmatpush1.msra.mxu0 %v1352
    %3142 = vmatprep.subr.mxu0 0.0
    %3143 = vmatpush1.msra.mxu0 %v1353
    %3144 = vmatprep.subr.mxu0 0.0
    %3145 = vmatpush1.msra.mxu0 %v1354
    %3146 = vmatprep.subr.mxu0 0.0
    %3147 = vmatpush1.msra.mxu0 %v1355
    %3148 = vmatprep.subr.mxu0 0.0
    %3149 = vmatpush1.msra.mxu0 %v1356
    %3150 = vmatprep.subr.mxu0 0.0
    %3151 = vmatpush1.msra.mxu0 %v1357
    %3152 = vmatprep.subr.mxu0 0.0
    %3153 = vmatpush1.msra.mxu0 %v1358
    %3154 = vmatprep.subr.mxu0 0.0
    %3155 = vmatpush1.msra.mxu0 %v1359
    %3156 = vmatprep.subr.mxu0 0.0
    %3157 = vmatpush1.msra.mxu0 %v1360
    %3158 = vmatprep.subr.mxu0 0.0
    %3159 = vmatpush1.msra.mxu0 %v1361
    %3160 = vmatprep.subr.mxu0 0.0
    %3161 = vmatpush1.msra.mxu0 %v1362
    %3162 = vmatprep.subr.mxu0 0.0
    %3163 = vmatpush1.msra.mxu0 %v1363
    %3164 = vmatprep.subr.mxu0 0.0
    %3165 = vmatpush1.msra.mxu0 0.0
    %3166 = vmatprep.subr.mxu0 0.0
    %3167 = vmatpush1.msra.mxu0 0.0
    %3168 = vmatprep.subr.mxu0 0.0
    %3169 = vmatpush1.msra.mxu0 0.0
    %3170 = vmatprep.subr.mxu0 0.0
    %3171 = vmatpush1.msra.mxu0 0.0
    %3172 = vmatprep.subr.mxu0 0.0
    %3173 = vmatpush1.msra.mxu0 0.0
    %3174 = vmatprep.subr.mxu0 0.0
    %3175 = vmatpush1.msra.mxu0 0.0
    %3176 = vmatprep.subr.mxu0 0.0
    %3177 = vmatpush1.msra.mxu0 0.0
    %3178 = vmatprep.subr.mxu0 0.0
    %3179 = vmatpush1.msra.mxu0 0.0
    %3180 = vmatprep.subr.mxu0 0.0
    %3181 = vmatpush1.msra.mxu0 0.0
    %3182 = vmatprep.subr.mxu0 0.0
    %3183 = vmatpush1.msra.mxu0 0.0
    %3184 = vmatprep.subr.mxu0 0.0
    %3185 = vmatpush1.msra.mxu0 0.0
    %3186 = vmatprep.subr.mxu0 0.0
    %3187 = vmatpush1.msra.mxu0 0.0
    %3188 = vmatprep.subr.mxu0 0.0
    %3189 = vmatpush1.msra.mxu0 0.0
    %3190 = vmatprep.subr.mxu0 0.0
    %3191 = vmatpush1.msra.mxu0 0.0
    %3192 = vmatprep.subr.mxu0 0.0
    %3193 = vmatpush1.msra.mxu0 0.0
    %3194 = vmatprep.subr.mxu0 0.0
    %3195 = vmatpush1.msra.mxu0 0.0
    %3196 = vmatprep.mubr.f32.mxu0 0.0
    %3197 = vmatmul.mubr.f32.gmra.mrb[0].mxu0 %v3131
    %v3198 = vpop.f32.mrb[0].mxu0
    %v3199 = vadd.f32 %v1364, %v3198
    %v3200 = vpop.f32.mrb[0].mxu0
    %3201 = vdwg.mxu0
    %v3202 = vxor.u32 %v3199, 2147483648
    %v3203 = vmul.f32 %v3202, 1.442695
    %v3204 = vpow.pop %v3203
    %v3205 = vadd.f32 %v3204, 1.0
    %v3206 = vrcp.pop %v3205
    %v3207 = vmul.f32 1.0, %v3206
    %v3208 = vtanh.pop %v3199
    %v3209 = vmul.f32 %v3207, %v2641
    %3211 = vrot.lane.b32.xlu0 %v3208, 64
    %v3212 = vpop.permute.xlu0 %3211
    %v3214 = vmul.f32 %v3207, %v3212
    %3216 = vrot.lane.b32.xlu0 %v3214, 32
    %v3217 = vpop.permute.xlu0 %3216
    %v3219 = vadd.f32 %v3209, %v3217
    %v3220 = vtanh.pop %v3219
    %3222 = vrot.lane.b32.xlu0 %v3220, 64
    %v3223 = vpop.permute.xlu0 %3222
    %v3225 = vmul.f32 %v3207, %v3223
    %3227 = vrot.lane.b32.xlu0 %v3225, 32
    %v3228 = vpop.permute.xlu0 %3227
    %v3230 = vsel %vm78, %v3228, 0.0
    %3231 = vst [vmem:[#allocation3 + $0x4] sm:$0x1] %v3230
    %v3232 = vsel %vm78, %v3228, 0
    %3234 = vmatprep.subr.mxu0 0.0
    %3235 = vmatpush1.msra.mxu0 %v1332
    %3236 = vmatprep.subr.mxu0 0.0
    %3237 = vmatpush1.msra.mxu0 %v1333
    %3238 = vmatprep.subr.mxu0 0.0
    %3239 = vmatpush1.msra.mxu0 %v1334
    %3240 = vmatprep.subr.mxu0 0.0
    %3241 = vmatpush1.msra.mxu0 %v1335
    %3242 = vmatprep.subr.mxu0 0.0
    %3243 = vmatpush1.msra.mxu0 0.0
    %3244 = vmatprep.subr.mxu0 0.0
    %3245 = vmatpush1.msra.mxu0 0.0
    %3246 = vmatprep.subr.mxu0 0.0
    %3247 = vmatpush1.msra.mxu0 0.0
    %3248 = vmatprep.subr.mxu0 0.0
    %3249 = vmatpush1.msra.mxu0 0.0
    %3250 = vmatprep.subr.mxu0 0.0
    %3251 = vmatpush1.msra.mxu0 0.0
    %3252 = vmatprep.subr.mxu0 0.0
    %3253 = vmatpush1.msra.mxu0 0.0
    %3254 = vmatprep.subr.mxu0 0.0
    %3255 = vmatpush1.msra.mxu0 0.0
    %3256 = vmatprep.subr.mxu0 0.0
    %3257 = vmatpush1.msra.mxu0 0.0
    %3258 = vmatprep.subr.mxu0 0.0
    %3259 = vmatpush1.msra.mxu0 0.0
    %3260 = vmatprep.subr.mxu0 0.0
    %3261 = vmatpush1.msra.mxu0 0.0
    %3262 = vmatprep.subr.mxu0 0.0
    %3263 = vmatpush1.msra.mxu0 0.0
    %3264 = vmatprep.subr.mxu0 0.0
    %3265 = vmatpush1.msra.mxu0 0.0
    %3266 = vmatprep.subr.mxu0 0.0
    %3267 = vmatpush1.msra.mxu0 0.0
    %3268 = vmatprep.subr.mxu0 0.0
    %3269 = vmatpush1.msra.mxu0 0.0
    %3270 = vmatprep.subr.mxu0 0.0
    %3271 = vmatpush1.msra.mxu0 0.0
    %3272 = vmatprep.subr.mxu0 0.0
    %3273 = vmatpush1.msra.mxu0 0.0
    %3274 = vmatprep.subr.mxu0 0.0
    %3275 = vmatpush1.msra.mxu0 0.0
    %3276 = vmatprep.subr.mxu0 0.0
    %3277 = vmatpush1.msra.mxu0 0.0
    %3278 = vmatprep.subr.mxu0 0.0
    %3279 = vmatpush1.msra.mxu0 0.0
    %3280 = vmatprep.subr.mxu0 0.0
    %3281 = vmatpush1.msra.mxu0 0.0
    %3282 = vmatprep.subr.mxu0 0.0
    %3283 = vmatpush1.msra.mxu0 0.0
    %3284 = vmatprep.subr.mxu0 0.0
    %3285 = vmatpush1.msra.mxu0 0.0
    %3286 = vmatprep.subr.mxu0 0.0
    %3287 = vmatpush1.msra.mxu0 0.0
    %3288 = vmatprep.subr.mxu0 0.0
    %3289 = vmatpush1.msra.mxu0 0.0
    %3290 = vmatprep.subr.mxu0 0.0
    %3291 = vmatpush1.msra.mxu0 0.0
    %3292 = vmatprep.subr.mxu0 0.0
    %3293 = vmatpush1.msra.mxu0 0.0
    %3294 = vmatprep.subr.mxu0 0.0
    %3295 = vmatpush1.msra.mxu0 0.0
    %3296 = vmatprep.subr.mxu0 0.0
    %3297 = vmatpush1.msra.mxu0 0.0
    %3298 = vmatprep.mubr.f32.mxu0 0.0
    %3299 = vmatmul.mubr.f32.gmra.mrb[0].mxu0 %v3232
    %v3300 = vpop.f32.mrb[0].mxu0
    %v3301 = vadd.f32 %v1337, %v3300
    %v3302 = vpop.f32.mrb[0].mxu0
    %3303 = vdwg.mxu0
    %v3304 = vsel %vm1555, %v3301, -inf
    %3305 = vmax.xlane.f32.xlu0 %v3304
    %v3306 = vpop.xlane.xlu0 %3305
    %v3307 = vsub.f32 %v3301, %v3306
    %v3308 = vmul.f32 %v3307, 1.442695
    %v3309 = vpow.pop %v3308
    %v3310 = vsel %vm1555, %v3309, 0.0
    %3311 = vadd.xlane.f32.xlu0 %v3310
    %v3312 = vpop.xlane.xlu0 %3311
    %v3313 = vrcp.pop %v3312
    %v3314 = vmul.f32 %v3309, %v3313
    %v3315 = vmul.f32 %v3314, %v1338
    %vm3316 = vcmp.gt.f32.partialorder %v3315, 0.0
    %v3317 = vmax.f32 %v3315, 1e-30
    %v3318 = vlog2.pop %v3317
    %v3319 = vmul.f32 %v3318, 0.6931472
    %v3320 = vsel %vm3316, %v3319, -1e+30
    %v3321 = vrot.slane %v1369, 3
    %v3323 = vadd.f32 %v3320, %v3321
    %v3324 = vsel %vm1555, %v3323, -inf
    %3325 = vmax.xlane.f32.xlu0 %v3324
    %v3326 = vpop.xlane.xlu0 %3325
    %vm3327 = vcmp.ge.f32.partialorder %v3323, %v3326
    %v3328 = vsel %vm3327, %v1372, 24.0
    %v3329 = vsel %vm1555, %v3328, inf
    %3330 = vmin.xlane.f32.xlu0 %v3329
    %v3331 = vpop.xlane.xlu0 %3330
    %vm3332 = vcmp.ge.f32.partialorder %v3331, 16.0
    %v3333 = vsub.f32 %v3331, 16.0
    %vm3334 = vcmp.eq.f32.partialorder %v1372, %v3333
    %v3335 = vsel %vm3334, %v1367, 0.0
    %v3336 = vsel %vm1586, %v3335, 0.0
    %3337 = vadd.xlane.f32.xlu0 %v3336
    %v3338 = vpop.xlane.xlu0 %3337
    %v3339 = vsel %vm3332, %v3338, %v3331
    %vm3340 = vcmp.eq.f32.partialorder %v1372, %v3331
    %v3341 = vsel %vm3340, %v3315, 0.0
    %v3342 = vsel %vm1555, %v3341, 0.0
    %3343 = vadd.xlane.f32.xlu0 %v3342
    %v3344 = vpop.xlane.xlu0 %3343
    %vm3345 = vcmp.eq.f32.partialorder %v1372, %v3339
    %v3346 = vsel %vm3345, %v3315, 0.0
    %v3347 = vsel %vm1598, %v3346, 0.0
    %3348 = vadd.xlane.f32.xlu0 %v3347
    %v3349 = vpop.xlane.xlu0 %3348
    %v3350 = vadd.f32 %v3344, %v3349
    %v3351 = vsel %vm3332, %v3350, %v3344
    %v3352 = vsel %vm1604, %v3339, 0.0
    %v3353 = vsel %vm1606, %v3351, 0.0
    %v3354 = vadd.f32 %v3352, %v3353
    %v3355 = vsel %vm1609, %v3331, 0.0
    %v3356 = vadd.f32 %v3354, %v3355
    %v3357 = vsel %vm3332, 1, 0
    %v3358 = vcvt.s32.f32 %v3357
    %v3359 = vsel %vm1612, %v3358, 0.0
    %v3360 = vadd.f32 %v3356, %v3359
    %3361 = vst [vmem:[#allocation5 + $0x3] sm:$0x1] %v3360
    %v3362 = vsel %vm3345, 1, 0
    %v3363 = vcvt.s32.f32 %v3362
    %v3365 = vsel %vm1331, %v3363, 0
    %3367 = vmatprep.subr.mxu0 0.0
    %3368 = vmatpush1.msra.mxu0 %v1365
    %3369 = vmatprep.subr.mxu0 0.0
    %3370 = vmatpush1.msra.mxu0 %v1366
    %3371 = vmatprep.subr.mxu0 0.0
    %3372 = vmatpush1.msra.mxu0 0.0
    %3373 = vmatprep.subr.mxu0 0.0
    %3374 = vmatpush1.msra.mxu0 0.0
    %3375 = vmatprep.subr.mxu0 0.0
    %3376 = vmatpush1.msra.mxu0 0.0
    %3377 = vmatprep.subr.mxu0 0.0
    %3378 = vmatpush1.msra.mxu0 0.0
    %3379 = vmatprep.subr.mxu0 0.0
    %3380 = vmatpush1.msra.mxu0 0.0
    %3381 = vmatprep.subr.mxu0 0.0
    %3382 = vmatpush1.msra.mxu0 0.0
    %3383 = vmatprep.subr.mxu0 0.0
    %3384 = vmatpush1.msra.mxu0 0.0
    %3385 = vmatprep.subr.mxu0 0.0
    %3386 = vmatpush1.msra.mxu0 0.0
    %3387 = vmatprep.subr.mxu0 0.0
    %3388 = vmatpush1.msra.mxu0 0.0
    %3389 = vmatprep.subr.mxu0 0.0
    %3390 = vmatpush1.msra.mxu0 0.0
    %3391 = vmatprep.subr.mxu0 0.0
    %3392 = vmatpush1.msra.mxu0 0.0
    %3393 = vmatprep.subr.mxu0 0.0
    %3394 = vmatpush1.msra.mxu0 0.0
    %3395 = vmatprep.subr.mxu0 0.0
    %3396 = vmatpush1.msra.mxu0 0.0
    %3397 = vmatprep.subr.mxu0 0.0
    %3398 = vmatpush1.msra.mxu0 0.0
    %3399 = vmatprep.subr.mxu0 0.0
    %3400 = vmatpush1.msra.mxu0 0.0
    %3401 = vmatprep.subr.mxu0 0.0
    %3402 = vmatpush1.msra.mxu0 0.0
    %3403 = vmatprep.subr.mxu0 0.0
    %3404 = vmatpush1.msra.mxu0 0.0
    %3405 = vmatprep.subr.mxu0 0.0
    %3406 = vmatpush1.msra.mxu0 0.0
    %3407 = vmatprep.subr.mxu0 0.0
    %3408 = vmatpush1.msra.mxu0 0.0
    %3409 = vmatprep.subr.mxu0 0.0
    %3410 = vmatpush1.msra.mxu0 0.0
    %3411 = vmatprep.subr.mxu0 0.0
    %3412 = vmatpush1.msra.mxu0 0.0
    %3413 = vmatprep.subr.mxu0 0.0
    %3414 = vmatpush1.msra.mxu0 0.0
    %3415 = vmatprep.subr.mxu0 0.0
    %3416 = vmatpush1.msra.mxu0 0.0
    %3417 = vmatprep.subr.mxu0 0.0
    %3418 = vmatpush1.msra.mxu0 0.0
    %3419 = vmatprep.subr.mxu0 0.0
    %3420 = vmatpush1.msra.mxu0 0.0
    %3421 = vmatprep.subr.mxu0 0.0
    %3422 = vmatpush1.msra.mxu0 0.0
    %3423 = vmatprep.subr.mxu0 0.0
    %3424 = vmatpush1.msra.mxu0 0.0
    %3425 = vmatprep.subr.mxu0 0.0
    %3426 = vmatpush1.msra.mxu0 0.0
    %3427 = vmatprep.subr.mxu0 0.0
    %3428 = vmatpush1.msra.mxu0 0.0
    %3429 = vmatprep.subr.mxu0 0.0
    %3430 = vmatpush1.msra.mxu0 0.0
    %3431 = vmatprep.mubr.f32.mxu0 0.0
    %3432 = vmatmul.mubr.f32.gmra.mrb[0].mxu0 %v3365
    %v3433 = vpop.f32.mrb[0].mxu0
    %v3434 = vadd.f32 0.0, %v3433
    %v3435 = vpop.f32.mrb[0].mxu0
    %3436 = vdwg.mxu0
    %3437 = vrot.lane.b32.xlu0 %v3225, 64
    %v3438 = vpop.permute.xlu0 %3437
    %v3440 = vsel %vm78, %v3434, %v3438
    %v3442 = vsel %vm1376, %v3440, 0
    %3444 = vmatprep.subr.mxu0 0.0
    %3445 = vmatpush1.msra.mxu0 %v1339
    %3446 = vmatprep.subr.mxu0 0.0
    %3447 = vmatpush1.msra.mxu0 %v1340
    %3448 = vmatprep.subr.mxu0 0.0
    %3449 = vmatpush1.msra.mxu0 %v1341
    %3450 = vmatprep.subr.mxu0 0.0
    %3451 = vmatpush1.msra.mxu0 %v1342
    %3452 = vmatprep.subr.mxu0 0.0
    %3453 = vmatpush1.msra.mxu0 %v1343
    %3454 = vmatprep.subr.mxu0 0.0
    %3455 = vmatpush1.msra.mxu0 %v1344
    %3456 = vmatprep.subr.mxu0 0.0
    %3457 = vmatpush1.msra.mxu0 %v1345
    %3458 = vmatprep.subr.mxu0 0.0
    %3459 = vmatpush1.msra.mxu0 %v1346
    %3460 = vmatprep.subr.mxu0 0.0
    %3461 = vmatpush1.msra.mxu0 0.0
    %3462 = vmatprep.subr.mxu0 0.0
    %3463 = vmatpush1.msra.mxu0 0.0
    %3464 = vmatprep.subr.mxu0 0.0
    %3465 = vmatpush1.msra.mxu0 0.0
    %3466 = vmatprep.subr.mxu0 0.0
    %3467 = vmatpush1.msra.mxu0 0.0
    %3468 = vmatprep.subr.mxu0 0.0
    %3469 = vmatpush1.msra.mxu0 0.0
    %3470 = vmatprep.subr.mxu0 0.0
    %3471 = vmatpush1.msra.mxu0 0.0
    %3472 = vmatprep.subr.mxu0 0.0
    %3473 = vmatpush1.msra.mxu0 0.0
    %3474 = vmatprep.subr.mxu0 0.0
    %3475 = vmatpush1.msra.mxu0 0.0
    %3476 = vmatprep.subr.mxu0 0.0
    %3477 = vmatpush1.msra.mxu0 0.0
    %3478 = vmatprep.subr.mxu0 0.0
    %3479 = vmatpush1.msra.mxu0 0.0
    %3480 = vmatprep.subr.mxu0 0.0
    %3481 = vmatpush1.msra.mxu0 0.0
    %3482 = vmatprep.subr.mxu0 0.0
    %3483 = vmatpush1.msra.mxu0 0.0
    %3484 = vmatprep.subr.mxu0 0.0
    %3485 = vmatpush1.msra.mxu0 0.0
    %3486 = vmatprep.subr.mxu0 0.0
    %3487 = vmatpush1.msra.mxu0 0.0
    %3488 = vmatprep.subr.mxu0 0.0
    %3489 = vmatpush1.msra.mxu0 0.0
    %3490 = vmatprep.subr.mxu0 0.0
    %3491 = vmatpush1.msra.mxu0 0.0
    %3492 = vmatprep.subr.mxu0 0.0
    %3493 = vmatpush1.msra.mxu0 0.0
    %3494 = vmatprep.subr.mxu0 0.0
    %3495 = vmatpush1.msra.mxu0 0.0
    %3496 = vmatprep.subr.mxu0 0.0
    %3497 = vmatpush1.msra.mxu0 0.0
    %3498 = vmatprep.subr.mxu0 0.0
    %3499 = vmatpush1.msra.mxu0 0.0
    %3500 = vmatprep.subr.mxu0 0.0
    %3501 = vmatpush1.msra.mxu0 0.0
    %3502 = vmatprep.subr.mxu0 0.0
    %3503 = vmatpush1.msra.mxu0 0.0
    %3504 = vmatprep.subr.mxu0 0.0
    %3505 = vmatpush1.msra.mxu0 0.0
    %3506 = vmatprep.subr.mxu0 0.0
    %3507 = vmatpush1.msra.mxu0 0.0
    %3508 = vmatprep.mubr.f32.mxu0 0.0
    %3509 = vmatmul.mubr.f32.gmra.mrb[0].mxu0 %v3442
    %v3510 = vpop.f32.mrb[0].mxu0
    %v3511 = vadd.f32 %v1347, %v3510
    %v3512 = vpop.f32.mrb[0].mxu0
    %3513 = vdwg.mxu0
    %v3514 = vsel %vm1586, %v3511, -inf
    %3515 = vmax.xlane.f32.xlu0 %v3514
    %v3516 = vpop.xlane.xlu0 %3515
    %v3517 = vsub.f32 %v3511, %v3516
    %v3518 = vmul.f32 %v3517, 1.442695
    %v3519 = vpow.pop %v3518
    %v3520 = vsel %vm1586, %v3519, 0.0
    %3521 = vadd.xlane.f32.xlu0 %v3520
    %v3522 = vpop.xlane.xlu0 %3521
    %v3523 = vrcp.pop %v3522
    %v3524 = vmul.f32 %v3519, %v3523
    %v3526 = vsel %vm1781, %v3524, 0
    %3528 = vmatprep.subr.mxu0 0.0
    %3529 = vmatpush1.msra.mxu0 %v1187
    %3530 = vmatprep.subr.mxu0 0.0
    %3531 = vmatpush1.msra.mxu0 0.0
    %3532 = vmatprep.subr.mxu0 0.0
    %3533 = vmatpush1.msra.mxu0 0.0
    %3534 = vmatprep.subr.mxu0 0.0
    %3535 = vmatpush1.msra.mxu0 0.0
    %3536 = vmatprep.subr.mxu0 0.0
    %3537 = vmatpush1.msra.mxu0 0.0
    %3538 = vmatprep.subr.mxu0 0.0
    %3539 = vmatpush1.msra.mxu0 0.0
    %3540 = vmatprep.subr.mxu0 0.0
    %3541 = vmatpush1.msra.mxu0 0.0
    %3542 = vmatprep.subr.mxu0 0.0
    %3543 = vmatpush1.msra.mxu0 0.0
    %3544 = vmatprep.subr.mxu0 0.0
    %3545 = vmatpush1.msra.mxu0 0.0
    %3546 = vmatprep.subr.mxu0 0.0
    %3547 = vmatpush1.msra.mxu0 0.0
    %3548 = vmatprep.subr.mxu0 0.0
    %3549 = vmatpush1.msra.mxu0 0.0
    %3550 = vmatprep.subr.mxu0 0.0
    %3551 = vmatpush1.msra.mxu0 0.0
    %3552 = vmatprep.subr.mxu0 0.0
    %3553 = vmatpush1.msra.mxu0 0.0
    %3554 = vmatprep.subr.mxu0 0.0
    %3555 = vmatpush1.msra.mxu0 0.0
    %3556 = vmatprep.subr.mxu0 0.0
    %3557 = vmatpush1.msra.mxu0 0.0
    %3558 = vmatprep.subr.mxu0 0.0
    %3559 = vmatpush1.msra.mxu0 0.0
    %3560 = vmatprep.subr.mxu0 0.0
    %3561 = vmatpush1.msra.mxu0 0.0
    %3562 = vmatprep.subr.mxu0 0.0
    %3563 = vmatpush1.msra.mxu0 0.0
    %3564 = vmatprep.subr.mxu0 0.0
    %3565 = vmatpush1.msra.mxu0 0.0
    %3566 = vmatprep.subr.mxu0 0.0
    %3567 = vmatpush1.msra.mxu0 0.0
    %3568 = vmatprep.subr.mxu0 0.0
    %3569 = vmatpush1.msra.mxu0 0.0
    %3570 = vmatprep.subr.mxu0 0.0
    %3571 = vmatpush1.msra.mxu0 0.0
    %3572 = vmatprep.subr.mxu0 0.0
    %3573 = vmatpush1.msra.mxu0 0.0
    %3574 = vmatprep.subr.mxu0 0.0
    %3575 = vmatpush1.msra.mxu0 0.0
    %3576 = vmatprep.subr.mxu0 0.0
    %3577 = vmatpush1.msra.mxu0 0.0
    %3578 = vmatprep.subr.mxu0 0.0
    %3579 = vmatpush1.msra.mxu0 0.0
    %3580 = vmatprep.subr.mxu0 0.0
    %3581 = vmatpush1.msra.mxu0 0.0
    %3582 = vmatprep.subr.mxu0 0.0
    %3583 = vmatpush1.msra.mxu0 0.0
    %3584 = vmatprep.subr.mxu0 0.0
    %3585 = vmatpush1.msra.mxu0 0.0
    %3586 = vmatprep.subr.mxu0 0.0
    %3587 = vmatpush1.msra.mxu0 0.0
    %3588 = vmatprep.subr.mxu0 0.0
    %3589 = vmatpush1.msra.mxu0 0.0
    %3590 = vmatprep.subr.mxu0 0.0
    %3591 = vmatpush1.msra.mxu0 0.0
    %3592 = vmatprep.mubr.f32.mxu0 0.0
    %3593 = vmatmul.mubr.f32.gmra.mrb[0].mxu0 %v3526
    %v3594 = vpop.f32.mrb[0].mxu0
    %v3595 = vadd.f32 0.0, %v3594
    %v3596 = vpop.f32.mrb[0].mxu0
    %3597 = vdwg.mxu0
    %vm3598 = vcmp.ne.f32.partialorder %v1367, %v3339
    %v3599 = vsel %vm3598, 1, 0
    %v3600 = vcvt.s32.f32 %v3599
    %v3601 = vmul.f32 %v3314, %v1864
    %v3603 = vlaneseq
    %v3604 = vshrl.u32 %v3603, 7
    %v3605 = vsub.s32 0, %v3604
    %v3606 = vrot.slane %v3600, %v3605
    %3607 = vrot.lane.b32.xlu0 %v3606, 16
    %v3608 = vpop.permute.xlu0 %3607
    %v3610 = vmul.f32 %v3601, %v3608
    %3612 = vrot.lane.b32.xlu0 %v3610, 112
    %v3613 = vpop.permute.xlu0 %3612
    %v3615 = vsel %vm1586, %v3613, 0.0
    %3616 = vadd.xlane.f32.xlu0 %v3615
    %v3617 = vpop.xlane.xlu0 %3616
    %vm3618 = vcmp.gt.f32.partialorder %v3617, 0.0
    %v3619 = vmax.f32 %v3617, 1e-30
    %v3620 = vrcp.pop %v3619
    %v3621 = vmul.f32 1.0, %v3620
    %v3622 = vsel %vm3618, %v3621, 1.0
    %v3623 = vmul.f32 %v3610, %v3622
    %3625 = vrot.lane.b32.xlu0 %v3623, 112
    %v3626 = vpop.permute.xlu0 %3625
    %v3627 = vsel %vm1781, %v3626, 0
    %3629 = vmatprep.subr.mxu0 0.0
    %3630 = vmatpush1.msra.mxu0 %v1187
    %3631 = vmatprep.subr.mxu0 0.0
    %3632 = vmatpush1.msra.mxu0 0.0
    %3633 = vmatprep.subr.mxu0 0.0
    %3634 = vmatpush1.msra.mxu0 0.0
    %3635 = vmatprep.subr.mxu0 0.0
    %3636 = vmatpush1.msra.mxu0 0.0
    %3637 = vmatprep.subr.mxu0 0.0
    %3638 = vmatpush1.msra.mxu0 0.0
    %3639 = vmatprep.subr.mxu0 0.0
    %3640 = vmatpush1.msra.mxu0 0.0
    %3641 = vmatprep.subr.mxu0 0.0
    %3642 = vmatpush1.msra.mxu0 0.0
    %3643 = vmatprep.subr.mxu0 0.0
    %3644 = vmatpush1.msra.mxu0 0.0
    %3645 = vmatprep.subr.mxu0 0.0
    %3646 = vmatpush1.msra.mxu0 0.0
    %3647 = vmatprep.subr.mxu0 0.0
    %3648 = vmatpush1.msra.mxu0 0.0
    %3649 = vmatprep.subr.mxu0 0.0
    %3650 = vmatpush1.msra.mxu0 0.0
    %3651 = vmatprep.subr.mxu0 0.0
    %3652 = vmatpush1.msra.mxu0 0.0
    %3653 = vmatprep.subr.mxu0 0.0
    %3654 = vmatpush1.msra.mxu0 0.0
    %3655 = vmatprep.subr.mxu0 0.0
    %3656 = vmatpush1.msra.mxu0 0.0
    %3657 = vmatprep.subr.mxu0 0.0
    %3658 = vmatpush1.msra.mxu0 0.0
    %3659 = vmatprep.subr.mxu0 0.0
    %3660 = vmatpush1.msra.mxu0 0.0
    %3661 = vmatprep.subr.mxu0 0.0
    %3662 = vmatpush1.msra.mxu0 0.0
    %3663 = vmatprep.subr.mxu0 0.0
    %3664 = vmatpush1.msra.mxu0 0.0
    %3665 = vmatprep.subr.mxu0 0.0
    %3666 = vmatpush1.msra.mxu0 0.0
    %3667 = vmatprep.subr.mxu0 0.0
    %3668 = vmatpush1.msra.mxu0 0.0
    %3669 = vmatprep.subr.mxu0 0.0
    %3670 = vmatpush1.msra.mxu0 0.0
    %3671 = vmatprep.subr.mxu0 0.0
    %3672 = vmatpush1.msra.mxu0 0.0
    %3673 = vmatprep.subr.mxu0 0.0
    %3674 = vmatpush1.msra.mxu0 0.0
    %3675 = vmatprep.subr.mxu0 0.0
    %3676 = vmatpush1.msra.mxu0 0.0
    %3677 = vmatprep.subr.mxu0 0.0
    %3678 = vmatpush1.msra.mxu0 0.0
    %3679 = vmatprep.subr.mxu0 0.0
    %3680 = vmatpush1.msra.mxu0 0.0
    %3681 = vmatprep.subr.mxu0 0.0
    %3682 = vmatpush1.msra.mxu0 0.0
    %3683 = vmatprep.subr.mxu0 0.0
    %3684 = vmatpush1.msra.mxu0 0.0
    %3685 = vmatprep.subr.mxu0 0.0
    %3686 = vmatpush1.msra.mxu0 0.0
    %3687 = vmatprep.subr.mxu0 0.0
    %3688 = vmatpush1.msra.mxu0 0.0
    %3689 = vmatprep.subr.mxu0 0.0
    %3690 = vmatpush1.msra.mxu0 0.0
    %3691 = vmatprep.subr.mxu0 0.0
    %3692 = vmatpush1.msra.mxu0 0.0
    %3693 = vmatprep.mubr.f32.mxu0 0.0
    %3694 = vmatmul.mubr.f32.gmra.mrb[0].mxu0 %v3627
    %v3695 = vpop.f32.mrb[0].mxu0
    %v3696 = vadd.f32 0.0, %v3695
    %v3697 = vpop.f32.mrb[0].mxu0
    %3698 = vdwg.mxu0
    %3700 = vrot.lane.b32.xlu0 %v3696, 32
    %v3701 = vpop.permute.xlu0 %3700
    %3704 = vrot.lane.b32.xlu0 %v3595, 64
    %v3705 = vpop.permute.xlu0 %3704
    %v3707 = vsel %vm78, %v3434, %v3701
    %v3708 = vsel %vm1376, %v3707, %v3705
    %v3709 = vsel %vm1378, %v3708, %v3225
    %3710 = vmatprep.subr.mxu0 0.0
    %3711 = vmatpush1.msra.mxu0 %v1348
    %3712 = vmatprep.subr.mxu0 0.0
    %3713 = vmatpush1.msra.mxu0 %v1349
    %3714 = vmatprep.subr.mxu0 0.0
    %3715 = vmatpush1.msra.mxu0 %v1350
    %3716 = vmatprep.subr.mxu0 0.0
    %3717 = vmatpush1.msra.mxu0 %v1351
    %3718 = vmatprep.subr.mxu0 0.0
    %3719 = vmatpush1.msra.mxu0 %v1352
    %3720 = vmatprep.subr.mxu0 0.0
    %3721 = vmatpush1.msra.mxu0 %v1353
    %3722 = vmatprep.subr.mxu0 0.0
    %3723 = vmatpush1.msra.mxu0 %v1354
    %3724 = vmatprep.subr.mxu0 0.0
    %3725 = vmatpush1.msra.mxu0 %v1355
    %3726 = vmatprep.subr.mxu0 0.0
    %3727 = vmatpush1.msra.mxu0 %v1356
    %3728 = vmatprep.subr.mxu0 0.0
    %3729 = vmatpush1.msra.mxu0 %v1357
    %3730 = vmatprep.subr.mxu0 0.0
    %3731 = vmatpush1.msra.mxu0 %v1358
    %3732 = vmatprep.subr.mxu0 0.0
    %3733 = vmatpush1.msra.mxu0 %v1359
    %3734 = vmatprep.subr.mxu0 0.0
    %3735 = vmatpush1.msra.mxu0 %v1360
    %3736 = vmatprep.subr.mxu0 0.0
    %3737 = vmatpush1.msra.mxu0 %v1361
    %3738 = vmatprep.subr.mxu0 0.0
    %3739 = vmatpush1.msra.mxu0 %v1362
    %3740 = vmatprep.subr.mxu0 0.0
    %3741 = vmatpush1.msra.mxu0 %v1363
    %3742 = vmatprep.subr.mxu0 0.0
    %3743 = vmatpush1.msra.mxu0 0.0
    %3744 = vmatprep.subr.mxu0 0.0
    %3745 = vmatpush1.msra.mxu0 0.0
    %3746 = vmatprep.subr.mxu0 0.0
    %3747 = vmatpush1.msra.mxu0 0.0
    %3748 = vmatprep.subr.mxu0 0.0
    %3749 = vmatpush1.msra.mxu0 0.0
    %3750 = vmatprep.subr.mxu0 0.0
    %3751 = vmatpush1.msra.mxu0 0.0
    %3752 = vmatprep.subr.mxu0 0.0
    %3753 = vmatpush1.msra.mxu0 0.0
    %3754 = vmatprep.subr.mxu0 0.0
    %3755 = vmatpush1.msra.mxu0 0.0
    %3756 = vmatprep.subr.mxu0 0.0
    %3757 = vmatpush1.msra.mxu0 0.0
    %3758 = vmatprep.subr.mxu0 0.0
    %3759 = vmatpush1.msra.mxu0 0.0
    %3760 = vmatprep.subr.mxu0 0.0
    %3761 = vmatpush1.msra.mxu0 0.0
    %3762 = vmatprep.subr.mxu0 0.0
    %3763 = vmatpush1.msra.mxu0 0.0
    %3764 = vmatprep.subr.mxu0 0.0
    %3765 = vmatpush1.msra.mxu0 0.0
    %3766 = vmatprep.subr.mxu0 0.0
    %3767 = vmatpush1.msra.mxu0 0.0
    %3768 = vmatprep.subr.mxu0 0.0
    %3769 = vmatpush1.msra.mxu0 0.0
    %3770 = vmatprep.subr.mxu0 0.0
    %3771 = vmatpush1.msra.mxu0 0.0
    %3772 = vmatprep.subr.mxu0 0.0
    %3773 = vmatpush1.msra.mxu0 0.0
    %3774 = vmatprep.mubr.f32.mxu0 0.0
    %3775 = vmatmul.mubr.f32.gmra.mrb[0].mxu0 %v3709
    %v3776 = vpop.f32.mrb[0].mxu0
    %v3777 = vadd.f32 %v1364, %v3776
    %v3778 = vpop.f32.mrb[0].mxu0
    %3779 = vdwg.mxu0
    %v3780 = vxor.u32 %v3777, 2147483648
    %v3781 = vmul.f32 %v3780, 1.442695
    %v3782 = vpow.pop %v3781
    %v3783 = vadd.f32 %v3782, 1.0
    %v3784 = vrcp.pop %v3783
    %v3785 = vmul.f32 1.0, %v3784
    %v3786 = vtanh.pop %v3777
    %v3787 = vmul.f32 %v3785, %v3219
    %3789 = vrot.lane.b32.xlu0 %v3786, 64
    %v3790 = vpop.permute.xlu0 %3789
    %v3792 = vmul.f32 %v3785, %v3790
    %3794 = vrot.lane.b32.xlu0 %v3792, 32
    %v3795 = vpop.permute.xlu0 %3794
    %v3797 = vadd.f32 %v3787, %v3795
    %v3798 = vtanh.pop %v3797
    %3800 = vrot.lane.b32.xlu0 %v3798, 64
    %v3801 = vpop.permute.xlu0 %3800
    %v3803 = vmul.f32 %v3785, %v3801
    %3805 = vrot.lane.b32.xlu0 %v3803, 32
    %v3806 = vpop.permute.xlu0 %3805
    %v3808 = vsel %vm78, %v3806, 0.0
    %3809 = vst [vmem:[#allocation3 + $0x5] sm:$0x1] %v3808
    %v3810 = vsel %vm78, %v3806, 0
    %3812 = vmatprep.subr.mxu0 0.0
    %3813 = vmatpush1.msra.mxu0 %v1332
    %3814 = vmatprep.subr.mxu0 0.0
    %3815 = vmatpush1.msra.mxu0 %v1333
    %3816 = vmatprep.subr.mxu0 0.0
    %3817 = vmatpush1.msra.mxu0 %v1334
    %3818 = vmatprep.subr.mxu0 0.0
    %3819 = vmatpush1.msra.mxu0 %v1335
    %3820 = vmatprep.subr.mxu0 0.0
    %3821 = vmatpush1.msra.mxu0 0.0
    %3822 = vmatprep.subr.mxu0 0.0
    %3823 = vmatpush1.msra.mxu0 0.0
    %3824 = vmatprep.subr.mxu0 0.0
    %3825 = vmatpush1.msra.mxu0 0.0
    %3826 = vmatprep.subr.mxu0 0.0
    %3827 = vmatpush1.msra.mxu0 0.0
    %3828 = vmatprep.subr.mxu0 0.0
    %3829 = vmatpush1.msra.mxu0 0.0
    %3830 = vmatprep.subr.mxu0 0.0
    %3831 = vmatpush1.msra.mxu0 0.0
    %3832 = vmatprep.subr.mxu0 0.0
    %3833 = vmatpush1.msra.mxu0 0.0
    %3834 = vmatprep.subr.mxu0 0.0
    %3835 = vmatpush1.msra.mxu0 0.0
    %3836 = vmatprep.subr.mxu0 0.0
    %3837 = vmatpush1.msra.mxu0 0.0
    %3838 = vmatprep.subr.mxu0 0.0
    %3839 = vmatpush1.msra.mxu0 0.0
    %3840 = vmatprep.subr.mxu0 0.0
    %3841 = vmatpush1.msra.mxu0 0.0
    %3842 = vmatprep.subr.mxu0 0.0
    %3843 = vmatpush1.msra.mxu0 0.0
    %3844 = vmatprep.subr.mxu0 0.0
    %3845 = vmatpush1.msra.mxu0 0.0
    %3846 = vmatprep.subr.mxu0 0.0
    %3847 = vmatpush1.msra.mxu0 0.0
    %3848 = vmatprep.subr.mxu0 0.0
    %3849 = vmatpush1.msra.mxu0 0.0
    %3850 = vmatprep.subr.mxu0 0.0
    %3851 = vmatpush1.msra.mxu0 0.0
    %3852 = vmatprep.subr.mxu0 0.0
    %3853 = vmatpush1.msra.mxu0 0.0
    %3854 = vmatprep.subr.mxu0 0.0
    %3855 = vmatpush1.msra.mxu0 0.0
    %3856 = vmatprep.subr.mxu0 0.0
    %3857 = vmatpush1.msra.mxu0 0.0
    %3858 = vmatprep.subr.mxu0 0.0
    %3859 = vmatpush1.msra.mxu0 0.0
    %3860 = vmatprep.subr.mxu0 0.0
    %3861 = vmatpush1.msra.mxu0 0.0
    %3862 = vmatprep.subr.mxu0 0.0
    %3863 = vmatpush1.msra.mxu0 0.0
    %3864 = vmatprep.subr.mxu0 0.0
    %3865 = vmatpush1.msra.mxu0 0.0
    %3866 = vmatprep.subr.mxu0 0.0
    %3867 = vmatpush1.msra.mxu0 0.0
    %3868 = vmatprep.subr.mxu0 0.0
    %3869 = vmatpush1.msra.mxu0 0.0
    %3870 = vmatprep.subr.mxu0 0.0
    %3871 = vmatpush1.msra.mxu0 0.0
    %3872 = vmatprep.subr.mxu0 0.0
    %3873 = vmatpush1.msra.mxu0 0.0
    %3874 = vmatprep.subr.mxu0 0.0
    %3875 = vmatpush1.msra.mxu0 0.0
    %3876 = vmatprep.mubr.f32.mxu0 0.0
    %3877 = vmatmul.mubr.f32.gmra.mrb[0].mxu0 %v3810
    %v3878 = vpop.f32.mrb[0].mxu0
    %v3879 = vadd.f32 %v1337, %v3878
    %v3880 = vpop.f32.mrb[0].mxu0
    %3881 = vdwg.mxu0
    %v3882 = vsel %vm1555, %v3879, -inf
    %3883 = vmax.xlane.f32.xlu0 %v3882
    %v3884 = vpop.xlane.xlu0 %3883
    %v3885 = vsub.f32 %v3879, %v3884
    %v3886 = vmul.f32 %v3885, 1.442695
    %v3887 = vpow.pop %v3886
    %v3888 = vsel %vm1555, %v3887, 0.0
    %3889 = vadd.xlane.f32.xlu0 %v3888
    %v3890 = vpop.xlane.xlu0 %3889
    %v3891 = vrcp.pop %v3890
    %v3892 = vmul.f32 %v3887, %v3891
    %v3893 = vmul.f32 %v3892, %v1338
    %vm3894 = vcmp.gt.f32.partialorder %v3893, 0.0
    %v3895 = vmax.f32 %v3893, 1e-30
    %v3896 = vlog2.pop %v3895
    %v3897 = vmul.f32 %v3896, 0.6931472
    %v3898 = vsel %vm3894, %v3897, -1e+30
    %v3899 = vrot.slane %v1369, 4
    %v3901 = vadd.f32 %v3898, %v3899
    %v3902 = vsel %vm1555, %v3901, -inf
    %3903 = vmax.xlane.f32.xlu0 %v3902
    %v3904 = vpop.xlane.xlu0 %3903
    %vm3905 = vcmp.ge.f32.partialorder %v3901, %v3904
    %v3906 = vsel %vm3905, %v1372, 24.0
    %v3907 = vsel %vm1555, %v3906, inf
    %3908 = vmin.xlane.f32.xlu0 %v3907
    %v3909 = vpop.xlane.xlu0 %3908
    %vm3910 = vcmp.ge.f32.partialorder %v3909, 16.0
    %v3911 = vsub.f32 %v3909, 16.0
    %vm3912 = vcmp.eq.f32.partialorder %v1372, %v3911
    %v3913 = vsel %vm3912, %v1367, 0.0
    %v3914 = vsel %vm1586, %v3913, 0.0
    %3915 = vadd.xlane.f32.xlu0 %v3914
    %v3916 = vpop.xlane.xlu0 %3915
    %v3917 = vsel %vm3910, %v3916, %v3909
    %vm3918 = vcmp.eq.f32.partialorder %v1372, %v3909
    %v3919 = vsel %vm3918, %v3893, 0.0
    %v3920 = vsel %vm1555, %v3919, 0.0
    %3921 = vadd.xlane.f32.xlu0 %v3920
    %v3922 = vpop.xlane.xlu0 %3921
    %vm3923 = vcmp.eq.f32.partialorder %v1372, %v3917
    %v3924 = vsel %vm3923, %v3893, 0.0
    %v3925 = vsel %vm1598, %v3924, 0.0
    %3926 = vadd.xlane.f32.xlu0 %v3925
    %v3927 = vpop.xlane.xlu0 %3926
    %v3928 = vadd.f32 %v3922, %v3927
    %v3929 = vsel %vm3910, %v3928, %v3922
    %v3930 = vsel %vm1604, %v3917, 0.0
    %v3931 = vsel %vm1606, %v3929, 0.0
    %v3932 = vadd.f32 %v3930, %v3931
    %v3933 = vsel %vm1609, %v3909, 0.0
    %v3934 = vadd.f32 %v3932, %v3933
    %v3935 = vsel %vm3910, 1, 0
    %v3936 = vcvt.s32.f32 %v3935
    %v3937 = vsel %vm1612, %v3936, 0.0
    %v3938 = vadd.f32 %v3934, %v3937
    %3939 = vst [vmem:[#allocation5 + $0x4] sm:$0x1] %v3938
    %v3940 = vsel %vm3923, 1, 0
    %v3941 = vcvt.s32.f32 %v3940
    %v3943 = vsel %vm1331, %v3941, 0
    %3945 = vmatprep.subr.mxu0 0.0
    %3946 = vmatpush1.msra.mxu0 %v1365
    %3947 = vmatprep.subr.mxu0 0.0
    %3948 = vmatpush1.msra.mxu0 %v1366
    %3949 = vmatprep.subr.mxu0 0.0
    %3950 = vmatpush1.msra.mxu0 0.0
    %3951 = vmatprep.subr.mxu0 0.0
    %3952 = vmatpush1.msra.mxu0 0.0
    %3953 = vmatprep.subr.mxu0 0.0
    %3954 = vmatpush1.msra.mxu0 0.0
    %3955 = vmatprep.subr.mxu0 0.0
    %3956 = vmatpush1.msra.mxu0 0.0
    %3957 = vmatprep.subr.mxu0 0.0
    %3958 = vmatpush1.msra.mxu0 0.0
    %3959 = vmatprep.subr.mxu0 0.0
    %3960 = vmatpush1.msra.mxu0 0.0
    %3961 = vmatprep.subr.mxu0 0.0
    %3962 = vmatpush1.msra.mxu0 0.0
    %3963 = vmatprep.subr.mxu0 0.0
    %3964 = vmatpush1.msra.mxu0 0.0
    %3965 = vmatprep.subr.mxu0 0.0
    %3966 = vmatpush1.msra.mxu0 0.0
    %3967 = vmatprep.subr.mxu0 0.0
    %3968 = vmatpush1.msra.mxu0 0.0
    %3969 = vmatprep.subr.mxu0 0.0
    %3970 = vmatpush1.msra.mxu0 0.0
    %3971 = vmatprep.subr.mxu0 0.0
    %3972 = vmatpush1.msra.mxu0 0.0
    %3973 = vmatprep.subr.mxu0 0.0
    %3974 = vmatpush1.msra.mxu0 0.0
    %3975 = vmatprep.subr.mxu0 0.0
    %3976 = vmatpush1.msra.mxu0 0.0
    %3977 = vmatprep.subr.mxu0 0.0
    %3978 = vmatpush1.msra.mxu0 0.0
    %3979 = vmatprep.subr.mxu0 0.0
    %3980 = vmatpush1.msra.mxu0 0.0
    %3981 = vmatprep.subr.mxu0 0.0
    %3982 = vmatpush1.msra.mxu0 0.0
    %3983 = vmatprep.subr.mxu0 0.0
    %3984 = vmatpush1.msra.mxu0 0.0
    %3985 = vmatprep.subr.mxu0 0.0
    %3986 = vmatpush1.msra.mxu0 0.0
    %3987 = vmatprep.subr.mxu0 0.0
    %3988 = vmatpush1.msra.mxu0 0.0
    %3989 = vmatprep.subr.mxu0 0.0
    %3990 = vmatpush1.msra.mxu0 0.0
    %3991 = vmatprep.subr.mxu0 0.0
    %3992 = vmatpush1.msra.mxu0 0.0
    %3993 = vmatprep.subr.mxu0 0.0
    %3994 = vmatpush1.msra.mxu0 0.0
    %3995 = vmatprep.subr.mxu0 0.0
    %3996 = vmatpush1.msra.mxu0 0.0
    %3997 = vmatprep.subr.mxu0 0.0
    %3998 = vmatpush1.msra.mxu0 0.0
    %3999 = vmatprep.subr.mxu0 0.0
    %4000 = vmatpush1.msra.mxu0 0.0
    %4001 = vmatprep.subr.mxu0 0.0
    %4002 = vmatpush1.msra.mxu0 0.0
    %4003 = vmatprep.subr.mxu0 0.0
    %4004 = vmatpush1.msra.mxu0 0.0
    %4005 = vmatprep.subr.mxu0 0.0
    %4006 = vmatpush1.msra.mxu0 0.0
    %4007 = vmatprep.subr.mxu0 0.0
    %4008 = vmatpush1.msra.mxu0 0.0
    %4009 = vmatprep.mubr.f32.mxu0 0.0
    %4010 = vmatmul.mubr.f32.gmra.mrb[0].mxu0 %v3943
    %v4011 = vpop.f32.mrb[0].mxu0
    %v4012 = vadd.f32 0.0, %v4011
    %v4013 = vpop.f32.mrb[0].mxu0
    %4014 = vdwg.mxu0
    %4015 = vrot.lane.b32.xlu0 %v3803, 64
    %v4016 = vpop.permute.xlu0 %4015
    %v4018 = vsel %vm78, %v4012, %v4016
    %v4020 = vsel %vm1376, %v4018, 0
    %4022 = vmatprep.subr.mxu0 0.0
    %4023 = vmatpush1.msra.mxu0 %v1339
    %4024 = vmatprep.subr.mxu0 0.0
    %4025 = vmatpush1.msra.mxu0 %v1340
    %4026 = vmatprep.subr.mxu0 0.0
    %4027 = vmatpush1.msra.mxu0 %v1341
    %4028 = vmatprep.subr.mxu0 0.0
    %4029 = vmatpush1.msra.mxu0 %v1342
    %4030 = vmatprep.subr.mxu0 0.0
    %4031 = vmatpush1.msra.mxu0 %v1343
    %4032 = vmatprep.subr.mxu0 0.0
    %4033 = vmatpush1.msra.mxu0 %v1344
    %4034 = vmatprep.subr.mxu0 0.0
    %4035 = vmatpush1.msra.mxu0 %v1345
    %4036 = vmatprep.subr.mxu0 0.0
    %4037 = vmatpush1.msra.mxu0 %v1346
    %4038 = vmatprep.subr.mxu0 0.0
    %4039 = vmatpush1.msra.mxu0 0.0
    %4040 = vmatprep.subr.mxu0 0.0
    %4041 = vmatpush1.msra.mxu0 0.0
    %4042 = vmatprep.subr.mxu0 0.0
    %4043 = vmatpush1.msra.mxu0 0.0
    %4044 = vmatprep.subr.mxu0 0.0
    %4045 = vmatpush1.msra.mxu0 0.0
    %4046 = vmatprep.subr.mxu0 0.0
    %4047 = vmatpush1.msra.mxu0 0.0
    %4048 = vmatprep.subr.mxu0 0.0
    %4049 = vmatpush1.msra.mxu0 0.0
    %4050 = vmatprep.subr.mxu0 0.0
    %4051 = vmatpush1.msra.mxu0 0.0
    %4052 = vmatprep.subr.mxu0 0.0
    %4053 = vmatpush1.msra.mxu0 0.0
    %4054 = vmatprep.subr.mxu0 0.0
    %4055 = vmatpush1.msra.mxu0 0.0
    %4056 = vmatprep.subr.mxu0 0.0
    %4057 = vmatpush1.msra.mxu0 0.0
    %4058 = vmatprep.subr.mxu0 0.0
    %4059 = vmatpush1.msra.mxu0 0.0
    %4060 = vmatprep.subr.mxu0 0.0
    %4061 = vmatpush1.msra.mxu0 0.0
    %4062 = vmatprep.subr.mxu0 0.0
    %4063 = vmatpush1.msra.mxu0 0.0
    %4064 = vmatprep.subr.mxu0 0.0
    %4065 = vmatpush1.msra.mxu0 0.0
    %4066 = vmatprep.subr.mxu0 0.0
    %4067 = vmatpush1.msra.mxu0 0.0
    %4068 = vmatprep.subr.mxu0 0.0
    %4069 = vmatpush1.msra.mxu0 0.0
    %4070 = vmatprep.subr.mxu0 0.0
    %4071 = vmatpush1.msra.mxu0 0.0
    %4072 = vmatprep.subr.mxu0 0.0
    %4073 = vmatpush1.msra.mxu0 0.0
    %4074 = vmatprep.subr.mxu0 0.0
    %4075 = vmatpush1.msra.mxu0 0.0
    %4076 = vmatprep.subr.mxu0 0.0
    %4077 = vmatpush1.msra.mxu0 0.0
    %4078 = vmatprep.subr.mxu0 0.0
    %4079 = vmatpush1.msra.mxu0 0.0
    %4080 = vmatprep.subr.mxu0 0.0
    %4081 = vmatpush1.msra.mxu0 0.0
    %4082 = vmatprep.subr.mxu0 0.0
    %4083 = vmatpush1.msra.mxu0 0.0
    %4084 = vmatprep.subr.mxu0 0.0
    %4085 = vmatpush1.msra.mxu0 0.0
    %4086 = vmatprep.mubr.f32.mxu0 0.0
    %4087 = vmatmul.mubr.f32.gmra.mrb[0].mxu0 %v4020
    %v4088 = vpop.f32.mrb[0].mxu0
    %v4089 = vadd.f32 %v1347, %v4088
    %v4090 = vpop.f32.mrb[0].mxu0
    %4091 = vdwg.mxu0
    %v4092 = vsel %vm1586, %v4089, -inf
    %4093 = vmax.xlane.f32.xlu0 %v4092
    %v4094 = vpop.xlane.xlu0 %4093
    %v4095 = vsub.f32 %v4089, %v4094
    %v4096 = vmul.f32 %v4095, 1.442695
    %v4097 = vpow.pop %v4096
    %v4098 = vsel %vm1586, %v4097, 0.0
    %4099 = vadd.xlane.f32.xlu0 %v4098
    %v4100 = vpop.xlane.xlu0 %4099
    %v4101 = vrcp.pop %v4100
    %v4102 = vmul.f32 %v4097, %v4101
    %v4104 = vsel %vm1781, %v4102, 0
    %4106 = vmatprep.subr.mxu0 0.0
    %4107 = vmatpush1.msra.mxu0 %v1187
    %4108 = vmatprep.subr.mxu0 0.0
    %4109 = vmatpush1.msra.mxu0 0.0
    %4110 = vmatprep.subr.mxu0 0.0
    %4111 = vmatpush1.msra.mxu0 0.0
    %4112 = vmatprep.subr.mxu0 0.0
    %4113 = vmatpush1.msra.mxu0 0.0
    %4114 = vmatprep.subr.mxu0 0.0
    %4115 = vmatpush1.msra.mxu0 0.0
    %4116 = vmatprep.subr.mxu0 0.0
    %4117 = vmatpush1.msra.mxu0 0.0
    %4118 = vmatprep.subr.mxu0 0.0
    %4119 = vmatpush1.msra.mxu0 0.0
    %4120 = vmatprep.subr.mxu0 0.0
    %4121 = vmatpush1.msra.mxu0 0.0
    %4122 = vmatprep.subr.mxu0 0.0
    %4123 = vmatpush1.msra.mxu0 0.0
    %4124 = vmatprep.subr.mxu0 0.0
    %4125 = vmatpush1.msra.mxu0 0.0
    %4126 = vmatprep.subr.mxu0 0.0
    %4127 = vmatpush1.msra.mxu0 0.0
    %4128 = vmatprep.subr.mxu0 0.0
    %4129 = vmatpush1.msra.mxu0 0.0
    %4130 = vmatprep.subr.mxu0 0.0
    %4131 = vmatpush1.msra.mxu0 0.0
    %4132 = vmatprep.subr.mxu0 0.0
    %4133 = vmatpush1.msra.mxu0 0.0
    %4134 = vmatprep.subr.mxu0 0.0
    %4135 = vmatpush1.msra.mxu0 0.0
    %4136 = vmatprep.subr.mxu0 0.0
    %4137 = vmatpush1.msra.mxu0 0.0
    %4138 = vmatprep.subr.mxu0 0.0
    %4139 = vmatpush1.msra.mxu0 0.0
    %4140 = vmatprep.subr.mxu0 0.0
    %4141 = vmatpush1.msra.mxu0 0.0
    %4142 = vmatprep.subr.mxu0 0.0
    %4143 = vmatpush1.msra.mxu0 0.0
    %4144 = vmatprep.subr.mxu0 0.0
    %4145 = vmatpush1.msra.mxu0 0.0
    %4146 = vmatprep.subr.mxu0 0.0
    %4147 = vmatpush1.msra.mxu0 0.0
    %4148 = vmatprep.subr.mxu0 0.0
    %4149 = vmatpush1.msra.mxu0 0.0
    %4150 = vmatprep.subr.mxu0 0.0
    %4151 = vmatpush1.msra.mxu0 0.0
    %4152 = vmatprep.subr.mxu0 0.0
    %4153 = vmatpush1.msra.mxu0 0.0
    %4154 = vmatprep.subr.mxu0 0.0
    %4155 = vmatpush1.msra.mxu0 0.0
    %4156 = vmatprep.subr.mxu0 0.0
    %4157 = vmatpush1.msra.mxu0 0.0
    %4158 = vmatprep.subr.mxu0 0.0
    %4159 = vmatpush1.msra.mxu0 0.0
    %4160 = vmatprep.subr.mxu0 0.0
    %4161 = vmatpush1.msra.mxu0 0.0
    %4162 = vmatprep.subr.mxu0 0.0
    %4163 = vmatpush1.msra.mxu0 0.0
    %4164 = vmatprep.subr.mxu0 0.0
    %4165 = vmatpush1.msra.mxu0 0.0
    %4166 = vmatprep.subr.mxu0 0.0
    %4167 = vmatpush1.msra.mxu0 0.0
    %4168 = vmatprep.subr.mxu0 0.0
    %4169 = vmatpush1.msra.mxu0 0.0
    %4170 = vmatprep.mubr.f32.mxu0 0.0
    %4171 = vmatmul.mubr.f32.gmra.mrb[0].mxu0 %v4104
    %v4172 = vpop.f32.mrb[0].mxu0
    %v4173 = vadd.f32 0.0, %v4172
    %v4174 = vpop.f32.mrb[0].mxu0
    %4175 = vdwg.mxu0
    %vm4176 = vcmp.ne.f32.partialorder %v1367, %v3917
    %v4177 = vsel %vm4176, 1, 0
    %v4178 = vcvt.s32.f32 %v4177
    %v4179 = vmul.f32 %v3892, %v1864
    %v4181 = vlaneseq
    %v4182 = vshrl.u32 %v4181, 7
    %v4183 = vsub.s32 0, %v4182
    %v4184 = vrot.slane %v4178, %v4183
    %4185 = vrot.lane.b32.xlu0 %v4184, 16
    %v4186 = vpop.permute.xlu0 %4185
    %v4188 = vmul.f32 %v4179, %v4186
    %4190 = vrot.lane.b32.xlu0 %v4188, 112
    %v4191 = vpop.permute.xlu0 %4190
    %v4193 = vsel %vm1586, %v4191, 0.0
    %4194 = vadd.xlane.f32.xlu0 %v4193
    %v4195 = vpop.xlane.xlu0 %4194
    %vm4196 = vcmp.gt.f32.partialorder %v4195, 0.0
    %v4197 = vmax.f32 %v4195, 1e-30
    %v4198 = vrcp.pop %v4197
    %v4199 = vmul.f32 1.0, %v4198
    %v4200 = vsel %vm4196, %v4199, 1.0
    %v4201 = vmul.f32 %v4188, %v4200
    %4203 = vrot.lane.b32.xlu0 %v4201, 112
    %v4204 = vpop.permute.xlu0 %4203
    %v4205 = vsel %vm1781, %v4204, 0
    %4207 = vmatprep.subr.mxu0 0.0
    %4208 = vmatpush1.msra.mxu0 %v1187
    %4209 = vmatprep.subr.mxu0 0.0
    %4210 = vmatpush1.msra.mxu0 0.0
    %4211 = vmatprep.subr.mxu0 0.0
    %4212 = vmatpush1.msra.mxu0 0.0
    %4213 = vmatprep.subr.mxu0 0.0
    %4214 = vmatpush1.msra.mxu0 0.0
    %4215 = vmatprep.subr.mxu0 0.0
    %4216 = vmatpush1.msra.mxu0 0.0
    %4217 = vmatprep.subr.mxu0 0.0
    %4218 = vmatpush1.msra.mxu0 0.0
    %4219 = vmatprep.subr.mxu0 0.0
    %4220 = vmatpush1.msra.mxu0 0.0
    %4221 = vmatprep.subr.mxu0 0.0
    %4222 = vmatpush1.msra.mxu0 0.0
    %4223 = vmatprep.subr.mxu0 0.0
    %4224 = vmatpush1.msra.mxu0 0.0
    %4225 = vmatprep.subr.mxu0 0.0
    %4226 = vmatpush1.msra.mxu0 0.0
    %4227 = vmatprep.subr.mxu0 0.0
    %4228 = vmatpush1.msra.mxu0 0.0
    %4229 = vmatprep.subr.mxu0 0.0
    %4230 = vmatpush1.msra.mxu0 0.0
    %4231 = vmatprep.subr.mxu0 0.0
    %4232 = vmatpush1.msra.mxu0 0.0
    %4233 = vmatprep.subr.mxu0 0.0
    %4234 = vmatpush1.msra.mxu0 0.0
    %4235 = vmatprep.subr.mxu0 0.0
    %4236 = vmatpush1.msra.mxu0 0.0
    %4237 = vmatprep.subr.mxu0 0.0
    %4238 = vmatpush1.msra.mxu0 0.0
    %4239 = vmatprep.subr.mxu0 0.0
    %4240 = vmatpush1.msra.mxu0 0.0
    %4241 = vmatprep.subr.mxu0 0.0
    %4242 = vmatpush1.msra.mxu0 0.0
    %4243 = vmatprep.subr.mxu0 0.0
    %4244 = vmatpush1.msra.mxu0 0.0
    %4245 = vmatprep.subr.mxu0 0.0
    %4246 = vmatpush1.msra.mxu0 0.0
    %4247 = vmatprep.subr.mxu0 0.0
    %4248 = vmatpush1.msra.mxu0 0.0
    %4249 = vmatprep.subr.mxu0 0.0
    %4250 = vmatpush1.msra.mxu0 0.0
    %4251 = vmatprep.subr.mxu0 0.0
    %4252 = vmatpush1.msra.mxu0 0.0
    %4253 = vmatprep.subr.mxu0 0.0
    %4254 = vmatpush1.msra.mxu0 0.0
    %4255 = vmatprep.subr.mxu0 0.0
    %4256 = vmatpush1.msra.mxu0 0.0
    %4257 = vmatprep.subr.mxu0 0.0
    %4258 = vmatpush1.msra.mxu0 0.0
    %4259 = vmatprep.subr.mxu0 0.0
    %4260 = vmatpush1.msra.mxu0 0.0
    %4261 = vmatprep.subr.mxu0 0.0
    %4262 = vmatpush1.msra.mxu0 0.0
    %4263 = vmatprep.subr.mxu0 0.0
    %4264 = vmatpush1.msra.mxu0 0.0
    %4265 = vmatprep.subr.mxu0 0.0
    %4266 = vmatpush1.msra.mxu0 0.0
    %4267 = vmatprep.subr.mxu0 0.0
    %4268 = vmatpush1.msra.mxu0 0.0
    %4269 = vmatprep.subr.mxu0 0.0
    %4270 = vmatpush1.msra.mxu0 0.0
    %4271 = vmatprep.mubr.f32.mxu0 0.0
    %4272 = vmatmul.mubr.f32.gmra.mrb[0].mxu0 %v4205
    %v4273 = vpop.f32.mrb[0].mxu0
    %v4274 = vadd.f32 0.0, %v4273
    %v4275 = vpop.f32.mrb[0].mxu0
    %4276 = vdwg.mxu0
    %4278 = vrot.lane.b32.xlu0 %v4274, 32
    %v4279 = vpop.permute.xlu0 %4278
    %4282 = vrot.lane.b32.xlu0 %v4173, 64
    %v4283 = vpop.permute.xlu0 %4282
    %v4285 = vsel %vm78, %v4012, %v4279
    %v4286 = vsel %vm1376, %v4285, %v4283
    %v4287 = vsel %vm1378, %v4286, %v3803
    %4288 = vmatprep.subr.mxu0 0.0
    %4289 = vmatpush1.msra.mxu0 %v1348
    %4290 = vmatprep.subr.mxu0 0.0
    %4291 = vmatpush1.msra.mxu0 %v1349
    %4292 = vmatprep.subr.mxu0 0.0
    %4293 = vmatpush1.msra.mxu0 %v1350
    %4294 = vmatprep.subr.mxu0 0.0
    %4295 = vmatpush1.msra.mxu0 %v1351
    %4296 = vmatprep.subr.mxu0 0.0
    %4297 = vmatpush1.msra.mxu0 %v1352
    %4298 = vmatprep.subr.mxu0 0.0
    %4299 = vmatpush1.msra.mxu0 %v1353
    %4300 = vmatprep.subr.mxu0 0.0
    %4301 = vmatpush1.msra.mxu0 %v1354
    %4302 = vmatprep.subr.mxu0 0.0
    %4303 = vmatpush1.msra.mxu0 %v1355
    %4304 = vmatprep.subr.mxu0 0.0
    %4305 = vmatpush1.msra.mxu0 %v1356
    %4306 = vmatprep.subr.mxu0 0.0
    %4307 = vmatpush1.msra.mxu0 %v1357
    %4308 = vmatprep.subr.mxu0 0.0
    %4309 = vmatpush1.msra.mxu0 %v1358
    %4310 = vmatprep.subr.mxu0 0.0
    %4311 = vmatpush1.msra.mxu0 %v1359
    %4312 = vmatprep.subr.mxu0 0.0
    %4313 = vmatpush1.msra.mxu0 %v1360
    %4314 = vmatprep.subr.mxu0 0.0
    %4315 = vmatpush1.msra.mxu0 %v1361
    %4316 = vmatprep.subr.mxu0 0.0
    %4317 = vmatpush1.msra.mxu0 %v1362
    %4318 = vmatprep.subr.mxu0 0.0
    %4319 = vmatpush1.msra.mxu0 %v1363
    %4320 = vmatprep.subr.mxu0 0.0
    %4321 = vmatpush1.msra.mxu0 0.0
    %4322 = vmatprep.subr.mxu0 0.0
    %4323 = vmatpush1.msra.mxu0 0.0
    %4324 = vmatprep.subr.mxu0 0.0
    %4325 = vmatpush1.msra.mxu0 0.0
    %4326 = vmatprep.subr.mxu0 0.0
    %4327 = vmatpush1.msra.mxu0 0.0
    %4328 = vmatprep.subr.mxu0 0.0
    %4329 = vmatpush1.msra.mxu0 0.0
    %4330 = vmatprep.subr.mxu0 0.0
    %4331 = vmatpush1.msra.mxu0 0.0
    %4332 = vmatprep.subr.mxu0 0.0
    %4333 = vmatpush1.msra.mxu0 0.0
    %4334 = vmatprep.subr.mxu0 0.0
    %4335 = vmatpush1.msra.mxu0 0.0
    %4336 = vmatprep.subr.mxu0 0.0
    %4337 = vmatpush1.msra.mxu0 0.0
    %4338 = vmatprep.subr.mxu0 0.0
    %4339 = vmatpush1.msra.mxu0 0.0
    %4340 = vmatprep.subr.mxu0 0.0
    %4341 = vmatpush1.msra.mxu0 0.0
    %4342 = vmatprep.subr.mxu0 0.0
    %4343 = vmatpush1.msra.mxu0 0.0
    %4344 = vmatprep.subr.mxu0 0.0
    %4345 = vmatpush1.msra.mxu0 0.0
    %4346 = vmatprep.subr.mxu0 0.0
    %4347 = vmatpush1.msra.mxu0 0.0
    %4348 = vmatprep.subr.mxu0 0.0
    %4349 = vmatpush1.msra.mxu0 0.0
    %4350 = vmatprep.subr.mxu0 0.0
    %4351 = vmatpush1.msra.mxu0 0.0
    %4352 = vmatprep.mubr.f32.mxu0 0.0
    %4353 = vmatmul.mubr.f32.gmra.mrb[0].mxu0 %v4287
    %v4354 = vpop.f32.mrb[0].mxu0
    %v4355 = vadd.f32 %v1364, %v4354
    %v4356 = vpop.f32.mrb[0].mxu0
    %4357 = vdwg.mxu0
    %v4358 = vxor.u32 %v4355, 2147483648
    %v4359 = vmul.f32 %v4358, 1.442695
    %v4360 = vpow.pop %v4359
    %v4361 = vadd.f32 %v4360, 1.0
    %v4362 = vrcp.pop %v4361
    %v4363 = vmul.f32 1.0, %v4362
    %v4364 = vtanh.pop %v4355
    %v4365 = vmul.f32 %v4363, %v3797
    %4367 = vrot.lane.b32.xlu0 %v4364, 64
    %v4368 = vpop.permute.xlu0 %4367
    %v4370 = vmul.f32 %v4363, %v4368
    %4372 = vrot.lane.b32.xlu0 %v4370, 32
    %v4373 = vpop.permute.xlu0 %4372
    %v4375 = vadd.f32 %v4365, %v4373
    %v4376 = vtanh.pop %v4375
    %4378 = vrot.lane.b32.xlu0 %v4376, 64
    %v4379 = vpop.permute.xlu0 %4378
    %v4381 = vmul.f32 %v4363, %v4379
    %4383 = vrot.lane.b32.xlu0 %v4381, 32
    %v4384 = vpop.permute.xlu0 %4383
    %v4386 = vsel %vm78, %v4384, 0.0
    %4387 = vst [vmem:[#allocation3 + $0x6] sm:$0x1] %v4386
    %v4388 = vsel %vm78, %v4384, 0
    %4390 = vmatprep.subr.mxu0 0.0
    %4391 = vmatpush1.msra.mxu0 %v1332
    %4392 = vmatprep.subr.mxu0 0.0
    %4393 = vmatpush1.msra.mxu0 %v1333
    %4394 = vmatprep.subr.mxu0 0.0
    %4395 = vmatpush1.msra.mxu0 %v1334
    %4396 = vmatprep.subr.mxu0 0.0
    %4397 = vmatpush1.msra.mxu0 %v1335
    %4398 = vmatprep.subr.mxu0 0.0
    %4399 = vmatpush1.msra.mxu0 0.0
    %4400 = vmatprep.subr.mxu0 0.0
    %4401 = vmatpush1.msra.mxu0 0.0
    %4402 = vmatprep.subr.mxu0 0.0
    %4403 = vmatpush1.msra.mxu0 0.0
    %4404 = vmatprep.subr.mxu0 0.0
    %4405 = vmatpush1.msra.mxu0 0.0
    %4406 = vmatprep.subr.mxu0 0.0
    %4407 = vmatpush1.msra.mxu0 0.0
    %4408 = vmatprep.subr.mxu0 0.0
    %4409 = vmatpush1.msra.mxu0 0.0
    %4410 = vmatprep.subr.mxu0 0.0
    %4411 = vmatpush1.msra.mxu0 0.0
    %4412 = vmatprep.subr.mxu0 0.0
    %4413 = vmatpush1.msra.mxu0 0.0
    %4414 = vmatprep.subr.mxu0 0.0
    %4415 = vmatpush1.msra.mxu0 0.0
    %4416 = vmatprep.subr.mxu0 0.0
    %4417 = vmatpush1.msra.mxu0 0.0
    %4418 = vmatprep.subr.mxu0 0.0
    %4419 = vmatpush1.msra.mxu0 0.0
    %4420 = vmatprep.subr.mxu0 0.0
    %4421 = vmatpush1.msra.mxu0 0.0
    %4422 = vmatprep.subr.mxu0 0.0
    %4423 = vmatpush1.msra.mxu0 0.0
    %4424 = vmatprep.subr.mxu0 0.0
    %4425 = vmatpush1.msra.mxu0 0.0
    %4426 = vmatprep.subr.mxu0 0.0
    %4427 = vmatpush1.msra.mxu0 0.0
    %4428 = vmatprep.subr.mxu0 0.0
    %4429 = vmatpush1.msra.mxu0 0.0
    %4430 = vmatprep.subr.mxu0 0.0
    %4431 = vmatpush1.msra.mxu0 0.0
    %4432 = vmatprep.subr.mxu0 0.0
    %4433 = vmatpush1.msra.mxu0 0.0
    %4434 = vmatprep.subr.mxu0 0.0
    %4435 = vmatpush1.msra.mxu0 0.0
    %4436 = vmatprep.subr.mxu0 0.0
    %4437 = vmatpush1.msra.mxu0 0.0
    %4438 = vmatprep.subr.mxu0 0.0
    %4439 = vmatpush1.msra.mxu0 0.0
    %4440 = vmatprep.subr.mxu0 0.0
    %4441 = vmatpush1.msra.mxu0 0.0
    %4442 = vmatprep.subr.mxu0 0.0
    %4443 = vmatpush1.msra.mxu0 0.0
    %4444 = vmatprep.subr.mxu0 0.0
    %4445 = vmatpush1.msra.mxu0 0.0
    %4446 = vmatprep.subr.mxu0 0.0
    %4447 = vmatpush1.msra.mxu0 0.0
    %4448 = vmatprep.subr.mxu0 0.0
    %4449 = vmatpush1.msra.mxu0 0.0
    %4450 = vmatprep.subr.mxu0 0.0
    %4451 = vmatpush1.msra.mxu0 0.0
    %4452 = vmatprep.subr.mxu0 0.0
    %4453 = vmatpush1.msra.mxu0 0.0
    %4454 = vmatprep.mubr.f32.mxu0 0.0
    %4455 = vmatmul.mubr.f32.gmra.mrb[0].mxu0 %v4388
    %v4456 = vpop.f32.mrb[0].mxu0
    %v4457 = vadd.f32 %v1337, %v4456
    %v4458 = vpop.f32.mrb[0].mxu0
    %4459 = vdwg.mxu0
    %v4460 = vsel %vm1555, %v4457, -inf
    %4461 = vmax.xlane.f32.xlu0 %v4460
    %v4462 = vpop.xlane.xlu0 %4461
    %v4463 = vsub.f32 %v4457, %v4462
    %v4464 = vmul.f32 %v4463, 1.442695
    %v4465 = vpow.pop %v4464
    %v4466 = vsel %vm1555, %v4465, 0.0
    %4467 = vadd.xlane.f32.xlu0 %v4466
    %v4468 = vpop.xlane.xlu0 %4467
    %v4469 = vrcp.pop %v4468
    %v4470 = vmul.f32 %v4465, %v4469
    %v4471 = vmul.f32 %v4470, %v1338
    %vm4472 = vcmp.gt.f32.partialorder %v4471, 0.0
    %v4473 = vmax.f32 %v4471, 1e-30
    %v4474 = vlog2.pop %v4473
    %v4475 = vmul.f32 %v4474, 0.6931472
    %v4476 = vsel %vm4472, %v4475, -1e+30
    %v4477 = vrot.slane %v1369, 5
    %v4479 = vadd.f32 %v4476, %v4477
    %v4480 = vsel %vm1555, %v4479, -inf
    %4481 = vmax.xlane.f32.xlu0 %v4480
    %v4482 = vpop.xlane.xlu0 %4481
    %vm4483 = vcmp.ge.f32.partialorder %v4479, %v4482
    %v4484 = vsel %vm4483, %v1372, 24.0
    %v4485 = vsel %vm1555, %v4484, inf
    %4486 = vmin.xlane.f32.xlu0 %v4485
    %v4487 = vpop.xlane.xlu0 %4486
    %vm4488 = vcmp.ge.f32.partialorder %v4487, 16.0
    %v4489 = vsub.f32 %v4487, 16.0
    %vm4490 = vcmp.eq.f32.partialorder %v1372, %v4489
    %v4491 = vsel %vm4490, %v1367, 0.0
    %v4492 = vsel %vm1586, %v4491, 0.0
    %4493 = vadd.xlane.f32.xlu0 %v4492
    %v4494 = vpop.xlane.xlu0 %4493
    %v4495 = vsel %vm4488, %v4494, %v4487
    %vm4496 = vcmp.eq.f32.partialorder %v1372, %v4487
    %v4497 = vsel %vm4496, %v4471, 0.0
    %v4498 = vsel %vm1555, %v4497, 0.0
    %4499 = vadd.xlane.f32.xlu0 %v4498
    %v4500 = vpop.xlane.xlu0 %4499
    %vm4501 = vcmp.eq.f32.partialorder %v1372, %v4495
    %v4502 = vsel %vm4501, %v4471, 0.0
    %v4503 = vsel %vm1598, %v4502, 0.0
    %4504 = vadd.xlane.f32.xlu0 %v4503
    %v4505 = vpop.xlane.xlu0 %4504
    %v4506 = vadd.f32 %v4500, %v4505
    %v4507 = vsel %vm4488, %v4506, %v4500
    %v4508 = vsel %vm1604, %v4495, 0.0
    %v4509 = vsel %vm1606, %v4507, 0.0
    %v4510 = vadd.f32 %v4508, %v4509
    %v4511 = vsel %vm1609, %v4487, 0.0
    %v4512 = vadd.f32 %v4510, %v4511
    %v4513 = vsel %vm4488, 1, 0
    %v4514 = vcvt.s32.f32 %v4513
    %v4515 = vsel %vm1612, %v4514, 0.0
    %v4516 = vadd.f32 %v4512, %v4515
    %4517 = vst [vmem:[#allocation5 + $0x5] sm:$0x1] %v4516
    %v4518 = vsel %vm4501, 1, 0
    %v4519 = vcvt.s32.f32 %v4518
    %v4521 = vsel %vm1331, %v4519, 0
    %4523 = vmatprep.subr.mxu0 0.0
    %4524 = vmatpush1.msra.mxu0 %v1365
    %4525 = vmatprep.subr.mxu0 0.0
    %4526 = vmatpush1.msra.mxu0 %v1366
    %4527 = vmatprep.subr.mxu0 0.0
    %4528 = vmatpush1.msra.mxu0 0.0
    %4529 = vmatprep.subr.mxu0 0.0
    %4530 = vmatpush1.msra.mxu0 0.0
    %4531 = vmatprep.subr.mxu0 0.0
    %4532 = vmatpush1.msra.mxu0 0.0
    %4533 = vmatprep.subr.mxu0 0.0
    %4534 = vmatpush1.msra.mxu0 0.0
    %4535 = vmatprep.subr.mxu0 0.0
    %4536 = vmatpush1.msra.mxu0 0.0
    %4537 = vmatprep.subr.mxu0 0.0
    %4538 = vmatpush1.msra.mxu0 0.0
    %4539 = vmatprep.subr.mxu0 0.0
    %4540 = vmatpush1.msra.mxu0 0.0
    %4541 = vmatprep.subr.mxu0 0.0
    %4542 = vmatpush1.msra.mxu0 0.0
    %4543 = vmatprep.subr.mxu0 0.0
    %4544 = vmatpush1.msra.mxu0 0.0
    %4545 = vmatprep.subr.mxu0 0.0
    %4546 = vmatpush1.msra.mxu0 0.0
    %4547 = vmatprep.subr.mxu0 0.0
    %4548 = vmatpush1.msra.mxu0 0.0
    %4549 = vmatprep.subr.mxu0 0.0
    %4550 = vmatpush1.msra.mxu0 0.0
    %4551 = vmatprep.subr.mxu0 0.0
    %4552 = vmatpush1.msra.mxu0 0.0
    %4553 = vmatprep.subr.mxu0 0.0
    %4554 = vmatpush1.msra.mxu0 0.0
    %4555 = vmatprep.subr.mxu0 0.0
    %4556 = vmatpush1.msra.mxu0 0.0
    %4557 = vmatprep.subr.mxu0 0.0
    %4558 = vmatpush1.msra.mxu0 0.0
    %4559 = vmatprep.subr.mxu0 0.0
    %4560 = vmatpush1.msra.mxu0 0.0
    %4561 = vmatprep.subr.mxu0 0.0
    %4562 = vmatpush1.msra.mxu0 0.0
    %4563 = vmatprep.subr.mxu0 0.0
    %4564 = vmatpush1.msra.mxu0 0.0
    %4565 = vmatprep.subr.mxu0 0.0
    %4566 = vmatpush1.msra.mxu0 0.0
    %4567 = vmatprep.subr.mxu0 0.0
    %4568 = vmatpush1.msra.mxu0 0.0
    %4569 = vmatprep.subr.mxu0 0.0
    %4570 = vmatpush1.msra.mxu0 0.0
    %4571 = vmatprep.subr.mxu0 0.0
    %4572 = vmatpush1.msra.mxu0 0.0
    %4573 = vmatprep.subr.mxu0 0.0
    %4574 = vmatpush1.msra.mxu0 0.0
    %4575 = vmatprep.subr.mxu0 0.0
    %4576 = vmatpush1.msra.mxu0 0.0
    %4577 = vmatprep.subr.mxu0 0.0
    %4578 = vmatpush1.msra.mxu0 0.0
    %4579 = vmatprep.subr.mxu0 0.0
    %4580 = vmatpush1.msra.mxu0 0.0
    %4581 = vmatprep.subr.mxu0 0.0
    %4582 = vmatpush1.msra.mxu0 0.0
    %4583 = vmatprep.subr.mxu0 0.0
    %4584 = vmatpush1.msra.mxu0 0.0
    %4585 = vmatprep.subr.mxu0 0.0
    %4586 = vmatpush1.msra.mxu0 0.0
    %4587 = vmatprep.mubr.f32.mxu0 0.0
    %4588 = vmatmul.mubr.f32.gmra.mrb[0].mxu0 %v4521
    %v4589 = vpop.f32.mrb[0].mxu0
    %v4590 = vadd.f32 0.0, %v4589
    %v4591 = vpop.f32.mrb[0].mxu0
    %4592 = vdwg.mxu0
    %4593 = vrot.lane.b32.xlu0 %v4381, 64
    %v4594 = vpop.permute.xlu0 %4593
    %v4596 = vsel %vm78, %v4590, %v4594
    %v4598 = vsel %vm1376, %v4596, 0
    %4600 = vmatprep.subr.mxu0 0.0
    %4601 = vmatpush1.msra.mxu0 %v1339
    %4602 = vmatprep.subr.mxu0 0.0
    %4603 = vmatpush1.msra.mxu0 %v1340
    %4604 = vmatprep.subr.mxu0 0.0
    %4605 = vmatpush1.msra.mxu0 %v1341
    %4606 = vmatprep.subr.mxu0 0.0
    %4607 = vmatpush1.msra.mxu0 %v1342
    %4608 = vmatprep.subr.mxu0 0.0
    %4609 = vmatpush1.msra.mxu0 %v1343
    %4610 = vmatprep.subr.mxu0 0.0
    %4611 = vmatpush1.msra.mxu0 %v1344
    %4612 = vmatprep.subr.mxu0 0.0
    %4613 = vmatpush1.msra.mxu0 %v1345
    %4614 = vmatprep.subr.mxu0 0.0
    %4615 = vmatpush1.msra.mxu0 %v1346
    %4616 = vmatprep.subr.mxu0 0.0
    %4617 = vmatpush1.msra.mxu0 0.0
    %4618 = vmatprep.subr.mxu0 0.0
    %4619 = vmatpush1.msra.mxu0 0.0
    %4620 = vmatprep.subr.mxu0 0.0
    %4621 = vmatpush1.msra.mxu0 0.0
    %4622 = vmatprep.subr.mxu0 0.0
    %4623 = vmatpush1.msra.mxu0 0.0
    %4624 = vmatprep.subr.mxu0 0.0
    %4625 = vmatpush1.msra.mxu0 0.0
    %4626 = vmatprep.subr.mxu0 0.0
    %4627 = vmatpush1.msra.mxu0 0.0
    %4628 = vmatprep.subr.mxu0 0.0
    %4629 = vmatpush1.msra.mxu0 0.0
    %4630 = vmatprep.subr.mxu0 0.0
    %4631 = vmatpush1.msra.mxu0 0.0
    %4632 = vmatprep.subr.mxu0 0.0
    %4633 = vmatpush1.msra.mxu0 0.0
    %4634 = vmatprep.subr.mxu0 0.0
    %4635 = vmatpush1.msra.mxu0 0.0
    %4636 = vmatprep.subr.mxu0 0.0
    %4637 = vmatpush1.msra.mxu0 0.0
    %4638 = vmatprep.subr.mxu0 0.0
    %4639 = vmatpush1.msra.mxu0 0.0
    %4640 = vmatprep.subr.mxu0 0.0
    %4641 = vmatpush1.msra.mxu0 0.0
    %4642 = vmatprep.subr.mxu0 0.0
    %4643 = vmatpush1.msra.mxu0 0.0
    %4644 = vmatprep.subr.mxu0 0.0
    %4645 = vmatpush1.msra.mxu0 0.0
    %4646 = vmatprep.subr.mxu0 0.0
    %4647 = vmatpush1.msra.mxu0 0.0
    %4648 = vmatprep.subr.mxu0 0.0
    %4649 = vmatpush1.msra.mxu0 0.0
    %4650 = vmatprep.subr.mxu0 0.0
    %4651 = vmatpush1.msra.mxu0 0.0
    %4652 = vmatprep.subr.mxu0 0.0
    %4653 = vmatpush1.msra.mxu0 0.0
    %4654 = vmatprep.subr.mxu0 0.0
    %4655 = vmatpush1.msra.mxu0 0.0
    %4656 = vmatprep.subr.mxu0 0.0
    %4657 = vmatpush1.msra.mxu0 0.0
    %4658 = vmatprep.subr.mxu0 0.0
    %4659 = vmatpush1.msra.mxu0 0.0
    %4660 = vmatprep.subr.mxu0 0.0
    %4661 = vmatpush1.msra.mxu0 0.0
    %4662 = vmatprep.subr.mxu0 0.0
    %4663 = vmatpush1.msra.mxu0 0.0
    %4664 = vmatprep.mubr.f32.mxu0 0.0
    %4665 = vmatmul.mubr.f32.gmra.mrb[0].mxu0 %v4598
    %v4666 = vpop.f32.mrb[0].mxu0
    %v4667 = vadd.f32 %v1347, %v4666
    %v4668 = vpop.f32.mrb[0].mxu0
    %4669 = vdwg.mxu0
    %v4670 = vsel %vm1586, %v4667, -inf
    %4671 = vmax.xlane.f32.xlu0 %v4670
    %v4672 = vpop.xlane.xlu0 %4671
    %v4673 = vsub.f32 %v4667, %v4672
    %v4674 = vmul.f32 %v4673, 1.442695
    %v4675 = vpow.pop %v4674
    %v4676 = vsel %vm1586, %v4675, 0.0
    %4677 = vadd.xlane.f32.xlu0 %v4676
    %v4678 = vpop.xlane.xlu0 %4677
    %v4679 = vrcp.pop %v4678
    %v4680 = vmul.f32 %v4675, %v4679
    %v4682 = vsel %vm1781, %v4680, 0
    %4684 = vmatprep.subr.mxu0 0.0
    %4685 = vmatpush1.msra.mxu0 %v1187
    %4686 = vmatprep.subr.mxu0 0.0
    %4687 = vmatpush1.msra.mxu0 0.0
    %4688 = vmatprep.subr.mxu0 0.0
    %4689 = vmatpush1.msra.mxu0 0.0
    %4690 = vmatprep.subr.mxu0 0.0
    %4691 = vmatpush1.msra.mxu0 0.0
    %4692 = vmatprep.subr.mxu0 0.0
    %4693 = vmatpush1.msra.mxu0 0.0
    %4694 = vmatprep.subr.mxu0 0.0
    %4695 = vmatpush1.msra.mxu0 0.0
    %4696 = vmatprep.subr.mxu0 0.0
    %4697 = vmatpush1.msra.mxu0 0.0
    %4698 = vmatprep.subr.mxu0 0.0
    %4699 = vmatpush1.msra.mxu0 0.0
    %4700 = vmatprep.subr.mxu0 0.0
    %4701 = vmatpush1.msra.mxu0 0.0
    %4702 = vmatprep.subr.mxu0 0.0
    %4703 = vmatpush1.msra.mxu0 0.0
    %4704 = vmatprep.subr.mxu0 0.0
    %4705 = vmatpush1.msra.mxu0 0.0
    %4706 = vmatprep.subr.mxu0 0.0
    %4707 = vmatpush1.msra.mxu0 0.0
    %4708 = vmatprep.subr.mxu0 0.0
    %4709 = vmatpush1.msra.mxu0 0.0
    %4710 = vmatprep.subr.mxu0 0.0
    %4711 = vmatpush1.msra.mxu0 0.0
    %4712 = vmatprep.subr.mxu0 0.0
    %4713 = vmatpush1.msra.mxu0 0.0
    %4714 = vmatprep.subr.mxu0 0.0
    %4715 = vmatpush1.msra.mxu0 0.0
    %4716 = vmatprep.subr.mxu0 0.0
    %4717 = vmatpush1.msra.mxu0 0.0
    %4718 = vmatprep.subr.mxu0 0.0
    %4719 = vmatpush1.msra.mxu0 0.0
    %4720 = vmatprep.subr.mxu0 0.0
    %4721 = vmatpush1.msra.mxu0 0.0
    %4722 = vmatprep.subr.mxu0 0.0
    %4723 = vmatpush1.msra.mxu0 0.0
    %4724 = vmatprep.subr.mxu0 0.0
    %4725 = vmatpush1.msra.mxu0 0.0
    %4726 = vmatprep.subr.mxu0 0.0
    %4727 = vmatpush1.msra.mxu0 0.0
    %4728 = vmatprep.subr.mxu0 0.0
    %4729 = vmatpush1.msra.mxu0 0.0
    %4730 = vmatprep.subr.mxu0 0.0
    %4731 = vmatpush1.msra.mxu0 0.0
    %4732 = vmatprep.subr.mxu0 0.0
    %4733 = vmatpush1.msra.mxu0 0.0
    %4734 = vmatprep.subr.mxu0 0.0
    %4735 = vmatpush1.msra.mxu0 0.0
    %4736 = vmatprep.subr.mxu0 0.0
    %4737 = vmatpush1.msra.mxu0 0.0
    %4738 = vmatprep.subr.mxu0 0.0
    %4739 = vmatpush1.msra.mxu0 0.0
    %4740 = vmatprep.subr.mxu0 0.0
    %4741 = vmatpush1.msra.mxu0 0.0
    %4742 = vmatprep.subr.mxu0 0.0
    %4743 = vmatpush1.msra.mxu0 0.0
    %4744 = vmatprep.subr.mxu0 0.0
    %4745 = vmatpush1.msra.mxu0 0.0
    %4746 = vmatprep.subr.mxu0 0.0
    %4747 = vmatpush1.msra.mxu0 0.0
    %4748 = vmatprep.mubr.f32.mxu0 0.0
    %4749 = vmatmul.mubr.f32.gmra.mrb[0].mxu0 %v4682
    %v4750 = vpop.f32.mrb[0].mxu0
    %v4751 = vadd.f32 0.0, %v4750
    %v4752 = vpop.f32.mrb[0].mxu0
    %4753 = vdwg.mxu0
    %vm4754 = vcmp.ne.f32.partialorder %v1367, %v4495
    %v4755 = vsel %vm4754, 1, 0
    %v4756 = vcvt.s32.f32 %v4755
    %v4757 = vmul.f32 %v4470, %v1864
    %v4759 = vlaneseq
    %v4760 = vshrl.u32 %v4759, 7
    %v4761 = vsub.s32 0, %v4760
    %v4762 = vrot.slane %v4756, %v4761
    %4763 = vrot.lane.b32.xlu0 %v4762, 16
    %v4764 = vpop.permute.xlu0 %4763
    %v4766 = vmul.f32 %v4757, %v4764
    %4768 = vrot.lane.b32.xlu0 %v4766, 112
    %v4769 = vpop.permute.xlu0 %4768
    %v4771 = vsel %vm1586, %v4769, 0.0
    %4772 = vadd.xlane.f32.xlu0 %v4771
    %v4773 = vpop.xlane.xlu0 %4772
    %vm4774 = vcmp.gt.f32.partialorder %v4773, 0.0
    %v4775 = vmax.f32 %v4773, 1e-30
    %v4776 = vrcp.pop %v4775
    %v4777 = vmul.f32 1.0, %v4776
    %v4778 = vsel %vm4774, %v4777, 1.0
    %v4779 = vmul.f32 %v4766, %v4778
    %4781 = vrot.lane.b32.xlu0 %v4779, 112
    %v4782 = vpop.permute.xlu0 %4781
    %v4783 = vsel %vm1781, %v4782, 0
    %4785 = vmatprep.subr.mxu0 0.0
    %4786 = vmatpush1.msra.mxu0 %v1187
    %4787 = vmatprep.subr.mxu0 0.0
    %4788 = vmatpush1.msra.mxu0 0.0
    %4789 = vmatprep.subr.mxu0 0.0
    %4790 = vmatpush1.msra.mxu0 0.0
    %4791 = vmatprep.subr.mxu0 0.0
    %4792 = vmatpush1.msra.mxu0 0.0
    %4793 = vmatprep.subr.mxu0 0.0
    %4794 = vmatpush1.msra.mxu0 0.0
    %4795 = vmatprep.subr.mxu0 0.0
    %4796 = vmatpush1.msra.mxu0 0.0
    %4797 = vmatprep.subr.mxu0 0.0
    %4798 = vmatpush1.msra.mxu0 0.0
    %4799 = vmatprep.subr.mxu0 0.0
    %4800 = vmatpush1.msra.mxu0 0.0
    %4801 = vmatprep.subr.mxu0 0.0
    %4802 = vmatpush1.msra.mxu0 0.0
    %4803 = vmatprep.subr.mxu0 0.0
    %4804 = vmatpush1.msra.mxu0 0.0
    %4805 = vmatprep.subr.mxu0 0.0
    %4806 = vmatpush1.msra.mxu0 0.0
    %4807 = vmatprep.subr.mxu0 0.0
    %4808 = vmatpush1.msra.mxu0 0.0
    %4809 = vmatprep.subr.mxu0 0.0
    %4810 = vmatpush1.msra.mxu0 0.0
    %4811 = vmatprep.subr.mxu0 0.0
    %4812 = vmatpush1.msra.mxu0 0.0
    %4813 = vmatprep.subr.mxu0 0.0
    %4814 = vmatpush1.msra.mxu0 0.0
    %4815 = vmatprep.subr.mxu0 0.0
    %4816 = vmatpush1.msra.mxu0 0.0
    %4817 = vmatprep.subr.mxu0 0.0
    %4818 = vmatpush1.msra.mxu0 0.0
    %4819 = vmatprep.subr.mxu0 0.0
    %4820 = vmatpush1.msra.mxu0 0.0
    %4821 = vmatprep.subr.mxu0 0.0
    %4822 = vmatpush1.msra.mxu0 0.0
    %4823 = vmatprep.subr.mxu0 0.0
    %4824 = vmatpush1.msra.mxu0 0.0
    %4825 = vmatprep.subr.mxu0 0.0
    %4826 = vmatpush1.msra.mxu0 0.0
    %4827 = vmatprep.subr.mxu0 0.0
    %4828 = vmatpush1.msra.mxu0 0.0
    %4829 = vmatprep.subr.mxu0 0.0
    %4830 = vmatpush1.msra.mxu0 0.0
    %4831 = vmatprep.subr.mxu0 0.0
    %4832 = vmatpush1.msra.mxu0 0.0
    %4833 = vmatprep.subr.mxu0 0.0
    %4834 = vmatpush1.msra.mxu0 0.0
    %4835 = vmatprep.subr.mxu0 0.0
    %4836 = vmatpush1.msra.mxu0 0.0
    %4837 = vmatprep.subr.mxu0 0.0
    %4838 = vmatpush1.msra.mxu0 0.0
    %4839 = vmatprep.subr.mxu0 0.0
    %4840 = vmatpush1.msra.mxu0 0.0
    %4841 = vmatprep.subr.mxu0 0.0
    %4842 = vmatpush1.msra.mxu0 0.0
    %4843 = vmatprep.subr.mxu0 0.0
    %4844 = vmatpush1.msra.mxu0 0.0
    %4845 = vmatprep.subr.mxu0 0.0
    %4846 = vmatpush1.msra.mxu0 0.0
    %4847 = vmatprep.subr.mxu0 0.0
    %4848 = vmatpush1.msra.mxu0 0.0
    %4849 = vmatprep.mubr.f32.mxu0 0.0
    %4850 = vmatmul.mubr.f32.gmra.mrb[0].mxu0 %v4783
    %v4851 = vpop.f32.mrb[0].mxu0
    %v4852 = vadd.f32 0.0, %v4851
    %v4853 = vpop.f32.mrb[0].mxu0
    %4854 = vdwg.mxu0
    %4856 = vrot.lane.b32.xlu0 %v4852, 32
    %v4857 = vpop.permute.xlu0 %4856
    %4860 = vrot.lane.b32.xlu0 %v4751, 64
    %v4861 = vpop.permute.xlu0 %4860
    %v4863 = vsel %vm78, %v4590, %v4857
    %v4864 = vsel %vm1376, %v4863, %v4861
    %v4865 = vsel %vm1378, %v4864, %v4381
    %4866 = vmatprep.subr.mxu0 0.0
    %4867 = vmatpush1.msra.mxu0 %v1348
    %4868 = vmatprep.subr.mxu0 0.0
    %4869 = vmatpush1.msra.mxu0 %v1349
    %4870 = vmatprep.subr.mxu0 0.0
    %4871 = vmatpush1.msra.mxu0 %v1350
    %4872 = vmatprep.subr.mxu0 0.0
    %4873 = vmatpush1.msra.mxu0 %v1351
    %4874 = vmatprep.subr.mxu0 0.0
    %4875 = vmatpush1.msra.mxu0 %v1352
    %4876 = vmatprep.subr.mxu0 0.0
    %4877 = vmatpush1.msra.mxu0 %v1353
    %4878 = vmatprep.subr.mxu0 0.0
    %4879 = vmatpush1.msra.mxu0 %v1354
    %4880 = vmatprep.subr.mxu0 0.0
    %4881 = vmatpush1.msra.mxu0 %v1355
    %4882 = vmatprep.subr.mxu0 0.0
    %4883 = vmatpush1.msra.mxu0 %v1356
    %4884 = vmatprep.subr.mxu0 0.0
    %4885 = vmatpush1.msra.mxu0 %v1357
    %4886 = vmatprep.subr.mxu0 0.0
    %4887 = vmatpush1.msra.mxu0 %v1358
    %4888 = vmatprep.subr.mxu0 0.0
    %4889 = vmatpush1.msra.mxu0 %v1359
    %4890 = vmatprep.subr.mxu0 0.0
    %4891 = vmatpush1.msra.mxu0 %v1360
    %4892 = vmatprep.subr.mxu0 0.0
    %4893 = vmatpush1.msra.mxu0 %v1361
    %4894 = vmatprep.subr.mxu0 0.0
    %4895 = vmatpush1.msra.mxu0 %v1362
    %4896 = vmatprep.subr.mxu0 0.0
    %4897 = vmatpush1.msra.mxu0 %v1363
    %4898 = vmatprep.subr.mxu0 0.0
    %4899 = vmatpush1.msra.mxu0 0.0
    %4900 = vmatprep.subr.mxu0 0.0
    %4901 = vmatpush1.msra.mxu0 0.0
    %4902 = vmatprep.subr.mxu0 0.0
    %4903 = vmatpush1.msra.mxu0 0.0
    %4904 = vmatprep.subr.mxu0 0.0
    %4905 = vmatpush1.msra.mxu0 0.0
    %4906 = vmatprep.subr.mxu0 0.0
    %4907 = vmatpush1.msra.mxu0 0.0
    %4908 = vmatprep.subr.mxu0 0.0
    %4909 = vmatpush1.msra.mxu0 0.0
    %4910 = vmatprep.subr.mxu0 0.0
    %4911 = vmatpush1.msra.mxu0 0.0
    %4912 = vmatprep.subr.mxu0 0.0
    %4913 = vmatpush1.msra.mxu0 0.0
    %4914 = vmatprep.subr.mxu0 0.0
    %4915 = vmatpush1.msra.mxu0 0.0
    %4916 = vmatprep.subr.mxu0 0.0
    %4917 = vmatpush1.msra.mxu0 0.0
    %4918 = vmatprep.subr.mxu0 0.0
    %4919 = vmatpush1.msra.mxu0 0.0
    %4920 = vmatprep.subr.mxu0 0.0
    %4921 = vmatpush1.msra.mxu0 0.0
    %4922 = vmatprep.subr.mxu0 0.0
    %4923 = vmatpush1.msra.mxu0 0.0
    %4924 = vmatprep.subr.mxu0 0.0
    %4925 = vmatpush1.msra.mxu0 0.0
    %4926 = vmatprep.subr.mxu0 0.0
    %4927 = vmatpush1.msra.mxu0 0.0
    %4928 = vmatprep.subr.mxu0 0.0
    %4929 = vmatpush1.msra.mxu0 0.0
    %4930 = vmatprep.mubr.f32.mxu0 0.0
    %4931 = vmatmul.mubr.f32.gmra.mrb[0].mxu0 %v4865
    %v4932 = vpop.f32.mrb[0].mxu0
    %v4933 = vadd.f32 %v1364, %v4932
    %v4934 = vpop.f32.mrb[0].mxu0
    %4935 = vdwg.mxu0
    %v4936 = vxor.u32 %v4933, 2147483648
    %v4937 = vmul.f32 %v4936, 1.442695
    %v4938 = vpow.pop %v4937
    %v4939 = vadd.f32 %v4938, 1.0
    %v4940 = vrcp.pop %v4939
    %v4941 = vmul.f32 1.0, %v4940
    %v4942 = vtanh.pop %v4933
    %v4943 = vmul.f32 %v4941, %v4375
    %4945 = vrot.lane.b32.xlu0 %v4942, 64
    %v4946 = vpop.permute.xlu0 %4945
    %v4948 = vmul.f32 %v4941, %v4946
    %4950 = vrot.lane.b32.xlu0 %v4948, 32
    %v4951 = vpop.permute.xlu0 %4950
    %v4953 = vadd.f32 %v4943, %v4951
    %v4954 = vtanh.pop %v4953
    %4956 = vrot.lane.b32.xlu0 %v4954, 64
    %v4957 = vpop.permute.xlu0 %4956
    %v4959 = vmul.f32 %v4941, %v4957
    %4961 = vrot.lane.b32.xlu0 %v4959, 32
    %v4962 = vpop.permute.xlu0 %4961
    %v4964 = vsel %vm78, %v4962, 0.0
    %4965 = vst [vmem:[#allocation3 + $0x7] sm:$0x1] %v4964
    %v4966 = vsel %vm78, %v4962, 0
    %4968 = vmatprep.subr.mxu0 0.0
    %4969 = vmatpush1.msra.mxu0 %v1332
    %4970 = vmatprep.subr.mxu0 0.0
    %4971 = vmatpush1.msra.mxu0 %v1333
    %4972 = vmatprep.subr.mxu0 0.0
    %4973 = vmatpush1.msra.mxu0 %v1334
    %4974 = vmatprep.subr.mxu0 0.0
    %4975 = vmatpush1.msra.mxu0 %v1335
    %4976 = vmatprep.subr.mxu0 0.0
    %4977 = vmatpush1.msra.mxu0 0.0
    %4978 = vmatprep.subr.mxu0 0.0
    %4979 = vmatpush1.msra.mxu0 0.0
    %4980 = vmatprep.subr.mxu0 0.0
    %4981 = vmatpush1.msra.mxu0 0.0
    %4982 = vmatprep.subr.mxu0 0.0
    %4983 = vmatpush1.msra.mxu0 0.0
    %4984 = vmatprep.subr.mxu0 0.0
    %4985 = vmatpush1.msra.mxu0 0.0
    %4986 = vmatprep.subr.mxu0 0.0
    %4987 = vmatpush1.msra.mxu0 0.0
    %4988 = vmatprep.subr.mxu0 0.0
    %4989 = vmatpush1.msra.mxu0 0.0
    %4990 = vmatprep.subr.mxu0 0.0
    %4991 = vmatpush1.msra.mxu0 0.0
    %4992 = vmatprep.subr.mxu0 0.0
    %4993 = vmatpush1.msra.mxu0 0.0
    %4994 = vmatprep.subr.mxu0 0.0
    %4995 = vmatpush1.msra.mxu0 0.0
    %4996 = vmatprep.subr.mxu0 0.0
    %4997 = vmatpush1.msra.mxu0 0.0
    %4998 = vmatprep.subr.mxu0 0.0
    %4999 = vmatpush1.msra.mxu0 0.0
    %5000 = vmatprep.subr.mxu0 0.0
    %5001 = vmatpush1.msra.mxu0 0.0
    %5002 = vmatprep.subr.mxu0 0.0
    %5003 = vmatpush1.msra.mxu0 0.0
    %5004 = vmatprep.subr.mxu0 0.0
    %5005 = vmatpush1.msra.mxu0 0.0
    %5006 = vmatprep.subr.mxu0 0.0
    %5007 = vmatpush1.msra.mxu0 0.0
    %5008 = vmatprep.subr.mxu0 0.0
    %5009 = vmatpush1.msra.mxu0 0.0
    %5010 = vmatprep.subr.mxu0 0.0
    %5011 = vmatpush1.msra.mxu0 0.0
    %5012 = vmatprep.subr.mxu0 0.0
    %5013 = vmatpush1.msra.mxu0 0.0
    %5014 = vmatprep.subr.mxu0 0.0
    %5015 = vmatpush1.msra.mxu0 0.0
    %5016 = vmatprep.subr.mxu0 0.0
    %5017 = vmatpush1.msra.mxu0 0.0
    %5018 = vmatprep.subr.mxu0 0.0
    %5019 = vmatpush1.msra.mxu0 0.0
    %5020 = vmatprep.subr.mxu0 0.0
    %5021 = vmatpush1.msra.mxu0 0.0
    %5022 = vmatprep.subr.mxu0 0.0
    %5023 = vmatpush1.msra.mxu0 0.0
    %5024 = vmatprep.subr.mxu0 0.0
    %5025 = vmatpush1.msra.mxu0 0.0
    %5026 = vmatprep.subr.mxu0 0.0
    %5027 = vmatpush1.msra.mxu0 0.0
    %5028 = vmatprep.subr.mxu0 0.0
    %5029 = vmatpush1.msra.mxu0 0.0
    %5030 = vmatprep.subr.mxu0 0.0
    %5031 = vmatpush1.msra.mxu0 0.0
    %5032 = vmatprep.mubr.f32.mxu0 0.0
    %5033 = vmatmul.mubr.f32.gmra.mrb[0].mxu0 %v4966
    %v5034 = vpop.f32.mrb[0].mxu0
    %v5035 = vadd.f32 %v1337, %v5034
    %v5036 = vpop.f32.mrb[0].mxu0
    %5037 = vdwg.mxu0
    %v5038 = vsel %vm1555, %v5035, -inf
    %5039 = vmax.xlane.f32.xlu0 %v5038
    %v5040 = vpop.xlane.xlu0 %5039
    %v5041 = vsub.f32 %v5035, %v5040
    %v5042 = vmul.f32 %v5041, 1.442695
    %v5043 = vpow.pop %v5042
    %v5044 = vsel %vm1555, %v5043, 0.0
    %5045 = vadd.xlane.f32.xlu0 %v5044
    %v5046 = vpop.xlane.xlu0 %5045
    %v5047 = vrcp.pop %v5046
    %v5048 = vmul.f32 %v5043, %v5047
    %v5049 = vmul.f32 %v5048, %v1338
    %vm5050 = vcmp.gt.f32.partialorder %v5049, 0.0
    %v5051 = vmax.f32 %v5049, 1e-30
    %v5052 = vlog2.pop %v5051
    %v5053 = vmul.f32 %v5052, 0.6931472
    %v5054 = vsel %vm5050, %v5053, -1e+30
    %v5055 = vrot.slane %v1369, 6
    %v5057 = vadd.f32 %v5054, %v5055
    %v5058 = vsel %vm1555, %v5057, -inf
    %5059 = vmax.xlane.f32.xlu0 %v5058
    %v5060 = vpop.xlane.xlu0 %5059
    %vm5061 = vcmp.ge.f32.partialorder %v5057, %v5060
    %v5062 = vsel %vm5061, %v1372, 24.0
    %v5063 = vsel %vm1555, %v5062, inf
    %5064 = vmin.xlane.f32.xlu0 %v5063
    %v5065 = vpop.xlane.xlu0 %5064
    %vm5066 = vcmp.ge.f32.partialorder %v5065, 16.0
    %v5067 = vsub.f32 %v5065, 16.0
    %vm5068 = vcmp.eq.f32.partialorder %v1372, %v5067
    %v5069 = vsel %vm5068, %v1367, 0.0
    %v5070 = vsel %vm1586, %v5069, 0.0
    %5071 = vadd.xlane.f32.xlu0 %v5070
    %v5072 = vpop.xlane.xlu0 %5071
    %v5073 = vsel %vm5066, %v5072, %v5065
    %vm5074 = vcmp.eq.f32.partialorder %v1372, %v5065
    %v5075 = vsel %vm5074, %v5049, 0.0
    %v5076 = vsel %vm1555, %v5075, 0.0
    %5077 = vadd.xlane.f32.xlu0 %v5076
    %v5078 = vpop.xlane.xlu0 %5077
    %vm5079 = vcmp.eq.f32.partialorder %v1372, %v5073
    %v5080 = vsel %vm5079, %v5049, 0.0
    %v5081 = vsel %vm1598, %v5080, 0.0
    %5082 = vadd.xlane.f32.xlu0 %v5081
    %v5083 = vpop.xlane.xlu0 %5082
    %v5084 = vadd.f32 %v5078, %v5083
    %v5085 = vsel %vm5066, %v5084, %v5078
    %v5086 = vsel %vm1604, %v5073, 0.0
    %v5087 = vsel %vm1606, %v5085, 0.0
    %v5088 = vadd.f32 %v5086, %v5087
    %v5089 = vsel %vm1609, %v5065, 0.0
    %v5090 = vadd.f32 %v5088, %v5089
    %v5091 = vsel %vm5066, 1, 0
    %v5092 = vcvt.s32.f32 %v5091
    %v5093 = vsel %vm1612, %v5092, 0.0
    %v5094 = vadd.f32 %v5090, %v5093
    %5095 = vst [vmem:[#allocation5 + $0x6] sm:$0x1] %v5094
    %v5096 = vsel %vm5079, 1, 0
    %v5097 = vcvt.s32.f32 %v5096
    %v5099 = vsel %vm1331, %v5097, 0
    %5101 = vmatprep.subr.mxu0 0.0
    %5102 = vmatpush1.msra.mxu0 %v1365
    %5103 = vmatprep.subr.mxu0 0.0
    %5104 = vmatpush1.msra.mxu0 %v1366
    %5105 = vmatprep.subr.mxu0 0.0
    %5106 = vmatpush1.msra.mxu0 0.0
    %5107 = vmatprep.subr.mxu0 0.0
    %5108 = vmatpush1.msra.mxu0 0.0
    %5109 = vmatprep.subr.mxu0 0.0
    %5110 = vmatpush1.msra.mxu0 0.0
    %5111 = vmatprep.subr.mxu0 0.0
    %5112 = vmatpush1.msra.mxu0 0.0
    %5113 = vmatprep.subr.mxu0 0.0
    %5114 = vmatpush1.msra.mxu0 0.0
    %5115 = vmatprep.subr.mxu0 0.0
    %5116 = vmatpush1.msra.mxu0 0.0
    %5117 = vmatprep.subr.mxu0 0.0
    %5118 = vmatpush1.msra.mxu0 0.0
    %5119 = vmatprep.subr.mxu0 0.0
    %5120 = vmatpush1.msra.mxu0 0.0
    %5121 = vmatprep.subr.mxu0 0.0
    %5122 = vmatpush1.msra.mxu0 0.0
    %5123 = vmatprep.subr.mxu0 0.0
    %5124 = vmatpush1.msra.mxu0 0.0
    %5125 = vmatprep.subr.mxu0 0.0
    %5126 = vmatpush1.msra.mxu0 0.0
    %5127 = vmatprep.subr.mxu0 0.0
    %5128 = vmatpush1.msra.mxu0 0.0
    %5129 = vmatprep.subr.mxu0 0.0
    %5130 = vmatpush1.msra.mxu0 0.0
    %5131 = vmatprep.subr.mxu0 0.0
    %5132 = vmatpush1.msra.mxu0 0.0
    %5133 = vmatprep.subr.mxu0 0.0
    %5134 = vmatpush1.msra.mxu0 0.0
    %5135 = vmatprep.subr.mxu0 0.0
    %5136 = vmatpush1.msra.mxu0 0.0
    %5137 = vmatprep.subr.mxu0 0.0
    %5138 = vmatpush1.msra.mxu0 0.0
    %5139 = vmatprep.subr.mxu0 0.0
    %5140 = vmatpush1.msra.mxu0 0.0
    %5141 = vmatprep.subr.mxu0 0.0
    %5142 = vmatpush1.msra.mxu0 0.0
    %5143 = vmatprep.subr.mxu0 0.0
    %5144 = vmatpush1.msra.mxu0 0.0
    %5145 = vmatprep.subr.mxu0 0.0
    %5146 = vmatpush1.msra.mxu0 0.0
    %5147 = vmatprep.subr.mxu0 0.0
    %5148 = vmatpush1.msra.mxu0 0.0
    %5149 = vmatprep.subr.mxu0 0.0
    %5150 = vmatpush1.msra.mxu0 0.0
    %5151 = vmatprep.subr.mxu0 0.0
    %5152 = vmatpush1.msra.mxu0 0.0
    %5153 = vmatprep.subr.mxu0 0.0
    %5154 = vmatpush1.msra.mxu0 0.0
    %5155 = vmatprep.subr.mxu0 0.0
    %5156 = vmatpush1.msra.mxu0 0.0
    %5157 = vmatprep.subr.mxu0 0.0
    %5158 = vmatpush1.msra.mxu0 0.0
    %5159 = vmatprep.subr.mxu0 0.0
    %5160 = vmatpush1.msra.mxu0 0.0
    %5161 = vmatprep.subr.mxu0 0.0
    %5162 = vmatpush1.msra.mxu0 0.0
    %5163 = vmatprep.subr.mxu0 0.0
    %5164 = vmatpush1.msra.mxu0 0.0
    %5165 = vmatprep.mubr.f32.mxu0 0.0
    %5166 = vmatmul.mubr.f32.gmra.mrb[0].mxu0 %v5099
    %v5167 = vpop.f32.mrb[0].mxu0
    %v5168 = vadd.f32 0.0, %v5167
    %v5169 = vpop.f32.mrb[0].mxu0
    %5170 = vdwg.mxu0
    %5171 = vrot.lane.b32.xlu0 %v4959, 64
    %v5172 = vpop.permute.xlu0 %5171
    %v5174 = vsel %vm78, %v5168, %v5172
    %v5176 = vsel %vm1376, %v5174, 0
    %5178 = vmatprep.subr.mxu0 0.0
    %5179 = vmatpush1.msra.mxu0 %v1339
    %5180 = vmatprep.subr.mxu0 0.0
    %5181 = vmatpush1.msra.mxu0 %v1340
    %5182 = vmatprep.subr.mxu0 0.0
    %5183 = vmatpush1.msra.mxu0 %v1341
    %5184 = vmatprep.subr.mxu0 0.0
    %5185 = vmatpush1.msra.mxu0 %v1342
    %5186 = vmatprep.subr.mxu0 0.0
    %5187 = vmatpush1.msra.mxu0 %v1343
    %5188 = vmatprep.subr.mxu0 0.0
    %5189 = vmatpush1.msra.mxu0 %v1344
    %5190 = vmatprep.subr.mxu0 0.0
    %5191 = vmatpush1.msra.mxu0 %v1345
    %5192 = vmatprep.subr.mxu0 0.0
    %5193 = vmatpush1.msra.mxu0 %v1346
    %5194 = vmatprep.subr.mxu0 0.0
    %5195 = vmatpush1.msra.mxu0 0.0
    %5196 = vmatprep.subr.mxu0 0.0
    %5197 = vmatpush1.msra.mxu0 0.0
    %5198 = vmatprep.subr.mxu0 0.0
    %5199 = vmatpush1.msra.mxu0 0.0
    %5200 = vmatprep.subr.mxu0 0.0
    %5201 = vmatpush1.msra.mxu0 0.0
    %5202 = vmatprep.subr.mxu0 0.0
    %5203 = vmatpush1.msra.mxu0 0.0
    %5204 = vmatprep.subr.mxu0 0.0
    %5205 = vmatpush1.msra.mxu0 0.0
    %5206 = vmatprep.subr.mxu0 0.0
    %5207 = vmatpush1.msra.mxu0 0.0
    %5208 = vmatprep.subr.mxu0 0.0
    %5209 = vmatpush1.msra.mxu0 0.0
    %5210 = vmatprep.subr.mxu0 0.0
    %5211 = vmatpush1.msra.mxu0 0.0
    %5212 = vmatprep.subr.mxu0 0.0
    %5213 = vmatpush1.msra.mxu0 0.0
    %5214 = vmatprep.subr.mxu0 0.0
    %5215 = vmatpush1.msra.mxu0 0.0
    %5216 = vmatprep.subr.mxu0 0.0
    %5217 = vmatpush1.msra.mxu0 0.0
    %5218 = vmatprep.subr.mxu0 0.0
    %5219 = vmatpush1.msra.mxu0 0.0
    %5220 = vmatprep.subr.mxu0 0.0
    %5221 = vmatpush1.msra.mxu0 0.0
    %5222 = vmatprep.subr.mxu0 0.0
    %5223 = vmatpush1.msra.mxu0 0.0
    %5224 = vmatprep.subr.mxu0 0.0
    %5225 = vmatpush1.msra.mxu0 0.0
    %5226 = vmatprep.subr.mxu0 0.0
    %5227 = vmatpush1.msra.mxu0 0.0
    %5228 = vmatprep.subr.mxu0 0.0
    %5229 = vmatpush1.msra.mxu0 0.0
    %5230 = vmatprep.subr.mxu0 0.0
    %5231 = vmatpush1.msra.mxu0 0.0
    %5232 = vmatprep.subr.mxu0 0.0
    %5233 = vmatpush1.msra.mxu0 0.0
    %5234 = vmatprep.subr.mxu0 0.0
    %5235 = vmatpush1.msra.mxu0 0.0
    %5236 = vmatprep.subr.mxu0 0.0
    %5237 = vmatpush1.msra.mxu0 0.0
    %5238 = vmatprep.subr.mxu0 0.0
    %5239 = vmatpush1.msra.mxu0 0.0
    %5240 = vmatprep.subr.mxu0 0.0
    %5241 = vmatpush1.msra.mxu0 0.0
    %5242 = vmatprep.mubr.f32.mxu0 0.0
    %5243 = vmatmul.mubr.f32.gmra.mrb[0].mxu0 %v5176
    %v5244 = vpop.f32.mrb[0].mxu0
    %v5245 = vadd.f32 %v1347, %v5244
    %v5246 = vpop.f32.mrb[0].mxu0
    %5247 = vdwg.mxu0
    %v5248 = vsel %vm1586, %v5245, -inf
    %5249 = vmax.xlane.f32.xlu0 %v5248
    %v5250 = vpop.xlane.xlu0 %5249
    %v5251 = vsub.f32 %v5245, %v5250
    %v5252 = vmul.f32 %v5251, 1.442695
    %v5253 = vpow.pop %v5252
    %v5254 = vsel %vm1586, %v5253, 0.0
    %5255 = vadd.xlane.f32.xlu0 %v5254
    %v5256 = vpop.xlane.xlu0 %5255
    %v5257 = vrcp.pop %v5256
    %v5258 = vmul.f32 %v5253, %v5257
    %v5260 = vsel %vm1781, %v5258, 0
    %5262 = vmatprep.subr.mxu0 0.0
    %5263 = vmatpush1.msra.mxu0 %v1187
    %5264 = vmatprep.subr.mxu0 0.0
    %5265 = vmatpush1.msra.mxu0 0.0
    %5266 = vmatprep.subr.mxu0 0.0
    %5267 = vmatpush1.msra.mxu0 0.0
    %5268 = vmatprep.subr.mxu0 0.0
    %5269 = vmatpush1.msra.mxu0 0.0
    %5270 = vmatprep.subr.mxu0 0.0
    %5271 = vmatpush1.msra.mxu0 0.0
    %5272 = vmatprep.subr.mxu0 0.0
    %5273 = vmatpush1.msra.mxu0 0.0
    %5274 = vmatprep.subr.mxu0 0.0
    %5275 = vmatpush1.msra.mxu0 0.0
    %5276 = vmatprep.subr.mxu0 0.0
    %5277 = vmatpush1.msra.mxu0 0.0
    %5278 = vmatprep.subr.mxu0 0.0
    %5279 = vmatpush1.msra.mxu0 0.0
    %5280 = vmatprep.subr.mxu0 0.0
    %5281 = vmatpush1.msra.mxu0 0.0
    %5282 = vmatprep.subr.mxu0 0.0
    %5283 = vmatpush1.msra.mxu0 0.0
    %5284 = vmatprep.subr.mxu0 0.0
    %5285 = vmatpush1.msra.mxu0 0.0
    %5286 = vmatprep.subr.mxu0 0.0
    %5287 = vmatpush1.msra.mxu0 0.0
    %5288 = vmatprep.subr.mxu0 0.0
    %5289 = vmatpush1.msra.mxu0 0.0
    %5290 = vmatprep.subr.mxu0 0.0
    %5291 = vmatpush1.msra.mxu0 0.0
    %5292 = vmatprep.subr.mxu0 0.0
    %5293 = vmatpush1.msra.mxu0 0.0
    %5294 = vmatprep.subr.mxu0 0.0
    %5295 = vmatpush1.msra.mxu0 0.0
    %5296 = vmatprep.subr.mxu0 0.0
    %5297 = vmatpush1.msra.mxu0 0.0
    %5298 = vmatprep.subr.mxu0 0.0
    %5299 = vmatpush1.msra.mxu0 0.0
    %5300 = vmatprep.subr.mxu0 0.0
    %5301 = vmatpush1.msra.mxu0 0.0
    %5302 = vmatprep.subr.mxu0 0.0
    %5303 = vmatpush1.msra.mxu0 0.0
    %5304 = vmatprep.subr.mxu0 0.0
    %5305 = vmatpush1.msra.mxu0 0.0
    %5306 = vmatprep.subr.mxu0 0.0
    %5307 = vmatpush1.msra.mxu0 0.0
    %5308 = vmatprep.subr.mxu0 0.0
    %5309 = vmatpush1.msra.mxu0 0.0
    %5310 = vmatprep.subr.mxu0 0.0
    %5311 = vmatpush1.msra.mxu0 0.0
    %5312 = vmatprep.subr.mxu0 0.0
    %5313 = vmatpush1.msra.mxu0 0.0
    %5314 = vmatprep.subr.mxu0 0.0
    %5315 = vmatpush1.msra.mxu0 0.0
    %5316 = vmatprep.subr.mxu0 0.0
    %5317 = vmatpush1.msra.mxu0 0.0
    %5318 = vmatprep.subr.mxu0 0.0
    %5319 = vmatpush1.msra.mxu0 0.0
    %5320 = vmatprep.subr.mxu0 0.0
    %5321 = vmatpush1.msra.mxu0 0.0
    %5322 = vmatprep.subr.mxu0 0.0
    %5323 = vmatpush1.msra.mxu0 0.0
    %5324 = vmatprep.subr.mxu0 0.0
    %5325 = vmatpush1.msra.mxu0 0.0
    %5326 = vmatprep.mubr.f32.mxu0 0.0
    %5327 = vmatmul.mubr.f32.gmra.mrb[0].mxu0 %v5260
    %v5328 = vpop.f32.mrb[0].mxu0
    %v5329 = vadd.f32 0.0, %v5328
    %v5330 = vpop.f32.mrb[0].mxu0
    %5331 = vdwg.mxu0
    %vm5332 = vcmp.ne.f32.partialorder %v1367, %v5073
    %v5333 = vsel %vm5332, 1, 0
    %v5334 = vcvt.s32.f32 %v5333
    %v5335 = vmul.f32 %v5048, %v1864
    %v5337 = vlaneseq
    %v5338 = vshrl.u32 %v5337, 7
    %v5339 = vsub.s32 0, %v5338
    %v5340 = vrot.slane %v5334, %v5339
    %5341 = vrot.lane.b32.xlu0 %v5340, 16
    %v5342 = vpop.permute.xlu0 %5341
    %v5344 = vmul.f32 %v5335, %v5342
    %5346 = vrot.lane.b32.xlu0 %v5344, 112
    %v5347 = vpop.permute.xlu0 %5346
    %v5349 = vsel %vm1586, %v5347, 0.0
    %5350 = vadd.xlane.f32.xlu0 %v5349
    %v5351 = vpop.xlane.xlu0 %5350
    %vm5352 = vcmp.gt.f32.partialorder %v5351, 0.0
    %v5353 = vmax.f32 %v5351, 1e-30
    %v5354 = vrcp.pop %v5353
    %v5355 = vmul.f32 1.0, %v5354
    %v5356 = vsel %vm5352, %v5355, 1.0
    %v5357 = vmul.f32 %v5344, %v5356
    %5359 = vrot.lane.b32.xlu0 %v5357, 112
    %v5360 = vpop.permute.xlu0 %5359
    %v5361 = vsel %vm1781, %v5360, 0
    %5363 = vmatprep.subr.mxu0 0.0
    %5364 = vmatpush1.msra.mxu0 %v1187
    %5365 = vmatprep.subr.mxu0 0.0
    %5366 = vmatpush1.msra.mxu0 0.0
    %5367 = vmatprep.subr.mxu0 0.0
    %5368 = vmatpush1.msra.mxu0 0.0
    %5369 = vmatprep.subr.mxu0 0.0
    %5370 = vmatpush1.msra.mxu0 0.0
    %5371 = vmatprep.subr.mxu0 0.0
    %5372 = vmatpush1.msra.mxu0 0.0
    %5373 = vmatprep.subr.mxu0 0.0
    %5374 = vmatpush1.msra.mxu0 0.0
    %5375 = vmatprep.subr.mxu0 0.0
    %5376 = vmatpush1.msra.mxu0 0.0
    %5377 = vmatprep.subr.mxu0 0.0
    %5378 = vmatpush1.msra.mxu0 0.0
    %5379 = vmatprep.subr.mxu0 0.0
    %5380 = vmatpush1.msra.mxu0 0.0
    %5381 = vmatprep.subr.mxu0 0.0
    %5382 = vmatpush1.msra.mxu0 0.0
    %5383 = vmatprep.subr.mxu0 0.0
    %5384 = vmatpush1.msra.mxu0 0.0
    %5385 = vmatprep.subr.mxu0 0.0
    %5386 = vmatpush1.msra.mxu0 0.0
    %5387 = vmatprep.subr.mxu0 0.0
    %5388 = vmatpush1.msra.mxu0 0.0
    %5389 = vmatprep.subr.mxu0 0.0
    %5390 = vmatpush1.msra.mxu0 0.0
    %5391 = vmatprep.subr.mxu0 0.0
    %5392 = vmatpush1.msra.mxu0 0.0
    %5393 = vmatprep.subr.mxu0 0.0
    %5394 = vmatpush1.msra.mxu0 0.0
    %5395 = vmatprep.subr.mxu0 0.0
    %5396 = vmatpush1.msra.mxu0 0.0
    %5397 = vmatprep.subr.mxu0 0.0
    %5398 = vmatpush1.msra.mxu0 0.0
    %5399 = vmatprep.subr.mxu0 0.0
    %5400 = vmatpush1.msra.mxu0 0.0
    %5401 = vmatprep.subr.mxu0 0.0
    %5402 = vmatpush1.msra.mxu0 0.0
    %5403 = vmatprep.subr.mxu0 0.0
    %5404 = vmatpush1.msra.mxu0 0.0
    %5405 = vmatprep.subr.mxu0 0.0
    %5406 = vmatpush1.msra.mxu0 0.0
    %5407 = vmatprep.subr.mxu0 0.0
    %5408 = vmatpush1.msra.mxu0 0.0
    %5409 = vmatprep.subr.mxu0 0.0
    %5410 = vmatpush1.msra.mxu0 0.0
    %5411 = vmatprep.subr.mxu0 0.0
    %5412 = vmatpush1.msra.mxu0 0.0
    %5413 = vmatprep.subr.mxu0 0.0
    %5414 = vmatpush1.msra.mxu0 0.0
    %5415 = vmatprep.subr.mxu0 0.0
    %5416 = vmatpush1.msra.mxu0 0.0
    %5417 = vmatprep.subr.mxu0 0.0
    %5418 = vmatpush1.msra.mxu0 0.0
    %5419 = vmatprep.subr.mxu0 0.0
    %5420 = vmatpush1.msra.mxu0 0.0
    %5421 = vmatprep.subr.mxu0 0.0
    %5422 = vmatpush1.msra.mxu0 0.0
    %5423 = vmatprep.subr.mxu0 0.0
    %5424 = vmatpush1.msra.mxu0 0.0
    %5425 = vmatprep.subr.mxu0 0.0
    %5426 = vmatpush1.msra.mxu0 0.0
    %5427 = vmatprep.mubr.f32.mxu0 0.0
    %5428 = vmatmul.mubr.f32.gmra.mrb[0].mxu0 %v5361
    %v5429 = vpop.f32.mrb[0].mxu0
    %v5430 = vadd.f32 0.0, %v5429
    %v5431 = vpop.f32.mrb[0].mxu0
    %5432 = vdwg.mxu0
    %5434 = vrot.lane.b32.xlu0 %v5430, 32
    %v5435 = vpop.permute.xlu0 %5434
    %5438 = vrot.lane.b32.xlu0 %v5329, 64
    %v5439 = vpop.permute.xlu0 %5438
    %v5441 = vsel %vm78, %v5168, %v5435
    %v5442 = vsel %vm1376, %v5441, %v5439
    %v5443 = vsel %vm1378, %v5442, %v4959
    %5444 = vmatprep.subr.mxu0 0.0
    %5445 = vmatpush1.msra.mxu0 %v1348
    %5446 = vmatprep.subr.mxu0 0.0
    %5447 = vmatpush1.msra.mxu0 %v1349
    %5448 = vmatprep.subr.mxu0 0.0
    %5449 = vmatpush1.msra.mxu0 %v1350
    %5450 = vmatprep.subr.mxu0 0.0
    %5451 = vmatpush1.msra.mxu0 %v1351
    %5452 = vmatprep.subr.mxu0 0.0
    %5453 = vmatpush1.msra.mxu0 %v1352
    %5454 = vmatprep.subr.mxu0 0.0
    %5455 = vmatpush1.msra.mxu0 %v1353
    %5456 = vmatprep.subr.mxu0 0.0
    %5457 = vmatpush1.msra.mxu0 %v1354
    %5458 = vmatprep.subr.mxu0 0.0
    %5459 = vmatpush1.msra.mxu0 %v1355
    %5460 = vmatprep.subr.mxu0 0.0
    %5461 = vmatpush1.msra.mxu0 %v1356
    %5462 = vmatprep.subr.mxu0 0.0
    %5463 = vmatpush1.msra.mxu0 %v1357
    %5464 = vmatprep.subr.mxu0 0.0
    %5465 = vmatpush1.msra.mxu0 %v1358
    %5466 = vmatprep.subr.mxu0 0.0
    %5467 = vmatpush1.msra.mxu0 %v1359
    %5468 = vmatprep.subr.mxu0 0.0
    %5469 = vmatpush1.msra.mxu0 %v1360
    %5470 = vmatprep.subr.mxu0 0.0
    %5471 = vmatpush1.msra.mxu0 %v1361
    %5472 = vmatprep.subr.mxu0 0.0
    %5473 = vmatpush1.msra.mxu0 %v1362
    %5474 = vmatprep.subr.mxu0 0.0
    %5475 = vmatpush1.msra.mxu0 %v1363
    %5476 = vmatprep.subr.mxu0 0.0
    %5477 = vmatpush1.msra.mxu0 0.0
    %5478 = vmatprep.subr.mxu0 0.0
    %5479 = vmatpush1.msra.mxu0 0.0
    %5480 = vmatprep.subr.mxu0 0.0
    %5481 = vmatpush1.msra.mxu0 0.0
    %5482 = vmatprep.subr.mxu0 0.0
    %5483 = vmatpush1.msra.mxu0 0.0
    %5484 = vmatprep.subr.mxu0 0.0
    %5485 = vmatpush1.msra.mxu0 0.0
    %5486 = vmatprep.subr.mxu0 0.0
    %5487 = vmatpush1.msra.mxu0 0.0
    %5488 = vmatprep.subr.mxu0 0.0
    %5489 = vmatpush1.msra.mxu0 0.0
    %5490 = vmatprep.subr.mxu0 0.0
    %5491 = vmatpush1.msra.mxu0 0.0
    %5492 = vmatprep.subr.mxu0 0.0
    %5493 = vmatpush1.msra.mxu0 0.0
    %5494 = vmatprep.subr.mxu0 0.0
    %5495 = vmatpush1.msra.mxu0 0.0
    %5496 = vmatprep.subr.mxu0 0.0
    %5497 = vmatpush1.msra.mxu0 0.0
    %5498 = vmatprep.subr.mxu0 0.0
    %5499 = vmatpush1.msra.mxu0 0.0
    %5500 = vmatprep.subr.mxu0 0.0
    %5501 = vmatpush1.msra.mxu0 0.0
    %5502 = vmatprep.subr.mxu0 0.0
    %5503 = vmatpush1.msra.mxu0 0.0
    %5504 = vmatprep.subr.mxu0 0.0
    %5505 = vmatpush1.msra.mxu0 0.0
    %5506 = vmatprep.subr.mxu0 0.0
    %5507 = vmatpush1.msra.mxu0 0.0
    %5508 = vmatprep.mubr.f32.mxu0 0.0
    %5509 = vmatmul.mubr.f32.gmra.mrb[0].mxu0 %v5443
    %v5510 = vpop.f32.mrb[0].mxu0
    %v5511 = vadd.f32 %v1364, %v5510
    %v5512 = vpop.f32.mrb[0].mxu0
    %5513 = vdwg.mxu0
    %v5514 = vxor.u32 %v5511, 2147483648
    %v5515 = vmul.f32 %v5514, 1.442695
    %v5516 = vpow.pop %v5515
    %v5517 = vadd.f32 %v5516, 1.0
    %v5518 = vrcp.pop %v5517
    %v5519 = vmul.f32 1.0, %v5518
    %v5520 = vtanh.pop %v5511
    %v5521 = vmul.f32 %v5519, %v4953
    %5523 = vrot.lane.b32.xlu0 %v5520, 64
    %v5524 = vpop.permute.xlu0 %5523
    %v5526 = vmul.f32 %v5519, %v5524
    %5528 = vrot.lane.b32.xlu0 %v5526, 32
    %v5529 = vpop.permute.xlu0 %5528
    %v5531 = vadd.f32 %v5521, %v5529
    %v5532 = vtanh.pop %v5531
    %5534 = vrot.lane.b32.xlu0 %v5532, 64
    %v5535 = vpop.permute.xlu0 %5534
    %v5537 = vmul.f32 %v5519, %v5535
    %5539 = vrot.lane.b32.xlu0 %v5537, 32
    %v5540 = vpop.permute.xlu0 %5539
    %v5542 = vsel %vm78, %v5540, 0.0
    %5543 = vst [vmem:[#allocation3 + $0x8] sm:$0x1] %v5542
    %v5544 = vsel %vm78, %v5540, 0
    %5546 = vmatprep.subr.mxu0 0.0
    %5547 = vmatpush1.msra.mxu0 %v1332
    %5548 = vmatprep.subr.mxu0 0.0
    %5549 = vmatpush1.msra.mxu0 %v1333
    %5550 = vmatprep.subr.mxu0 0.0
    %5551 = vmatpush1.msra.mxu0 %v1334
    %5552 = vmatprep.subr.mxu0 0.0
    %5553 = vmatpush1.msra.mxu0 %v1335
    %5554 = vmatprep.subr.mxu0 0.0
    %5555 = vmatpush1.msra.mxu0 0.0
    %5556 = vmatprep.subr.mxu0 0.0
    %5557 = vmatpush1.msra.mxu0 0.0
    %5558 = vmatprep.subr.mxu0 0.0
    %5559 = vmatpush1.msra.mxu0 0.0
    %5560 = vmatprep.subr.mxu0 0.0
    %5561 = vmatpush1.msra.mxu0 0.0
    %5562 = vmatprep.subr.mxu0 0.0
    %5563 = vmatpush1.msra.mxu0 0.0
    %5564 = vmatprep.subr.mxu0 0.0
    %5565 = vmatpush1.msra.mxu0 0.0
    %5566 = vmatprep.subr.mxu0 0.0
    %5567 = vmatpush1.msra.mxu0 0.0
    %5568 = vmatprep.subr.mxu0 0.0
    %5569 = vmatpush1.msra.mxu0 0.0
    %5570 = vmatprep.subr.mxu0 0.0
    %5571 = vmatpush1.msra.mxu0 0.0
    %5572 = vmatprep.subr.mxu0 0.0
    %5573 = vmatpush1.msra.mxu0 0.0
    %5574 = vmatprep.subr.mxu0 0.0
    %5575 = vmatpush1.msra.mxu0 0.0
    %5576 = vmatprep.subr.mxu0 0.0
    %5577 = vmatpush1.msra.mxu0 0.0
    %5578 = vmatprep.subr.mxu0 0.0
    %5579 = vmatpush1.msra.mxu0 0.0
    %5580 = vmatprep.subr.mxu0 0.0
    %5581 = vmatpush1.msra.mxu0 0.0
    %5582 = vmatprep.subr.mxu0 0.0
    %5583 = vmatpush1.msra.mxu0 0.0
    %5584 = vmatprep.subr.mxu0 0.0
    %5585 = vmatpush1.msra.mxu0 0.0
    %5586 = vmatprep.subr.mxu0 0.0
    %5587 = vmatpush1.msra.mxu0 0.0
    %5588 = vmatprep.subr.mxu0 0.0
    %5589 = vmatpush1.msra.mxu0 0.0
    %5590 = vmatprep.subr.mxu0 0.0
    %5591 = vmatpush1.msra.mxu0 0.0
    %5592 = vmatprep.subr.mxu0 0.0
    %5593 = vmatpush1.msra.mxu0 0.0
    %5594 = vmatprep.subr.mxu0 0.0
    %5595 = vmatpush1.msra.mxu0 0.0
    %5596 = vmatprep.subr.mxu0 0.0
    %5597 = vmatpush1.msra.mxu0 0.0
    %5598 = vmatprep.subr.mxu0 0.0
    %5599 = vmatpush1.msra.mxu0 0.0
    %5600 = vmatprep.subr.mxu0 0.0
    %5601 = vmatpush1.msra.mxu0 0.0
    %5602 = vmatprep.subr.mxu0 0.0
    %5603 = vmatpush1.msra.mxu0 0.0
    %5604 = vmatprep.subr.mxu0 0.0
    %5605 = vmatpush1.msra.mxu0 0.0
    %5606 = vmatprep.subr.mxu0 0.0
    %5607 = vmatpush1.msra.mxu0 0.0
    %5608 = vmatprep.subr.mxu0 0.0
    %5609 = vmatpush1.msra.mxu0 0.0
    %5610 = vmatprep.mubr.f32.mxu0 0.0
    %5611 = vmatmul.mubr.f32.gmra.mrb[0].mxu0 %v5544
    %v5612 = vpop.f32.mrb[0].mxu0
    %v5613 = vadd.f32 %v1337, %v5612
    %v5614 = vpop.f32.mrb[0].mxu0
    %5615 = vdwg.mxu0
    %v5616 = vsel %vm1555, %v5613, -inf
    %5617 = vmax.xlane.f32.xlu0 %v5616
    %v5618 = vpop.xlane.xlu0 %5617
    %v5619 = vsub.f32 %v5613, %v5618
    %v5620 = vmul.f32 %v5619, 1.442695
    %v5621 = vpow.pop %v5620
    %v5622 = vsel %vm1555, %v5621, 0.0
    %5623 = vadd.xlane.f32.xlu0 %v5622
    %v5624 = vpop.xlane.xlu0 %5623
    %v5625 = vrcp.pop %v5624
    %v5626 = vmul.f32 %v5621, %v5625
    %v5627 = vmul.f32 %v5626, %v1338
    %vm5628 = vcmp.gt.f32.partialorder %v5627, 0.0
    %v5629 = vmax.f32 %v5627, 1e-30
    %v5630 = vlog2.pop %v5629
    %v5631 = vmul.f32 %v5630, 0.6931472
    %v5632 = vsel %vm5628, %v5631, -1e+30
    %v5633 = vrot.slane %v1369, 7
    %v5635 = vadd.f32 %v5632, %v5633
    %v5636 = vsel %vm1555, %v5635, -inf
    %5637 = vmax.xlane.f32.xlu0 %v5636
    %v5638 = vpop.xlane.xlu0 %5637
    %vm5639 = vcmp.ge.f32.partialorder %v5635, %v5638
    %v5640 = vsel %vm5639, %v1372, 24.0
    %v5641 = vsel %vm1555, %v5640, inf
    %5642 = vmin.xlane.f32.xlu0 %v5641
    %v5643 = vpop.xlane.xlu0 %5642
    %vm5644 = vcmp.ge.f32.partialorder %v5643, 16.0
    %v5645 = vsub.f32 %v5643, 16.0
    %vm5646 = vcmp.eq.f32.partialorder %v1372, %v5645
    %v5647 = vsel %vm5646, %v1367, 0.0
    %v5648 = vsel %vm1586, %v5647, 0.0
    %5649 = vadd.xlane.f32.xlu0 %v5648
    %v5650 = vpop.xlane.xlu0 %5649
    %v5651 = vsel %vm5644, %v5650, %v5643
    %vm5652 = vcmp.eq.f32.partialorder %v1372, %v5643
    %v5653 = vsel %vm5652, %v5627, 0.0
    %v5654 = vsel %vm1555, %v5653, 0.0
    %5655 = vadd.xlane.f32.xlu0 %v5654
    %v5656 = vpop.xlane.xlu0 %5655
    %vm5657 = vcmp.eq.f32.partialorder %v1372, %v5651
    %v5658 = vsel %vm5657, %v5627, 0.0
    %v5659 = vsel %vm1598, %v5658, 0.0
    %5660 = vadd.xlane.f32.xlu0 %v5659
    %v5661 = vpop.xlane.xlu0 %5660
    %v5662 = vadd.f32 %v5656, %v5661
    %v5663 = vsel %vm5644, %v5662, %v5656
    %v5664 = vsel %vm1604, %v5651, 0.0
    %v5665 = vsel %vm1606, %v5663, 0.0
    %v5666 = vadd.f32 %v5664, %v5665
    %v5667 = vsel %vm1609, %v5643, 0.0
    %v5668 = vadd.f32 %v5666, %v5667
    %v5669 = vsel %vm5644, 1, 0
    %v5670 = vcvt.s32.f32 %v5669
    %v5671 = vsel %vm1612, %v5670, 0.0
    %v5672 = vadd.f32 %v5668, %v5671
    %5673 = vst [vmem:[#allocation5 + $0x7] sm:$0x1] %v5672
    // Predicated region
    $region74: #{_actor_copy_device.1} parent=1 // pred_check
      _
    $region75: #{_actor_copy_device.1} parent=1 // pred_check_branch
      %5675 = sbr.rel (0) target = $region77
    $region76: #{_actor_copy_device.1} parent=1 // pred_region
      %s5677 = ssub.s32 256, 256
      %5678 = vsyncadd [#allocation4], %s5677
      %s5679 = sshll.u32 [#allocation3], 4
      %s5680 = int_to_ptr.vmem [resolvable:$true] %s5679
      %5685 = dma.vmem_to_hbm [thread:$0]  %s5680, 256, %s18, [#allocation4], 128, 128, 8
    $region77: #{_actor_copy_device.1} parent=1 // pred_fallthru
      _
    // Predicated region
    $region78: #{_actor_copy_device.1} parent=1 // pred_check
      _
    $region79: #{_actor_copy_device.1} parent=1 // pred_check_branch
      %5687 = sbr.rel (0) target = $region81
    $region80: #{_actor_copy_device.1} parent=1 // pred_region
      %s5689 = ssub.s32 128, 128
      %5690 = vsyncadd [#allocation6], %s5689
      %s5692 = sshll.u32 [#allocation5], 4
      %s5693 = int_to_ptr.vmem [resolvable:$true] %s5692
      %5695 = dma.vmem_to_hbm [thread:$0]  %s5693, 128, %s19, [#allocation6]
    $region81: #{_actor_copy_device.1} parent=1 // pred_fallthru
      _
    // Predicated region
    $region82: #{_actor_copy_device.1} parent=1 // pred_check
      _
    $region83: #{_actor_copy_device.1} parent=1 // pred_check_branch
      %5697 = sbr.rel (0) target = $region85
    $region84: #{_actor_copy_device.1} parent=1 // pred_region
      %s5699 = ssub.s32 128, 128
      %5700 = vsyncadd [#allocation6], %s5699
      %s5702 = sshll.u32 [#allocation7], 4
      %s5703 = int_to_ptr.vmem [resolvable:$true] %s5702
      %5705 = dma.vmem_to_hbm [thread:$0]  %s5703, 128, %s20, [#allocation6]
    $region85: #{_actor_copy_device.1} parent=1 // pred_fallthru
      _
    // Predicated region
    $region86: #{_actor_copy_device.1} parent=1 // pred_check
      _
    $region87: #{_actor_copy_device.1} parent=1 // pred_check_branch
      %5707 = sbr.rel (0) target = $region89
    $region88: #{_actor_copy_device.1} parent=1 // pred_region
      %5708 = dma.done [#allocation4], 256
    $region89: #{_actor_copy_device.1} parent=1 // pred_fallthru
      _
    // Predicated region
    $region90: #{_actor_copy_device.1} parent=1 // pred_check
      _
    $region91: #{_actor_copy_device.1} parent=1 // pred_check_branch
      %5710 = sbr.rel (0) target = $region93
    $region92: #{_actor_copy_device.1} parent=1 // pred_region
      %5711 = dma.done [#allocation6], 128
    $region93: #{_actor_copy_device.1} parent=1 // pred_fallthru
      _
    // Predicated region
    $region94: #{_actor_copy_device.1} parent=1 // pred_check
      _
    $region95: #{_actor_copy_device.1} parent=1 // pred_check_branch
      %5713 = sbr.rel (0) target = $region97
    $region96: #{_actor_copy_device.1} parent=1 // pred_region
      %5714 = dma.done [#allocation6], 128
    $region97: #{_actor_copy_device.1} parent=1 // pred_fallthru
      _
    %5715 = vsyncpa [#allocation4], 1
    %5716 = vsyncpa [#allocation6], 1

</llo_original>
